<compile_context>
chip_gen: v7x
topology: tpu7x:2x2x1
jax: 0.10.0
libtpu: 0.0.40
codegen_flags: <defaults>
</compile_context>

<pallas_src>
import functools

import numpy as np
import jax
import jax.numpy as jnp
from jax.experimental import pallas as pl
from jax.experimental.pallas import tpu as pltpu

TB = 256              # batch tile (lane-width multiple; fills 256-wide MXU)
IMG_ROWS = 28
IMG_COLS_PAD = 32     # 28 image cols zero-padded to 32
FLAT_PIX = IMG_ROWS * IMG_COLS_PAD          # 896 flat pixels per image
ROW_BLK = 4 * IMG_COLS_PAD                  # 128 flat pixels = 4 image rows
POOL_ROWS = 13
POOL_COLS = 13
N_CH = 8
BLK_M = 128          # per-pool-offset output rows: 13*8=104 used, padded to 128


# --------------- fused kernel: conv(MXU)+pool+relu+fc1+relu+fc2 -----------------
def fused_mnist_kernel(x_ref, wc_ref, cb_ref, w1_ref, b1_ref, w2_ref, b2_ref,
                       o_ref):
    # x_ref : (896, TB)     bf16  raw image, batch on lanes, pixel = row*32 + col
    # wc_ref: (512, 128)    bf16  conv-as-matmul weights, rows = uv*128 + q*8 + c
    # cb_ref: (128, 1)      f32   conv bias broadcast to rows q*8 + c
    # w1_ref: (13, 16, 128) bf16  fc1 weights regrouped per pooled row p
    # b1_ref: (16, 1)       f32
    # w2_ref: (10, 16)      bf16
    # b2_ref: (10, 1)       f32
    # o_ref : (10, TB)      f32   logits, batch on lanes
    tb = x_ref.shape[-1]
    wc = wc_ref[...]                      # hoisted: loaded once per grid step
    cb = cb_ref[...]
    h1 = jnp.zeros((16, tb), jnp.float32)

    for p in range(POOL_ROWS):            # 13 pooled rows, unrolled
        # the 4 image rows (2p .. 2p+3) feeding pooled row p, flat & tile-aligned
        rhs = x_ref[pl.ds(64 * p, ROW_BLK), :]                       # (128, TB)
        # conv for all (pool-offset, channel, pooled-col): one MXU matmul
        conv = jnp.dot(wc, rhs, preferred_element_type=jnp.float32)  # (512, TB)
        # 2x2 max-pool over the 4 uv row-groups, then bias + ReLU (VPU only)
        m = jnp.maximum(jnp.maximum(conv[0:128], conv[128:256]),
                        jnp.maximum(conv[256:384], conv[384:512]))
        pooled = jnp.maximum(m + cb, 0.0)                            # (128, TB)
        # partial fc1 for pooled row p: features stay contractable -> no relayout
        h1 = h1 + jnp.dot(w1_ref[p], pooled.astype(jnp.bfloat16),
                          preferred_element_type=jnp.float32)

    h1 = jnp.maximum(h1 + b1_ref[...], 0.0)                          # fc1 bias+ReLU
    o_ref[...] = jnp.dot(w2_ref[...], h1.astype(jnp.bfloat16),
                         preferred_element_type=jnp.float32) + b2_ref[...]


# --------------- wrapper-side weight repacking (pure layout, tiny) --------------
def _build_conv_matrix(conv_w):
    # Wc[uv*128 + q*8 + c, (u+di)*32 + 2q + v + dj] = conv_w[c, 0, di, dj]
    rows, cols, wi = [], [], []
    for uv in range(4):
        u, v = uv // 2, uv % 2
        for q in range(POOL_COLS):
            for c in range(N_CH):
                for di in range(3):
                    for dj in range(3):
                        rows.append(uv * BLK_M + q * 8 + c)
                        cols.append((u + di) * IMG_COLS_PAD + 2 * q + v + dj)
                        wi.append(c * 9 + di * 3 + dj)
    rows, cols, wi = np.asarray(rows), np.asarray(cols), np.asarray(wi)
    vals = conv_w.reshape(N_CH * 9)[wi]
    return jnp.zeros((4 * BLK_M, ROW_BLK), jnp.float32).at[rows, cols].set(vals)


def _regroup_fc1(fc1_w):
    # fc1_w[j, c*169 + p*13 + q]  ->  w1[p, j, q*8 + c]   (last dim padded to 128)
    w = fc1_w.reshape(16, N_CH, POOL_ROWS, POOL_COLS)            # [j, c, p, q]
    w = jnp.transpose(w, (2, 0, 3, 1)).reshape(POOL_ROWS, 16, POOL_COLS * N_CH)
    return jnp.pad(w, ((0, 0), (0, 0), (0, BLK_M - POOL_COLS * N_CH)))


# --------------- JAX glue -------------------------------------------------------
@functools.partial(jax.jit, static_argnames=("tb",))
def mnist_forward(x, params, tb=TB):
    conv_w, conv_b, fc1_w, fc1_b, fc2_w, fc2_b = params
    B = x.shape[0]
    pad_b = ((B + tb - 1) // tb) * tb

    # Raw image, batch-last, cols padded 28->32, flattened: (896, pad_b) bf16.
    xi = jnp.pad(x[:, 0], ((0, pad_b - B), (0, 0), (0, IMG_COLS_PAD - 28)))
    x_flat = xi.reshape(pad_b, FLAT_PIX).T.astype(jnp.bfloat16)

    wc = _build_conv_matrix(conv_w).astype(jnp.bfloat16)             # (512, 128)
    cb = jnp.pad(jnp.tile(conv_b, POOL_COLS), (0, BLK_M - POOL_COLS * N_CH))
    cb = cb.reshape(BLK_M, 1).astype(jnp.float32)                    # (128, 1)
    w1 = _regroup_fc1(fc1_w).astype(jnp.bfloat16)                    # (13, 16, 128)
    b1 = fc1_b.reshape(16, 1).astype(jnp.float32)
    w2 = fc2_w.astype(jnp.bfloat16)                                  # (10, 16)
    b2 = fc2_b.reshape(10, 1).astype(jnp.float32)

    out_t = pl.pallas_call(
        fused_mnist_kernel,
        out_shape=jax.ShapeDtypeStruct((10, pad_b), jnp.float32),
        grid=(pad_b // tb,),
        in_specs=[
            pl.BlockSpec((FLAT_PIX, tb), lambda i: (0, i)),          # image slab
            pl.BlockSpec(memory_space=pltpu.MemorySpace.VMEM),       # conv matrix
            pl.BlockSpec(memory_space=pltpu.MemorySpace.VMEM),       # conv bias
            pl.BlockSpec(memory_space=pltpu.MemorySpace.VMEM),       # fc1 weights
            pl.BlockSpec(memory_space=pltpu.MemorySpace.VMEM),       # fc1 bias
            pl.BlockSpec(memory_space=pltpu.MemorySpace.VMEM),       # fc2 weights
            pl.BlockSpec(memory_space=pltpu.MemorySpace.VMEM),       # fc2 bias
        ],
        out_specs=pl.BlockSpec((10, tb), lambda i: (0, i)),
        compiler_params=pltpu.CompilerParams(
            dimension_semantics=("parallel",)),
    )(x_flat, wc, cb, w1, b1, w2, b2)

    return out_t[:, :B].T                                            # [B, 10]


# --------------- Pure-JAX reference (correctness check) -------------------------
def torch_like_reference(x, params):
    conv_w, conv_b, fc1_w, fc1_b, fc2_w, fc2_b = params
    y = jax.lax.conv_general_dilated(
        x, conv_w, window_strides=(1, 1), padding="VALID",
        dimension_numbers=("NCHW", "OIHW", "NCHW"))
    y = jax.nn.relu(y + conv_b.reshape(1, 8, 1, 1))
    y = jax.lax.reduce_window(y, -jnp.inf, jax.lax.max,
                              (1, 1, 2, 2), (1, 1, 2, 2), "VALID")
    y = y.reshape(x.shape[0], -1)
    y = jax.nn.relu(y @ fc1_w.T + fc1_b)
    return y @ fc2_w.T + fc2_b


if __name__ == "__main__":
    key = jax.random.PRNGKey(0)
    kx, kp = jax.random.split(key)
    x = jax.random.normal(kx, (2, 1, 28, 28), dtype=jnp.float32)

    # Deterministic PyTorch-style uniform(-1/sqrt(fan_in), 1/sqrt(fan_in)) init.
    ks = jax.random.split(kp, 6)

    def uinit(k, shape, fan_in):
        b = 1.0 / float(fan_in) ** 0.5
        return jax.random.uniform(k, shape, jnp.float32, -b, b)

    params = (
        uinit(ks[0], (8, 1, 3, 3), 9),          # conv1.weight
        uinit(ks[1], (8,), 9),                  # conv1.bias
        uinit(ks[2], (16, 8 * 13 * 13), 1352),  # fc1.weight
        uinit(ks[3], (16,), 1352),              # fc1.bias
        uinit(ks[4], (10, 16), 16),             # fc2.weight
        uinit(ks[5], (10,), 16),                # fc2.bias
    )

    out = mnist_forward(x, params)
    jax.block_until_ready(out)

    ref = torch_like_reference(x, params)
    assert out.shape == (2, 10)
    # bf16 MXU operands => slightly looser tolerance than pure-f32.
    assert jnp.allclose(out, ref, atol=2e-2, rtol=2e-2), float(
        jnp.max(jnp.abs(out - ref)))
    print("KERNEL_OK")
</pallas_src>

<mosaic_0001>
module attributes {stable_mosaic.version = 11 : i64} {
  func.func @fused_mnist_kernel(%arg0: i32, %arg1: memref<896x256xbf16, #tpu.memory_space<vmem>>, %arg2: memref<512x128xbf16, #tpu.memory_space<vmem>>, %arg3: memref<128x1xf32, #tpu.memory_space<vmem>>, %arg4: memref<13x16x128xbf16, #tpu.memory_space<vmem>>, %arg5: memref<16x1xf32, #tpu.memory_space<vmem>>, %arg6: memref<10x16xbf16, #tpu.memory_space<vmem>>, %arg7: memref<10x1xf32, #tpu.memory_space<vmem>>, %arg8: memref<10x256xf32, #tpu.memory_space<vmem>>) attributes {dimension_semantics = [#tpu.dimension_semantics<parallel>], iteration_bounds = array<i64: 1>, scalar_prefetch = 0 : i64, scratch_operands = 0 : i64, tpu.core_type = #tpu.core_type<tc>, window_params = [{transform_indices = @transform_0, window_bounds = array<i64: 896, 256>}, {pipeline_mode = #tpu.pipeline_mode<synchronous>, transform_indices = @transform_1, window_bounds = array<i64: 512, 128>}, {pipeline_mode = #tpu.pipeline_mode<synchronous>, transform_indices = @transform_2, window_bounds = array<i64: 128, 1>}, {pipeline_mode = #tpu.pipeline_mode<synchronous>, transform_indices = @transform_3, window_bounds = array<i64: 13, 16, 128>}, {pipeline_mode = #tpu.pipeline_mode<synchronous>, transform_indices = @transform_4, window_bounds = array<i64: 16, 1>}, {pipeline_mode = #tpu.pipeline_mode<synchronous>, transform_indices = @transform_5, window_bounds = array<i64: 10, 16>}, {pipeline_mode = #tpu.pipeline_mode<synchronous>, transform_indices = @transform_6, window_bounds = array<i64: 10, 1>}, {transform_indices = @transform_7, window_bounds = array<i64: 10, 256>}]} {
    %c0 = arith.constant 0 : index
    %c0_0 = arith.constant 0 : index
    %0 = vector.load %arg2[%c0, %c0_0] : memref<512x128xbf16, #tpu.memory_space<vmem>>, vector<512x128xbf16>
    %c0_1 = arith.constant 0 : index
    %c0_2 = arith.constant 0 : index
    %1 = vector.load %arg3[%c0_1, %c0_2] : memref<128x1xf32, #tpu.memory_space<vmem>>, vector<128x1xf32>
    %cst = arith.constant 0.000000e+00 : f32
    %2 = vector.broadcast %cst : f32 to vector<16x256xf32>
    %c0_3 = arith.constant 0 : index
    %c0_4 = arith.constant 0 : index
    %3 = vector.load %arg1[%c0_3, %c0_4] : memref<896x256xbf16, #tpu.memory_space<vmem>>, vector<128x256xbf16>
    %cst_5 = arith.constant dense<0.000000e+00> : vector<512x256xf32>
    %4 = tpu.matmul %0, %3, %cst_5 {dimension_numbers = #tpu.dot_dimension_numbers<[1], [0], [0], [1], [0, 0, 1, 1], [], []>} : vector<512x128xbf16>, vector<128x256xbf16>, vector<512x256xf32> -> vector<512x256xf32>
    %5 = vector.extract_strided_slice %4 {offsets = [0, 0], sizes = [128, 256], strides = [1, 1]} : vector<512x256xf32> to vector<128x256xf32>
    %6 = vector.extract_strided_slice %4 {offsets = [128, 0], sizes = [128, 256], strides = [1, 1]} : vector<512x256xf32> to vector<128x256xf32>
    %7 = arith.maximumf %5, %6 : vector<128x256xf32>
    %8 = vector.extract_strided_slice %4 {offsets = [256, 0], sizes = [128, 256], strides = [1, 1]} : vector<512x256xf32> to vector<128x256xf32>
    %9 = vector.extract_strided_slice %4 {offsets = [384, 0], sizes = [128, 256], strides = [1, 1]} : vector<512x256xf32> to vector<128x256xf32>
    %10 = arith.maximumf %8, %9 : vector<128x256xf32>
    %11 = arith.maximumf %7, %10 : vector<128x256xf32>
    %12 = vector.broadcast %1 : vector<128x1xf32> to vector<128x256xf32>
    %13 = arith.addf %11, %12 : vector<128x256xf32>
    %cst_6 = arith.constant 0.000000e+00 : f32
    %14 = vector.broadcast %cst_6 : f32 to vector<128x256xf32>
    %15 = arith.maximumf %13, %14 : vector<128x256xf32>
    %c0_7 = arith.constant 0 : index
    %c0_8 = arith.constant 0 : index
    %c0_9 = arith.constant 0 : index
    %16 = vector.load %arg4[%c0_7, %c0_8, %c0_9] : memref<13x16x128xbf16, #tpu.memory_space<vmem>>, vector<1x16x128xbf16>
    %17 = vector.shape_cast %16 : vector<1x16x128xbf16> to vector<16x128xbf16>
    %18 = arith.truncf %15 : vector<128x256xf32> to vector<128x256xbf16>
    %cst_10 = arith.constant dense<0.000000e+00> : vector<16x256xf32>
    %19 = tpu.matmul %17, %18, %cst_10 {dimension_numbers = #tpu.dot_dimension_numbers<[1], [0], [0], [1], [0, 0, 1, 1], [], []>} : vector<16x128xbf16>, vector<128x256xbf16>, vector<16x256xf32> -> vector<16x256xf32>
    %20 = arith.addf %2, %19 : vector<16x256xf32>
    %c64 = arith.constant 64 : index
    %c0_11 = arith.constant 0 : index
    %21 = vector.load %arg1[%c64, %c0_11] : memref<896x256xbf16, #tpu.memory_space<vmem>>, vector<128x256xbf16>
    %cst_12 = arith.constant dense<0.000000e+00> : vector<512x256xf32>
    %22 = tpu.matmul %0, %21, %cst_12 {dimension_numbers = #tpu.dot_dimension_numbers<[1], [0], [0], [1], [0, 0, 1, 1], [], []>} : vector<512x128xbf16>, vector<128x256xbf16>, vector<512x256xf32> -> vector<512x256xf32>
    %23 = vector.extract_strided_slice %22 {offsets = [0, 0], sizes = [128, 256], strides = [1, 1]} : vector<512x256xf32> to vector<128x256xf32>
    %24 = vector.extract_strided_slice %22 {offsets = [128, 0], sizes = [128, 256], strides = [1, 1]} : vector<512x256xf32> to vector<128x256xf32>
    %25 = arith.maximumf %23, %24 : vector<128x256xf32>
    %26 = vector.extract_strided_slice %22 {offsets = [256, 0], sizes = [128, 256], strides = [1, 1]} : vector<512x256xf32> to vector<128x256xf32>
    %27 = vector.extract_strided_slice %22 {offsets = [384, 0], sizes = [128, 256], strides = [1, 1]} : vector<512x256xf32> to vector<128x256xf32>
    %28 = arith.maximumf %26, %27 : vector<128x256xf32>
    %29 = arith.maximumf %25, %28 : vector<128x256xf32>
    %30 = vector.broadcast %1 : vector<128x1xf32> to vector<128x256xf32>
    %31 = arith.addf %29, %30 : vector<128x256xf32>
    %cst_13 = arith.constant 0.000000e+00 : f32
    %32 = vector.broadcast %cst_13 : f32 to vector<128x256xf32>
    %33 = arith.maximumf %31, %32 : vector<128x256xf32>
    %c1 = arith.constant 1 : index
    %c0_14 = arith.constant 0 : index
    %c0_15 = arith.constant 0 : index
    %34 = vector.load %arg4[%c1, %c0_14, %c0_15] : memref<13x16x128xbf16, #tpu.memory_space<vmem>>, vector<1x16x128xbf16>
    %35 = vector.shape_cast %34 : vector<1x16x128xbf16> to vector<16x128xbf16>
    %36 = arith.truncf %33 : vector<128x256xf32> to vector<128x256xbf16>
    %cst_16 = arith.constant dense<0.000000e+00> : vector<16x256xf32>
    %37 = tpu.matmul %35, %36, %cst_16 {dimension_numbers = #tpu.dot_dimension_numbers<[1], [0], [0], [1], [0, 0, 1, 1], [], []>} : vector<16x128xbf16>, vector<128x256xbf16>, vector<16x256xf32> -> vector<16x256xf32>
    %38 = arith.addf %20, %37 : vector<16x256xf32>
    %c128 = arith.constant 128 : index
    %c0_17 = arith.constant 0 : index
    %39 = vector.load %arg1[%c128, %c0_17] : memref<896x256xbf16, #tpu.memory_space<vmem>>, vector<128x256xbf16>
    %cst_18 = arith.constant dense<0.000000e+00> : vector<512x256xf32>
    %40 = tpu.matmul %0, %39, %cst_18 {dimension_numbers = #tpu.dot_dimension_numbers<[1], [0], [0], [1], [0, 0, 1, 1], [], []>} : vector<512x128xbf16>, vector<128x256xbf16>, vector<512x256xf32> -> vector<512x256xf32>
    %41 = vector.extract_strided_slice %40 {offsets = [0, 0], sizes = [128, 256], strides = [1, 1]} : vector<512x256xf32> to vector<128x256xf32>
    %42 = vector.extract_strided_slice %40 {offsets = [128, 0], sizes = [128, 256], strides = [1, 1]} : vector<512x256xf32> to vector<128x256xf32>
    %43 = arith.maximumf %41, %42 : vector<128x256xf32>
    %44 = vector.extract_strided_slice %40 {offsets = [256, 0], sizes = [128, 256], strides = [1, 1]} : vector<512x256xf32> to vector<128x256xf32>
    %45 = vector.extract_strided_slice %40 {offsets = [384, 0], sizes = [128, 256], strides = [1, 1]} : vector<512x256xf32> to vector<128x256xf32>
    %46 = arith.maximumf %44, %45 : vector<128x256xf32>
    %47 = arith.maximumf %43, %46 : vector<128x256xf32>
    %48 = vector.broadcast %1 : vector<128x1xf32> to vector<128x256xf32>
    %49 = arith.addf %47, %48 : vector<128x256xf32>
    %cst_19 = arith.constant 0.000000e+00 : f32
    %50 = vector.broadcast %cst_19 : f32 to vector<128x256xf32>
    %51 = arith.maximumf %49, %50 : vector<128x256xf32>
    %c2 = arith.constant 2 : index
    %c0_20 = arith.constant 0 : index
    %c0_21 = arith.constant 0 : index
    %52 = vector.load %arg4[%c2, %c0_20, %c0_21] : memref<13x16x128xbf16, #tpu.memory_space<vmem>>, vector<1x16x128xbf16>
    %53 = vector.shape_cast %52 : vector<1x16x128xbf16> to vector<16x128xbf16>
    %54 = arith.truncf %51 : vector<128x256xf32> to vector<128x256xbf16>
    %cst_22 = arith.constant dense<0.000000e+00> : vector<16x256xf32>
    %55 = tpu.matmul %53, %54, %cst_22 {dimension_numbers = #tpu.dot_dimension_numbers<[1], [0], [0], [1], [0, 0, 1, 1], [], []>} : vector<16x128xbf16>, vector<128x256xbf16>, vector<16x256xf32> -> vector<16x256xf32>
    %56 = arith.addf %38, %55 : vector<16x256xf32>
    %c192 = arith.constant 192 : index
    %c0_23 = arith.constant 0 : index
    %57 = vector.load %arg1[%c192, %c0_23] : memref<896x256xbf16, #tpu.memory_space<vmem>>, vector<128x256xbf16>
    %cst_24 = arith.constant dense<0.000000e+00> : vector<512x256xf32>
    %58 = tpu.matmul %0, %57, %cst_24 {dimension_numbers = #tpu.dot_dimension_numbers<[1], [0], [0], [1], [0, 0, 1, 1], [], []>} : vector<512x128xbf16>, vector<128x256xbf16>, vector<512x256xf32> -> vector<512x256xf32>
    %59 = vector.extract_strided_slice %58 {offsets = [0, 0], sizes = [128, 256], strides = [1, 1]} : vector<512x256xf32> to vector<128x256xf32>
    %60 = vector.extract_strided_slice %58 {offsets = [128, 0], sizes = [128, 256], strides = [1, 1]} : vector<512x256xf32> to vector<128x256xf32>
    %61 = arith.maximumf %59, %60 : vector<128x256xf32>
    %62 = vector.extract_strided_slice %58 {offsets = [256, 0], sizes = [128, 256], strides = [1, 1]} : vector<512x256xf32> to vector<128x256xf32>
    %63 = vector.extract_strided_slice %58 {offsets = [384, 0], sizes = [128, 256], strides = [1, 1]} : vector<512x256xf32> to vector<128x256xf32>
    %64 = arith.maximumf %62, %63 : vector<128x256xf32>
    %65 = arith.maximumf %61, %64 : vector<128x256xf32>
    %66 = vector.broadcast %1 : vector<128x1xf32> to vector<128x256xf32>
    %67 = arith.addf %65, %66 : vector<128x256xf32>
    %cst_25 = arith.constant 0.000000e+00 : f32
    %68 = vector.broadcast %cst_25 : f32 to vector<128x256xf32>
    %69 = arith.maximumf %67, %68 : vector<128x256xf32>
    %c3 = arith.constant 3 : index
    %c0_26 = arith.constant 0 : index
    %c0_27 = arith.constant 0 : index
    %70 = vector.load %arg4[%c3, %c0_26, %c0_27] : memref<13x16x128xbf16, #tpu.memory_space<vmem>>, vector<1x16x128xbf16>
    %71 = vector.shape_cast %70 : vector<1x16x128xbf16> to vector<16x128xbf16>
    %72 = arith.truncf %69 : vector<128x256xf32> to vector<128x256xbf16>
    %cst_28 = arith.constant dense<0.000000e+00> : vector<16x256xf32>
    %73 = tpu.matmul %71, %72, %cst_28 {dimension_numbers = #tpu.dot_dimension_numbers<[1], [0], [0], [1], [0, 0, 1, 1], [], []>} : vector<16x128xbf16>, vector<128x256xbf16>, vector<16x256xf32> -> vector<16x256xf32>
    %74 = arith.addf %56, %73 : vector<16x256xf32>
    %c256 = arith.constant 256 : index
    %c0_29 = arith.constant 0 : index
    %75 = vector.load %arg1[%c256, %c0_29] : memref<896x256xbf16, #tpu.memory_space<vmem>>, vector<128x256xbf16>
    %cst_30 = arith.constant dense<0.000000e+00> : vector<512x256xf32>
    %76 = tpu.matmul %0, %75, %cst_30 {dimension_numbers = #tpu.dot_dimension_numbers<[1], [0], [0], [1], [0, 0, 1, 1], [], []>} : vector<512x128xbf16>, vector<128x256xbf16>, vector<512x256xf32> -> vector<512x256xf32>
    %77 = vector.extract_strided_slice %76 {offsets = [0, 0], sizes = [128, 256], strides = [1, 1]} : vector<512x256xf32> to vector<128x256xf32>
    %78 = vector.extract_strided_slice %76 {offsets = [128, 0], sizes = [128, 256], strides = [1, 1]} : vector<512x256xf32> to vector<128x256xf32>
    %79 = arith.maximumf %77, %78 : vector<128x256xf32>
    %80 = vector.extract_strided_slice %76 {offsets = [256, 0], sizes = [128, 256], strides = [1, 1]} : vector<512x256xf32> to vector<128x256xf32>
    %81 = vector.extract_strided_slice %76 {offsets = [384, 0], sizes = [128, 256], strides = [1, 1]} : vector<512x256xf32> to vector<128x256xf32>
    %82 = arith.maximumf %80, %81 : vector<128x256xf32>
    %83 = arith.maximumf %79, %82 : vector<128x256xf32>
    %84 = vector.broadcast %1 : vector<128x1xf32> to vector<128x256xf32>
    %85 = arith.addf %83, %84 : vector<128x256xf32>
    %cst_31 = arith.constant 0.000000e+00 : f32
    %86 = vector.broadcast %cst_31 : f32 to vector<128x256xf32>
    %87 = arith.maximumf %85, %86 : vector<128x256xf32>
    %c4 = arith.constant 4 : index
    %c0_32 = arith.constant 0 : index
    %c0_33 = arith.constant 0 : index
    %88 = vector.load %arg4[%c4, %c0_32, %c0_33] : memref<13x16x128xbf16, #tpu.memory_space<vmem>>, vector<1x16x128xbf16>
    %89 = vector.shape_cast %88 : vector<1x16x128xbf16> to vector<16x128xbf16>
    %90 = arith.truncf %87 : vector<128x256xf32> to vector<128x256xbf16>
    %cst_34 = arith.constant dense<0.000000e+00> : vector<16x256xf32>
    %91 = tpu.matmul %89, %90, %cst_34 {dimension_numbers = #tpu.dot_dimension_numbers<[1], [0], [0], [1], [0, 0, 1, 1], [], []>} : vector<16x128xbf16>, vector<128x256xbf16>, vector<16x256xf32> -> vector<16x256xf32>
    %92 = arith.addf %74, %91 : vector<16x256xf32>
    %c320 = arith.constant 320 : index
    %c0_35 = arith.constant 0 : index
    %93 = vector.load %arg1[%c320, %c0_35] : memref<896x256xbf16, #tpu.memory_space<vmem>>, vector<128x256xbf16>
    %cst_36 = arith.constant dense<0.000000e+00> : vector<512x256xf32>
    %94 = tpu.matmul %0, %93, %cst_36 {dimension_numbers = #tpu.dot_dimension_numbers<[1], [0], [0], [1], [0, 0, 1, 1], [], []>} : vector<512x128xbf16>, vector<128x256xbf16>, vector<512x256xf32> -> vector<512x256xf32>
    %95 = vector.extract_strided_slice %94 {offsets = [0, 0], sizes = [128, 256], strides = [1, 1]} : vector<512x256xf32> to vector<128x256xf32>
    %96 = vector.extract_strided_slice %94 {offsets = [128, 0], sizes = [128, 256], strides = [1, 1]} : vector<512x256xf32> to vector<128x256xf32>
    %97 = arith.maximumf %95, %96 : vector<128x256xf32>
    %98 = vector.extract_strided_slice %94 {offsets = [256, 0], sizes = [128, 256], strides = [1, 1]} : vector<512x256xf32> to vector<128x256xf32>
    %99 = vector.extract_strided_slice %94 {offsets = [384, 0], sizes = [128, 256], strides = [1, 1]} : vector<512x256xf32> to vector<128x256xf32>
    %100 = arith.maximumf %98, %99 : vector<128x256xf32>
    %101 = arith.maximumf %97, %100 : vector<128x256xf32>
    %102 = vector.broadcast %1 : vector<128x1xf32> to vector<128x256xf32>
    %103 = arith.addf %101, %102 : vector<128x256xf32>
    %cst_37 = arith.constant 0.000000e+00 : f32
    %104 = vector.broadcast %cst_37 : f32 to vector<128x256xf32>
    %105 = arith.maximumf %103, %104 : vector<128x256xf32>
    %c5 = arith.constant 5 : index
    %c0_38 = arith.constant 0 : index
    %c0_39 = arith.constant 0 : index
    %106 = vector.load %arg4[%c5, %c0_38, %c0_39] : memref<13x16x128xbf16, #tpu.memory_space<vmem>>, vector<1x16x128xbf16>
    %107 = vector.shape_cast %106 : vector<1x16x128xbf16> to vector<16x128xbf16>
    %108 = arith.truncf %105 : vector<128x256xf32> to vector<128x256xbf16>
    %cst_40 = arith.constant dense<0.000000e+00> : vector<16x256xf32>
    %109 = tpu.matmul %107, %108, %cst_40 {dimension_numbers = #tpu.dot_dimension_numbers<[1], [0], [0], [1], [0, 0, 1, 1], [], []>} : vector<16x128xbf16>, vector<128x256xbf16>, vector<16x256xf32> -> vector<16x256xf32>
    %110 = arith.addf %92, %109 : vector<16x256xf32>
    %c384 = arith.constant 384 : index
    %c0_41 = arith.constant 0 : index
    %111 = vector.load %arg1[%c384, %c0_41] : memref<896x256xbf16, #tpu.memory_space<vmem>>, vector<128x256xbf16>
    %cst_42 = arith.constant dense<0.000000e+00> : vector<512x256xf32>
    %112 = tpu.matmul %0, %111, %cst_42 {dimension_numbers = #tpu.dot_dimension_numbers<[1], [0], [0], [1], [0, 0, 1, 1], [], []>} : vector<512x128xbf16>, vector<128x256xbf16>, vector<512x256xf32> -> vector<512x256xf32>
    %113 = vector.extract_strided_slice %112 {offsets = [0, 0], sizes = [128, 256], strides = [1, 1]} : vector<512x256xf32> to vector<128x256xf32>
    %114 = vector.extract_strided_slice %112 {offsets = [128, 0], sizes = [128, 256], strides = [1, 1]} : vector<512x256xf32> to vector<128x256xf32>
    %115 = arith.maximumf %113, %114 : vector<128x256xf32>
    %116 = vector.extract_strided_slice %112 {offsets = [256, 0], sizes = [128, 256], strides = [1, 1]} : vector<512x256xf32> to vector<128x256xf32>
    %117 = vector.extract_strided_slice %112 {offsets = [384, 0], sizes = [128, 256], strides = [1, 1]} : vector<512x256xf32> to vector<128x256xf32>
    %118 = arith.maximumf %116, %117 : vector<128x256xf32>
    %119 = arith.maximumf %115, %118 : vector<128x256xf32>
    %120 = vector.broadcast %1 : vector<128x1xf32> to vector<128x256xf32>
    %121 = arith.addf %119, %120 : vector<128x256xf32>
    %cst_43 = arith.constant 0.000000e+00 : f32
    %122 = vector.broadcast %cst_43 : f32 to vector<128x256xf32>
    %123 = arith.maximumf %121, %122 : vector<128x256xf32>
    %c6 = arith.constant 6 : index
    %c0_44 = arith.constant 0 : index
    %c0_45 = arith.constant 0 : index
    %124 = vector.load %arg4[%c6, %c0_44, %c0_45] : memref<13x16x128xbf16, #tpu.memory_space<vmem>>, vector<1x16x128xbf16>
    %125 = vector.shape_cast %124 : vector<1x16x128xbf16> to vector<16x128xbf16>
    %126 = arith.truncf %123 : vector<128x256xf32> to vector<128x256xbf16>
    %cst_46 = arith.constant dense<0.000000e+00> : vector<16x256xf32>
    %127 = tpu.matmul %125, %126, %cst_46 {dimension_numbers = #tpu.dot_dimension_numbers<[1], [0], [0], [1], [0, 0, 1, 1], [], []>} : vector<16x128xbf16>, vector<128x256xbf16>, vector<16x256xf32> -> vector<16x256xf32>
    %128 = arith.addf %110, %127 : vector<16x256xf32>
    %c448 = arith.constant 448 : index
    %c0_47 = arith.constant 0 : index
    %129 = vector.load %arg1[%c448, %c0_47] : memref<896x256xbf16, #tpu.memory_space<vmem>>, vector<128x256xbf16>
    %cst_48 = arith.constant dense<0.000000e+00> : vector<512x256xf32>
    %130 = tpu.matmul %0, %129, %cst_48 {dimension_numbers = #tpu.dot_dimension_numbers<[1], [0], [0], [1], [0, 0, 1, 1], [], []>} : vector<512x128xbf16>, vector<128x256xbf16>, vector<512x256xf32> -> vector<512x256xf32>
    %131 = vector.extract_strided_slice %130 {offsets = [0, 0], sizes = [128, 256], strides = [1, 1]} : vector<512x256xf32> to vector<128x256xf32>
    %132 = vector.extract_strided_slice %130 {offsets = [128, 0], sizes = [128, 256], strides = [1, 1]} : vector<512x256xf32> to vector<128x256xf32>
    %133 = arith.maximumf %131, %132 : vector<128x256xf32>
    %134 = vector.extract_strided_slice %130 {offsets = [256, 0], sizes = [128, 256], strides = [1, 1]} : vector<512x256xf32> to vector<128x256xf32>
    %135 = vector.extract_strided_slice %130 {offsets = [384, 0], sizes = [128, 256], strides = [1, 1]} : vector<512x256xf32> to vector<128x256xf32>
    %136 = arith.maximumf %134, %135 : vector<128x256xf32>
    %137 = arith.maximumf %133, %136 : vector<128x256xf32>
    %138 = vector.broadcast %1 : vector<128x1xf32> to vector<128x256xf32>
    %139 = arith.addf %137, %138 : vector<128x256xf32>
    %cst_49 = arith.constant 0.000000e+00 : f32
    %140 = vector.broadcast %cst_49 : f32 to vector<128x256xf32>
    %141 = arith.maximumf %139, %140 : vector<128x256xf32>
    %c7 = arith.constant 7 : index
    %c0_50 = arith.constant 0 : index
    %c0_51 = arith.constant 0 : index
    %142 = vector.load %arg4[%c7, %c0_50, %c0_51] : memref<13x16x128xbf16, #tpu.memory_space<vmem>>, vector<1x16x128xbf16>
    %143 = vector.shape_cast %142 : vector<1x16x128xbf16> to vector<16x128xbf16>
    %144 = arith.truncf %141 : vector<128x256xf32> to vector<128x256xbf16>
    %cst_52 = arith.constant dense<0.000000e+00> : vector<16x256xf32>
    %145 = tpu.matmul %143, %144, %cst_52 {dimension_numbers = #tpu.dot_dimension_numbers<[1], [0], [0], [1], [0, 0, 1, 1], [], []>} : vector<16x128xbf16>, vector<128x256xbf16>, vector<16x256xf32> -> vector<16x256xf32>
    %146 = arith.addf %128, %145 : vector<16x256xf32>
    %c512 = arith.constant 512 : index
    %c0_53 = arith.constant 0 : index
    %147 = vector.load %arg1[%c512, %c0_53] : memref<896x256xbf16, #tpu.memory_space<vmem>>, vector<128x256xbf16>
    %cst_54 = arith.constant dense<0.000000e+00> : vector<512x256xf32>
    %148 = tpu.matmul %0, %147, %cst_54 {dimension_numbers = #tpu.dot_dimension_numbers<[1], [0], [0], [1], [0, 0, 1, 1], [], []>} : vector<512x128xbf16>, vector<128x256xbf16>, vector<512x256xf32> -> vector<512x256xf32>
    %149 = vector.extract_strided_slice %148 {offsets = [0, 0], sizes = [128, 256], strides = [1, 1]} : vector<512x256xf32> to vector<128x256xf32>
    %150 = vector.extract_strided_slice %148 {offsets = [128, 0], sizes = [128, 256], strides = [1, 1]} : vector<512x256xf32> to vector<128x256xf32>
    %151 = arith.maximumf %149, %150 : vector<128x256xf32>
    %152 = vector.extract_strided_slice %148 {offsets = [256, 0], sizes = [128, 256], strides = [1, 1]} : vector<512x256xf32> to vector<128x256xf32>
    %153 = vector.extract_strided_slice %148 {offsets = [384, 0], sizes = [128, 256], strides = [1, 1]} : vector<512x256xf32> to vector<128x256xf32>
    %154 = arith.maximumf %152, %153 : vector<128x256xf32>
    %155 = arith.maximumf %151, %154 : vector<128x256xf32>
    %156 = vector.broadcast %1 : vector<128x1xf32> to vector<128x256xf32>
    %157 = arith.addf %155, %156 : vector<128x256xf32>
    %cst_55 = arith.constant 0.000000e+00 : f32
    %158 = vector.broadcast %cst_55 : f32 to vector<128x256xf32>
    %159 = arith.maximumf %157, %158 : vector<128x256xf32>
    %c8 = arith.constant 8 : index
    %c0_56 = arith.constant 0 : index
    %c0_57 = arith.constant 0 : index
    %160 = vector.load %arg4[%c8, %c0_56, %c0_57] : memref<13x16x128xbf16, #tpu.memory_space<vmem>>, vector<1x16x128xbf16>
    %161 = vector.shape_cast %160 : vector<1x16x128xbf16> to vector<16x128xbf16>
    %162 = arith.truncf %159 : vector<128x256xf32> to vector<128x256xbf16>
    %cst_58 = arith.constant dense<0.000000e+00> : vector<16x256xf32>
    %163 = tpu.matmul %161, %162, %cst_58 {dimension_numbers = #tpu.dot_dimension_numbers<[1], [0], [0], [1], [0, 0, 1, 1], [], []>} : vector<16x128xbf16>, vector<128x256xbf16>, vector<16x256xf32> -> vector<16x256xf32>
    %164 = arith.addf %146, %163 : vector<16x256xf32>
    %c576 = arith.constant 576 : index
    %c0_59 = arith.constant 0 : index
    %165 = vector.load %arg1[%c576, %c0_59] : memref<896x256xbf16, #tpu.memory_space<vmem>>, vector<128x256xbf16>
    %cst_60 = arith.constant dense<0.000000e+00> : vector<512x256xf32>
    %166 = tpu.matmul %0, %165, %cst_60 {dimension_numbers = #tpu.dot_dimension_numbers<[1], [0], [0], [1], [0, 0, 1, 1], [], []>} : vector<512x128xbf16>, vector<128x256xbf16>, vector<512x256xf32> -> vector<512x256xf32>
    %167 = vector.extract_strided_slice %166 {offsets = [0, 0], sizes = [128, 256], strides = [1, 1]} : vector<512x256xf32> to vector<128x256xf32>
    %168 = vector.extract_strided_slice %166 {offsets = [128, 0], sizes = [128, 256], strides = [1, 1]} : vector<512x256xf32> to vector<128x256xf32>
    %169 = arith.maximumf %167, %168 : vector<128x256xf32>
    %170 = vector.extract_strided_slice %166 {offsets = [256, 0], sizes = [128, 256], strides = [1, 1]} : vector<512x256xf32> to vector<128x256xf32>
    %171 = vector.extract_strided_slice %166 {offsets = [384, 0], sizes = [128, 256], strides = [1, 1]} : vector<512x256xf32> to vector<128x256xf32>
    %172 = arith.maximumf %170, %171 : vector<128x256xf32>
    %173 = arith.maximumf %169, %172 : vector<128x256xf32>
    %174 = vector.broadcast %1 : vector<128x1xf32> to vector<128x256xf32>
    %175 = arith.addf %173, %174 : vector<128x256xf32>
    %cst_61 = arith.constant 0.000000e+00 : f32
    %176 = vector.broadcast %cst_61 : f32 to vector<128x256xf32>
    %177 = arith.maximumf %175, %176 : vector<128x256xf32>
    %c9 = arith.constant 9 : index
    %c0_62 = arith.constant 0 : index
    %c0_63 = arith.constant 0 : index
    %178 = vector.load %arg4[%c9, %c0_62, %c0_63] : memref<13x16x128xbf16, #tpu.memory_space<vmem>>, vector<1x16x128xbf16>
    %179 = vector.shape_cast %178 : vector<1x16x128xbf16> to vector<16x128xbf16>
    %180 = arith.truncf %177 : vector<128x256xf32> to vector<128x256xbf16>
    %cst_64 = arith.constant dense<0.000000e+00> : vector<16x256xf32>
    %181 = tpu.matmul %179, %180, %cst_64 {dimension_numbers = #tpu.dot_dimension_numbers<[1], [0], [0], [1], [0, 0, 1, 1], [], []>} : vector<16x128xbf16>, vector<128x256xbf16>, vector<16x256xf32> -> vector<16x256xf32>
    %182 = arith.addf %164, %181 : vector<16x256xf32>
    %c640 = arith.constant 640 : index
    %c0_65 = arith.constant 0 : index
    %183 = vector.load %arg1[%c640, %c0_65] : memref<896x256xbf16, #tpu.memory_space<vmem>>, vector<128x256xbf16>
    %cst_66 = arith.constant dense<0.000000e+00> : vector<512x256xf32>
    %184 = tpu.matmul %0, %183, %cst_66 {dimension_numbers = #tpu.dot_dimension_numbers<[1], [0], [0], [1], [0, 0, 1, 1], [], []>} : vector<512x128xbf16>, vector<128x256xbf16>, vector<512x256xf32> -> vector<512x256xf32>
    %185 = vector.extract_strided_slice %184 {offsets = [0, 0], sizes = [128, 256], strides = [1, 1]} : vector<512x256xf32> to vector<128x256xf32>
    %186 = vector.extract_strided_slice %184 {offsets = [128, 0], sizes = [128, 256], strides = [1, 1]} : vector<512x256xf32> to vector<128x256xf32>
    %187 = arith.maximumf %185, %186 : vector<128x256xf32>
    %188 = vector.extract_strided_slice %184 {offsets = [256, 0], sizes = [128, 256], strides = [1, 1]} : vector<512x256xf32> to vector<128x256xf32>
    %189 = vector.extract_strided_slice %184 {offsets = [384, 0], sizes = [128, 256], strides = [1, 1]} : vector<512x256xf32> to vector<128x256xf32>
    %190 = arith.maximumf %188, %189 : vector<128x256xf32>
    %191 = arith.maximumf %187, %190 : vector<128x256xf32>
    %192 = vector.broadcast %1 : vector<128x1xf32> to vector<128x256xf32>
    %193 = arith.addf %191, %192 : vector<128x256xf32>
    %cst_67 = arith.constant 0.000000e+00 : f32
    %194 = vector.broadcast %cst_67 : f32 to vector<128x256xf32>
    %195 = arith.maximumf %193, %194 : vector<128x256xf32>
    %c10 = arith.constant 10 : index
    %c0_68 = arith.constant 0 : index
    %c0_69 = arith.constant 0 : index
    %196 = vector.load %arg4[%c10, %c0_68, %c0_69] : memref<13x16x128xbf16, #tpu.memory_space<vmem>>, vector<1x16x128xbf16>
    %197 = vector.shape_cast %196 : vector<1x16x128xbf16> to vector<16x128xbf16>
    %198 = arith.truncf %195 : vector<128x256xf32> to vector<128x256xbf16>
    %cst_70 = arith.constant dense<0.000000e+00> : vector<16x256xf32>
    %199 = tpu.matmul %197, %198, %cst_70 {dimension_numbers = #tpu.dot_dimension_numbers<[1], [0], [0], [1], [0, 0, 1, 1], [], []>} : vector<16x128xbf16>, vector<128x256xbf16>, vector<16x256xf32> -> vector<16x256xf32>
    %200 = arith.addf %182, %199 : vector<16x256xf32>
    %c704 = arith.constant 704 : index
    %c0_71 = arith.constant 0 : index
    %201 = vector.load %arg1[%c704, %c0_71] : memref<896x256xbf16, #tpu.memory_space<vmem>>, vector<128x256xbf16>
    %cst_72 = arith.constant dense<0.000000e+00> : vector<512x256xf32>
    %202 = tpu.matmul %0, %201, %cst_72 {dimension_numbers = #tpu.dot_dimension_numbers<[1], [0], [0], [1], [0, 0, 1, 1], [], []>} : vector<512x128xbf16>, vector<128x256xbf16>, vector<512x256xf32> -> vector<512x256xf32>
    %203 = vector.extract_strided_slice %202 {offsets = [0, 0], sizes = [128, 256], strides = [1, 1]} : vector<512x256xf32> to vector<128x256xf32>
    %204 = vector.extract_strided_slice %202 {offsets = [128, 0], sizes = [128, 256], strides = [1, 1]} : vector<512x256xf32> to vector<128x256xf32>
    %205 = arith.maximumf %203, %204 : vector<128x256xf32>
    %206 = vector.extract_strided_slice %202 {offsets = [256, 0], sizes = [128, 256], strides = [1, 1]} : vector<512x256xf32> to vector<128x256xf32>
    %207 = vector.extract_strided_slice %202 {offsets = [384, 0], sizes = [128, 256], strides = [1, 1]} : vector<512x256xf32> to vector<128x256xf32>
    %208 = arith.maximumf %206, %207 : vector<128x256xf32>
    %209 = arith.maximumf %205, %208 : vector<128x256xf32>
    %210 = vector.broadcast %1 : vector<128x1xf32> to vector<128x256xf32>
    %211 = arith.addf %209, %210 : vector<128x256xf32>
    %cst_73 = arith.constant 0.000000e+00 : f32
    %212 = vector.broadcast %cst_73 : f32 to vector<128x256xf32>
    %213 = arith.maximumf %211, %212 : vector<128x256xf32>
    %c11 = arith.constant 11 : index
    %c0_74 = arith.constant 0 : index
    %c0_75 = arith.constant 0 : index
    %214 = vector.load %arg4[%c11, %c0_74, %c0_75] : memref<13x16x128xbf16, #tpu.memory_space<vmem>>, vector<1x16x128xbf16>
    %215 = vector.shape_cast %214 : vector<1x16x128xbf16> to vector<16x128xbf16>
    %216 = arith.truncf %213 : vector<128x256xf32> to vector<128x256xbf16>
    %cst_76 = arith.constant dense<0.000000e+00> : vector<16x256xf32>
    %217 = tpu.matmul %215, %216, %cst_76 {dimension_numbers = #tpu.dot_dimension_numbers<[1], [0], [0], [1], [0, 0, 1, 1], [], []>} : vector<16x128xbf16>, vector<128x256xbf16>, vector<16x256xf32> -> vector<16x256xf32>
    %218 = arith.addf %200, %217 : vector<16x256xf32>
    %c768 = arith.constant 768 : index
    %c0_77 = arith.constant 0 : index
    %219 = vector.load %arg1[%c768, %c0_77] : memref<896x256xbf16, #tpu.memory_space<vmem>>, vector<128x256xbf16>
    %cst_78 = arith.constant dense<0.000000e+00> : vector<512x256xf32>
    %220 = tpu.matmul %0, %219, %cst_78 {dimension_numbers = #tpu.dot_dimension_numbers<[1], [0], [0], [1], [0, 0, 1, 1], [], []>} : vector<512x128xbf16>, vector<128x256xbf16>, vector<512x256xf32> -> vector<512x256xf32>
    %221 = vector.extract_strided_slice %220 {offsets = [0, 0], sizes = [128, 256], strides = [1, 1]} : vector<512x256xf32> to vector<128x256xf32>
    %222 = vector.extract_strided_slice %220 {offsets = [128, 0], sizes = [128, 256], strides = [1, 1]} : vector<512x256xf32> to vector<128x256xf32>
    %223 = arith.maximumf %221, %222 : vector<128x256xf32>
    %224 = vector.extract_strided_slice %220 {offsets = [256, 0], sizes = [128, 256], strides = [1, 1]} : vector<512x256xf32> to vector<128x256xf32>
    %225 = vector.extract_strided_slice %220 {offsets = [384, 0], sizes = [128, 256], strides = [1, 1]} : vector<512x256xf32> to vector<128x256xf32>
    %226 = arith.maximumf %224, %225 : vector<128x256xf32>
    %227 = arith.maximumf %223, %226 : vector<128x256xf32>
    %228 = vector.broadcast %1 : vector<128x1xf32> to vector<128x256xf32>
    %229 = arith.addf %227, %228 : vector<128x256xf32>
    %cst_79 = arith.constant 0.000000e+00 : f32
    %230 = vector.broadcast %cst_79 : f32 to vector<128x256xf32>
    %231 = arith.maximumf %229, %230 : vector<128x256xf32>
    %c12 = arith.constant 12 : index
    %c0_80 = arith.constant 0 : index
    %c0_81 = arith.constant 0 : index
    %232 = vector.load %arg4[%c12, %c0_80, %c0_81] : memref<13x16x128xbf16, #tpu.memory_space<vmem>>, vector<1x16x128xbf16>
    %233 = vector.shape_cast %232 : vector<1x16x128xbf16> to vector<16x128xbf16>
    %234 = arith.truncf %231 : vector<128x256xf32> to vector<128x256xbf16>
    %cst_82 = arith.constant dense<0.000000e+00> : vector<16x256xf32>
    %235 = tpu.matmul %233, %234, %cst_82 {dimension_numbers = #tpu.dot_dimension_numbers<[1], [0], [0], [1], [0, 0, 1, 1], [], []>} : vector<16x128xbf16>, vector<128x256xbf16>, vector<16x256xf32> -> vector<16x256xf32>
    %236 = arith.addf %218, %235 : vector<16x256xf32>
    %c0_83 = arith.constant 0 : index
    %c0_84 = arith.constant 0 : index
    %237 = vector.load %arg5[%c0_83, %c0_84] : memref<16x1xf32, #tpu.memory_space<vmem>>, vector<16x1xf32>
    %238 = vector.broadcast %237 : vector<16x1xf32> to vector<16x256xf32>
    %239 = arith.addf %236, %238 : vector<16x256xf32>
    %cst_85 = arith.constant 0.000000e+00 : f32
    %240 = vector.broadcast %cst_85 : f32 to vector<16x256xf32>
    %241 = arith.maximumf %239, %240 : vector<16x256xf32>
    %c0_86 = arith.constant 0 : index
    %c0_87 = arith.constant 0 : index
    %242 = vector.load %arg6[%c0_86, %c0_87] : memref<10x16xbf16, #tpu.memory_space<vmem>>, vector<10x16xbf16>
    %243 = arith.truncf %241 : vector<16x256xf32> to vector<16x256xbf16>
    %cst_88 = arith.constant dense<0.000000e+00> : vector<10x256xf32>
    %244 = tpu.matmul %242, %243, %cst_88 {dimension_numbers = #tpu.dot_dimension_numbers<[1], [0], [0], [1], [0, 0, 1, 1], [], []>} : vector<10x16xbf16>, vector<16x256xbf16>, vector<10x256xf32> -> vector<10x256xf32>
    %c0_89 = arith.constant 0 : index
    %c0_90 = arith.constant 0 : index
    %245 = vector.load %arg7[%c0_89, %c0_90] : memref<10x1xf32, #tpu.memory_space<vmem>>, vector<10x1xf32>
    %246 = vector.broadcast %245 : vector<10x1xf32> to vector<10x256xf32>
    %247 = arith.addf %244, %246 : vector<10x256xf32>
    %c0_91 = arith.constant 0 : index
    %c0_92 = arith.constant 0 : index
    %248 = vector.load %arg8[%c0_91, %c0_92] : memref<10x256xf32, #tpu.memory_space<vmem>>, vector<10x256xf32>
    tpu.vector_store %arg8[%c0_91, %c0_92], %247 {strides = array<i32>} : memref<10x256xf32, #tpu.memory_space<vmem>>, vector<10x256xf32>,
    return
  }
  func.func @transform_0(%arg0: i32) -> (i32, i32) {
    %c0_i32 = arith.constant 0 : i32
    %c0_i32_0 = arith.constant 0 : i32
    return %c0_i32, %arg0 : i32, i32
  }
  func.func @transform_1(%arg0: i32) -> (i32, i32) {
    %c0_i32 = arith.constant 0 : i32
    %c0_i32_0 = arith.constant 0 : i32
    %c0_i32_1 = arith.constant 0 : i32
    return %c0_i32, %c0_i32_0 : i32, i32
  }
  func.func @transform_2(%arg0: i32) -> (i32, i32) {
    %c0_i32 = arith.constant 0 : i32
    %c0_i32_0 = arith.constant 0 : i32
    %c0_i32_1 = arith.constant 0 : i32
    return %c0_i32, %c0_i32_0 : i32, i32
  }
  func.func @transform_3(%arg0: i32) -> (i32, i32, i32) {
    %c0_i32 = arith.constant 0 : i32
    %c0_i32_0 = arith.constant 0 : i32
    %c0_i32_1 = arith.constant 0 : i32
    %c0_i32_2 = arith.constant 0 : i32
    return %c0_i32, %c0_i32_0, %c0_i32_1 : i32, i32, i32
  }
  func.func @transform_4(%arg0: i32) -> (i32, i32) {
    %c0_i32 = arith.constant 0 : i32
    %c0_i32_0 = arith.constant 0 : i32
    %c0_i32_1 = arith.constant 0 : i32
    return %c0_i32, %c0_i32_0 : i32, i32
  }
  func.func @transform_5(%arg0: i32) -> (i32, i32) {
    %c0_i32 = arith.constant 0 : i32
    %c0_i32_0 = arith.constant 0 : i32
    %c0_i32_1 = arith.constant 0 : i32
    return %c0_i32, %c0_i32_0 : i32, i32
  }
  func.func @transform_6(%arg0: i32) -> (i32, i32) {
    %c0_i32 = arith.constant 0 : i32
    %c0_i32_0 = arith.constant 0 : i32
    %c0_i32_1 = arith.constant 0 : i32
    return %c0_i32, %c0_i32_0 : i32, i32
  }
  func.func @transform_7(%arg0: i32) -> (i32, i32) {
    %c0_i32 = arith.constant 0 : i32
    %c0_i32_0 = arith.constant 0 : i32
    return %c0_i32, %arg0 : i32, i32
  }
}

</mosaic_0001>

<llo_original>
// kernel: tile.8
$region0: #{tile.8}
  #allocation0 [shape = 's32[1]{0}', space=sflag, size = 0x4, scoped, tag = 'scoped memory for tile.8']
  %s0 = inlined_call_operand.vmem [shape: f32[8], index: 0, kind: input, shape index: {}]
  %s1 = inlined_call_operand.vmem [shape: f32[13,8], index: 1, kind: output, shape index: {}]
  // Predicated region
  $region2: #{tile.8} parent=0 // pred_check
    _
  $region3: #{tile.8} parent=0 // pred_check_branch
    %3 = sbr.rel (0) target = $region5
  $region4: #{tile.8} parent=0 // pred_region
    _
  $region5: #{tile.8} parent=0 // pred_fallthru
    _
  %v4 = vld [vmem:[%s0] ss:$0 sm:$0xff]
  %5 = vst [vmem:[%s1] sm:$0xff] %v4
  %s6 = scalar_lea.vmem %s1, 8
  %7 = vst [vmem:[%s6] sm:$0xff] %v4

// kernel: tile.9
$region0: #{tile.9}
  %s0 = inlined_call_operand.vmem [shape: f32[13,8], index: 0, kind: input, shape index: {}]
  %s1 = inlined_call_operand.vmem [shape: f32[104], index: 1, kind: output, shape index: {}]
  $region1: #{tile.9} parent=0
    #allocation0 [shape = 'u8[4096]{0}', space=vmem, size = 0x1000, scoped, tag = 'scoped mem for output reshape']
    %v2 = vld [vmem:[%s0] sm:$0x1]
    %vm3 = vcmask 64512
    %4 = vst.msk [vmem:[#allocation0] sm:$0x1] %vm3, %v2
    %s5 = scalar_lea.vmem %s0, 12
    %v6 = vld [vmem:[%s5] sm:$0x1]
    %7 = vrot.lane.b32.xlu0 %v6, 96
    %v8 = vpop.permute.xlu0 %7
    %vm9 = vcmask 851712
    %10 = vst.msk [vmem:[#allocation0] sm:$0x1] %vm9, %v8
    %s11 = scalar_lea.vmem %s0, 11
    %v12 = vld [vmem:[%s11] sm:$0x1]
    %13 = vrot.lane.b32.xlu0 %v12, 88
    %v14 = vpop.permute.xlu0 %13
    %vm15 = vcmask 786112
    %16 = vst.msk [vmem:[#allocation0] sm:$0x1] %vm15, %v14
    %s17 = scalar_lea.vmem %s0, 10
    %v18 = vld [vmem:[%s17] sm:$0x1]
    %19 = vrot.lane.b32.xlu0 %v18, 80
    %v20 = vpop.permute.xlu0 %19
    %vm21 = vcmask 720512
    %22 = vst.msk [vmem:[#allocation0] sm:$0x1] %vm21, %v20
    %s23 = scalar_lea.vmem %s0, 9
    %v24 = vld [vmem:[%s23] sm:$0x1]
    %25 = vrot.lane.b32.xlu0 %v24, 72
    %v26 = vpop.permute.xlu0 %25
    %vm27 = vcmask 654912
    %28 = vst.msk [vmem:[#allocation0] sm:$0x1] %vm27, %v26
    %s29 = scalar_lea.vmem %s0, 8
    %v30 = vld [vmem:[%s29] sm:$0x1]
    %31 = vrot.lane.b32.xlu0 %v30, 64
    %v32 = vpop.permute.xlu0 %31
    %vm33 = vcmask 589312
    %34 = vst.msk [vmem:[#allocation0] sm:$0x1] %vm33, %v32
    %s35 = scalar_lea.vmem %s0, 7
    %v36 = vld [vmem:[%s35] sm:$0x1]
    %37 = vrot.lane.b32.xlu0 %v36, 56
    %v38 = vpop.permute.xlu0 %37
    %vm39 = vcmask 523712
    %40 = vst.msk [vmem:[#allocation0] sm:$0x1] %vm39, %v38
    %s41 = scalar_lea.vmem %s0, 6
    %v42 = vld [vmem:[%s41] sm:$0x1]
    %43 = vrot.lane.b32.xlu0 %v42, 48
    %v44 = vpop.permute.xlu0 %43
    %vm45 = vcmask 458112
    %46 = vst.msk [vmem:[#allocation0] sm:$0x1] %vm45, %v44
    %s47 = scalar_lea.vmem %s0, 5
    %v48 = vld [vmem:[%s47] sm:$0x1]
    %49 = vrot.lane.b32.xlu0 %v48, 40
    %v50 = vpop.permute.xlu0 %49
    %vm51 = vcmask 392512
    %52 = vst.msk [vmem:[#allocation0] sm:$0x1] %vm51, %v50
    %s53 = scalar_lea.vmem %s0, 4
    %v54 = vld [vmem:[%s53] sm:$0x1]
    %55 = vrot.lane.b32.xlu0 %v54, 32
    %v56 = vpop.permute.xlu0 %55
    %vm57 = vcmask 326912
    %58 = vst.msk [vmem:[#allocation0] sm:$0x1] %vm57, %v56
    %s59 = scalar_lea.vmem %s0, 3
    %v60 = vld [vmem:[%s59] sm:$0x1]
    %61 = vrot.lane.b32.xlu0 %v60, 24
    %v62 = vpop.permute.xlu0 %61
    %vm63 = vcmask 261312
    %64 = vst.msk [vmem:[#allocation0] sm:$0x1] %vm63, %v62
    %s65 = scalar_lea.vmem %s0, 2
    %v66 = vld [vmem:[%s65] sm:$0x1]
    %67 = vrot.lane.b32.xlu0 %v66, 16
    %v68 = vpop.permute.xlu0 %67
    %vm69 = vcmask 195712
    %70 = vst.msk [vmem:[#allocation0] sm:$0x1] %vm69, %v68
    %s71 = scalar_lea.vmem %s0, 1
    %v72 = vld [vmem:[%s71] sm:$0x1]
    %73 = vrot.lane.b32.xlu0 %v72, 8
    %v74 = vpop.permute.xlu0 %73
    %vm75 = vcmask 130112
    %76 = vst.msk [vmem:[#allocation0] sm:$0x1] %vm75, %v74
    %s78 = sshllo.u32 0, 1
    %v80 = vld [vmem:[#allocation0] sm:%s78]
    %s81 = sshllo.u32 0, 1
    %82 = vst [vmem:[%s1] sm:%s81] %v80

// kernel: mnist_forward.1
$region0: #{mnist_forward.1}
  #allocation0 [shape = 'u32[]', space=smem, size = 0x4, offset = 0x4, fixed_abs, tag = 'smem constant byte address 0x4 - core index']
  #allocation1 [shape = 'u32[144,128]{1,0:T(1,128)}', space=vmem, size = 0x12000, scoped, tag = 'internal scratch']
  %s0 = inlined_call_operand.vmem [shape: bf16[896,256], index: 0, kind: input, shape index: {}]
  %s1 = inlined_call_operand.vmem [shape: bf16[512,128], index: 1, kind: input, shape index: {}]
  %s2 = inlined_call_operand.vmem [shape: f32[128,1], index: 2, kind: input, shape index: {}]
  %s3 = inlined_call_operand.vmem [shape: bf16[13,16,128], index: 3, kind: input, shape index: {}]
  %s4 = inlined_call_operand.vmem [shape: f32[16,1], index: 4, kind: input, shape index: {}]
  %s5 = inlined_call_operand.vmem [shape: bf16[10,16], index: 5, kind: input, shape index: {}]
  %s6 = inlined_call_operand.vmem [shape: f32[10,1], index: 6, kind: input, shape index: {}]
  %s7 = inlined_call_operand.vmem [shape: f32[10,256], index: 7, kind: output, shape index: {}]
  %s8 = sld [smem:[#allocation0]]
  $region38: #{mnist_forward.1} parent=0
    _
  %s10 = ssub.s32 1, %s8
  %s11 = scalar_select 0, %s10, %s8
  // Predicated region
  $region2: #{mnist_forward.1} parent=0 // pred_check
    _
  $region3: #{mnist_forward.1} parent=0 // pred_check_branch
    %13 = sbr.rel (0) target = $region5
  $region4: #{mnist_forward.1} parent=0 // pred_region
    _
  $region5: #{mnist_forward.1} parent=0 // pred_fallthru
    _
  // Predicated region
  $region6: #{mnist_forward.1} parent=0 // pred_check
    _
  $region7: #{mnist_forward.1} parent=0 // pred_check_branch
    %15 = sbr.rel (0) target = $region9
  $region8: #{mnist_forward.1} parent=0 // pred_region
    _
  $region9: #{mnist_forward.1} parent=0 // pred_fallthru
    _
  // Predicated region
  $region10: #{mnist_forward.1} parent=0 // pred_check
    _
  $region11: #{mnist_forward.1} parent=0 // pred_check_branch
    %17 = sbr.rel (0) target = $region13
  $region12: #{mnist_forward.1} parent=0 // pred_region
    _
  $region13: #{mnist_forward.1} parent=0 // pred_fallthru
    _
  // Predicated region
  $region14: #{mnist_forward.1} parent=0 // pred_check
    _
  $region15: #{mnist_forward.1} parent=0 // pred_check_branch
    %19 = sbr.rel (0) target = $region17
  $region16: #{mnist_forward.1} parent=0 // pred_region
    _
  $region17: #{mnist_forward.1} parent=0 // pred_fallthru
    _
  // Predicated region
  $region18: #{mnist_forward.1} parent=0 // pred_check
    _
  $region19: #{mnist_forward.1} parent=0 // pred_check_branch
    %21 = sbr.rel (0) target = $region21
  $region20: #{mnist_forward.1} parent=0 // pred_region
    _
  $region21: #{mnist_forward.1} parent=0 // pred_fallthru
    _
  // Predicated region
  $region22: #{mnist_forward.1} parent=0 // pred_check
    _
  $region23: #{mnist_forward.1} parent=0 // pred_check_branch
    %23 = sbr.rel (0) target = $region25
  $region24: #{mnist_forward.1} parent=0 // pred_region
    _
  $region25: #{mnist_forward.1} parent=0 // pred_fallthru
    _
  // Predicated region
  $region26: #{mnist_forward.1} parent=0 // pred_check
    _
  $region27: #{mnist_forward.1} parent=0 // pred_check_branch
    %25 = sbr.rel (0) target = $region29
  $region28: #{mnist_forward.1} parent=0 // pred_region
    _
  $region29: #{mnist_forward.1} parent=0 // pred_fallthru
    _
  %v27 = vld [vmem:[%s1] sm:$0xf]
  %v28 = vld [vmem:[%s1 + $0x4] sm:$0xf]
  %v29 = vld [vmem:[%s1 + $0x8] sm:$0xf]
  %v30 = vld [vmem:[%s1 + $0xc] sm:$0xf]
  %v31 = vld [vmem:[%s1 + $0x10] sm:$0xf]
  %v32 = vld [vmem:[%s1 + $0x14] sm:$0xf]
  %v33 = vld [vmem:[%s1 + $0x18] sm:$0xf]
  %v34 = vld [vmem:[%s1 + $0x1c] sm:$0xf]
  %v35 = vld [vmem:[%s1 + $0x20] sm:$0xf]
  %v36 = vld [vmem:[%s1 + $0x24] sm:$0xf]
  %v37 = vld [vmem:[%s1 + $0x28] sm:$0xf]
  %v38 = vld [vmem:[%s1 + $0x2c] sm:$0xf]
  %v39 = vld [vmem:[%s1 + $0x30] sm:$0xf]
  %v40 = vld [vmem:[%s1 + $0x34] sm:$0xf]
  %v41 = vld [vmem:[%s1 + $0x38] sm:$0xf]
  %v42 = vld [vmem:[%s1 + $0x3c] sm:$0xf]
  %v43 = vld [vmem:[%s1 + $0x40] sm:$0xf]
  %v44 = vld [vmem:[%s1 + $0x44] sm:$0xf]
  %v45 = vld [vmem:[%s1 + $0x48] sm:$0xf]
  %v46 = vld [vmem:[%s1 + $0x4c] sm:$0xf]
  %v47 = vld [vmem:[%s1 + $0x50] sm:$0xf]
  %v48 = vld [vmem:[%s1 + $0x54] sm:$0xf]
  %v49 = vld [vmem:[%s1 + $0x58] sm:$0xf]
  %v50 = vld [vmem:[%s1 + $0x5c] sm:$0xf]
  %v51 = vld [vmem:[%s1 + $0x60] sm:$0xf]
  %v52 = vld [vmem:[%s1 + $0x64] sm:$0xf]
  %v53 = vld [vmem:[%s1 + $0x68] sm:$0xf]
  %v54 = vld [vmem:[%s1 + $0x6c] sm:$0xf]
  %v55 = vld [vmem:[%s1 + $0x70] sm:$0xf]
  %v56 = vld [vmem:[%s1 + $0x74] sm:$0xf]
  %v57 = vld [vmem:[%s1 + $0x78] sm:$0xf]
  %v58 = vld [vmem:[%s1 + $0x7c] sm:$0xf]
  %v59 = vld [vmem:[%s1 + $0x80] sm:$0xf]
  %v60 = vld [vmem:[%s1 + $0x84] sm:$0xf]
  %v61 = vld [vmem:[%s1 + $0x88] sm:$0xf]
  %v62 = vld [vmem:[%s1 + $0x8c] sm:$0xf]
  %v63 = vld [vmem:[%s1 + $0x90] sm:$0xf]
  %v64 = vld [vmem:[%s1 + $0x94] sm:$0xf]
  %v65 = vld [vmem:[%s1 + $0x98] sm:$0xf]
  %v66 = vld [vmem:[%s1 + $0x9c] sm:$0xf]
  %v67 = vld [vmem:[%s1 + $0xa0] sm:$0xf]
  %v68 = vld [vmem:[%s1 + $0xa4] sm:$0xf]
  %v69 = vld [vmem:[%s1 + $0xa8] sm:$0xf]
  %v70 = vld [vmem:[%s1 + $0xac] sm:$0xf]
  %v71 = vld [vmem:[%s1 + $0xb0] sm:$0xf]
  %v72 = vld [vmem:[%s1 + $0xb4] sm:$0xf]
  %v73 = vld [vmem:[%s1 + $0xb8] sm:$0xf]
  %v74 = vld [vmem:[%s1 + $0xbc] sm:$0xf]
  %v75 = vld [vmem:[%s1 + $0xc0] sm:$0xf]
  %v76 = vld [vmem:[%s1 + $0xc4] sm:$0xf]
  %v77 = vld [vmem:[%s1 + $0xc8] sm:$0xf]
  %v78 = vld [vmem:[%s1 + $0xcc] sm:$0xf]
  %v79 = vld [vmem:[%s1 + $0xd0] sm:$0xf]
  %v80 = vld [vmem:[%s1 + $0xd4] sm:$0xf]
  %v81 = vld [vmem:[%s1 + $0xd8] sm:$0xf]
  %v82 = vld [vmem:[%s1 + $0xdc] sm:$0xf]
  %v83 = vld [vmem:[%s1 + $0xe0] sm:$0xf]
  %v84 = vld [vmem:[%s1 + $0xe4] sm:$0xf]
  %v85 = vld [vmem:[%s1 + $0xe8] sm:$0xf]
  %v86 = vld [vmem:[%s1 + $0xec] sm:$0xf]
  %v87 = vld [vmem:[%s1 + $0xf0] sm:$0xf]
  %v88 = vld [vmem:[%s1 + $0xf4] sm:$0xf]
  %v89 = vld [vmem:[%s1 + $0xf8] sm:$0xf]
  %v90 = vld [vmem:[%s1 + $0xfc] sm:$0xf]
  %v91 = vld [vmem:[%s2] sm:$0xff]
  %v92 = vld [vmem:[%s2 + $0x8] sm:$0xff]
  %v93 = vld [vmem:[%s2 + $0x10] sm:$0xff]
  %v94 = vld [vmem:[%s2 + $0x18] sm:$0xff]
  %v95 = vld [vmem:[%s2 + $0x20] sm:$0xff]
  %v96 = vld [vmem:[%s2 + $0x28] sm:$0xff]
  %v97 = vld [vmem:[%s2 + $0x30] sm:$0xff]
  %v98 = vld [vmem:[%s2 + $0x38] sm:$0xff]
  %v99 = vld [vmem:[%s2 + $0x40] sm:$0xff]
  %v100 = vld [vmem:[%s2 + $0x48] sm:$0xff]
  %v101 = vld [vmem:[%s2 + $0x50] sm:$0xff]
  %v102 = vld [vmem:[%s2 + $0x58] sm:$0xff]
  %v103 = vld [vmem:[%s2 + $0x60] sm:$0xff]
  %v104 = vld [vmem:[%s2 + $0x68] sm:$0xff]
  %v105 = vld [vmem:[%s2 + $0x70] sm:$0xff]
  %v106 = vld [vmem:[%s2 + $0x78] sm:$0xff]
  %v107 = vld [vmem:[%s0] sm:$0xff]
  %v108 = vld [vmem:[%s0 + $0x8] sm:$0xff]
  %v109 = vld [vmem:[%s0 + $0x10] sm:$0xff]
  %v110 = vld [vmem:[%s0 + $0x18] sm:$0xff]
  %v111 = vld [vmem:[%s0 + $0x20] sm:$0xff]
  %v112 = vld [vmem:[%s0 + $0x28] sm:$0xff]
  %v113 = vld [vmem:[%s0 + $0x30] sm:$0xff]
  %v114 = vld [vmem:[%s0 + $0x38] sm:$0xff]
  %v115 = vld [vmem:[%s0 + $0x40] sm:$0xff]
  %v116 = vld [vmem:[%s0 + $0x48] sm:$0xff]
  %v117 = vld [vmem:[%s0 + $0x50] sm:$0xff]
  %v118 = vld [vmem:[%s0 + $0x58] sm:$0xff]
  %v119 = vld [vmem:[%s0 + $0x60] sm:$0xff]
  %v120 = vld [vmem:[%s0 + $0x68] sm:$0xff]
  %v121 = vld [vmem:[%s0 + $0x70] sm:$0xff]
  %v122 = vld [vmem:[%s0 + $0x78] sm:$0xff]
  %v187 = vunpack.c.l.b16 %v27
  %v188 = vunpack.c.l.b16 %v28
  %v189 = vunpack.c.l.b16 %v29
  %v190 = vunpack.c.l.b16 %v30
  %v191 = vunpack.c.l.b16 %v31
  %v192 = vunpack.c.l.b16 %v32
  %v193 = vunpack.c.l.b16 %v33
  %v194 = vunpack.c.l.b16 %v34
  %v195 = vunpack.c.l.b16 %v35
  %v196 = vunpack.c.l.b16 %v36
  %v197 = vunpack.c.l.b16 %v37
  %v198 = vunpack.c.l.b16 %v38
  %v199 = vunpack.c.l.b16 %v39
  %v200 = vunpack.c.l.b16 %v40
  %v201 = vunpack.c.l.b16 %v41
  %v202 = vunpack.c.l.b16 %v42
  %v203 = vunpack.c.l.b16 %v43
  %v204 = vunpack.c.l.b16 %v44
  %v205 = vunpack.c.l.b16 %v45
  %v206 = vunpack.c.l.b16 %v46
  %v207 = vunpack.c.l.b16 %v47
  %v208 = vunpack.c.l.b16 %v48
  %v209 = vunpack.c.l.b16 %v49
  %v210 = vunpack.c.l.b16 %v50
  %v211 = vunpack.c.l.b16 %v51
  %v212 = vunpack.c.l.b16 %v52
  %v213 = vunpack.c.l.b16 %v53
  %v214 = vunpack.c.l.b16 %v54
  %v215 = vunpack.c.l.b16 %v55
  %v216 = vunpack.c.l.b16 %v56
  %v217 = vunpack.c.l.b16 %v57
  %v218 = vunpack.c.l.b16 %v58
  %v219 = vunpack.c.l.b16 %v59
  %v220 = vunpack.c.l.b16 %v60
  %v221 = vunpack.c.l.b16 %v61
  %v222 = vunpack.c.l.b16 %v62
  %v223 = vunpack.c.l.b16 %v63
  %v224 = vunpack.c.l.b16 %v64
  %v225 = vunpack.c.l.b16 %v65
  %v226 = vunpack.c.l.b16 %v66
  %v227 = vunpack.c.l.b16 %v67
  %v228 = vunpack.c.l.b16 %v68
  %v229 = vunpack.c.l.b16 %v69
  %v230 = vunpack.c.l.b16 %v70
  %v231 = vunpack.c.l.b16 %v71
  %v232 = vunpack.c.l.b16 %v72
  %v233 = vunpack.c.l.b16 %v73
  %v234 = vunpack.c.l.b16 %v74
  %v235 = vunpack.c.l.b16 %v75
  %v236 = vunpack.c.l.b16 %v76
  %v237 = vunpack.c.l.b16 %v77
  %v238 = vunpack.c.l.b16 %v78
  %v239 = vunpack.c.l.b16 %v79
  %v240 = vunpack.c.l.b16 %v80
  %v241 = vunpack.c.l.b16 %v81
  %v242 = vunpack.c.l.b16 %v82
  %v243 = vunpack.c.l.b16 %v83
  %v244 = vunpack.c.l.b16 %v84
  %v245 = vunpack.c.l.b16 %v85
  %v246 = vunpack.c.l.b16 %v86
  %v247 = vunpack.c.l.b16 %v87
  %v248 = vunpack.c.l.b16 %v88
  %v249 = vunpack.c.l.b16 %v89
  %v250 = vunpack.c.l.b16 %v90
  %v251 = vpack.c.b16 %v188, %v187
  %v252 = vpack.c.b16 %v190, %v189
  %v253 = vpack.c.b16 %v192, %v191
  %v254 = vpack.c.b16 %v194, %v193
  %v255 = vpack.c.b16 %v196, %v195
  %v256 = vpack.c.b16 %v198, %v197
  %v257 = vpack.c.b16 %v200, %v199
  %v258 = vpack.c.b16 %v202, %v201
  %v259 = vpack.c.b16 %v204, %v203
  %v260 = vpack.c.b16 %v206, %v205
  %v261 = vpack.c.b16 %v208, %v207
  %v262 = vpack.c.b16 %v210, %v209
  %v263 = vpack.c.b16 %v212, %v211
  %v264 = vpack.c.b16 %v214, %v213
  %v265 = vpack.c.b16 %v216, %v215
  %v266 = vpack.c.b16 %v218, %v217
  %v267 = vpack.c.b16 %v220, %v219
  %v268 = vpack.c.b16 %v222, %v221
  %v269 = vpack.c.b16 %v224, %v223
  %v270 = vpack.c.b16 %v226, %v225
  %v271 = vpack.c.b16 %v228, %v227
  %v272 = vpack.c.b16 %v230, %v229
  %v273 = vpack.c.b16 %v232, %v231
  %v274 = vpack.c.b16 %v234, %v233
  %v275 = vpack.c.b16 %v236, %v235
  %v276 = vpack.c.b16 %v238, %v237
  %v277 = vpack.c.b16 %v240, %v239
  %v278 = vpack.c.b16 %v242, %v241
  %v279 = vpack.c.b16 %v244, %v243
  %v280 = vpack.c.b16 %v246, %v245
  %v281 = vpack.c.b16 %v248, %v247
  %v282 = vpack.c.b16 %v250, %v249
  %v331 = vunpack.c.l.b16 %v107
  %v332 = vunpack.c.h.b16 %v107
  %v333 = vunpack.c.l.b16 %v108
  %v334 = vunpack.c.h.b16 %v108
  %v335 = vunpack.c.l.b16 %v109
  %v336 = vunpack.c.h.b16 %v109
  %v337 = vunpack.c.l.b16 %v110
  %v338 = vunpack.c.h.b16 %v110
  %v339 = vunpack.c.l.b16 %v111
  %v340 = vunpack.c.h.b16 %v111
  %v341 = vunpack.c.l.b16 %v112
  %v342 = vunpack.c.h.b16 %v112
  %v343 = vunpack.c.l.b16 %v113
  %v344 = vunpack.c.h.b16 %v113
  %v345 = vunpack.c.l.b16 %v114
  %v346 = vunpack.c.h.b16 %v114
  %v347 = vunpack.c.l.b16 %v115
  %v348 = vunpack.c.h.b16 %v115
  %v349 = vunpack.c.l.b16 %v116
  %v350 = vunpack.c.h.b16 %v116
  %v351 = vunpack.c.l.b16 %v117
  %v352 = vunpack.c.h.b16 %v117
  %v353 = vunpack.c.l.b16 %v118
  %v354 = vunpack.c.h.b16 %v118
  %v355 = vunpack.c.l.b16 %v119
  %v356 = vunpack.c.h.b16 %v119
  %v357 = vunpack.c.l.b16 %v120
  %v358 = vunpack.c.h.b16 %v120
  %v359 = vunpack.c.l.b16 %v121
  %v360 = vunpack.c.h.b16 %v121
  %v361 = vunpack.c.l.b16 %v122
  %v362 = vunpack.c.h.b16 %v122
  %v363 = vpack.c.b16 %v333, %v331
  %v364 = vpack.c.b16 %v334, %v332
  %v365 = vpack.c.b16 %v337, %v335
  %v366 = vpack.c.b16 %v338, %v336
  %v367 = vpack.c.b16 %v341, %v339
  %v368 = vpack.c.b16 %v342, %v340
  %v369 = vpack.c.b16 %v345, %v343
  %v370 = vpack.c.b16 %v346, %v344
  %v371 = vpack.c.b16 %v349, %v347
  %v372 = vpack.c.b16 %v350, %v348
  %v373 = vpack.c.b16 %v353, %v351
  %v374 = vpack.c.b16 %v354, %v352
  %v375 = vpack.c.b16 %v357, %v355
  %v376 = vpack.c.b16 %v358, %v356
  %v377 = vpack.c.b16 %v361, %v359
  %v378 = vpack.c.b16 %v362, %v360
  %395 = vmatprep.subr.bf16.mxu0 %v364
  %396 = vmatpush1.bf16.msra.mxu0 %v363
  %397 = vmatprep.subr.bf16.mxu0 %v366
  %398 = vmatpush1.bf16.msra.mxu0 %v365
  %399 = vmatprep.subr.bf16.mxu0 %v368
  %400 = vmatpush1.bf16.msra.mxu0 %v367
  %401 = vmatprep.subr.bf16.mxu0 %v370
  %402 = vmatpush1.bf16.msra.mxu0 %v369
  %403 = vmatprep.subr.bf16.mxu0 %v372
  %404 = vmatpush1.bf16.msra.mxu0 %v371
  %405 = vmatprep.subr.bf16.mxu0 %v374
  %406 = vmatpush1.bf16.msra.mxu0 %v373
  %407 = vmatprep.subr.bf16.mxu0 %v376
  %408 = vmatpush1.bf16.msra.mxu0 %v375
  %409 = vmatprep.subr.bf16.mxu0 %v378
  %410 = vmatpush1.bf16.msra.mxu0 %v377
  %411 = vmatprep.subr.bf16.mxu0 0
  %412 = vmatpush1.bf16.msra.mxu0 0
  %413 = vmatprep.subr.bf16.mxu0 0
  %414 = vmatpush1.bf16.msra.mxu0 0
  %415 = vmatprep.subr.bf16.mxu0 0
  %416 = vmatpush1.bf16.msra.mxu0 0
  %417 = vmatprep.subr.bf16.mxu0 0
  %418 = vmatpush1.bf16.msra.mxu0 0
  %419 = vmatprep.subr.bf16.mxu0 0
  %420 = vmatpush1.bf16.msra.mxu0 0
  %421 = vmatprep.subr.bf16.mxu0 0
  %422 = vmatpush1.bf16.msra.mxu0 0
  %423 = vmatprep.subr.bf16.mxu0 0
  %424 = vmatpush1.bf16.msra.mxu0 0
  %425 = vmatprep.subr.bf16.mxu0 0
  %426 = vmatpush1.bf16.msra.mxu0 0
  %427 = vmatprep.mubr.bf16.mxu0 0
  %428 = vmatmul.mubr.bf16.gmra.mrb[0].mxu0 %v251
  %v429 = vpop.f32.mrb[0].mxu0
  %v430 = vadd.f32 0.0, %v429
  %v431 = vpop.f32.mrb[0].mxu0
  %v432 = vadd.f32 0.0, %v431
  %v433 = vpop.f32.mrb[0].mxu0
  %v434 = vadd.f32 0.0, %v433
  %v435 = vpop.f32.mrb[0].mxu0
  %v436 = vadd.f32 0.0, %v435
  %437 = vmatprep.mubr.bf16.mxu0 0
  %438 = vmatmul.mubr.bf16.gmra.mrb[0].mxu0 %v252
  %v439 = vpop.f32.mrb[0].mxu0
  %v440 = vadd.f32 0.0, %v439
  %v441 = vpop.f32.mrb[0].mxu0
  %v442 = vadd.f32 0.0, %v441
  %v443 = vpop.f32.mrb[0].mxu0
  %v444 = vadd.f32 0.0, %v443
  %v445 = vpop.f32.mrb[0].mxu0
  %v446 = vadd.f32 0.0, %v445
  %447 = vmatprep.mubr.bf16.mxu0 0
  %448 = vmatmul.mubr.bf16.gmra.mrb[0].mxu0 %v253
  %v449 = vpop.f32.mrb[0].mxu0
  %v450 = vadd.f32 0.0, %v449
  %v451 = vpop.f32.mrb[0].mxu0
  %v452 = vadd.f32 0.0, %v451
  %v453 = vpop.f32.mrb[0].mxu0
  %v454 = vadd.f32 0.0, %v453
  %v455 = vpop.f32.mrb[0].mxu0
  %v456 = vadd.f32 0.0, %v455
  %457 = vmatprep.mubr.bf16.mxu0 0
  %458 = vmatmul.mubr.bf16.gmra.mrb[0].mxu0 %v254
  %v459 = vpop.f32.mrb[0].mxu0
  %v460 = vadd.f32 0.0, %v459
  %v461 = vpop.f32.mrb[0].mxu0
  %v462 = vadd.f32 0.0, %v461
  %v463 = vpop.f32.mrb[0].mxu0
  %v464 = vadd.f32 0.0, %v463
  %v465 = vpop.f32.mrb[0].mxu0
  %v466 = vadd.f32 0.0, %v465
  %467 = vmatprep.mubr.bf16.mxu0 0
  %468 = vmatmul.mubr.bf16.gmra.mrb[0].mxu0 %v255
  %v469 = vpop.f32.mrb[0].mxu0
  %v470 = vadd.f32 0.0, %v469
  %v471 = vpop.f32.mrb[0].mxu0
  %v472 = vadd.f32 0.0, %v471
  %v473 = vpop.f32.mrb[0].mxu0
  %v474 = vadd.f32 0.0, %v473
  %v475 = vpop.f32.mrb[0].mxu0
  %v476 = vadd.f32 0.0, %v475
  %477 = vmatprep.mubr.bf16.mxu0 0
  %478 = vmatmul.mubr.bf16.gmra.mrb[0].mxu0 %v256
  %v479 = vpop.f32.mrb[0].mxu0
  %v480 = vadd.f32 0.0, %v479
  %v481 = vpop.f32.mrb[0].mxu0
  %v482 = vadd.f32 0.0, %v481
  %v483 = vpop.f32.mrb[0].mxu0
  %v484 = vadd.f32 0.0, %v483
  %v485 = vpop.f32.mrb[0].mxu0
  %v486 = vadd.f32 0.0, %v485
  %487 = vmatprep.mubr.bf16.mxu0 0
  %488 = vmatmul.mubr.bf16.gmra.mrb[0].mxu0 %v257
  %v489 = vpop.f32.mrb[0].mxu0
  %v490 = vadd.f32 0.0, %v489
  %v491 = vpop.f32.mrb[0].mxu0
  %v492 = vadd.f32 0.0, %v491
  %v493 = vpop.f32.mrb[0].mxu0
  %v494 = vadd.f32 0.0, %v493
  %v495 = vpop.f32.mrb[0].mxu0
  %v496 = vadd.f32 0.0, %v495
  %497 = vmatprep.mubr.bf16.mxu0 0
  %498 = vmatmul.mubr.bf16.gmra.mrb[0].mxu0 %v258
  %v499 = vpop.f32.mrb[0].mxu0
  %v500 = vadd.f32 0.0, %v499
  %v501 = vpop.f32.mrb[0].mxu0
  %v502 = vadd.f32 0.0, %v501
  %v503 = vpop.f32.mrb[0].mxu0
  %v504 = vadd.f32 0.0, %v503
  %v505 = vpop.f32.mrb[0].mxu0
  %v506 = vadd.f32 0.0, %v505
  %507 = vmatprep.mubr.bf16.mxu0 0
  %508 = vmatmul.mubr.bf16.gmra.mrb[0].mxu0 %v259
  %v509 = vpop.f32.mrb[0].mxu0
  %v510 = vadd.f32 0.0, %v509
  %v511 = vpop.f32.mrb[0].mxu0
  %v512 = vadd.f32 0.0, %v511
  %v513 = vpop.f32.mrb[0].mxu0
  %v514 = vadd.f32 0.0, %v513
  %v515 = vpop.f32.mrb[0].mxu0
  %v516 = vadd.f32 0.0, %v515
  %517 = vmatprep.mubr.bf16.mxu0 0
  %518 = vmatmul.mubr.bf16.gmra.mrb[0].mxu0 %v260
  %v519 = vpop.f32.mrb[0].mxu0
  %v520 = vadd.f32 0.0, %v519
  %v521 = vpop.f32.mrb[0].mxu0
  %v522 = vadd.f32 0.0, %v521
  %v523 = vpop.f32.mrb[0].mxu0
  %v524 = vadd.f32 0.0, %v523
  %v525 = vpop.f32.mrb[0].mxu0
  %v526 = vadd.f32 0.0, %v525
  %527 = vmatprep.mubr.bf16.mxu0 0
  %528 = vmatmul.mubr.bf16.gmra.mrb[0].mxu0 %v261
  %v529 = vpop.f32.mrb[0].mxu0
  %v530 = vadd.f32 0.0, %v529
  %v531 = vpop.f32.mrb[0].mxu0
  %v532 = vadd.f32 0.0, %v531
  %v533 = vpop.f32.mrb[0].mxu0
  %v534 = vadd.f32 0.0, %v533
  %v535 = vpop.f32.mrb[0].mxu0
  %v536 = vadd.f32 0.0, %v535
  %537 = vmatprep.mubr.bf16.mxu0 0
  %538 = vmatmul.mubr.bf16.gmra.mrb[0].mxu0 %v262
  %v539 = vpop.f32.mrb[0].mxu0
  %v540 = vadd.f32 0.0, %v539
  %v541 = vpop.f32.mrb[0].mxu0
  %v542 = vadd.f32 0.0, %v541
  %v543 = vpop.f32.mrb[0].mxu0
  %v544 = vadd.f32 0.0, %v543
  %v545 = vpop.f32.mrb[0].mxu0
  %v546 = vadd.f32 0.0, %v545
  %547 = vmatprep.mubr.bf16.mxu0 0
  %548 = vmatmul.mubr.bf16.gmra.mrb[0].mxu0 %v263
  %v549 = vpop.f32.mrb[0].mxu0
  %v550 = vadd.f32 0.0, %v549
  %v551 = vpop.f32.mrb[0].mxu0
  %v552 = vadd.f32 0.0, %v551
  %v553 = vpop.f32.mrb[0].mxu0
  %v554 = vadd.f32 0.0, %v553
  %v555 = vpop.f32.mrb[0].mxu0
  %v556 = vadd.f32 0.0, %v555
  %557 = vmatprep.mubr.bf16.mxu0 0
  %558 = vmatmul.mubr.bf16.gmra.mrb[0].mxu0 %v264
  %v559 = vpop.f32.mrb[0].mxu0
  %v560 = vadd.f32 0.0, %v559
  %v561 = vpop.f32.mrb[0].mxu0
  %v562 = vadd.f32 0.0, %v561
  %v563 = vpop.f32.mrb[0].mxu0
  %v564 = vadd.f32 0.0, %v563
  %v565 = vpop.f32.mrb[0].mxu0
  %v566 = vadd.f32 0.0, %v565
  %567 = vmatprep.mubr.bf16.mxu0 0
  %568 = vmatmul.mubr.bf16.gmra.mrb[0].mxu0 %v265
  %v569 = vpop.f32.mrb[0].mxu0
  %v570 = vadd.f32 0.0, %v569
  %v571 = vpop.f32.mrb[0].mxu0
  %v572 = vadd.f32 0.0, %v571
  %v573 = vpop.f32.mrb[0].mxu0
  %v574 = vadd.f32 0.0, %v573
  %v575 = vpop.f32.mrb[0].mxu0
  %v576 = vadd.f32 0.0, %v575
  %577 = vmatprep.mubr.bf16.mxu0 0
  %578 = vmatmul.mubr.bf16.gmra.mrb[0].mxu0 %v266
  %v579 = vpop.f32.mrb[0].mxu0
  %v580 = vadd.f32 0.0, %v579
  %v581 = vpop.f32.mrb[0].mxu0
  %v582 = vadd.f32 0.0, %v581
  %v583 = vpop.f32.mrb[0].mxu0
  %v584 = vadd.f32 0.0, %v583
  %v585 = vpop.f32.mrb[0].mxu0
  %v586 = vadd.f32 0.0, %v585
  %587 = vmatprep.mubr.bf16.mxu0 0
  %588 = vmatmul.mubr.bf16.gmra.mrb[0].mxu0 %v267
  %v589 = vpop.f32.mrb[0].mxu0
  %v590 = vadd.f32 0.0, %v589
  %v591 = vpop.f32.mrb[0].mxu0
  %v592 = vadd.f32 0.0, %v591
  %v593 = vpop.f32.mrb[0].mxu0
  %v594 = vadd.f32 0.0, %v593
  %v595 = vpop.f32.mrb[0].mxu0
  %v596 = vadd.f32 0.0, %v595
  %597 = vmatprep.mubr.bf16.mxu0 0
  %598 = vmatmul.mubr.bf16.gmra.mrb[0].mxu0 %v268
  %v599 = vpop.f32.mrb[0].mxu0
  %v600 = vadd.f32 0.0, %v599
  %v601 = vpop.f32.mrb[0].mxu0
  %v602 = vadd.f32 0.0, %v601
  %v603 = vpop.f32.mrb[0].mxu0
  %v604 = vadd.f32 0.0, %v603
  %v605 = vpop.f32.mrb[0].mxu0
  %v606 = vadd.f32 0.0, %v605
  %607 = vmatprep.mubr.bf16.mxu0 0
  %608 = vmatmul.mubr.bf16.gmra.mrb[0].mxu0 %v269
  %v609 = vpop.f32.mrb[0].mxu0
  %v610 = vadd.f32 0.0, %v609
  %v611 = vpop.f32.mrb[0].mxu0
  %v612 = vadd.f32 0.0, %v611
  %v613 = vpop.f32.mrb[0].mxu0
  %v614 = vadd.f32 0.0, %v613
  %v615 = vpop.f32.mrb[0].mxu0
  %v616 = vadd.f32 0.0, %v615
  %617 = vmatprep.mubr.bf16.mxu0 0
  %618 = vmatmul.mubr.bf16.gmra.mrb[0].mxu0 %v270
  %v619 = vpop.f32.mrb[0].mxu0
  %v620 = vadd.f32 0.0, %v619
  %v621 = vpop.f32.mrb[0].mxu0
  %v622 = vadd.f32 0.0, %v621
  %v623 = vpop.f32.mrb[0].mxu0
  %v624 = vadd.f32 0.0, %v623
  %v625 = vpop.f32.mrb[0].mxu0
  %v626 = vadd.f32 0.0, %v625
  %627 = vmatprep.mubr.bf16.mxu0 0
  %628 = vmatmul.mubr.bf16.gmra.mrb[0].mxu0 %v271
  %v629 = vpop.f32.mrb[0].mxu0
  %v630 = vadd.f32 0.0, %v629
  %v631 = vpop.f32.mrb[0].mxu0
  %v632 = vadd.f32 0.0, %v631
  %v633 = vpop.f32.mrb[0].mxu0
  %v634 = vadd.f32 0.0, %v633
  %v635 = vpop.f32.mrb[0].mxu0
  %v636 = vadd.f32 0.0, %v635
  %637 = vmatprep.mubr.bf16.mxu0 0
  %638 = vmatmul.mubr.bf16.gmra.mrb[0].mxu0 %v272
  %v639 = vpop.f32.mrb[0].mxu0
  %v640 = vadd.f32 0.0, %v639
  %v641 = vpop.f32.mrb[0].mxu0
  %v642 = vadd.f32 0.0, %v641
  %v643 = vpop.f32.mrb[0].mxu0
  %v644 = vadd.f32 0.0, %v643
  %v645 = vpop.f32.mrb[0].mxu0
  %v646 = vadd.f32 0.0, %v645
  %647 = vmatprep.mubr.bf16.mxu0 0
  %648 = vmatmul.mubr.bf16.gmra.mrb[0].mxu0 %v273
  %v649 = vpop.f32.mrb[0].mxu0
  %v650 = vadd.f32 0.0, %v649
  %v651 = vpop.f32.mrb[0].mxu0
  %v652 = vadd.f32 0.0, %v651
  %v653 = vpop.f32.mrb[0].mxu0
  %v654 = vadd.f32 0.0, %v653
  %v655 = vpop.f32.mrb[0].mxu0
  %v656 = vadd.f32 0.0, %v655
  %657 = vmatprep.mubr.bf16.mxu0 0
  %658 = vmatmul.mubr.bf16.gmra.mrb[0].mxu0 %v274
  %v659 = vpop.f32.mrb[0].mxu0
  %v660 = vadd.f32 0.0, %v659
  %v661 = vpop.f32.mrb[0].mxu0
  %v662 = vadd.f32 0.0, %v661
  %v663 = vpop.f32.mrb[0].mxu0
  %v664 = vadd.f32 0.0, %v663
  %v665 = vpop.f32.mrb[0].mxu0
  %v666 = vadd.f32 0.0, %v665
  %667 = vmatprep.mubr.bf16.mxu0 0
  %668 = vmatmul.mubr.bf16.gmra.mrb[0].mxu0 %v275
  %v669 = vpop.f32.mrb[0].mxu0
  %v670 = vadd.f32 0.0, %v669
  %v671 = vpop.f32.mrb[0].mxu0
  %v672 = vadd.f32 0.0, %v671
  %v673 = vpop.f32.mrb[0].mxu0
  %v674 = vadd.f32 0.0, %v673
  %v675 = vpop.f32.mrb[0].mxu0
  %v676 = vadd.f32 0.0, %v675
  %677 = vmatprep.mubr.bf16.mxu0 0
  %678 = vmatmul.mubr.bf16.gmra.mrb[0].mxu0 %v276
  %v679 = vpop.f32.mrb[0].mxu0
  %v680 = vadd.f32 0.0, %v679
  %v681 = vpop.f32.mrb[0].mxu0
  %v682 = vadd.f32 0.0, %v681
  %v683 = vpop.f32.mrb[0].mxu0
  %v684 = vadd.f32 0.0, %v683
  %v685 = vpop.f32.mrb[0].mxu0
  %v686 = vadd.f32 0.0, %v685
  %687 = vmatprep.mubr.bf16.mxu0 0
  %688 = vmatmul.mubr.bf16.gmra.mrb[0].mxu0 %v277
  %v689 = vpop.f32.mrb[0].mxu0
  %v690 = vadd.f32 0.0, %v689
  %v691 = vpop.f32.mrb[0].mxu0
  %v692 = vadd.f32 0.0, %v691
  %v693 = vpop.f32.mrb[0].mxu0
  %v694 = vadd.f32 0.0, %v693
  %v695 = vpop.f32.mrb[0].mxu0
  %v696 = vadd.f32 0.0, %v695
  %697 = vmatprep.mubr.bf16.mxu0 0
  %698 = vmatmul.mubr.bf16.gmra.mrb[0].mxu0 %v278
  %v699 = vpop.f32.mrb[0].mxu0
  %v700 = vadd.f32 0.0, %v699
  %v701 = vpop.f32.mrb[0].mxu0
  %v702 = vadd.f32 0.0, %v701
  %v703 = vpop.f32.mrb[0].mxu0
  %v704 = vadd.f32 0.0, %v703
  %v705 = vpop.f32.mrb[0].mxu0
  %v706 = vadd.f32 0.0, %v705
  %707 = vmatprep.mubr.bf16.mxu0 0
  %708 = vmatmul.mubr.bf16.gmra.mrb[0].mxu0 %v279
  %v709 = vpop.f32.mrb[0].mxu0
  %v710 = vadd.f32 0.0, %v709
  %v711 = vpop.f32.mrb[0].mxu0
  %v712 = vadd.f32 0.0, %v711
  %v713 = vpop.f32.mrb[0].mxu0
  %v714 = vadd.f32 0.0, %v713
  %v715 = vpop.f32.mrb[0].mxu0
  %v716 = vadd.f32 0.0, %v715
  %717 = vmatprep.mubr.bf16.mxu0 0
  %718 = vmatmul.mubr.bf16.gmra.mrb[0].mxu0 %v280
  %v719 = vpop.f32.mrb[0].mxu0
  %v720 = vadd.f32 0.0, %v719
  %v721 = vpop.f32.mrb[0].mxu0
  %v722 = vadd.f32 0.0, %v721
  %v723 = vpop.f32.mrb[0].mxu0
  %v724 = vadd.f32 0.0, %v723
  %v725 = vpop.f32.mrb[0].mxu0
  %v726 = vadd.f32 0.0, %v725
  %727 = vmatprep.mubr.bf16.mxu0 0
  %728 = vmatmul.mubr.bf16.gmra.mrb[0].mxu0 %v281
  %v729 = vpop.f32.mrb[0].mxu0
  %v730 = vadd.f32 0.0, %v729
  %v731 = vpop.f32.mrb[0].mxu0
  %v732 = vadd.f32 0.0, %v731
  %v733 = vpop.f32.mrb[0].mxu0
  %v734 = vadd.f32 0.0, %v733
  %v735 = vpop.f32.mrb[0].mxu0
  %v736 = vadd.f32 0.0, %v735
  %737 = vmatprep.mubr.bf16.mxu0 0
  %738 = vmatmul.mubr.bf16.gmra.mrb[0].mxu0 %v282
  %v739 = vpop.f32.mrb[0].mxu0
  %v740 = vadd.f32 0.0, %v739
  %v741 = vpop.f32.mrb[0].mxu0
  %v742 = vadd.f32 0.0, %v741
  %v743 = vpop.f32.mrb[0].mxu0
  %v744 = vadd.f32 0.0, %v743
  %v745 = vpop.f32.mrb[0].mxu0
  %v746 = vadd.f32 0.0, %v745
  %747 = vdwg.mxu0
  %v748 = vmax.f32 %v430, %v510
  %v749 = vmax.f32 %v432, %v512
  %v750 = vmax.f32 %v434, %v514
  %v751 = vmax.f32 %v436, %v516
  %v752 = vmax.f32 %v440, %v520
  %v753 = vmax.f32 %v442, %v522
  %v754 = vmax.f32 %v444, %v524
  %v755 = vmax.f32 %v446, %v526
  %v756 = vmax.f32 %v450, %v530
  %v757 = vmax.f32 %v452, %v532
  %v758 = vmax.f32 %v454, %v534
  %v759 = vmax.f32 %v456, %v536
  %v760 = vmax.f32 %v460, %v540
  %v761 = vmax.f32 %v462, %v542
  %v762 = vmax.f32 %v464, %v544
  %v763 = vmax.f32 %v466, %v546
  %v764 = vmax.f32 %v470, %v550
  %v765 = vmax.f32 %v472, %v552
  %v766 = vmax.f32 %v474, %v554
  %v767 = vmax.f32 %v476, %v556
  %v768 = vmax.f32 %v480, %v560
  %v769 = vmax.f32 %v482, %v562
  %v770 = vmax.f32 %v484, %v564
  %v771 = vmax.f32 %v486, %v566
  %v772 = vmax.f32 %v490, %v570
  %v773 = vmax.f32 %v492, %v572
  %v774 = vmax.f32 %v494, %v574
  %v775 = vmax.f32 %v496, %v576
  %v776 = vmax.f32 %v500, %v580
  %v777 = vmax.f32 %v502, %v582
  %v778 = vmax.f32 %v504, %v584
  %v779 = vmax.f32 %v506, %v586
  %v780 = vmax.f32 %v590, %v670
  %v781 = vmax.f32 %v592, %v672
  %v782 = vmax.f32 %v594, %v674
  %v783 = vmax.f32 %v596, %v676
  %v784 = vmax.f32 %v600, %v680
  %v785 = vmax.f32 %v602, %v682
  %v786 = vmax.f32 %v604, %v684
  %v787 = vmax.f32 %v606, %v686
  %v788 = vmax.f32 %v610, %v690
  %v789 = vmax.f32 %v612, %v692
  %v790 = vmax.f32 %v614, %v694
  %v791 = vmax.f32 %v616, %v696
  %v792 = vmax.f32 %v620, %v700
  %v793 = vmax.f32 %v622, %v702
  %v794 = vmax.f32 %v624, %v704
  %v795 = vmax.f32 %v626, %v706
  %v796 = vmax.f32 %v630, %v710
  %v797 = vmax.f32 %v632, %v712
  %v798 = vmax.f32 %v634, %v714
  %v799 = vmax.f32 %v636, %v716
  %v800 = vmax.f32 %v640, %v720
  %v801 = vmax.f32 %v642, %v722
  %v802 = vmax.f32 %v644, %v724
  %v803 = vmax.f32 %v646, %v726
  %v804 = vmax.f32 %v650, %v730
  %v805 = vmax.f32 %v652, %v732
  %v806 = vmax.f32 %v654, %v734
  %v807 = vmax.f32 %v656, %v736
  %v808 = vmax.f32 %v660, %v740
  %v809 = vmax.f32 %v662, %v742
  %v810 = vmax.f32 %v664, %v744
  %v811 = vmax.f32 %v666, %v746
  %v812 = vmax.f32 %v748, %v780
  %v813 = vmax.f32 %v749, %v781
  %v814 = vmax.f32 %v750, %v782
  %v815 = vmax.f32 %v751, %v783
  %v816 = vmax.f32 %v752, %v784
  %v817 = vmax.f32 %v753, %v785
  %v818 = vmax.f32 %v754, %v786
  %v819 = vmax.f32 %v755, %v787
  %v820 = vmax.f32 %v756, %v788
  %v821 = vmax.f32 %v757, %v789
  %v822 = vmax.f32 %v758, %v790
  %v823 = vmax.f32 %v759, %v791
  %v824 = vmax.f32 %v760, %v792
  %v825 = vmax.f32 %v761, %v793
  %v826 = vmax.f32 %v762, %v794
  %v827 = vmax.f32 %v763, %v795
  %v828 = vmax.f32 %v764, %v796
  %v829 = vmax.f32 %v765, %v797
  %v830 = vmax.f32 %v766, %v798
  %v831 = vmax.f32 %v767, %v799
  %v832 = vmax.f32 %v768, %v800
  %v833 = vmax.f32 %v769, %v801
  %v834 = vmax.f32 %v770, %v802
  %v835 = vmax.f32 %v771, %v803
  %v836 = vmax.f32 %v772, %v804
  %v837 = vmax.f32 %v773, %v805
  %v838 = vmax.f32 %v774, %v806
  %v839 = vmax.f32 %v775, %v807
  %v840 = vmax.f32 %v776, %v808
  %v841 = vmax.f32 %v777, %v809
  %v842 = vmax.f32 %v778, %v810
  %v843 = vmax.f32 %v779, %v811
  %845 = vset.pattern.permute.xlu0 0
  %846 = vperm.xlu0 %845, %v91
  %v847 = vpop.permute.xlu0 %846
  %850 = vset.pattern.permute.xlu0 0
  %851 = vperm.xlu0 %850, %v92
  %v852 = vpop.permute.xlu0 %851
  %855 = vset.pattern.permute.xlu0 0
  %856 = vperm.xlu0 %855, %v93
  %v857 = vpop.permute.xlu0 %856
  %860 = vset.pattern.permute.xlu0 0
  %861 = vperm.xlu0 %860, %v94
  %v862 = vpop.permute.xlu0 %861
  %865 = vset.pattern.permute.xlu0 0
  %866 = vperm.xlu0 %865, %v95
  %v867 = vpop.permute.xlu0 %866
  %870 = vset.pattern.permute.xlu0 0
  %871 = vperm.xlu0 %870, %v96
  %v872 = vpop.permute.xlu0 %871
  %875 = vset.pattern.permute.xlu0 0
  %876 = vperm.xlu0 %875, %v97
  %v877 = vpop.permute.xlu0 %876
  %880 = vset.pattern.permute.xlu0 0
  %881 = vperm.xlu0 %880, %v98
  %v882 = vpop.permute.xlu0 %881
  %885 = vset.pattern.permute.xlu0 0
  %886 = vperm.xlu0 %885, %v99
  %v887 = vpop.permute.xlu0 %886
  %890 = vset.pattern.permute.xlu0 0
  %891 = vperm.xlu0 %890, %v100
  %v892 = vpop.permute.xlu0 %891
  %895 = vset.pattern.permute.xlu0 0
  %896 = vperm.xlu0 %895, %v101
  %v897 = vpop.permute.xlu0 %896
  %900 = vset.pattern.permute.xlu0 0
  %901 = vperm.xlu0 %900, %v102
  %v902 = vpop.permute.xlu0 %901
  %905 = vset.pattern.permute.xlu0 0
  %906 = vperm.xlu0 %905, %v103
  %v907 = vpop.permute.xlu0 %906
  %910 = vset.pattern.permute.xlu0 0
  %911 = vperm.xlu0 %910, %v104
  %v912 = vpop.permute.xlu0 %911
  %915 = vset.pattern.permute.xlu0 0
  %916 = vperm.xlu0 %915, %v105
  %v917 = vpop.permute.xlu0 %916
  %920 = vset.pattern.permute.xlu0 0
  %921 = vperm.xlu0 %920, %v106
  %v922 = vpop.permute.xlu0 %921
  %v924 = vadd.f32 %v812, %v847
  %v925 = vadd.f32 %v813, %v847
  %v926 = vadd.f32 %v814, %v852
  %v927 = vadd.f32 %v815, %v852
  %v928 = vadd.f32 %v816, %v857
  %v929 = vadd.f32 %v817, %v857
  %v930 = vadd.f32 %v818, %v862
  %v931 = vadd.f32 %v819, %v862
  %v932 = vadd.f32 %v820, %v867
  %v933 = vadd.f32 %v821, %v867
  %v934 = vadd.f32 %v822, %v872
  %v935 = vadd.f32 %v823, %v872
  %v936 = vadd.f32 %v824, %v877
  %v937 = vadd.f32 %v825, %v877
  %v938 = vadd.f32 %v826, %v882
  %v939 = vadd.f32 %v827, %v882
  %v940 = vadd.f32 %v828, %v887
  %v941 = vadd.f32 %v829, %v887
  %v942 = vadd.f32 %v830, %v892
  %v943 = vadd.f32 %v831, %v892
  %v944 = vadd.f32 %v832, %v897
  %v945 = vadd.f32 %v833, %v897
  %v946 = vadd.f32 %v834, %v902
  %v947 = vadd.f32 %v835, %v902
  %v948 = vadd.f32 %v836, %v907
  %v949 = vadd.f32 %v837, %v907
  %v950 = vadd.f32 %v838, %v912
  %v951 = vadd.f32 %v839, %v912
  %v952 = vadd.f32 %v840, %v917
  %v953 = vadd.f32 %v841, %v917
  %v954 = vadd.f32 %v842, %v922
  %v955 = vadd.f32 %v843, %v922
  %v956 = vmax.f32 %v924, 0.0
  %v957 = vmax.f32 %v925, 0.0
  %v958 = vmax.f32 %v926, 0.0
  %v959 = vmax.f32 %v927, 0.0
  %v960 = vmax.f32 %v928, 0.0
  %v961 = vmax.f32 %v929, 0.0
  %v962 = vmax.f32 %v930, 0.0
  %v963 = vmax.f32 %v931, 0.0
  %v964 = vmax.f32 %v932, 0.0
  %v965 = vmax.f32 %v933, 0.0
  %v966 = vmax.f32 %v934, 0.0
  %v967 = vmax.f32 %v935, 0.0
  %v968 = vmax.f32 %v936, 0.0
  %v969 = vmax.f32 %v937, 0.0
  %v970 = vmax.f32 %v938, 0.0
  %v971 = vmax.f32 %v939, 0.0
  %v972 = vmax.f32 %v940, 0.0
  %v973 = vmax.f32 %v941, 0.0
  %v974 = vmax.f32 %v942, 0.0
  %v975 = vmax.f32 %v943, 0.0
  %v976 = vmax.f32 %v944, 0.0
  %v977 = vmax.f32 %v945, 0.0
  %v978 = vmax.f32 %v946, 0.0
  %v979 = vmax.f32 %v947, 0.0
  %v980 = vmax.f32 %v948, 0.0
  %v981 = vmax.f32 %v949, 0.0
  %v982 = vmax.f32 %v950, 0.0
  %v983 = vmax.f32 %v951, 0.0
  %v984 = vmax.f32 %v952, 0.0
  %v985 = vmax.f32 %v953, 0.0
  %v986 = vmax.f32 %v954, 0.0
  %v987 = vmax.f32 %v955, 0.0
  %v988 = vld [vmem:[%s3] sm:$0xf]
  %v989 = vld [vmem:[%s3 + $0x4] sm:$0xf]
  %v990 = vpack.c.bf16 %v958, %v956
  %v991 = vpack.c.bf16 %v959, %v957
  %v992 = vpack.c.bf16 %v962, %v960
  %v993 = vpack.c.bf16 %v963, %v961
  %v994 = vpack.c.bf16 %v966, %v964
  %v995 = vpack.c.bf16 %v967, %v965
  %v996 = vpack.c.bf16 %v970, %v968
  %v997 = vpack.c.bf16 %v971, %v969
  %v998 = vpack.c.bf16 %v974, %v972
  %v999 = vpack.c.bf16 %v975, %v973
  %v1000 = vpack.c.bf16 %v978, %v976
  %v1001 = vpack.c.bf16 %v979, %v977
  %v1002 = vpack.c.bf16 %v982, %v980
  %v1003 = vpack.c.bf16 %v983, %v981
  %v1004 = vpack.c.bf16 %v986, %v984
  %v1005 = vpack.c.bf16 %v987, %v985
  %v1006 = vld [vmem:[%s0 + $0x40] sm:$0xff]
  %v1007 = vld [vmem:[%s0 + $0x48] sm:$0xff]
  %v1008 = vld [vmem:[%s0 + $0x50] sm:$0xff]
  %v1009 = vld [vmem:[%s0 + $0x58] sm:$0xff]
  %v1010 = vld [vmem:[%s0 + $0x60] sm:$0xff]
  %v1011 = vld [vmem:[%s0 + $0x68] sm:$0xff]
  %v1012 = vld [vmem:[%s0 + $0x70] sm:$0xff]
  %v1013 = vld [vmem:[%s0 + $0x78] sm:$0xff]
  %v1014 = vld [vmem:[%s0 + $0x80] sm:$0xff]
  %v1015 = vld [vmem:[%s0 + $0x88] sm:$0xff]
  %v1016 = vld [vmem:[%s0 + $0x90] sm:$0xff]
  %v1017 = vld [vmem:[%s0 + $0x98] sm:$0xff]
  %v1018 = vld [vmem:[%s0 + $0xa0] sm:$0xff]
  %v1019 = vld [vmem:[%s0 + $0xa8] sm:$0xff]
  %v1020 = vld [vmem:[%s0 + $0xb0] sm:$0xff]
  %v1021 = vld [vmem:[%s0 + $0xb8] sm:$0xff]
  %v1038 = vunpack.c.l.b16 %v1006
  %v1039 = vunpack.c.h.b16 %v1006
  %v1040 = vunpack.c.l.b16 %v1007
  %v1041 = vunpack.c.h.b16 %v1007
  %v1042 = vunpack.c.l.b16 %v1008
  %v1043 = vunpack.c.h.b16 %v1008
  %v1044 = vunpack.c.l.b16 %v1009
  %v1045 = vunpack.c.h.b16 %v1009
  %v1046 = vunpack.c.l.b16 %v1010
  %v1047 = vunpack.c.h.b16 %v1010
  %v1048 = vunpack.c.l.b16 %v1011
  %v1049 = vunpack.c.h.b16 %v1011
  %v1050 = vunpack.c.l.b16 %v1012
  %v1051 = vunpack.c.h.b16 %v1012
  %v1052 = vunpack.c.l.b16 %v1013
  %v1053 = vunpack.c.h.b16 %v1013
  %v1054 = vunpack.c.l.b16 %v1014
  %v1055 = vunpack.c.h.b16 %v1014
  %v1056 = vunpack.c.l.b16 %v1015
  %v1057 = vunpack.c.h.b16 %v1015
  %v1058 = vunpack.c.l.b16 %v1016
  %v1059 = vunpack.c.h.b16 %v1016
  %v1060 = vunpack.c.l.b16 %v1017
  %v1061 = vunpack.c.h.b16 %v1017
  %v1062 = vunpack.c.l.b16 %v1018
  %v1063 = vunpack.c.h.b16 %v1018
  %v1064 = vunpack.c.l.b16 %v1019
  %v1065 = vunpack.c.h.b16 %v1019
  %v1066 = vunpack.c.l.b16 %v1020
  %v1067 = vunpack.c.h.b16 %v1020
  %v1068 = vunpack.c.l.b16 %v1021
  %v1069 = vunpack.c.h.b16 %v1021
  %v1070 = vpack.c.b16 %v1040, %v1038
  %v1071 = vpack.c.b16 %v1041, %v1039
  %v1072 = vpack.c.b16 %v1044, %v1042
  %v1073 = vpack.c.b16 %v1045, %v1043
  %v1074 = vpack.c.b16 %v1048, %v1046
  %v1075 = vpack.c.b16 %v1049, %v1047
  %v1076 = vpack.c.b16 %v1052, %v1050
  %v1077 = vpack.c.b16 %v1053, %v1051
  %v1078 = vpack.c.b16 %v1056, %v1054
  %v1079 = vpack.c.b16 %v1057, %v1055
  %v1080 = vpack.c.b16 %v1060, %v1058
  %v1081 = vpack.c.b16 %v1061, %v1059
  %v1082 = vpack.c.b16 %v1064, %v1062
  %v1083 = vpack.c.b16 %v1065, %v1063
  %v1084 = vpack.c.b16 %v1068, %v1066
  %v1085 = vpack.c.b16 %v1069, %v1067
  %1102 = vmatprep.subr.bf16.mxu0 %v1071
  %1103 = vmatpush1.bf16.msra.mxu0 %v1070
  %1104 = vmatprep.subr.bf16.mxu0 %v1073
  %1105 = vmatpush1.bf16.msra.mxu0 %v1072
  %1106 = vmatprep.subr.bf16.mxu0 %v1075
  %1107 = vmatpush1.bf16.msra.mxu0 %v1074
  %1108 = vmatprep.subr.bf16.mxu0 %v1077
  %1109 = vmatpush1.bf16.msra.mxu0 %v1076
  %1110 = vmatprep.subr.bf16.mxu0 %v1079
  %1111 = vmatpush1.bf16.msra.mxu0 %v1078
  %1112 = vmatprep.subr.bf16.mxu0 %v1081
  %1113 = vmatpush1.bf16.msra.mxu0 %v1080
  %1114 = vmatprep.subr.bf16.mxu0 %v1083
  %1115 = vmatpush1.bf16.msra.mxu0 %v1082
  %1116 = vmatprep.subr.bf16.mxu0 %v1085
  %1117 = vmatpush1.bf16.msra.mxu0 %v1084
  %1118 = vmatprep.subr.bf16.mxu0 0
  %1119 = vmatpush1.bf16.msra.mxu0 0
  %1120 = vmatprep.subr.bf16.mxu0 0
  %1121 = vmatpush1.bf16.msra.mxu0 0
  %1122 = vmatprep.subr.bf16.mxu0 0
  %1123 = vmatpush1.bf16.msra.mxu0 0
  %1124 = vmatprep.subr.bf16.mxu0 0
  %1125 = vmatpush1.bf16.msra.mxu0 0
  %1126 = vmatprep.subr.bf16.mxu0 0
  %1127 = vmatpush1.bf16.msra.mxu0 0
  %1128 = vmatprep.subr.bf16.mxu0 0
  %1129 = vmatpush1.bf16.msra.mxu0 0
  %1130 = vmatprep.subr.bf16.mxu0 0
  %1131 = vmatpush1.bf16.msra.mxu0 0
  %1132 = vmatprep.subr.bf16.mxu0 0
  %1133 = vmatpush1.bf16.msra.mxu0 0
  %1134 = vmatprep.mubr.bf16.mxu0 0
  %1135 = vmatmul.mubr.bf16.gmra.mrb[0].mxu0 %v251
  %v1136 = vpop.f32.mrb[0].mxu0
  %v1137 = vadd.f32 0.0, %v1136
  %v1138 = vpop.f32.mrb[0].mxu0
  %v1139 = vadd.f32 0.0, %v1138
  %v1140 = vpop.f32.mrb[0].mxu0
  %v1141 = vadd.f32 0.0, %v1140
  %v1142 = vpop.f32.mrb[0].mxu0
  %v1143 = vadd.f32 0.0, %v1142
  %1144 = vmatprep.mubr.bf16.mxu0 0
  %1145 = vmatmul.mubr.bf16.gmra.mrb[0].mxu0 %v252
  %v1146 = vpop.f32.mrb[0].mxu0
  %v1147 = vadd.f32 0.0, %v1146
  %v1148 = vpop.f32.mrb[0].mxu0
  %v1149 = vadd.f32 0.0, %v1148
  %v1150 = vpop.f32.mrb[0].mxu0
  %v1151 = vadd.f32 0.0, %v1150
  %v1152 = vpop.f32.mrb[0].mxu0
  %v1153 = vadd.f32 0.0, %v1152
  %1154 = vmatprep.mubr.bf16.mxu0 0
  %1155 = vmatmul.mubr.bf16.gmra.mrb[0].mxu0 %v253
  %v1156 = vpop.f32.mrb[0].mxu0
  %v1157 = vadd.f32 0.0, %v1156
  %v1158 = vpop.f32.mrb[0].mxu0
  %v1159 = vadd.f32 0.0, %v1158
  %v1160 = vpop.f32.mrb[0].mxu0
  %v1161 = vadd.f32 0.0, %v1160
  %v1162 = vpop.f32.mrb[0].mxu0
  %v1163 = vadd.f32 0.0, %v1162
  %1164 = vmatprep.mubr.bf16.mxu0 0
  %1165 = vmatmul.mubr.bf16.gmra.mrb[0].mxu0 %v254
  %v1166 = vpop.f32.mrb[0].mxu0
  %v1167 = vadd.f32 0.0, %v1166
  %v1168 = vpop.f32.mrb[0].mxu0
  %v1169 = vadd.f32 0.0, %v1168
  %v1170 = vpop.f32.mrb[0].mxu0
  %v1171 = vadd.f32 0.0, %v1170
  %v1172 = vpop.f32.mrb[0].mxu0
  %v1173 = vadd.f32 0.0, %v1172
  %1174 = vmatprep.mubr.bf16.mxu0 0
  %1175 = vmatmul.mubr.bf16.gmra.mrb[0].mxu0 %v255
  %v1176 = vpop.f32.mrb[0].mxu0
  %v1177 = vadd.f32 0.0, %v1176
  %v1178 = vpop.f32.mrb[0].mxu0
  %v1179 = vadd.f32 0.0, %v1178
  %v1180 = vpop.f32.mrb[0].mxu0
  %v1181 = vadd.f32 0.0, %v1180
  %v1182 = vpop.f32.mrb[0].mxu0
  %v1183 = vadd.f32 0.0, %v1182
  %1184 = vmatprep.mubr.bf16.mxu0 0
  %1185 = vmatmul.mubr.bf16.gmra.mrb[0].mxu0 %v256
  %v1186 = vpop.f32.mrb[0].mxu0
  %v1187 = vadd.f32 0.0, %v1186
  %v1188 = vpop.f32.mrb[0].mxu0
  %v1189 = vadd.f32 0.0, %v1188
  %v1190 = vpop.f32.mrb[0].mxu0
  %v1191 = vadd.f32 0.0, %v1190
  %v1192 = vpop.f32.mrb[0].mxu0
  %v1193 = vadd.f32 0.0, %v1192
  %1194 = vmatprep.mubr.bf16.mxu0 0
  %1195 = vmatmul.mubr.bf16.gmra.mrb[0].mxu0 %v257
  %v1196 = vpop.f32.mrb[0].mxu0
  %v1197 = vadd.f32 0.0, %v1196
  %v1198 = vpop.f32.mrb[0].mxu0
  %v1199 = vadd.f32 0.0, %v1198
  %v1200 = vpop.f32.mrb[0].mxu0
  %v1201 = vadd.f32 0.0, %v1200
  %v1202 = vpop.f32.mrb[0].mxu0
  %v1203 = vadd.f32 0.0, %v1202
  %1204 = vmatprep.mubr.bf16.mxu0 0
  %1205 = vmatmul.mubr.bf16.gmra.mrb[0].mxu0 %v258
  %v1206 = vpop.f32.mrb[0].mxu0
  %v1207 = vadd.f32 0.0, %v1206
  %v1208 = vpop.f32.mrb[0].mxu0
  %v1209 = vadd.f32 0.0, %v1208
  %v1210 = vpop.f32.mrb[0].mxu0
  %v1211 = vadd.f32 0.0, %v1210
  %v1212 = vpop.f32.mrb[0].mxu0
  %v1213 = vadd.f32 0.0, %v1212
  %1214 = vmatprep.mubr.bf16.mxu0 0
  %1215 = vmatmul.mubr.bf16.gmra.mrb[0].mxu0 %v259
  %v1216 = vpop.f32.mrb[0].mxu0
  %v1217 = vadd.f32 0.0, %v1216
  %v1218 = vpop.f32.mrb[0].mxu0
  %v1219 = vadd.f32 0.0, %v1218
  %v1220 = vpop.f32.mrb[0].mxu0
  %v1221 = vadd.f32 0.0, %v1220
  %v1222 = vpop.f32.mrb[0].mxu0
  %v1223 = vadd.f32 0.0, %v1222
  %1224 = vmatprep.mubr.bf16.mxu0 0
  %1225 = vmatmul.mubr.bf16.gmra.mrb[0].mxu0 %v260
  %v1226 = vpop.f32.mrb[0].mxu0
  %v1227 = vadd.f32 0.0, %v1226
  %v1228 = vpop.f32.mrb[0].mxu0
  %v1229 = vadd.f32 0.0, %v1228
  %v1230 = vpop.f32.mrb[0].mxu0
  %v1231 = vadd.f32 0.0, %v1230
  %v1232 = vpop.f32.mrb[0].mxu0
  %v1233 = vadd.f32 0.0, %v1232
  %1234 = vmatprep.mubr.bf16.mxu0 0
  %1235 = vmatmul.mubr.bf16.gmra.mrb[0].mxu0 %v261
  %v1236 = vpop.f32.mrb[0].mxu0
  %v1237 = vadd.f32 0.0, %v1236
  %v1238 = vpop.f32.mrb[0].mxu0
  %v1239 = vadd.f32 0.0, %v1238
  %v1240 = vpop.f32.mrb[0].mxu0
  %v1241 = vadd.f32 0.0, %v1240
  %v1242 = vpop.f32.mrb[0].mxu0
  %v1243 = vadd.f32 0.0, %v1242
  %1244 = vmatprep.mubr.bf16.mxu0 0
  %1245 = vmatmul.mubr.bf16.gmra.mrb[0].mxu0 %v262
  %v1246 = vpop.f32.mrb[0].mxu0
  %v1247 = vadd.f32 0.0, %v1246
  %v1248 = vpop.f32.mrb[0].mxu0
  %v1249 = vadd.f32 0.0, %v1248
  %v1250 = vpop.f32.mrb[0].mxu0
  %v1251 = vadd.f32 0.0, %v1250
  %v1252 = vpop.f32.mrb[0].mxu0
  %v1253 = vadd.f32 0.0, %v1252
  %1254 = vmatprep.mubr.bf16.mxu0 0
  %1255 = vmatmul.mubr.bf16.gmra.mrb[0].mxu0 %v263
  %v1256 = vpop.f32.mrb[0].mxu0
  %v1257 = vadd.f32 0.0, %v1256
  %v1258 = vpop.f32.mrb[0].mxu0
  %v1259 = vadd.f32 0.0, %v1258
  %v1260 = vpop.f32.mrb[0].mxu0
  %v1261 = vadd.f32 0.0, %v1260
  %v1262 = vpop.f32.mrb[0].mxu0
  %v1263 = vadd.f32 0.0, %v1262
  %1264 = vmatprep.mubr.bf16.mxu0 0
  %1265 = vmatmul.mubr.bf16.gmra.mrb[0].mxu0 %v264
  %v1266 = vpop.f32.mrb[0].mxu0
  %v1267 = vadd.f32 0.0, %v1266
  %v1268 = vpop.f32.mrb[0].mxu0
  %v1269 = vadd.f32 0.0, %v1268
  %v1270 = vpop.f32.mrb[0].mxu0
  %v1271 = vadd.f32 0.0, %v1270
  %v1272 = vpop.f32.mrb[0].mxu0
  %v1273 = vadd.f32 0.0, %v1272
  %1274 = vmatprep.mubr.bf16.mxu0 0
  %1275 = vmatmul.mubr.bf16.gmra.mrb[0].mxu0 %v265
  %v1276 = vpop.f32.mrb[0].mxu0
  %v1277 = vadd.f32 0.0, %v1276
  %v1278 = vpop.f32.mrb[0].mxu0
  %v1279 = vadd.f32 0.0, %v1278
  %v1280 = vpop.f32.mrb[0].mxu0
  %v1281 = vadd.f32 0.0, %v1280
  %v1282 = vpop.f32.mrb[0].mxu0
  %v1283 = vadd.f32 0.0, %v1282
  %1284 = vmatprep.mubr.bf16.mxu0 0
  %1285 = vmatmul.mubr.bf16.gmra.mrb[0].mxu0 %v266
  %v1286 = vpop.f32.mrb[0].mxu0
  %v1287 = vadd.f32 0.0, %v1286
  %v1288 = vpop.f32.mrb[0].mxu0
  %v1289 = vadd.f32 0.0, %v1288
  %v1290 = vpop.f32.mrb[0].mxu0
  %v1291 = vadd.f32 0.0, %v1290
  %v1292 = vpop.f32.mrb[0].mxu0
  %v1293 = vadd.f32 0.0, %v1292
  %1294 = vmatprep.mubr.bf16.mxu0 0
  %1295 = vmatmul.mubr.bf16.gmra.mrb[0].mxu0 %v267
  %v1296 = vpop.f32.mrb[0].mxu0
  %v1297 = vadd.f32 0.0, %v1296
  %v1298 = vpop.f32.mrb[0].mxu0
  %v1299 = vadd.f32 0.0, %v1298
  %v1300 = vpop.f32.mrb[0].mxu0
  %v1301 = vadd.f32 0.0, %v1300
  %v1302 = vpop.f32.mrb[0].mxu0
  %v1303 = vadd.f32 0.0, %v1302
  %1304 = vmatprep.mubr.bf16.mxu0 0
  %1305 = vmatmul.mubr.bf16.gmra.mrb[0].mxu0 %v268
  %v1306 = vpop.f32.mrb[0].mxu0
  %v1307 = vadd.f32 0.0, %v1306
  %v1308 = vpop.f32.mrb[0].mxu0
  %v1309 = vadd.f32 0.0, %v1308
  %v1310 = vpop.f32.mrb[0].mxu0
  %v1311 = vadd.f32 0.0, %v1310
  %v1312 = vpop.f32.mrb[0].mxu0
  %v1313 = vadd.f32 0.0, %v1312
  %1314 = vmatprep.mubr.bf16.mxu0 0
  %1315 = vmatmul.mubr.bf16.gmra.mrb[0].mxu0 %v269
  %v1316 = vpop.f32.mrb[0].mxu0
  %v1317 = vadd.f32 0.0, %v1316
  %v1318 = vpop.f32.mrb[0].mxu0
  %v1319 = vadd.f32 0.0, %v1318
  %v1320 = vpop.f32.mrb[0].mxu0
  %v1321 = vadd.f32 0.0, %v1320
  %v1322 = vpop.f32.mrb[0].mxu0
  %v1323 = vadd.f32 0.0, %v1322
  %1324 = vmatprep.mubr.bf16.mxu0 0
  %1325 = vmatmul.mubr.bf16.gmra.mrb[0].mxu0 %v270
  %v1326 = vpop.f32.mrb[0].mxu0
  %v1327 = vadd.f32 0.0, %v1326
  %v1328 = vpop.f32.mrb[0].mxu0
  %v1329 = vadd.f32 0.0, %v1328
  %v1330 = vpop.f32.mrb[0].mxu0
  %v1331 = vadd.f32 0.0, %v1330
  %v1332 = vpop.f32.mrb[0].mxu0
  %v1333 = vadd.f32 0.0, %v1332
  %1334 = vmatprep.mubr.bf16.mxu0 0
  %1335 = vmatmul.mubr.bf16.gmra.mrb[0].mxu0 %v271
  %v1336 = vpop.f32.mrb[0].mxu0
  %v1337 = vadd.f32 0.0, %v1336
  %v1338 = vpop.f32.mrb[0].mxu0
  %v1339 = vadd.f32 0.0, %v1338
  %v1340 = vpop.f32.mrb[0].mxu0
  %v1341 = vadd.f32 0.0, %v1340
  %v1342 = vpop.f32.mrb[0].mxu0
  %v1343 = vadd.f32 0.0, %v1342
  %1344 = vmatprep.mubr.bf16.mxu0 0
  %1345 = vmatmul.mubr.bf16.gmra.mrb[0].mxu0 %v272
  %v1346 = vpop.f32.mrb[0].mxu0
  %v1347 = vadd.f32 0.0, %v1346
  %v1348 = vpop.f32.mrb[0].mxu0
  %v1349 = vadd.f32 0.0, %v1348
  %v1350 = vpop.f32.mrb[0].mxu0
  %v1351 = vadd.f32 0.0, %v1350
  %v1352 = vpop.f32.mrb[0].mxu0
  %v1353 = vadd.f32 0.0, %v1352
  %1354 = vmatprep.mubr.bf16.mxu0 0
  %1355 = vmatmul.mubr.bf16.gmra.mrb[0].mxu0 %v273
  %v1356 = vpop.f32.mrb[0].mxu0
  %v1357 = vadd.f32 0.0, %v1356
  %v1358 = vpop.f32.mrb[0].mxu0
  %v1359 = vadd.f32 0.0, %v1358
  %v1360 = vpop.f32.mrb[0].mxu0
  %v1361 = vadd.f32 0.0, %v1360
  %v1362 = vpop.f32.mrb[0].mxu0
  %v1363 = vadd.f32 0.0, %v1362
  %1364 = vmatprep.mubr.bf16.mxu0 0
  %1365 = vmatmul.mubr.bf16.gmra.mrb[0].mxu0 %v274
  %v1366 = vpop.f32.mrb[0].mxu0
  %v1367 = vadd.f32 0.0, %v1366
  %v1368 = vpop.f32.mrb[0].mxu0
  %v1369 = vadd.f32 0.0, %v1368
  %v1370 = vpop.f32.mrb[0].mxu0
  %v1371 = vadd.f32 0.0, %v1370
  %v1372 = vpop.f32.mrb[0].mxu0
  %v1373 = vadd.f32 0.0, %v1372
  %1374 = vmatprep.mubr.bf16.mxu0 0
  %1375 = vmatmul.mubr.bf16.gmra.mrb[0].mxu0 %v275
  %v1376 = vpop.f32.mrb[0].mxu0
  %v1377 = vadd.f32 0.0, %v1376
  %v1378 = vpop.f32.mrb[0].mxu0
  %v1379 = vadd.f32 0.0, %v1378
  %v1380 = vpop.f32.mrb[0].mxu0
  %v1381 = vadd.f32 0.0, %v1380
  %v1382 = vpop.f32.mrb[0].mxu0
  %v1383 = vadd.f32 0.0, %v1382
  %1384 = vmatprep.mubr.bf16.mxu0 0
  %1385 = vmatmul.mubr.bf16.gmra.mrb[0].mxu0 %v276
  %v1386 = vpop.f32.mrb[0].mxu0
  %v1387 = vadd.f32 0.0, %v1386
  %v1388 = vpop.f32.mrb[0].mxu0
  %v1389 = vadd.f32 0.0, %v1388
  %v1390 = vpop.f32.mrb[0].mxu0
  %v1391 = vadd.f32 0.0, %v1390
  %v1392 = vpop.f32.mrb[0].mxu0
  %v1393 = vadd.f32 0.0, %v1392
  %1394 = vmatprep.mubr.bf16.mxu0 0
  %1395 = vmatmul.mubr.bf16.gmra.mrb[0].mxu0 %v277
  %v1396 = vpop.f32.mrb[0].mxu0
  %v1397 = vadd.f32 0.0, %v1396
  %v1398 = vpop.f32.mrb[0].mxu0
  %v1399 = vadd.f32 0.0, %v1398
  %v1400 = vpop.f32.mrb[0].mxu0
  %v1401 = vadd.f32 0.0, %v1400
  %v1402 = vpop.f32.mrb[0].mxu0
  %v1403 = vadd.f32 0.0, %v1402
  %1404 = vmatprep.mubr.bf16.mxu0 0
  %1405 = vmatmul.mubr.bf16.gmra.mrb[0].mxu0 %v278
  %v1406 = vpop.f32.mrb[0].mxu0
  %v1407 = vadd.f32 0.0, %v1406
  %v1408 = vpop.f32.mrb[0].mxu0
  %v1409 = vadd.f32 0.0, %v1408
  %v1410 = vpop.f32.mrb[0].mxu0
  %v1411 = vadd.f32 0.0, %v1410
  %v1412 = vpop.f32.mrb[0].mxu0
  %v1413 = vadd.f32 0.0, %v1412
  %1414 = vmatprep.mubr.bf16.mxu0 0
  %1415 = vmatmul.mubr.bf16.gmra.mrb[0].mxu0 %v279
  %v1416 = vpop.f32.mrb[0].mxu0
  %v1417 = vadd.f32 0.0, %v1416
  %v1418 = vpop.f32.mrb[0].mxu0
  %v1419 = vadd.f32 0.0, %v1418
  %v1420 = vpop.f32.mrb[0].mxu0
  %v1421 = vadd.f32 0.0, %v1420
  %v1422 = vpop.f32.mrb[0].mxu0
  %v1423 = vadd.f32 0.0, %v1422
  %1424 = vmatprep.mubr.bf16.mxu0 0
  %1425 = vmatmul.mubr.bf16.gmra.mrb[0].mxu0 %v280
  %v1426 = vpop.f32.mrb[0].mxu0
  %v1427 = vadd.f32 0.0, %v1426
  %v1428 = vpop.f32.mrb[0].mxu0
  %v1429 = vadd.f32 0.0, %v1428
  %v1430 = vpop.f32.mrb[0].mxu0
  %v1431 = vadd.f32 0.0, %v1430
  %v1432 = vpop.f32.mrb[0].mxu0
  %v1433 = vadd.f32 0.0, %v1432
  %1434 = vmatprep.mubr.bf16.mxu0 0
  %1435 = vmatmul.mubr.bf16.gmra.mrb[0].mxu0 %v281
  %v1436 = vpop.f32.mrb[0].mxu0
  %v1437 = vadd.f32 0.0, %v1436
  %v1438 = vpop.f32.mrb[0].mxu0
  %v1439 = vadd.f32 0.0, %v1438
  %v1440 = vpop.f32.mrb[0].mxu0
  %v1441 = vadd.f32 0.0, %v1440
  %v1442 = vpop.f32.mrb[0].mxu0
  %v1443 = vadd.f32 0.0, %v1442
  %1444 = vmatprep.mubr.bf16.mxu0 0
  %1445 = vmatmul.mubr.bf16.gmra.mrb[0].mxu0 %v282
  %v1446 = vpop.f32.mrb[0].mxu0
  %v1447 = vadd.f32 0.0, %v1446
  %v1448 = vpop.f32.mrb[0].mxu0
  %v1449 = vadd.f32 0.0, %v1448
  %v1450 = vpop.f32.mrb[0].mxu0
  %v1451 = vadd.f32 0.0, %v1450
  %v1452 = vpop.f32.mrb[0].mxu0
  %v1453 = vadd.f32 0.0, %v1452
  %1454 = vdwg.mxu0
  %v1455 = vmax.f32 %v1137, %v1217
  %v1456 = vmax.f32 %v1139, %v1219
  %v1457 = vmax.f32 %v1141, %v1221
  %v1458 = vmax.f32 %v1143, %v1223
  %v1459 = vmax.f32 %v1147, %v1227
  %v1460 = vmax.f32 %v1149, %v1229
  %v1461 = vmax.f32 %v1151, %v1231
  %v1462 = vmax.f32 %v1153, %v1233
  %v1463 = vmax.f32 %v1157, %v1237
  %v1464 = vmax.f32 %v1159, %v1239
  %v1465 = vmax.f32 %v1161, %v1241
  %v1466 = vmax.f32 %v1163, %v1243
  %v1467 = vmax.f32 %v1167, %v1247
  %v1468 = vmax.f32 %v1169, %v1249
  %v1469 = vmax.f32 %v1171, %v1251
  %v1470 = vmax.f32 %v1173, %v1253
  %v1471 = vmax.f32 %v1177, %v1257
  %v1472 = vmax.f32 %v1179, %v1259
  %v1473 = vmax.f32 %v1181, %v1261
  %v1474 = vmax.f32 %v1183, %v1263
  %v1475 = vmax.f32 %v1187, %v1267
  %v1476 = vmax.f32 %v1189, %v1269
  %v1477 = vmax.f32 %v1191, %v1271
  %v1478 = vmax.f32 %v1193, %v1273
  %v1479 = vmax.f32 %v1197, %v1277
  %v1480 = vmax.f32 %v1199, %v1279
  %v1481 = vmax.f32 %v1201, %v1281
  %v1482 = vmax.f32 %v1203, %v1283
  %v1483 = vmax.f32 %v1207, %v1287
  %v1484 = vmax.f32 %v1209, %v1289
  %v1485 = vmax.f32 %v1211, %v1291
  %v1486 = vmax.f32 %v1213, %v1293
  %v1487 = vmax.f32 %v1297, %v1377
  %v1488 = vmax.f32 %v1299, %v1379
  %v1489 = vmax.f32 %v1301, %v1381
  %v1490 = vmax.f32 %v1303, %v1383
  %v1491 = vmax.f32 %v1307, %v1387
  %v1492 = vmax.f32 %v1309, %v1389
  %v1493 = vmax.f32 %v1311, %v1391
  %v1494 = vmax.f32 %v1313, %v1393
  %v1495 = vmax.f32 %v1317, %v1397
  %v1496 = vmax.f32 %v1319, %v1399
  %v1497 = vmax.f32 %v1321, %v1401
  %v1498 = vmax.f32 %v1323, %v1403
  %v1499 = vmax.f32 %v1327, %v1407
  %v1500 = vmax.f32 %v1329, %v1409
  %v1501 = vmax.f32 %v1331, %v1411
  %v1502 = vmax.f32 %v1333, %v1413
  %v1503 = vmax.f32 %v1337, %v1417
  %v1504 = vmax.f32 %v1339, %v1419
  %v1505 = vmax.f32 %v1341, %v1421
  %v1506 = vmax.f32 %v1343, %v1423
  %v1507 = vmax.f32 %v1347, %v1427
  %v1508 = vmax.f32 %v1349, %v1429
  %v1509 = vmax.f32 %v1351, %v1431
  %v1510 = vmax.f32 %v1353, %v1433
  %v1511 = vmax.f32 %v1357, %v1437
  %v1512 = vmax.f32 %v1359, %v1439
  %v1513 = vmax.f32 %v1361, %v1441
  %v1514 = vmax.f32 %v1363, %v1443
  %v1515 = vmax.f32 %v1367, %v1447
  %v1516 = vmax.f32 %v1369, %v1449
  %v1517 = vmax.f32 %v1371, %v1451
  %v1518 = vmax.f32 %v1373, %v1453
  %v1519 = vmax.f32 %v1455, %v1487
  %v1520 = vmax.f32 %v1456, %v1488
  %v1521 = vmax.f32 %v1457, %v1489
  %v1522 = vmax.f32 %v1458, %v1490
  %v1523 = vmax.f32 %v1459, %v1491
  %v1524 = vmax.f32 %v1460, %v1492
  %v1525 = vmax.f32 %v1461, %v1493
  %v1526 = vmax.f32 %v1462, %v1494
  %v1527 = vmax.f32 %v1463, %v1495
  %v1528 = vmax.f32 %v1464, %v1496
  %v1529 = vmax.f32 %v1465, %v1497
  %v1530 = vmax.f32 %v1466, %v1498
  %v1531 = vmax.f32 %v1467, %v1499
  %v1532 = vmax.f32 %v1468, %v1500
  %v1533 = vmax.f32 %v1469, %v1501
  %v1534 = vmax.f32 %v1470, %v1502
  %v1535 = vmax.f32 %v1471, %v1503
  %v1536 = vmax.f32 %v1472, %v1504
  %v1537 = vmax.f32 %v1473, %v1505
  %v1538 = vmax.f32 %v1474, %v1506
  %v1539 = vmax.f32 %v1475, %v1507
  %v1540 = vmax.f32 %v1476, %v1508
  %v1541 = vmax.f32 %v1477, %v1509
  %v1542 = vmax.f32 %v1478, %v1510
  %v1543 = vmax.f32 %v1479, %v1511
  %v1544 = vmax.f32 %v1480, %v1512
  %v1545 = vmax.f32 %v1481, %v1513
  %v1546 = vmax.f32 %v1482, %v1514
  %v1547 = vmax.f32 %v1483, %v1515
  %v1548 = vmax.f32 %v1484, %v1516
  %v1549 = vmax.f32 %v1485, %v1517
  %v1550 = vmax.f32 %v1486, %v1518
  %v1551 = vadd.f32 %v1519, %v847
  %v1552 = vadd.f32 %v1520, %v847
  %v1553 = vadd.f32 %v1521, %v852
  %v1554 = vadd.f32 %v1522, %v852
  %v1555 = vadd.f32 %v1523, %v857
  %v1556 = vadd.f32 %v1524, %v857
  %v1557 = vadd.f32 %v1525, %v862
  %v1558 = vadd.f32 %v1526, %v862
  %v1559 = vadd.f32 %v1527, %v867
  %v1560 = vadd.f32 %v1528, %v867
  %v1561 = vadd.f32 %v1529, %v872
  %v1562 = vadd.f32 %v1530, %v872
  %v1563 = vadd.f32 %v1531, %v877
  %v1564 = vadd.f32 %v1532, %v877
  %v1565 = vadd.f32 %v1533, %v882
  %v1566 = vadd.f32 %v1534, %v882
  %v1567 = vadd.f32 %v1535, %v887
  %v1568 = vadd.f32 %v1536, %v887
  %v1569 = vadd.f32 %v1537, %v892
  %v1570 = vadd.f32 %v1538, %v892
  %v1571 = vadd.f32 %v1539, %v897
  %v1572 = vadd.f32 %v1540, %v897
  %v1573 = vadd.f32 %v1541, %v902
  %v1574 = vadd.f32 %v1542, %v902
  %v1575 = vadd.f32 %v1543, %v907
  %v1576 = vadd.f32 %v1544, %v907
  %v1577 = vadd.f32 %v1545, %v912
  %v1578 = vadd.f32 %v1546, %v912
  %v1579 = vadd.f32 %v1547, %v917
  %v1580 = vadd.f32 %v1548, %v917
  %v1581 = vadd.f32 %v1549, %v922
  %v1582 = vadd.f32 %v1550, %v922
  %v1583 = vmax.f32 %v1551, 0.0
  %v1584 = vmax.f32 %v1552, 0.0
  %v1585 = vmax.f32 %v1553, 0.0
  %v1586 = vmax.f32 %v1554, 0.0
  %v1587 = vmax.f32 %v1555, 0.0
  %v1588 = vmax.f32 %v1556, 0.0
  %v1589 = vmax.f32 %v1557, 0.0
  %v1590 = vmax.f32 %v1558, 0.0
  %v1591 = vmax.f32 %v1559, 0.0
  %v1592 = vmax.f32 %v1560, 0.0
  %v1593 = vmax.f32 %v1561, 0.0
  %v1594 = vmax.f32 %v1562, 0.0
  %v1595 = vmax.f32 %v1563, 0.0
  %v1596 = vmax.f32 %v1564, 0.0
  %v1597 = vmax.f32 %v1565, 0.0
  %v1598 = vmax.f32 %v1566, 0.0
  %v1599 = vmax.f32 %v1567, 0.0
  %v1600 = vmax.f32 %v1568, 0.0
  %v1601 = vmax.f32 %v1569, 0.0
  %v1602 = vmax.f32 %v1570, 0.0
  %v1603 = vmax.f32 %v1571, 0.0
  %v1604 = vmax.f32 %v1572, 0.0
  %v1605 = vmax.f32 %v1573, 0.0
  %v1606 = vmax.f32 %v1574, 0.0
  %v1607 = vmax.f32 %v1575, 0.0
  %v1608 = vmax.f32 %v1576, 0.0
  %v1609 = vmax.f32 %v1577, 0.0
  %v1610 = vmax.f32 %v1578, 0.0
  %v1611 = vmax.f32 %v1579, 0.0
  %v1612 = vmax.f32 %v1580, 0.0
  %v1613 = vmax.f32 %v1581, 0.0
  %v1614 = vmax.f32 %v1582, 0.0
  %s1615 = scalar_lea.vmem %s3, 8
  %v1616 = vld [vmem:[%s1615] sm:$0xf]
  %v1617 = vld [vmem:[%s1615 + $0x4] sm:$0xf]
  %v1618 = vpack.c.bf16 %v1585, %v1583
  %v1619 = vpack.c.bf16 %v1586, %v1584
  %v1620 = vpack.c.bf16 %v1589, %v1587
  %v1621 = vpack.c.bf16 %v1590, %v1588
  %v1622 = vpack.c.bf16 %v1593, %v1591
  %v1623 = vpack.c.bf16 %v1594, %v1592
  %v1624 = vpack.c.bf16 %v1597, %v1595
  %v1625 = vpack.c.bf16 %v1598, %v1596
  %v1626 = vpack.c.bf16 %v1601, %v1599
  %v1627 = vpack.c.bf16 %v1602, %v1600
  %v1628 = vpack.c.bf16 %v1605, %v1603
  %v1629 = vpack.c.bf16 %v1606, %v1604
  %v1630 = vpack.c.bf16 %v1609, %v1607
  %v1631 = vpack.c.bf16 %v1610, %v1608
  %v1632 = vpack.c.bf16 %v1613, %v1611
  %v1633 = vpack.c.bf16 %v1614, %v1612
  %v1636 = vunpack.c.l.b16 %v1616
  %v1637 = vunpack.c.l.b16 %v1617
  %v1638 = vpack.c.b16 %v1637, %v1636
  %1640 = vmatprep.subr.bf16.mxu0 %v1619
  %1641 = vmatpush1.bf16.msra.mxu0 %v1618
  %1642 = vmatprep.subr.bf16.mxu0 %v1621
  %1643 = vmatpush1.bf16.msra.mxu0 %v1620
  %1644 = vmatprep.subr.bf16.mxu0 %v1623
  %1645 = vmatpush1.bf16.msra.mxu0 %v1622
  %1646 = vmatprep.subr.bf16.mxu0 %v1625
  %1647 = vmatpush1.bf16.msra.mxu0 %v1624
  %1648 = vmatprep.subr.bf16.mxu0 %v1627
  %1649 = vmatpush1.bf16.msra.mxu0 %v1626
  %1650 = vmatprep.subr.bf16.mxu0 %v1629
  %1651 = vmatpush1.bf16.msra.mxu0 %v1628
  %1652 = vmatprep.subr.bf16.mxu0 %v1631
  %1653 = vmatpush1.bf16.msra.mxu0 %v1630
  %1654 = vmatprep.subr.bf16.mxu0 %v1633
  %1655 = vmatpush1.bf16.msra.mxu0 %v1632
  %1656 = vmatprep.subr.bf16.mxu0 0
  %1657 = vmatpush1.bf16.msra.mxu0 0
  %1658 = vmatprep.subr.bf16.mxu0 0
  %1659 = vmatpush1.bf16.msra.mxu0 0
  %1660 = vmatprep.subr.bf16.mxu0 0
  %1661 = vmatpush1.bf16.msra.mxu0 0
  %1662 = vmatprep.subr.bf16.mxu0 0
  %1663 = vmatpush1.bf16.msra.mxu0 0
  %1664 = vmatprep.subr.bf16.mxu0 0
  %1665 = vmatpush1.bf16.msra.mxu0 0
  %1666 = vmatprep.subr.bf16.mxu0 0
  %1667 = vmatpush1.bf16.msra.mxu0 0
  %1668 = vmatprep.subr.bf16.mxu0 0
  %1669 = vmatpush1.bf16.msra.mxu0 0
  %1670 = vmatprep.subr.bf16.mxu0 0
  %1671 = vmatpush1.bf16.msra.mxu0 0
  %1672 = vmatprep.mubr.bf16.mxu0 0
  %1673 = vmatmul.mubr.bf16.gmra.mrb[0].mxu0 %v1638
  %v1674 = vpop.f32.mrb[0].mxu0
  %v1675 = vadd.f32 0.0, %v1674
  %v1676 = vpop.f32.mrb[0].mxu0
  %v1677 = vadd.f32 0.0, %v1676
  %v1678 = vpop.f32.mrb[0].mxu0
  %v1679 = vadd.f32 0.0, %v1678
  %v1680 = vpop.f32.mrb[0].mxu0
  %v1681 = vadd.f32 0.0, %v1680
  %1682 = vdwg.mxu0
  %v1685 = vunpack.c.l.b16 %v988
  %v1686 = vunpack.c.l.b16 %v989
  %v1687 = vpack.c.b16 %v1686, %v1685
  %1689 = vmatprep.subr.bf16.mxu0 %v991
  %1690 = vmatpush1.bf16.msra.mxu0 %v990
  %1691 = vmatprep.subr.bf16.mxu0 %v993
  %1692 = vmatpush1.bf16.msra.mxu0 %v992
  %1693 = vmatprep.subr.bf16.mxu0 %v995
  %1694 = vmatpush1.bf16.msra.mxu0 %v994
  %1695 = vmatprep.subr.bf16.mxu0 %v997
  %1696 = vmatpush1.bf16.msra.mxu0 %v996
  %1697 = vmatprep.subr.bf16.mxu0 %v999
  %1698 = vmatpush1.bf16.msra.mxu0 %v998
  %1699 = vmatprep.subr.bf16.mxu0 %v1001
  %1700 = vmatpush1.bf16.msra.mxu0 %v1000
  %1701 = vmatprep.subr.bf16.mxu0 %v1003
  %1702 = vmatpush1.bf16.msra.mxu0 %v1002
  %1703 = vmatprep.subr.bf16.mxu0 %v1005
  %1704 = vmatpush1.bf16.msra.mxu0 %v1004
  %1705 = vmatprep.subr.bf16.mxu0 0
  %1706 = vmatpush1.bf16.msra.mxu0 0
  %1707 = vmatprep.subr.bf16.mxu0 0
  %1708 = vmatpush1.bf16.msra.mxu0 0
  %1709 = vmatprep.subr.bf16.mxu0 0
  %1710 = vmatpush1.bf16.msra.mxu0 0
  %1711 = vmatprep.subr.bf16.mxu0 0
  %1712 = vmatpush1.bf16.msra.mxu0 0
  %1713 = vmatprep.subr.bf16.mxu0 0
  %1714 = vmatpush1.bf16.msra.mxu0 0
  %1715 = vmatprep.subr.bf16.mxu0 0
  %1716 = vmatpush1.bf16.msra.mxu0 0
  %1717 = vmatprep.subr.bf16.mxu0 0
  %1718 = vmatpush1.bf16.msra.mxu0 0
  %1719 = vmatprep.subr.bf16.mxu0 0
  %1720 = vmatpush1.bf16.msra.mxu0 0
  %1721 = vmatprep.mubr.bf16.mxu0 0
  %1722 = vmatmul.mubr.bf16.gmra.mrb[0].mxu0 %v1687
  %v1723 = vpop.f32.mrb[0].mxu0
  %v1724 = vadd.f32 %v1675, %v1723
  %v1725 = vpop.f32.mrb[0].mxu0
  %v1726 = vadd.f32 %v1677, %v1725
  %v1727 = vpop.f32.mrb[0].mxu0
  %v1728 = vadd.f32 %v1679, %v1727
  %v1729 = vpop.f32.mrb[0].mxu0
  %v1730 = vadd.f32 %v1681, %v1729
  %1731 = vdwg.mxu0
  %v1732 = vld [vmem:[%s0 + $0x80] sm:$0xff]
  %v1733 = vld [vmem:[%s0 + $0x88] sm:$0xff]
  %v1734 = vld [vmem:[%s0 + $0x90] sm:$0xff]
  %v1735 = vld [vmem:[%s0 + $0x98] sm:$0xff]
  %v1736 = vld [vmem:[%s0 + $0xa0] sm:$0xff]
  %v1737 = vld [vmem:[%s0 + $0xa8] sm:$0xff]
  %v1738 = vld [vmem:[%s0 + $0xb0] sm:$0xff]
  %v1739 = vld [vmem:[%s0 + $0xb8] sm:$0xff]
  %v1740 = vld [vmem:[%s0 + $0xc0] sm:$0xff]
  %v1741 = vld [vmem:[%s0 + $0xc8] sm:$0xff]
  %v1742 = vld [vmem:[%s0 + $0xd0] sm:$0xff]
  %v1743 = vld [vmem:[%s0 + $0xd8] sm:$0xff]
  %v1744 = vld [vmem:[%s0 + $0xe0] sm:$0xff]
  %v1745 = vld [vmem:[%s0 + $0xe8] sm:$0xff]
  %v1746 = vld [vmem:[%s0 + $0xf0] sm:$0xff]
  %v1747 = vld [vmem:[%s0 + $0xf8] sm:$0xff]
  %v1764 = vunpack.c.l.b16 %v1732
  %v1765 = vunpack.c.h.b16 %v1732
  %v1766 = vunpack.c.l.b16 %v1733
  %v1767 = vunpack.c.h.b16 %v1733
  %v1768 = vunpack.c.l.b16 %v1734
  %v1769 = vunpack.c.h.b16 %v1734
  %v1770 = vunpack.c.l.b16 %v1735
  %v1771 = vunpack.c.h.b16 %v1735
  %v1772 = vunpack.c.l.b16 %v1736
  %v1773 = vunpack.c.h.b16 %v1736
  %v1774 = vunpack.c.l.b16 %v1737
  %v1775 = vunpack.c.h.b16 %v1737
  %v1776 = vunpack.c.l.b16 %v1738
  %v1777 = vunpack.c.h.b16 %v1738
  %v1778 = vunpack.c.l.b16 %v1739
  %v1779 = vunpack.c.h.b16 %v1739
  %v1780 = vunpack.c.l.b16 %v1740
  %v1781 = vunpack.c.h.b16 %v1740
  %v1782 = vunpack.c.l.b16 %v1741
  %v1783 = vunpack.c.h.b16 %v1741
  %v1784 = vunpack.c.l.b16 %v1742
  %v1785 = vunpack.c.h.b16 %v1742
  %v1786 = vunpack.c.l.b16 %v1743
  %v1787 = vunpack.c.h.b16 %v1743
  %v1788 = vunpack.c.l.b16 %v1744
  %v1789 = vunpack.c.h.b16 %v1744
  %v1790 = vunpack.c.l.b16 %v1745
  %v1791 = vunpack.c.h.b16 %v1745
  %v1792 = vunpack.c.l.b16 %v1746
  %v1793 = vunpack.c.h.b16 %v1746
  %v1794 = vunpack.c.l.b16 %v1747
  %v1795 = vunpack.c.h.b16 %v1747
  %v1796 = vpack.c.b16 %v1766, %v1764
  %v1797 = vpack.c.b16 %v1767, %v1765
  %v1798 = vpack.c.b16 %v1770, %v1768
  %v1799 = vpack.c.b16 %v1771, %v1769
  %v1800 = vpack.c.b16 %v1774, %v1772
  %v1801 = vpack.c.b16 %v1775, %v1773
  %v1802 = vpack.c.b16 %v1778, %v1776
  %v1803 = vpack.c.b16 %v1779, %v1777
  %v1804 = vpack.c.b16 %v1782, %v1780
  %v1805 = vpack.c.b16 %v1783, %v1781
  %v1806 = vpack.c.b16 %v1786, %v1784
  %v1807 = vpack.c.b16 %v1787, %v1785
  %v1808 = vpack.c.b16 %v1790, %v1788
  %v1809 = vpack.c.b16 %v1791, %v1789
  %v1810 = vpack.c.b16 %v1794, %v1792
  %v1811 = vpack.c.b16 %v1795, %v1793
  %1828 = vmatprep.subr.bf16.mxu0 %v1797
  %1829 = vmatpush1.bf16.msra.mxu0 %v1796
  %1830 = vmatprep.subr.bf16.mxu0 %v1799
  %1831 = vmatpush1.bf16.msra.mxu0 %v1798
  %1832 = vmatprep.subr.bf16.mxu0 %v1801
  %1833 = vmatpush1.bf16.msra.mxu0 %v1800
  %1834 = vmatprep.subr.bf16.mxu0 %v1803
  %1835 = vmatpush1.bf16.msra.mxu0 %v1802
  %1836 = vmatprep.subr.bf16.mxu0 %v1805
  %1837 = vmatpush1.bf16.msra.mxu0 %v1804
  %1838 = vmatprep.subr.bf16.mxu0 %v1807
  %1839 = vmatpush1.bf16.msra.mxu0 %v1806
  %1840 = vmatprep.subr.bf16.mxu0 %v1809
  %1841 = vmatpush1.bf16.msra.mxu0 %v1808
  %1842 = vmatprep.subr.bf16.mxu0 %v1811
  %1843 = vmatpush1.bf16.msra.mxu0 %v1810
  %1844 = vmatprep.subr.bf16.mxu0 0
  %1845 = vmatpush1.bf16.msra.mxu0 0
  %1846 = vmatprep.subr.bf16.mxu0 0
  %1847 = vmatpush1.bf16.msra.mxu0 0
  %1848 = vmatprep.subr.bf16.mxu0 0
  %1849 = vmatpush1.bf16.msra.mxu0 0
  %1850 = vmatprep.subr.bf16.mxu0 0
  %1851 = vmatpush1.bf16.msra.mxu0 0
  %1852 = vmatprep.subr.bf16.mxu0 0
  %1853 = vmatpush1.bf16.msra.mxu0 0
  %1854 = vmatprep.subr.bf16.mxu0 0
  %1855 = vmatpush1.bf16.msra.mxu0 0
  %1856 = vmatprep.subr.bf16.mxu0 0
  %1857 = vmatpush1.bf16.msra.mxu0 0
  %1858 = vmatprep.subr.bf16.mxu0 0
  %1859 = vmatpush1.bf16.msra.mxu0 0
  %1860 = vmatprep.mubr.bf16.mxu0 0
  %1861 = vmatmul.mubr.bf16.gmra.mrb[0].mxu0 %v251
  %v1862 = vpop.f32.mrb[0].mxu0
  %v1863 = vadd.f32 0.0, %v1862
  %v1864 = vpop.f32.mrb[0].mxu0
  %v1865 = vadd.f32 0.0, %v1864
  %v1866 = vpop.f32.mrb[0].mxu0
  %v1867 = vadd.f32 0.0, %v1866
  %v1868 = vpop.f32.mrb[0].mxu0
  %v1869 = vadd.f32 0.0, %v1868
  %1870 = vmatprep.mubr.bf16.mxu0 0
  %1871 = vmatmul.mubr.bf16.gmra.mrb[0].mxu0 %v252
  %v1872 = vpop.f32.mrb[0].mxu0
  %v1873 = vadd.f32 0.0, %v1872
  %v1874 = vpop.f32.mrb[0].mxu0
  %v1875 = vadd.f32 0.0, %v1874
  %v1876 = vpop.f32.mrb[0].mxu0
  %v1877 = vadd.f32 0.0, %v1876
  %v1878 = vpop.f32.mrb[0].mxu0
  %v1879 = vadd.f32 0.0, %v1878
  %1880 = vmatprep.mubr.bf16.mxu0 0
  %1881 = vmatmul.mubr.bf16.gmra.mrb[0].mxu0 %v253
  %v1882 = vpop.f32.mrb[0].mxu0
  %v1883 = vadd.f32 0.0, %v1882
  %v1884 = vpop.f32.mrb[0].mxu0
  %v1885 = vadd.f32 0.0, %v1884
  %v1886 = vpop.f32.mrb[0].mxu0
  %v1887 = vadd.f32 0.0, %v1886
  %v1888 = vpop.f32.mrb[0].mxu0
  %v1889 = vadd.f32 0.0, %v1888
  %1890 = vmatprep.mubr.bf16.mxu0 0
  %1891 = vmatmul.mubr.bf16.gmra.mrb[0].mxu0 %v254
  %v1892 = vpop.f32.mrb[0].mxu0
  %v1893 = vadd.f32 0.0, %v1892
  %v1894 = vpop.f32.mrb[0].mxu0
  %v1895 = vadd.f32 0.0, %v1894
  %v1896 = vpop.f32.mrb[0].mxu0
  %v1897 = vadd.f32 0.0, %v1896
  %v1898 = vpop.f32.mrb[0].mxu0
  %v1899 = vadd.f32 0.0, %v1898
  %1900 = vmatprep.mubr.bf16.mxu0 0
  %1901 = vmatmul.mubr.bf16.gmra.mrb[0].mxu0 %v255
  %v1902 = vpop.f32.mrb[0].mxu0
  %v1903 = vadd.f32 0.0, %v1902
  %v1904 = vpop.f32.mrb[0].mxu0
  %v1905 = vadd.f32 0.0, %v1904
  %v1906 = vpop.f32.mrb[0].mxu0
  %v1907 = vadd.f32 0.0, %v1906
  %v1908 = vpop.f32.mrb[0].mxu0
  %v1909 = vadd.f32 0.0, %v1908
  %1910 = vmatprep.mubr.bf16.mxu0 0
  %1911 = vmatmul.mubr.bf16.gmra.mrb[0].mxu0 %v256
  %v1912 = vpop.f32.mrb[0].mxu0
  %v1913 = vadd.f32 0.0, %v1912
  %v1914 = vpop.f32.mrb[0].mxu0
  %v1915 = vadd.f32 0.0, %v1914
  %v1916 = vpop.f32.mrb[0].mxu0
  %v1917 = vadd.f32 0.0, %v1916
  %v1918 = vpop.f32.mrb[0].mxu0
  %v1919 = vadd.f32 0.0, %v1918
  %1920 = vmatprep.mubr.bf16.mxu0 0
  %1921 = vmatmul.mubr.bf16.gmra.mrb[0].mxu0 %v257
  %v1922 = vpop.f32.mrb[0].mxu0
  %v1923 = vadd.f32 0.0, %v1922
  %v1924 = vpop.f32.mrb[0].mxu0
  %v1925 = vadd.f32 0.0, %v1924
  %v1926 = vpop.f32.mrb[0].mxu0
  %v1927 = vadd.f32 0.0, %v1926
  %v1928 = vpop.f32.mrb[0].mxu0
  %v1929 = vadd.f32 0.0, %v1928
  %1930 = vmatprep.mubr.bf16.mxu0 0
  %1931 = vmatmul.mubr.bf16.gmra.mrb[0].mxu0 %v258
  %v1932 = vpop.f32.mrb[0].mxu0
  %v1933 = vadd.f32 0.0, %v1932
  %v1934 = vpop.f32.mrb[0].mxu0
  %v1935 = vadd.f32 0.0, %v1934
  %v1936 = vpop.f32.mrb[0].mxu0
  %v1937 = vadd.f32 0.0, %v1936
  %v1938 = vpop.f32.mrb[0].mxu0
  %v1939 = vadd.f32 0.0, %v1938
  %1940 = vmatprep.mubr.bf16.mxu0 0
  %1941 = vmatmul.mubr.bf16.gmra.mrb[0].mxu0 %v259
  %v1942 = vpop.f32.mrb[0].mxu0
  %v1943 = vadd.f32 0.0, %v1942
  %v1944 = vpop.f32.mrb[0].mxu0
  %v1945 = vadd.f32 0.0, %v1944
  %v1946 = vpop.f32.mrb[0].mxu0
  %v1947 = vadd.f32 0.0, %v1946
  %v1948 = vpop.f32.mrb[0].mxu0
  %v1949 = vadd.f32 0.0, %v1948
  %1950 = vmatprep.mubr.bf16.mxu0 0
  %1951 = vmatmul.mubr.bf16.gmra.mrb[0].mxu0 %v260
  %v1952 = vpop.f32.mrb[0].mxu0
  %v1953 = vadd.f32 0.0, %v1952
  %v1954 = vpop.f32.mrb[0].mxu0
  %v1955 = vadd.f32 0.0, %v1954
  %v1956 = vpop.f32.mrb[0].mxu0
  %v1957 = vadd.f32 0.0, %v1956
  %v1958 = vpop.f32.mrb[0].mxu0
  %v1959 = vadd.f32 0.0, %v1958
  %1960 = vmatprep.mubr.bf16.mxu0 0
  %1961 = vmatmul.mubr.bf16.gmra.mrb[0].mxu0 %v261
  %v1962 = vpop.f32.mrb[0].mxu0
  %v1963 = vadd.f32 0.0, %v1962
  %v1964 = vpop.f32.mrb[0].mxu0
  %v1965 = vadd.f32 0.0, %v1964
  %v1966 = vpop.f32.mrb[0].mxu0
  %v1967 = vadd.f32 0.0, %v1966
  %v1968 = vpop.f32.mrb[0].mxu0
  %v1969 = vadd.f32 0.0, %v1968
  %1970 = vmatprep.mubr.bf16.mxu0 0
  %1971 = vmatmul.mubr.bf16.gmra.mrb[0].mxu0 %v262
  %v1972 = vpop.f32.mrb[0].mxu0
  %v1973 = vadd.f32 0.0, %v1972
  %v1974 = vpop.f32.mrb[0].mxu0
  %v1975 = vadd.f32 0.0, %v1974
  %v1976 = vpop.f32.mrb[0].mxu0
  %v1977 = vadd.f32 0.0, %v1976
  %v1978 = vpop.f32.mrb[0].mxu0
  %v1979 = vadd.f32 0.0, %v1978
  %1980 = vmatprep.mubr.bf16.mxu0 0
  %1981 = vmatmul.mubr.bf16.gmra.mrb[0].mxu0 %v263
  %v1982 = vpop.f32.mrb[0].mxu0
  %v1983 = vadd.f32 0.0, %v1982
  %v1984 = vpop.f32.mrb[0].mxu0
  %v1985 = vadd.f32 0.0, %v1984
  %v1986 = vpop.f32.mrb[0].mxu0
  %v1987 = vadd.f32 0.0, %v1986
  %v1988 = vpop.f32.mrb[0].mxu0
  %v1989 = vadd.f32 0.0, %v1988
  %1990 = vmatprep.mubr.bf16.mxu0 0
  %1991 = vmatmul.mubr.bf16.gmra.mrb[0].mxu0 %v264
  %v1992 = vpop.f32.mrb[0].mxu0
  %v1993 = vadd.f32 0.0, %v1992
  %v1994 = vpop.f32.mrb[0].mxu0
  %v1995 = vadd.f32 0.0, %v1994
  %v1996 = vpop.f32.mrb[0].mxu0
  %v1997 = vadd.f32 0.0, %v1996
  %v1998 = vpop.f32.mrb[0].mxu0
  %v1999 = vadd.f32 0.0, %v1998
  %2000 = vmatprep.mubr.bf16.mxu0 0
  %2001 = vmatmul.mubr.bf16.gmra.mrb[0].mxu0 %v265
  %v2002 = vpop.f32.mrb[0].mxu0
  %v2003 = vadd.f32 0.0, %v2002
  %v2004 = vpop.f32.mrb[0].mxu0
  %v2005 = vadd.f32 0.0, %v2004
  %v2006 = vpop.f32.mrb[0].mxu0
  %v2007 = vadd.f32 0.0, %v2006
  %v2008 = vpop.f32.mrb[0].mxu0
  %v2009 = vadd.f32 0.0, %v2008
  %2010 = vmatprep.mubr.bf16.mxu0 0
  %2011 = vmatmul.mubr.bf16.gmra.mrb[0].mxu0 %v266
  %v2012 = vpop.f32.mrb[0].mxu0
  %v2013 = vadd.f32 0.0, %v2012
  %v2014 = vpop.f32.mrb[0].mxu0
  %v2015 = vadd.f32 0.0, %v2014
  %v2016 = vpop.f32.mrb[0].mxu0
  %v2017 = vadd.f32 0.0, %v2016
  %v2018 = vpop.f32.mrb[0].mxu0
  %v2019 = vadd.f32 0.0, %v2018
  %2020 = vmatprep.mubr.bf16.mxu0 0
  %2021 = vmatmul.mubr.bf16.gmra.mrb[0].mxu0 %v267
  %v2022 = vpop.f32.mrb[0].mxu0
  %v2023 = vadd.f32 0.0, %v2022
  %v2024 = vpop.f32.mrb[0].mxu0
  %v2025 = vadd.f32 0.0, %v2024
  %v2026 = vpop.f32.mrb[0].mxu0
  %v2027 = vadd.f32 0.0, %v2026
  %v2028 = vpop.f32.mrb[0].mxu0
  %v2029 = vadd.f32 0.0, %v2028
  %2030 = vmatprep.mubr.bf16.mxu0 0
  %2031 = vmatmul.mubr.bf16.gmra.mrb[0].mxu0 %v268
  %v2032 = vpop.f32.mrb[0].mxu0
  %v2033 = vadd.f32 0.0, %v2032
  %v2034 = vpop.f32.mrb[0].mxu0
  %v2035 = vadd.f32 0.0, %v2034
  %v2036 = vpop.f32.mrb[0].mxu0
  %v2037 = vadd.f32 0.0, %v2036
  %v2038 = vpop.f32.mrb[0].mxu0
  %v2039 = vadd.f32 0.0, %v2038
  %2040 = vmatprep.mubr.bf16.mxu0 0
  %2041 = vmatmul.mubr.bf16.gmra.mrb[0].mxu0 %v269
  %v2042 = vpop.f32.mrb[0].mxu0
  %v2043 = vadd.f32 0.0, %v2042
  %v2044 = vpop.f32.mrb[0].mxu0
  %v2045 = vadd.f32 0.0, %v2044
  %v2046 = vpop.f32.mrb[0].mxu0
  %v2047 = vadd.f32 0.0, %v2046
  %v2048 = vpop.f32.mrb[0].mxu0
  %v2049 = vadd.f32 0.0, %v2048
  %2050 = vmatprep.mubr.bf16.mxu0 0
  %2051 = vmatmul.mubr.bf16.gmra.mrb[0].mxu0 %v270
  %v2052 = vpop.f32.mrb[0].mxu0
  %v2053 = vadd.f32 0.0, %v2052
  %v2054 = vpop.f32.mrb[0].mxu0
  %v2055 = vadd.f32 0.0, %v2054
  %v2056 = vpop.f32.mrb[0].mxu0
  %v2057 = vadd.f32 0.0, %v2056
  %v2058 = vpop.f32.mrb[0].mxu0
  %v2059 = vadd.f32 0.0, %v2058
  %2060 = vmatprep.mubr.bf16.mxu0 0
  %2061 = vmatmul.mubr.bf16.gmra.mrb[0].mxu0 %v271
  %v2062 = vpop.f32.mrb[0].mxu0
  %v2063 = vadd.f32 0.0, %v2062
  %v2064 = vpop.f32.mrb[0].mxu0
  %v2065 = vadd.f32 0.0, %v2064
  %v2066 = vpop.f32.mrb[0].mxu0
  %v2067 = vadd.f32 0.0, %v2066
  %v2068 = vpop.f32.mrb[0].mxu0
  %v2069 = vadd.f32 0.0, %v2068
  %2070 = vmatprep.mubr.bf16.mxu0 0
  %2071 = vmatmul.mubr.bf16.gmra.mrb[0].mxu0 %v272
  %v2072 = vpop.f32.mrb[0].mxu0
  %v2073 = vadd.f32 0.0, %v2072
  %v2074 = vpop.f32.mrb[0].mxu0
  %v2075 = vadd.f32 0.0, %v2074
  %v2076 = vpop.f32.mrb[0].mxu0
  %v2077 = vadd.f32 0.0, %v2076
  %v2078 = vpop.f32.mrb[0].mxu0
  %v2079 = vadd.f32 0.0, %v2078
  %2080 = vmatprep.mubr.bf16.mxu0 0
  %2081 = vmatmul.mubr.bf16.gmra.mrb[0].mxu0 %v273
  %v2082 = vpop.f32.mrb[0].mxu0
  %v2083 = vadd.f32 0.0, %v2082
  %v2084 = vpop.f32.mrb[0].mxu0
  %v2085 = vadd.f32 0.0, %v2084
  %v2086 = vpop.f32.mrb[0].mxu0
  %v2087 = vadd.f32 0.0, %v2086
  %v2088 = vpop.f32.mrb[0].mxu0
  %v2089 = vadd.f32 0.0, %v2088
  %2090 = vmatprep.mubr.bf16.mxu0 0
  %2091 = vmatmul.mubr.bf16.gmra.mrb[0].mxu0 %v274
  %v2092 = vpop.f32.mrb[0].mxu0
  %v2093 = vadd.f32 0.0, %v2092
  %v2094 = vpop.f32.mrb[0].mxu0
  %v2095 = vadd.f32 0.0, %v2094
  %v2096 = vpop.f32.mrb[0].mxu0
  %v2097 = vadd.f32 0.0, %v2096
  %v2098 = vpop.f32.mrb[0].mxu0
  %v2099 = vadd.f32 0.0, %v2098
  %2100 = vmatprep.mubr.bf16.mxu0 0
  %2101 = vmatmul.mubr.bf16.gmra.mrb[0].mxu0 %v275
  %v2102 = vpop.f32.mrb[0].mxu0
  %v2103 = vadd.f32 0.0, %v2102
  %v2104 = vpop.f32.mrb[0].mxu0
  %v2105 = vadd.f32 0.0, %v2104
  %v2106 = vpop.f32.mrb[0].mxu0
  %v2107 = vadd.f32 0.0, %v2106
  %v2108 = vpop.f32.mrb[0].mxu0
  %v2109 = vadd.f32 0.0, %v2108
  %2110 = vmatprep.mubr.bf16.mxu0 0
  %2111 = vmatmul.mubr.bf16.gmra.mrb[0].mxu0 %v276
  %v2112 = vpop.f32.mrb[0].mxu0
  %v2113 = vadd.f32 0.0, %v2112
  %v2114 = vpop.f32.mrb[0].mxu0
  %v2115 = vadd.f32 0.0, %v2114
  %v2116 = vpop.f32.mrb[0].mxu0
  %v2117 = vadd.f32 0.0, %v2116
  %v2118 = vpop.f32.mrb[0].mxu0
  %v2119 = vadd.f32 0.0, %v2118
  %2120 = vmatprep.mubr.bf16.mxu0 0
  %2121 = vmatmul.mubr.bf16.gmra.mrb[0].mxu0 %v277
  %v2122 = vpop.f32.mrb[0].mxu0
  %v2123 = vadd.f32 0.0, %v2122
  %v2124 = vpop.f32.mrb[0].mxu0
  %v2125 = vadd.f32 0.0, %v2124
  %v2126 = vpop.f32.mrb[0].mxu0
  %v2127 = vadd.f32 0.0, %v2126
  %v2128 = vpop.f32.mrb[0].mxu0
  %v2129 = vadd.f32 0.0, %v2128
  %2130 = vmatprep.mubr.bf16.mxu0 0
  %2131 = vmatmul.mubr.bf16.gmra.mrb[0].mxu0 %v278
  %v2132 = vpop.f32.mrb[0].mxu0
  %v2133 = vadd.f32 0.0, %v2132
  %v2134 = vpop.f32.mrb[0].mxu0
  %v2135 = vadd.f32 0.0, %v2134
  %v2136 = vpop.f32.mrb[0].mxu0
  %v2137 = vadd.f32 0.0, %v2136
  %v2138 = vpop.f32.mrb[0].mxu0
  %v2139 = vadd.f32 0.0, %v2138
  %2140 = vmatprep.mubr.bf16.mxu0 0
  %2141 = vmatmul.mubr.bf16.gmra.mrb[0].mxu0 %v279
  %v2142 = vpop.f32.mrb[0].mxu0
  %v2143 = vadd.f32 0.0, %v2142
  %v2144 = vpop.f32.mrb[0].mxu0
  %v2145 = vadd.f32 0.0, %v2144
  %v2146 = vpop.f32.mrb[0].mxu0
  %v2147 = vadd.f32 0.0, %v2146
  %v2148 = vpop.f32.mrb[0].mxu0
  %v2149 = vadd.f32 0.0, %v2148
  %2150 = vmatprep.mubr.bf16.mxu0 0
  %2151 = vmatmul.mubr.bf16.gmra.mrb[0].mxu0 %v280
  %v2152 = vpop.f32.mrb[0].mxu0
  %v2153 = vadd.f32 0.0, %v2152
  %v2154 = vpop.f32.mrb[0].mxu0
  %v2155 = vadd.f32 0.0, %v2154
  %v2156 = vpop.f32.mrb[0].mxu0
  %v2157 = vadd.f32 0.0, %v2156
  %v2158 = vpop.f32.mrb[0].mxu0
  %v2159 = vadd.f32 0.0, %v2158
  %2160 = vmatprep.mubr.bf16.mxu0 0
  %2161 = vmatmul.mubr.bf16.gmra.mrb[0].mxu0 %v281
  %v2162 = vpop.f32.mrb[0].mxu0
  %v2163 = vadd.f32 0.0, %v2162
  %v2164 = vpop.f32.mrb[0].mxu0
  %v2165 = vadd.f32 0.0, %v2164
  %v2166 = vpop.f32.mrb[0].mxu0
  %v2167 = vadd.f32 0.0, %v2166
  %v2168 = vpop.f32.mrb[0].mxu0
  %v2169 = vadd.f32 0.0, %v2168
  %2170 = vmatprep.mubr.bf16.mxu0 0
  %2171 = vmatmul.mubr.bf16.gmra.mrb[0].mxu0 %v282
  %v2172 = vpop.f32.mrb[0].mxu0
  %v2173 = vadd.f32 0.0, %v2172
  %v2174 = vpop.f32.mrb[0].mxu0
  %v2175 = vadd.f32 0.0, %v2174
  %v2176 = vpop.f32.mrb[0].mxu0
  %v2177 = vadd.f32 0.0, %v2176
  %v2178 = vpop.f32.mrb[0].mxu0
  %v2179 = vadd.f32 0.0, %v2178
  %2180 = vdwg.mxu0
  %v2181 = vmax.f32 %v1863, %v1943
  %v2182 = vmax.f32 %v1865, %v1945
  %v2183 = vmax.f32 %v1867, %v1947
  %v2184 = vmax.f32 %v1869, %v1949
  %v2185 = vmax.f32 %v1873, %v1953
  %v2186 = vmax.f32 %v1875, %v1955
  %v2187 = vmax.f32 %v1877, %v1957
  %v2188 = vmax.f32 %v1879, %v1959
  %v2189 = vmax.f32 %v1883, %v1963
  %v2190 = vmax.f32 %v1885, %v1965
  %v2191 = vmax.f32 %v1887, %v1967
  %v2192 = vmax.f32 %v1889, %v1969
  %v2193 = vmax.f32 %v1893, %v1973
  %v2194 = vmax.f32 %v1895, %v1975
  %v2195 = vmax.f32 %v1897, %v1977
  %v2196 = vmax.f32 %v1899, %v1979
  %v2197 = vmax.f32 %v1903, %v1983
  %v2198 = vmax.f32 %v1905, %v1985
  %v2199 = vmax.f32 %v1907, %v1987
  %v2200 = vmax.f32 %v1909, %v1989
  %v2201 = vmax.f32 %v1913, %v1993
  %v2202 = vmax.f32 %v1915, %v1995
  %v2203 = vmax.f32 %v1917, %v1997
  %v2204 = vmax.f32 %v1919, %v1999
  %v2205 = vmax.f32 %v1923, %v2003
  %v2206 = vmax.f32 %v1925, %v2005
  %v2207 = vmax.f32 %v1927, %v2007
  %v2208 = vmax.f32 %v1929, %v2009
  %v2209 = vmax.f32 %v1933, %v2013
  %v2210 = vmax.f32 %v1935, %v2015
  %v2211 = vmax.f32 %v1937, %v2017
  %v2212 = vmax.f32 %v1939, %v2019
  %v2213 = vmax.f32 %v2023, %v2103
  %v2214 = vmax.f32 %v2025, %v2105
  %v2215 = vmax.f32 %v2027, %v2107
  %v2216 = vmax.f32 %v2029, %v2109
  %v2217 = vmax.f32 %v2033, %v2113
  %v2218 = vmax.f32 %v2035, %v2115
  %v2219 = vmax.f32 %v2037, %v2117
  %v2220 = vmax.f32 %v2039, %v2119
  %v2221 = vmax.f32 %v2043, %v2123
  %v2222 = vmax.f32 %v2045, %v2125
  %v2223 = vmax.f32 %v2047, %v2127
  %v2224 = vmax.f32 %v2049, %v2129
  %v2225 = vmax.f32 %v2053, %v2133
  %v2226 = vmax.f32 %v2055, %v2135
  %v2227 = vmax.f32 %v2057, %v2137
  %v2228 = vmax.f32 %v2059, %v2139
  %v2229 = vmax.f32 %v2063, %v2143
  %v2230 = vmax.f32 %v2065, %v2145
  %v2231 = vmax.f32 %v2067, %v2147
  %v2232 = vmax.f32 %v2069, %v2149
  %v2233 = vmax.f32 %v2073, %v2153
  %v2234 = vmax.f32 %v2075, %v2155
  %v2235 = vmax.f32 %v2077, %v2157
  %v2236 = vmax.f32 %v2079, %v2159
  %v2237 = vmax.f32 %v2083, %v2163
  %v2238 = vmax.f32 %v2085, %v2165
  %v2239 = vmax.f32 %v2087, %v2167
  %v2240 = vmax.f32 %v2089, %v2169
  %v2241 = vmax.f32 %v2093, %v2173
  %v2242 = vmax.f32 %v2095, %v2175
  %v2243 = vmax.f32 %v2097, %v2177
  %v2244 = vmax.f32 %v2099, %v2179
  %v2245 = vmax.f32 %v2181, %v2213
  %v2246 = vmax.f32 %v2182, %v2214
  %v2247 = vmax.f32 %v2183, %v2215
  %v2248 = vmax.f32 %v2184, %v2216
  %v2249 = vmax.f32 %v2185, %v2217
  %v2250 = vmax.f32 %v2186, %v2218
  %v2251 = vmax.f32 %v2187, %v2219
  %v2252 = vmax.f32 %v2188, %v2220
  %v2253 = vmax.f32 %v2189, %v2221
  %v2254 = vmax.f32 %v2190, %v2222
  %v2255 = vmax.f32 %v2191, %v2223
  %v2256 = vmax.f32 %v2192, %v2224
  %v2257 = vmax.f32 %v2193, %v2225
  %v2258 = vmax.f32 %v2194, %v2226
  %v2259 = vmax.f32 %v2195, %v2227
  %v2260 = vmax.f32 %v2196, %v2228
  %v2261 = vmax.f32 %v2197, %v2229
  %v2262 = vmax.f32 %v2198, %v2230
  %v2263 = vmax.f32 %v2199, %v2231
  %v2264 = vmax.f32 %v2200, %v2232
  %v2265 = vmax.f32 %v2201, %v2233
  %v2266 = vmax.f32 %v2202, %v2234
  %v2267 = vmax.f32 %v2203, %v2235
  %v2268 = vmax.f32 %v2204, %v2236
  %v2269 = vmax.f32 %v2205, %v2237
  %v2270 = vmax.f32 %v2206, %v2238
  %v2271 = vmax.f32 %v2207, %v2239
  %v2272 = vmax.f32 %v2208, %v2240
  %v2273 = vmax.f32 %v2209, %v2241
  %v2274 = vmax.f32 %v2210, %v2242
  %v2275 = vmax.f32 %v2211, %v2243
  %v2276 = vmax.f32 %v2212, %v2244
  %v2277 = vadd.f32 %v2245, %v847
  %v2278 = vadd.f32 %v2246, %v847
  %v2279 = vadd.f32 %v2247, %v852
  %v2280 = vadd.f32 %v2248, %v852
  %v2281 = vadd.f32 %v2249, %v857
  %v2282 = vadd.f32 %v2250, %v857
  %v2283 = vadd.f32 %v2251, %v862
  %v2284 = vadd.f32 %v2252, %v862
  %v2285 = vadd.f32 %v2253, %v867
  %v2286 = vadd.f32 %v2254, %v867
  %v2287 = vadd.f32 %v2255, %v872
  %v2288 = vadd.f32 %v2256, %v872
  %v2289 = vadd.f32 %v2257, %v877
  %v2290 = vadd.f32 %v2258, %v877
  %v2291 = vadd.f32 %v2259, %v882
  %v2292 = vadd.f32 %v2260, %v882
  %v2293 = vadd.f32 %v2261, %v887
  %v2294 = vadd.f32 %v2262, %v887
  %v2295 = vadd.f32 %v2263, %v892
  %v2296 = vadd.f32 %v2264, %v892
  %v2297 = vadd.f32 %v2265, %v897
  %v2298 = vadd.f32 %v2266, %v897
  %v2299 = vadd.f32 %v2267, %v902
  %v2300 = vadd.f32 %v2268, %v902
  %v2301 = vadd.f32 %v2269, %v907
  %v2302 = vadd.f32 %v2270, %v907
  %v2303 = vadd.f32 %v2271, %v912
  %v2304 = vadd.f32 %v2272, %v912
  %v2305 = vadd.f32 %v2273, %v917
  %v2306 = vadd.f32 %v2274, %v917
  %v2307 = vadd.f32 %v2275, %v922
  %v2308 = vadd.f32 %v2276, %v922
  %v2309 = vmax.f32 %v2277, 0.0
  %v2310 = vmax.f32 %v2278, 0.0
  %v2311 = vmax.f32 %v2279, 0.0
  %v2312 = vmax.f32 %v2280, 0.0
  %v2313 = vmax.f32 %v2281, 0.0
  %v2314 = vmax.f32 %v2282, 0.0
  %v2315 = vmax.f32 %v2283, 0.0
  %v2316 = vmax.f32 %v2284, 0.0
  %v2317 = vmax.f32 %v2285, 0.0
  %v2318 = vmax.f32 %v2286, 0.0
  %v2319 = vmax.f32 %v2287, 0.0
  %v2320 = vmax.f32 %v2288, 0.0
  %v2321 = vmax.f32 %v2289, 0.0
  %v2322 = vmax.f32 %v2290, 0.0
  %v2323 = vmax.f32 %v2291, 0.0
  %v2324 = vmax.f32 %v2292, 0.0
  %v2325 = vmax.f32 %v2293, 0.0
  %v2326 = vmax.f32 %v2294, 0.0
  %v2327 = vmax.f32 %v2295, 0.0
  %v2328 = vmax.f32 %v2296, 0.0
  %v2329 = vmax.f32 %v2297, 0.0
  %v2330 = vmax.f32 %v2298, 0.0
  %v2331 = vmax.f32 %v2299, 0.0
  %v2332 = vmax.f32 %v2300, 0.0
  %v2333 = vmax.f32 %v2301, 0.0
  %v2334 = vmax.f32 %v2302, 0.0
  %v2335 = vmax.f32 %v2303, 0.0
  %v2336 = vmax.f32 %v2304, 0.0
  %v2337 = vmax.f32 %v2305, 0.0
  %v2338 = vmax.f32 %v2306, 0.0
  %v2339 = vmax.f32 %v2307, 0.0
  %v2340 = vmax.f32 %v2308, 0.0
  %s2341 = scalar_lea.vmem %s3, 16
  %v2342 = vld [vmem:[%s2341] sm:$0xf]
  %v2343 = vld [vmem:[%s2341 + $0x4] sm:$0xf]
  %v2344 = vpack.c.bf16 %v2311, %v2309
  %v2345 = vpack.c.bf16 %v2312, %v2310
  %v2346 = vpack.c.bf16 %v2315, %v2313
  %v2347 = vpack.c.bf16 %v2316, %v2314
  %v2348 = vpack.c.bf16 %v2319, %v2317
  %v2349 = vpack.c.bf16 %v2320, %v2318
  %v2350 = vpack.c.bf16 %v2323, %v2321
  %v2351 = vpack.c.bf16 %v2324, %v2322
  %v2352 = vpack.c.bf16 %v2327, %v2325
  %v2353 = vpack.c.bf16 %v2328, %v2326
  %v2354 = vpack.c.bf16 %v2331, %v2329
  %v2355 = vpack.c.bf16 %v2332, %v2330
  %v2356 = vpack.c.bf16 %v2335, %v2333
  %v2357 = vpack.c.bf16 %v2336, %v2334
  %v2358 = vpack.c.bf16 %v2339, %v2337
  %v2359 = vpack.c.bf16 %v2340, %v2338
  %v2362 = vunpack.c.l.b16 %v2342
  %v2363 = vunpack.c.l.b16 %v2343
  %v2364 = vpack.c.b16 %v2363, %v2362
  %2366 = vmatprep.subr.bf16.mxu0 %v2345
  %2367 = vmatpush1.bf16.msra.mxu0 %v2344
  %2368 = vmatprep.subr.bf16.mxu0 %v2347
  %2369 = vmatpush1.bf16.msra.mxu0 %v2346
  %2370 = vmatprep.subr.bf16.mxu0 %v2349
  %2371 = vmatpush1.bf16.msra.mxu0 %v2348
  %2372 = vmatprep.subr.bf16.mxu0 %v2351
  %2373 = vmatpush1.bf16.msra.mxu0 %v2350
  %2374 = vmatprep.subr.bf16.mxu0 %v2353
  %2375 = vmatpush1.bf16.msra.mxu0 %v2352
  %2376 = vmatprep.subr.bf16.mxu0 %v2355
  %2377 = vmatpush1.bf16.msra.mxu0 %v2354
  %2378 = vmatprep.subr.bf16.mxu0 %v2357
  %2379 = vmatpush1.bf16.msra.mxu0 %v2356
  %2380 = vmatprep.subr.bf16.mxu0 %v2359
  %2381 = vmatpush1.bf16.msra.mxu0 %v2358
  %2382 = vmatprep.subr.bf16.mxu0 0
  %2383 = vmatpush1.bf16.msra.mxu0 0
  %2384 = vmatprep.subr.bf16.mxu0 0
  %2385 = vmatpush1.bf16.msra.mxu0 0
  %2386 = vmatprep.subr.bf16.mxu0 0
  %2387 = vmatpush1.bf16.msra.mxu0 0
  %2388 = vmatprep.subr.bf16.mxu0 0
  %2389 = vmatpush1.bf16.msra.mxu0 0
  %2390 = vmatprep.subr.bf16.mxu0 0
  %2391 = vmatpush1.bf16.msra.mxu0 0
  %2392 = vmatprep.subr.bf16.mxu0 0
  %2393 = vmatpush1.bf16.msra.mxu0 0
  %2394 = vmatprep.subr.bf16.mxu0 0
  %2395 = vmatpush1.bf16.msra.mxu0 0
  %2396 = vmatprep.subr.bf16.mxu0 0
  %2397 = vmatpush1.bf16.msra.mxu0 0
  %2398 = vmatprep.mubr.bf16.mxu0 0
  %2399 = vmatmul.mubr.bf16.gmra.mrb[0].mxu0 %v2364
  %v2400 = vpop.f32.mrb[0].mxu0
  %v2401 = vadd.f32 0.0, %v2400
  %v2402 = vpop.f32.mrb[0].mxu0
  %v2403 = vadd.f32 0.0, %v2402
  %v2404 = vpop.f32.mrb[0].mxu0
  %v2405 = vadd.f32 0.0, %v2404
  %v2406 = vpop.f32.mrb[0].mxu0
  %v2407 = vadd.f32 0.0, %v2406
  %2408 = vdwg.mxu0
  %v2409 = vadd.f32 %v1724, %v2401
  %v2410 = vadd.f32 %v1726, %v2403
  %v2411 = vadd.f32 %v1728, %v2405
  %v2412 = vadd.f32 %v1730, %v2407
  %v2413 = vld [vmem:[%s0 + $0xc0] sm:$0xff]
  %v2414 = vld [vmem:[%s0 + $0xc8] sm:$0xff]
  %v2415 = vld [vmem:[%s0 + $0xd0] sm:$0xff]
  %v2416 = vld [vmem:[%s0 + $0xd8] sm:$0xff]
  %v2417 = vld [vmem:[%s0 + $0xe0] sm:$0xff]
  %v2418 = vld [vmem:[%s0 + $0xe8] sm:$0xff]
  %v2419 = vld [vmem:[%s0 + $0xf0] sm:$0xff]
  %v2420 = vld [vmem:[%s0 + $0xf8] sm:$0xff]
  %v2421 = vld [vmem:[%s0 + $0x100] sm:$0xff]
  %v2422 = vld [vmem:[%s0 + $0x108] sm:$0xff]
  %v2423 = vld [vmem:[%s0 + $0x110] sm:$0xff]
  %v2424 = vld [vmem:[%s0 + $0x118] sm:$0xff]
  %v2425 = vld [vmem:[%s0 + $0x120] sm:$0xff]
  %v2426 = vld [vmem:[%s0 + $0x128] sm:$0xff]
  %v2427 = vld [vmem:[%s0 + $0x130] sm:$0xff]
  %v2428 = vld [vmem:[%s0 + $0x138] sm:$0xff]
  %v2445 = vunpack.c.l.b16 %v2413
  %v2446 = vunpack.c.h.b16 %v2413
  %v2447 = vunpack.c.l.b16 %v2414
  %v2448 = vunpack.c.h.b16 %v2414
  %v2449 = vunpack.c.l.b16 %v2415
  %v2450 = vunpack.c.h.b16 %v2415
  %v2451 = vunpack.c.l.b16 %v2416
  %v2452 = vunpack.c.h.b16 %v2416
  %v2453 = vunpack.c.l.b16 %v2417
  %v2454 = vunpack.c.h.b16 %v2417
  %v2455 = vunpack.c.l.b16 %v2418
  %v2456 = vunpack.c.h.b16 %v2418
  %v2457 = vunpack.c.l.b16 %v2419
  %v2458 = vunpack.c.h.b16 %v2419
  %v2459 = vunpack.c.l.b16 %v2420
  %v2460 = vunpack.c.h.b16 %v2420
  %v2461 = vunpack.c.l.b16 %v2421
  %v2462 = vunpack.c.h.b16 %v2421
  %v2463 = vunpack.c.l.b16 %v2422
  %v2464 = vunpack.c.h.b16 %v2422
  %v2465 = vunpack.c.l.b16 %v2423
  %v2466 = vunpack.c.h.b16 %v2423
  %v2467 = vunpack.c.l.b16 %v2424
  %v2468 = vunpack.c.h.b16 %v2424
  %v2469 = vunpack.c.l.b16 %v2425
  %v2470 = vunpack.c.h.b16 %v2425
  %v2471 = vunpack.c.l.b16 %v2426
  %v2472 = vunpack.c.h.b16 %v2426
  %v2473 = vunpack.c.l.b16 %v2427
  %v2474 = vunpack.c.h.b16 %v2427
  %v2475 = vunpack.c.l.b16 %v2428
  %v2476 = vunpack.c.h.b16 %v2428
  %v2477 = vpack.c.b16 %v2447, %v2445
  %v2478 = vpack.c.b16 %v2448, %v2446
  %v2479 = vpack.c.b16 %v2451, %v2449
  %v2480 = vpack.c.b16 %v2452, %v2450
  %v2481 = vpack.c.b16 %v2455, %v2453
  %v2482 = vpack.c.b16 %v2456, %v2454
  %v2483 = vpack.c.b16 %v2459, %v2457
  %v2484 = vpack.c.b16 %v2460, %v2458
  %v2485 = vpack.c.b16 %v2463, %v2461
  %v2486 = vpack.c.b16 %v2464, %v2462
  %v2487 = vpack.c.b16 %v2467, %v2465
  %v2488 = vpack.c.b16 %v2468, %v2466
  %v2489 = vpack.c.b16 %v2471, %v2469
  %v2490 = vpack.c.b16 %v2472, %v2470
  %v2491 = vpack.c.b16 %v2475, %v2473
  %v2492 = vpack.c.b16 %v2476, %v2474
  %2509 = vmatprep.subr.bf16.mxu0 %v2478
  %2510 = vmatpush1.bf16.msra.mxu0 %v2477
  %2511 = vmatprep.subr.bf16.mxu0 %v2480
  %2512 = vmatpush1.bf16.msra.mxu0 %v2479
  %2513 = vmatprep.subr.bf16.mxu0 %v2482
  %2514 = vmatpush1.bf16.msra.mxu0 %v2481
  %2515 = vmatprep.subr.bf16.mxu0 %v2484
  %2516 = vmatpush1.bf16.msra.mxu0 %v2483
  %2517 = vmatprep.subr.bf16.mxu0 %v2486
  %2518 = vmatpush1.bf16.msra.mxu0 %v2485
  %2519 = vmatprep.subr.bf16.mxu0 %v2488
  %2520 = vmatpush1.bf16.msra.mxu0 %v2487
  %2521 = vmatprep.subr.bf16.mxu0 %v2490
  %2522 = vmatpush1.bf16.msra.mxu0 %v2489
  %2523 = vmatprep.subr.bf16.mxu0 %v2492
  %2524 = vmatpush1.bf16.msra.mxu0 %v2491
  %2525 = vmatprep.subr.bf16.mxu0 0
  %2526 = vmatpush1.bf16.msra.mxu0 0
  %2527 = vmatprep.subr.bf16.mxu0 0
  %2528 = vmatpush1.bf16.msra.mxu0 0
  %2529 = vmatprep.subr.bf16.mxu0 0
  %2530 = vmatpush1.bf16.msra.mxu0 0
  %2531 = vmatprep.subr.bf16.mxu0 0
  %2532 = vmatpush1.bf16.msra.mxu0 0
  %2533 = vmatprep.subr.bf16.mxu0 0
  %2534 = vmatpush1.bf16.msra.mxu0 0
  %2535 = vmatprep.subr.bf16.mxu0 0
  %2536 = vmatpush1.bf16.msra.mxu0 0
  %2537 = vmatprep.subr.bf16.mxu0 0
  %2538 = vmatpush1.bf16.msra.mxu0 0
  %2539 = vmatprep.subr.bf16.mxu0 0
  %2540 = vmatpush1.bf16.msra.mxu0 0
  %2541 = vmatprep.mubr.bf16.mxu0 0
  %2542 = vmatmul.mubr.bf16.gmra.mrb[0].mxu0 %v251
  %v2543 = vpop.f32.mrb[0].mxu0
  %v2544 = vadd.f32 0.0, %v2543
  %v2545 = vpop.f32.mrb[0].mxu0
  %v2546 = vadd.f32 0.0, %v2545
  %v2547 = vpop.f32.mrb[0].mxu0
  %v2548 = vadd.f32 0.0, %v2547
  %v2549 = vpop.f32.mrb[0].mxu0
  %v2550 = vadd.f32 0.0, %v2549
  %2551 = vmatprep.mubr.bf16.mxu0 0
  %2552 = vmatmul.mubr.bf16.gmra.mrb[0].mxu0 %v252
  %v2553 = vpop.f32.mrb[0].mxu0
  %v2554 = vadd.f32 0.0, %v2553
  %v2555 = vpop.f32.mrb[0].mxu0
  %v2556 = vadd.f32 0.0, %v2555
  %v2557 = vpop.f32.mrb[0].mxu0
  %v2558 = vadd.f32 0.0, %v2557
  %v2559 = vpop.f32.mrb[0].mxu0
  %v2560 = vadd.f32 0.0, %v2559
  %2561 = vmatprep.mubr.bf16.mxu0 0
  %2562 = vmatmul.mubr.bf16.gmra.mrb[0].mxu0 %v253
  %v2563 = vpop.f32.mrb[0].mxu0
  %v2564 = vadd.f32 0.0, %v2563
  %v2565 = vpop.f32.mrb[0].mxu0
  %v2566 = vadd.f32 0.0, %v2565
  %v2567 = vpop.f32.mrb[0].mxu0
  %v2568 = vadd.f32 0.0, %v2567
  %v2569 = vpop.f32.mrb[0].mxu0
  %v2570 = vadd.f32 0.0, %v2569
  %2571 = vmatprep.mubr.bf16.mxu0 0
  %2572 = vmatmul.mubr.bf16.gmra.mrb[0].mxu0 %v254
  %v2573 = vpop.f32.mrb[0].mxu0
  %v2574 = vadd.f32 0.0, %v2573
  %v2575 = vpop.f32.mrb[0].mxu0
  %v2576 = vadd.f32 0.0, %v2575
  %v2577 = vpop.f32.mrb[0].mxu0
  %v2578 = vadd.f32 0.0, %v2577
  %v2579 = vpop.f32.mrb[0].mxu0
  %v2580 = vadd.f32 0.0, %v2579
  %2581 = vmatprep.mubr.bf16.mxu0 0
  %2582 = vmatmul.mubr.bf16.gmra.mrb[0].mxu0 %v255
  %v2583 = vpop.f32.mrb[0].mxu0
  %v2584 = vadd.f32 0.0, %v2583
  %v2585 = vpop.f32.mrb[0].mxu0
  %v2586 = vadd.f32 0.0, %v2585
  %v2587 = vpop.f32.mrb[0].mxu0
  %v2588 = vadd.f32 0.0, %v2587
  %v2589 = vpop.f32.mrb[0].mxu0
  %v2590 = vadd.f32 0.0, %v2589
  %2591 = vmatprep.mubr.bf16.mxu0 0
  %2592 = vmatmul.mubr.bf16.gmra.mrb[0].mxu0 %v256
  %v2593 = vpop.f32.mrb[0].mxu0
  %v2594 = vadd.f32 0.0, %v2593
  %v2595 = vpop.f32.mrb[0].mxu0
  %v2596 = vadd.f32 0.0, %v2595
  %v2597 = vpop.f32.mrb[0].mxu0
  %v2598 = vadd.f32 0.0, %v2597
  %v2599 = vpop.f32.mrb[0].mxu0
  %v2600 = vadd.f32 0.0, %v2599
  %2601 = vmatprep.mubr.bf16.mxu0 0
  %2602 = vmatmul.mubr.bf16.gmra.mrb[0].mxu0 %v257
  %v2603 = vpop.f32.mrb[0].mxu0
  %v2604 = vadd.f32 0.0, %v2603
  %v2605 = vpop.f32.mrb[0].mxu0
  %v2606 = vadd.f32 0.0, %v2605
  %v2607 = vpop.f32.mrb[0].mxu0
  %v2608 = vadd.f32 0.0, %v2607
  %v2609 = vpop.f32.mrb[0].mxu0
  %v2610 = vadd.f32 0.0, %v2609
  %2611 = vmatprep.mubr.bf16.mxu0 0
  %2612 = vmatmul.mubr.bf16.gmra.mrb[0].mxu0 %v258
  %v2613 = vpop.f32.mrb[0].mxu0
  %v2614 = vadd.f32 0.0, %v2613
  %v2615 = vpop.f32.mrb[0].mxu0
  %v2616 = vadd.f32 0.0, %v2615
  %v2617 = vpop.f32.mrb[0].mxu0
  %v2618 = vadd.f32 0.0, %v2617
  %v2619 = vpop.f32.mrb[0].mxu0
  %v2620 = vadd.f32 0.0, %v2619
  %2621 = vmatprep.mubr.bf16.mxu0 0
  %2622 = vmatmul.mubr.bf16.gmra.mrb[0].mxu0 %v259
  %v2623 = vpop.f32.mrb[0].mxu0
  %v2624 = vadd.f32 0.0, %v2623
  %v2625 = vpop.f32.mrb[0].mxu0
  %v2626 = vadd.f32 0.0, %v2625
  %v2627 = vpop.f32.mrb[0].mxu0
  %v2628 = vadd.f32 0.0, %v2627
  %v2629 = vpop.f32.mrb[0].mxu0
  %v2630 = vadd.f32 0.0, %v2629
  %2631 = vmatprep.mubr.bf16.mxu0 0
  %2632 = vmatmul.mubr.bf16.gmra.mrb[0].mxu0 %v260
  %v2633 = vpop.f32.mrb[0].mxu0
  %v2634 = vadd.f32 0.0, %v2633
  %v2635 = vpop.f32.mrb[0].mxu0
  %v2636 = vadd.f32 0.0, %v2635
  %v2637 = vpop.f32.mrb[0].mxu0
  %v2638 = vadd.f32 0.0, %v2637
  %v2639 = vpop.f32.mrb[0].mxu0
  %v2640 = vadd.f32 0.0, %v2639
  %2641 = vmatprep.mubr.bf16.mxu0 0
  %2642 = vmatmul.mubr.bf16.gmra.mrb[0].mxu0 %v261
  %v2643 = vpop.f32.mrb[0].mxu0
  %v2644 = vadd.f32 0.0, %v2643
  %v2645 = vpop.f32.mrb[0].mxu0
  %v2646 = vadd.f32 0.0, %v2645
  %v2647 = vpop.f32.mrb[0].mxu0
  %v2648 = vadd.f32 0.0, %v2647
  %v2649 = vpop.f32.mrb[0].mxu0
  %v2650 = vadd.f32 0.0, %v2649
  %2651 = vmatprep.mubr.bf16.mxu0 0
  %2652 = vmatmul.mubr.bf16.gmra.mrb[0].mxu0 %v262
  %v2653 = vpop.f32.mrb[0].mxu0
  %v2654 = vadd.f32 0.0, %v2653
  %v2655 = vpop.f32.mrb[0].mxu0
  %v2656 = vadd.f32 0.0, %v2655
  %v2657 = vpop.f32.mrb[0].mxu0
  %v2658 = vadd.f32 0.0, %v2657
  %v2659 = vpop.f32.mrb[0].mxu0
  %v2660 = vadd.f32 0.0, %v2659
  %2661 = vmatprep.mubr.bf16.mxu0 0
  %2662 = vmatmul.mubr.bf16.gmra.mrb[0].mxu0 %v263
  %v2663 = vpop.f32.mrb[0].mxu0
  %v2664 = vadd.f32 0.0, %v2663
  %v2665 = vpop.f32.mrb[0].mxu0
  %v2666 = vadd.f32 0.0, %v2665
  %v2667 = vpop.f32.mrb[0].mxu0
  %v2668 = vadd.f32 0.0, %v2667
  %v2669 = vpop.f32.mrb[0].mxu0
  %v2670 = vadd.f32 0.0, %v2669
  %2671 = vmatprep.mubr.bf16.mxu0 0
  %2672 = vmatmul.mubr.bf16.gmra.mrb[0].mxu0 %v264
  %v2673 = vpop.f32.mrb[0].mxu0
  %v2674 = vadd.f32 0.0, %v2673
  %v2675 = vpop.f32.mrb[0].mxu0
  %v2676 = vadd.f32 0.0, %v2675
  %v2677 = vpop.f32.mrb[0].mxu0
  %v2678 = vadd.f32 0.0, %v2677
  %v2679 = vpop.f32.mrb[0].mxu0
  %v2680 = vadd.f32 0.0, %v2679
  %2681 = vmatprep.mubr.bf16.mxu0 0
  %2682 = vmatmul.mubr.bf16.gmra.mrb[0].mxu0 %v265
  %v2683 = vpop.f32.mrb[0].mxu0
  %v2684 = vadd.f32 0.0, %v2683
  %v2685 = vpop.f32.mrb[0].mxu0
  %v2686 = vadd.f32 0.0, %v2685
  %v2687 = vpop.f32.mrb[0].mxu0
  %v2688 = vadd.f32 0.0, %v2687
  %v2689 = vpop.f32.mrb[0].mxu0
  %v2690 = vadd.f32 0.0, %v2689
  %2691 = vmatprep.mubr.bf16.mxu0 0
  %2692 = vmatmul.mubr.bf16.gmra.mrb[0].mxu0 %v266
  %v2693 = vpop.f32.mrb[0].mxu0
  %v2694 = vadd.f32 0.0, %v2693
  %v2695 = vpop.f32.mrb[0].mxu0
  %v2696 = vadd.f32 0.0, %v2695
  %v2697 = vpop.f32.mrb[0].mxu0
  %v2698 = vadd.f32 0.0, %v2697
  %v2699 = vpop.f32.mrb[0].mxu0
  %v2700 = vadd.f32 0.0, %v2699
  %2701 = vmatprep.mubr.bf16.mxu0 0
  %2702 = vmatmul.mubr.bf16.gmra.mrb[0].mxu0 %v267
  %v2703 = vpop.f32.mrb[0].mxu0
  %v2704 = vadd.f32 0.0, %v2703
  %v2705 = vpop.f32.mrb[0].mxu0
  %v2706 = vadd.f32 0.0, %v2705
  %v2707 = vpop.f32.mrb[0].mxu0
  %v2708 = vadd.f32 0.0, %v2707
  %v2709 = vpop.f32.mrb[0].mxu0
  %v2710 = vadd.f32 0.0, %v2709
  %2711 = vmatprep.mubr.bf16.mxu0 0
  %2712 = vmatmul.mubr.bf16.gmra.mrb[0].mxu0 %v268
  %v2713 = vpop.f32.mrb[0].mxu0
  %v2714 = vadd.f32 0.0, %v2713
  %v2715 = vpop.f32.mrb[0].mxu0
  %v2716 = vadd.f32 0.0, %v2715
  %v2717 = vpop.f32.mrb[0].mxu0
  %v2718 = vadd.f32 0.0, %v2717
  %v2719 = vpop.f32.mrb[0].mxu0
  %v2720 = vadd.f32 0.0, %v2719
  %2721 = vmatprep.mubr.bf16.mxu0 0
  %2722 = vmatmul.mubr.bf16.gmra.mrb[0].mxu0 %v269
  %v2723 = vpop.f32.mrb[0].mxu0
  %v2724 = vadd.f32 0.0, %v2723
  %v2725 = vpop.f32.mrb[0].mxu0
  %v2726 = vadd.f32 0.0, %v2725
  %v2727 = vpop.f32.mrb[0].mxu0
  %v2728 = vadd.f32 0.0, %v2727
  %v2729 = vpop.f32.mrb[0].mxu0
  %v2730 = vadd.f32 0.0, %v2729
  %2731 = vmatprep.mubr.bf16.mxu0 0
  %2732 = vmatmul.mubr.bf16.gmra.mrb[0].mxu0 %v270
  %v2733 = vpop.f32.mrb[0].mxu0
  %v2734 = vadd.f32 0.0, %v2733
  %v2735 = vpop.f32.mrb[0].mxu0
  %v2736 = vadd.f32 0.0, %v2735
  %v2737 = vpop.f32.mrb[0].mxu0
  %v2738 = vadd.f32 0.0, %v2737
  %v2739 = vpop.f32.mrb[0].mxu0
  %v2740 = vadd.f32 0.0, %v2739
  %2741 = vmatprep.mubr.bf16.mxu0 0
  %2742 = vmatmul.mubr.bf16.gmra.mrb[0].mxu0 %v271
  %v2743 = vpop.f32.mrb[0].mxu0
  %v2744 = vadd.f32 0.0, %v2743
  %v2745 = vpop.f32.mrb[0].mxu0
  %v2746 = vadd.f32 0.0, %v2745
  %v2747 = vpop.f32.mrb[0].mxu0
  %v2748 = vadd.f32 0.0, %v2747
  %v2749 = vpop.f32.mrb[0].mxu0
  %v2750 = vadd.f32 0.0, %v2749
  %2751 = vmatprep.mubr.bf16.mxu0 0
  %2752 = vmatmul.mubr.bf16.gmra.mrb[0].mxu0 %v272
  %v2753 = vpop.f32.mrb[0].mxu0
  %v2754 = vadd.f32 0.0, %v2753
  %v2755 = vpop.f32.mrb[0].mxu0
  %v2756 = vadd.f32 0.0, %v2755
  %v2757 = vpop.f32.mrb[0].mxu0
  %v2758 = vadd.f32 0.0, %v2757
  %v2759 = vpop.f32.mrb[0].mxu0
  %v2760 = vadd.f32 0.0, %v2759
  %2761 = vmatprep.mubr.bf16.mxu0 0
  %2762 = vmatmul.mubr.bf16.gmra.mrb[0].mxu0 %v273
  %v2763 = vpop.f32.mrb[0].mxu0
  %v2764 = vadd.f32 0.0, %v2763
  %v2765 = vpop.f32.mrb[0].mxu0
  %v2766 = vadd.f32 0.0, %v2765
  %v2767 = vpop.f32.mrb[0].mxu0
  %v2768 = vadd.f32 0.0, %v2767
  %v2769 = vpop.f32.mrb[0].mxu0
  %v2770 = vadd.f32 0.0, %v2769
  %2771 = vmatprep.mubr.bf16.mxu0 0
  %2772 = vmatmul.mubr.bf16.gmra.mrb[0].mxu0 %v274
  %v2773 = vpop.f32.mrb[0].mxu0
  %v2774 = vadd.f32 0.0, %v2773
  %v2775 = vpop.f32.mrb[0].mxu0
  %v2776 = vadd.f32 0.0, %v2775
  %v2777 = vpop.f32.mrb[0].mxu0
  %v2778 = vadd.f32 0.0, %v2777
  %v2779 = vpop.f32.mrb[0].mxu0
  %v2780 = vadd.f32 0.0, %v2779
  %2781 = vmatprep.mubr.bf16.mxu0 0
  %2782 = vmatmul.mubr.bf16.gmra.mrb[0].mxu0 %v275
  %v2783 = vpop.f32.mrb[0].mxu0
  %v2784 = vadd.f32 0.0, %v2783
  %v2785 = vpop.f32.mrb[0].mxu0
  %v2786 = vadd.f32 0.0, %v2785
  %v2787 = vpop.f32.mrb[0].mxu0
  %v2788 = vadd.f32 0.0, %v2787
  %v2789 = vpop.f32.mrb[0].mxu0
  %v2790 = vadd.f32 0.0, %v2789
  %2791 = vmatprep.mubr.bf16.mxu0 0
  %2792 = vmatmul.mubr.bf16.gmra.mrb[0].mxu0 %v276
  %v2793 = vpop.f32.mrb[0].mxu0
  %v2794 = vadd.f32 0.0, %v2793
  %v2795 = vpop.f32.mrb[0].mxu0
  %v2796 = vadd.f32 0.0, %v2795
  %v2797 = vpop.f32.mrb[0].mxu0
  %v2798 = vadd.f32 0.0, %v2797
  %v2799 = vpop.f32.mrb[0].mxu0
  %v2800 = vadd.f32 0.0, %v2799
  %2801 = vmatprep.mubr.bf16.mxu0 0
  %2802 = vmatmul.mubr.bf16.gmra.mrb[0].mxu0 %v277
  %v2803 = vpop.f32.mrb[0].mxu0
  %v2804 = vadd.f32 0.0, %v2803
  %v2805 = vpop.f32.mrb[0].mxu0
  %v2806 = vadd.f32 0.0, %v2805
  %v2807 = vpop.f32.mrb[0].mxu0
  %v2808 = vadd.f32 0.0, %v2807
  %v2809 = vpop.f32.mrb[0].mxu0
  %v2810 = vadd.f32 0.0, %v2809
  %2811 = vmatprep.mubr.bf16.mxu0 0
  %2812 = vmatmul.mubr.bf16.gmra.mrb[0].mxu0 %v278
  %v2813 = vpop.f32.mrb[0].mxu0
  %v2814 = vadd.f32 0.0, %v2813
  %v2815 = vpop.f32.mrb[0].mxu0
  %v2816 = vadd.f32 0.0, %v2815
  %v2817 = vpop.f32.mrb[0].mxu0
  %v2818 = vadd.f32 0.0, %v2817
  %v2819 = vpop.f32.mrb[0].mxu0
  %v2820 = vadd.f32 0.0, %v2819
  %2821 = vmatprep.mubr.bf16.mxu0 0
  %2822 = vmatmul.mubr.bf16.gmra.mrb[0].mxu0 %v279
  %v2823 = vpop.f32.mrb[0].mxu0
  %v2824 = vadd.f32 0.0, %v2823
  %v2825 = vpop.f32.mrb[0].mxu0
  %v2826 = vadd.f32 0.0, %v2825
  %v2827 = vpop.f32.mrb[0].mxu0
  %v2828 = vadd.f32 0.0, %v2827
  %v2829 = vpop.f32.mrb[0].mxu0
  %v2830 = vadd.f32 0.0, %v2829
  %2831 = vmatprep.mubr.bf16.mxu0 0
  %2832 = vmatmul.mubr.bf16.gmra.mrb[0].mxu0 %v280
  %v2833 = vpop.f32.mrb[0].mxu0
  %v2834 = vadd.f32 0.0, %v2833
  %v2835 = vpop.f32.mrb[0].mxu0
  %v2836 = vadd.f32 0.0, %v2835
  %v2837 = vpop.f32.mrb[0].mxu0
  %v2838 = vadd.f32 0.0, %v2837
  %v2839 = vpop.f32.mrb[0].mxu0
  %v2840 = vadd.f32 0.0, %v2839
  %2841 = vmatprep.mubr.bf16.mxu0 0
  %2842 = vmatmul.mubr.bf16.gmra.mrb[0].mxu0 %v281
  %v2843 = vpop.f32.mrb[0].mxu0
  %v2844 = vadd.f32 0.0, %v2843
  %v2845 = vpop.f32.mrb[0].mxu0
  %v2846 = vadd.f32 0.0, %v2845
  %v2847 = vpop.f32.mrb[0].mxu0
  %v2848 = vadd.f32 0.0, %v2847
  %v2849 = vpop.f32.mrb[0].mxu0
  %v2850 = vadd.f32 0.0, %v2849
  %2851 = vmatprep.mubr.bf16.mxu0 0
  %2852 = vmatmul.mubr.bf16.gmra.mrb[0].mxu0 %v282
  %v2853 = vpop.f32.mrb[0].mxu0
  %v2854 = vadd.f32 0.0, %v2853
  %v2855 = vpop.f32.mrb[0].mxu0
  %v2856 = vadd.f32 0.0, %v2855
  %v2857 = vpop.f32.mrb[0].mxu0
  %v2858 = vadd.f32 0.0, %v2857
  %v2859 = vpop.f32.mrb[0].mxu0
  %v2860 = vadd.f32 0.0, %v2859
  %2861 = vdwg.mxu0
  %v2862 = vmax.f32 %v2544, %v2624
  %v2863 = vmax.f32 %v2546, %v2626
  %v2864 = vmax.f32 %v2548, %v2628
  %v2865 = vmax.f32 %v2550, %v2630
  %v2866 = vmax.f32 %v2554, %v2634
  %v2867 = vmax.f32 %v2556, %v2636
  %v2868 = vmax.f32 %v2558, %v2638
  %v2869 = vmax.f32 %v2560, %v2640
  %v2870 = vmax.f32 %v2564, %v2644
  %v2871 = vmax.f32 %v2566, %v2646
  %v2872 = vmax.f32 %v2568, %v2648
  %v2873 = vmax.f32 %v2570, %v2650
  %v2874 = vmax.f32 %v2574, %v2654
  %v2875 = vmax.f32 %v2576, %v2656
  %v2876 = vmax.f32 %v2578, %v2658
  %v2877 = vmax.f32 %v2580, %v2660
  %v2878 = vmax.f32 %v2584, %v2664
  %v2879 = vmax.f32 %v2586, %v2666
  %v2880 = vmax.f32 %v2588, %v2668
  %v2881 = vmax.f32 %v2590, %v2670
  %v2882 = vmax.f32 %v2594, %v2674
  %v2883 = vmax.f32 %v2596, %v2676
  %v2884 = vmax.f32 %v2598, %v2678
  %v2885 = vmax.f32 %v2600, %v2680
  %v2886 = vmax.f32 %v2604, %v2684
  %v2887 = vmax.f32 %v2606, %v2686
  %v2888 = vmax.f32 %v2608, %v2688
  %v2889 = vmax.f32 %v2610, %v2690
  %v2890 = vmax.f32 %v2614, %v2694
  %v2891 = vmax.f32 %v2616, %v2696
  %v2892 = vmax.f32 %v2618, %v2698
  %v2893 = vmax.f32 %v2620, %v2700
  %v2894 = vmax.f32 %v2704, %v2784
  %v2895 = vmax.f32 %v2706, %v2786
  %v2896 = vmax.f32 %v2708, %v2788
  %v2897 = vmax.f32 %v2710, %v2790
  %v2898 = vmax.f32 %v2714, %v2794
  %v2899 = vmax.f32 %v2716, %v2796
  %v2900 = vmax.f32 %v2718, %v2798
  %v2901 = vmax.f32 %v2720, %v2800
  %v2902 = vmax.f32 %v2724, %v2804
  %v2903 = vmax.f32 %v2726, %v2806
  %v2904 = vmax.f32 %v2728, %v2808
  %v2905 = vmax.f32 %v2730, %v2810
  %v2906 = vmax.f32 %v2734, %v2814
  %v2907 = vmax.f32 %v2736, %v2816
  %v2908 = vmax.f32 %v2738, %v2818
  %v2909 = vmax.f32 %v2740, %v2820
  %v2910 = vmax.f32 %v2744, %v2824
  %v2911 = vmax.f32 %v2746, %v2826
  %v2912 = vmax.f32 %v2748, %v2828
  %v2913 = vmax.f32 %v2750, %v2830
  %v2914 = vmax.f32 %v2754, %v2834
  %v2915 = vmax.f32 %v2756, %v2836
  %v2916 = vmax.f32 %v2758, %v2838
  %v2917 = vmax.f32 %v2760, %v2840
  %v2918 = vmax.f32 %v2764, %v2844
  %v2919 = vmax.f32 %v2766, %v2846
  %v2920 = vmax.f32 %v2768, %v2848
  %v2921 = vmax.f32 %v2770, %v2850
  %v2922 = vmax.f32 %v2774, %v2854
  %v2923 = vmax.f32 %v2776, %v2856
  %v2924 = vmax.f32 %v2778, %v2858
  %v2925 = vmax.f32 %v2780, %v2860
  %v2926 = vmax.f32 %v2862, %v2894
  %v2927 = vmax.f32 %v2863, %v2895
  %v2928 = vmax.f32 %v2864, %v2896
  %v2929 = vmax.f32 %v2865, %v2897
  %v2930 = vmax.f32 %v2866, %v2898
  %v2931 = vmax.f32 %v2867, %v2899
  %v2932 = vmax.f32 %v2868, %v2900
  %v2933 = vmax.f32 %v2869, %v2901
  %v2934 = vmax.f32 %v2870, %v2902
  %v2935 = vmax.f32 %v2871, %v2903
  %v2936 = vmax.f32 %v2872, %v2904
  %v2937 = vmax.f32 %v2873, %v2905
  %v2938 = vmax.f32 %v2874, %v2906
  %v2939 = vmax.f32 %v2875, %v2907
  %v2940 = vmax.f32 %v2876, %v2908
  %v2941 = vmax.f32 %v2877, %v2909
  %v2942 = vmax.f32 %v2878, %v2910
  %v2943 = vmax.f32 %v2879, %v2911
  %v2944 = vmax.f32 %v2880, %v2912
  %v2945 = vmax.f32 %v2881, %v2913
  %v2946 = vmax.f32 %v2882, %v2914
  %v2947 = vmax.f32 %v2883, %v2915
  %v2948 = vmax.f32 %v2884, %v2916
  %v2949 = vmax.f32 %v2885, %v2917
  %v2950 = vmax.f32 %v2886, %v2918
  %v2951 = vmax.f32 %v2887, %v2919
  %v2952 = vmax.f32 %v2888, %v2920
  %v2953 = vmax.f32 %v2889, %v2921
  %v2954 = vmax.f32 %v2890, %v2922
  %v2955 = vmax.f32 %v2891, %v2923
  %v2956 = vmax.f32 %v2892, %v2924
  %v2957 = vmax.f32 %v2893, %v2925
  %v2958 = vadd.f32 %v2926, %v847
  %v2959 = vadd.f32 %v2927, %v847
  %v2960 = vadd.f32 %v2928, %v852
  %v2961 = vadd.f32 %v2929, %v852
  %v2962 = vadd.f32 %v2930, %v857
  %v2963 = vadd.f32 %v2931, %v857
  %v2964 = vadd.f32 %v2932, %v862
  %v2965 = vadd.f32 %v2933, %v862
  %v2966 = vadd.f32 %v2934, %v867
  %v2967 = vadd.f32 %v2935, %v867
  %v2968 = vadd.f32 %v2936, %v872
  %v2969 = vadd.f32 %v2937, %v872
  %v2970 = vadd.f32 %v2938, %v877
  %v2971 = vadd.f32 %v2939, %v877
  %v2972 = vadd.f32 %v2940, %v882
  %v2973 = vadd.f32 %v2941, %v882
  %v2974 = vadd.f32 %v2942, %v887
  %v2975 = vadd.f32 %v2943, %v887
  %v2976 = vadd.f32 %v2944, %v892
  %v2977 = vadd.f32 %v2945, %v892
  %v2978 = vadd.f32 %v2946, %v897
  %v2979 = vadd.f32 %v2947, %v897
  %v2980 = vadd.f32 %v2948, %v902
  %v2981 = vadd.f32 %v2949, %v902
  %v2982 = vadd.f32 %v2950, %v907
  %v2983 = vadd.f32 %v2951, %v907
  %v2984 = vadd.f32 %v2952, %v912
  %v2985 = vadd.f32 %v2953, %v912
  %v2986 = vadd.f32 %v2954, %v917
  %v2987 = vadd.f32 %v2955, %v917
  %v2988 = vadd.f32 %v2956, %v922
  %v2989 = vadd.f32 %v2957, %v922
  %v2990 = vmax.f32 %v2958, 0.0
  %v2991 = vmax.f32 %v2959, 0.0
  %v2992 = vmax.f32 %v2960, 0.0
  %v2993 = vmax.f32 %v2961, 0.0
  %v2994 = vmax.f32 %v2962, 0.0
  %v2995 = vmax.f32 %v2963, 0.0
  %v2996 = vmax.f32 %v2964, 0.0
  %v2997 = vmax.f32 %v2965, 0.0
  %v2998 = vmax.f32 %v2966, 0.0
  %v2999 = vmax.f32 %v2967, 0.0
  %v3000 = vmax.f32 %v2968, 0.0
  %v3001 = vmax.f32 %v2969, 0.0
  %v3002 = vmax.f32 %v2970, 0.0
  %v3003 = vmax.f32 %v2971, 0.0
  %v3004 = vmax.f32 %v2972, 0.0
  %v3005 = vmax.f32 %v2973, 0.0
  %v3006 = vmax.f32 %v2974, 0.0
  %v3007 = vmax.f32 %v2975, 0.0
  %v3008 = vmax.f32 %v2976, 0.0
  %v3009 = vmax.f32 %v2977, 0.0
  %v3010 = vmax.f32 %v2978, 0.0
  %v3011 = vmax.f32 %v2979, 0.0
  %v3012 = vmax.f32 %v2980, 0.0
  %v3013 = vmax.f32 %v2981, 0.0
  %v3014 = vmax.f32 %v2982, 0.0
  %v3015 = vmax.f32 %v2983, 0.0
  %v3016 = vmax.f32 %v2984, 0.0
  %v3017 = vmax.f32 %v2985, 0.0
  %v3018 = vmax.f32 %v2986, 0.0
  %v3019 = vmax.f32 %v2987, 0.0
  %v3020 = vmax.f32 %v2988, 0.0
  %v3021 = vmax.f32 %v2989, 0.0
  %s3022 = scalar_lea.vmem %s3, 24
  %v3023 = vld [vmem:[%s3022] sm:$0xf]
  %v3024 = vld [vmem:[%s3022 + $0x4] sm:$0xf]
  %v3025 = vpack.c.bf16 %v2992, %v2990
  %v3026 = vpack.c.bf16 %v2993, %v2991
  %v3027 = vpack.c.bf16 %v2996, %v2994
  %v3028 = vpack.c.bf16 %v2997, %v2995
  %v3029 = vpack.c.bf16 %v3000, %v2998
  %v3030 = vpack.c.bf16 %v3001, %v2999
  %v3031 = vpack.c.bf16 %v3004, %v3002
  %v3032 = vpack.c.bf16 %v3005, %v3003
  %v3033 = vpack.c.bf16 %v3008, %v3006
  %v3034 = vpack.c.bf16 %v3009, %v3007
  %v3035 = vpack.c.bf16 %v3012, %v3010
  %v3036 = vpack.c.bf16 %v3013, %v3011
  %v3037 = vpack.c.bf16 %v3016, %v3014
  %v3038 = vpack.c.bf16 %v3017, %v3015
  %v3039 = vpack.c.bf16 %v3020, %v3018
  %v3040 = vpack.c.bf16 %v3021, %v3019
  %v3043 = vunpack.c.l.b16 %v3023
  %v3044 = vunpack.c.l.b16 %v3024
  %v3045 = vpack.c.b16 %v3044, %v3043
  %3047 = vmatprep.subr.bf16.mxu0 %v3026
  %3048 = vmatpush1.bf16.msra.mxu0 %v3025
  %3049 = vmatprep.subr.bf16.mxu0 %v3028
  %3050 = vmatpush1.bf16.msra.mxu0 %v3027
  %3051 = vmatprep.subr.bf16.mxu0 %v3030
  %3052 = vmatpush1.bf16.msra.mxu0 %v3029
  %3053 = vmatprep.subr.bf16.mxu0 %v3032
  %3054 = vmatpush1.bf16.msra.mxu0 %v3031
  %3055 = vmatprep.subr.bf16.mxu0 %v3034
  %3056 = vmatpush1.bf16.msra.mxu0 %v3033
  %3057 = vmatprep.subr.bf16.mxu0 %v3036
  %3058 = vmatpush1.bf16.msra.mxu0 %v3035
  %3059 = vmatprep.subr.bf16.mxu0 %v3038
  %3060 = vmatpush1.bf16.msra.mxu0 %v3037
  %3061 = vmatprep.subr.bf16.mxu0 %v3040
  %3062 = vmatpush1.bf16.msra.mxu0 %v3039
  %3063 = vmatprep.subr.bf16.mxu0 0
  %3064 = vmatpush1.bf16.msra.mxu0 0
  %3065 = vmatprep.subr.bf16.mxu0 0
  %3066 = vmatpush1.bf16.msra.mxu0 0
  %3067 = vmatprep.subr.bf16.mxu0 0
  %3068 = vmatpush1.bf16.msra.mxu0 0
  %3069 = vmatprep.subr.bf16.mxu0 0
  %3070 = vmatpush1.bf16.msra.mxu0 0
  %3071 = vmatprep.subr.bf16.mxu0 0
  %3072 = vmatpush1.bf16.msra.mxu0 0
  %3073 = vmatprep.subr.bf16.mxu0 0
  %3074 = vmatpush1.bf16.msra.mxu0 0
  %3075 = vmatprep.subr.bf16.mxu0 0
  %3076 = vmatpush1.bf16.msra.mxu0 0
  %3077 = vmatprep.subr.bf16.mxu0 0
  %3078 = vmatpush1.bf16.msra.mxu0 0
  %3079 = vmatprep.mubr.bf16.mxu0 0
  %3080 = vmatmul.mubr.bf16.gmra.mrb[0].mxu0 %v3045
  %v3081 = vpop.f32.mrb[0].mxu0
  %v3082 = vadd.f32 0.0, %v3081
  %v3083 = vpop.f32.mrb[0].mxu0
  %v3084 = vadd.f32 0.0, %v3083
  %v3085 = vpop.f32.mrb[0].mxu0
  %v3086 = vadd.f32 0.0, %v3085
  %v3087 = vpop.f32.mrb[0].mxu0
  %v3088 = vadd.f32 0.0, %v3087
  %3089 = vdwg.mxu0
  %v3090 = vadd.f32 %v2409, %v3082
  %v3091 = vadd.f32 %v2410, %v3084
  %v3092 = vadd.f32 %v2411, %v3086
  %v3093 = vadd.f32 %v2412, %v3088
  %v3094 = vld [vmem:[%s0 + $0x100] sm:$0xff]
  %v3095 = vld [vmem:[%s0 + $0x108] sm:$0xff]
  %v3096 = vld [vmem:[%s0 + $0x110] sm:$0xff]
  %v3097 = vld [vmem:[%s0 + $0x118] sm:$0xff]
  %v3098 = vld [vmem:[%s0 + $0x120] sm:$0xff]
  %v3099 = vld [vmem:[%s0 + $0x128] sm:$0xff]
  %v3100 = vld [vmem:[%s0 + $0x130] sm:$0xff]
  %v3101 = vld [vmem:[%s0 + $0x138] sm:$0xff]
  %v3102 = vld [vmem:[%s0 + $0x140] sm:$0xff]
  %v3103 = vld [vmem:[%s0 + $0x148] sm:$0xff]
  %v3104 = vld [vmem:[%s0 + $0x150] sm:$0xff]
  %v3105 = vld [vmem:[%s0 + $0x158] sm:$0xff]
  %v3106 = vld [vmem:[%s0 + $0x160] sm:$0xff]
  %v3107 = vld [vmem:[%s0 + $0x168] sm:$0xff]
  %v3108 = vld [vmem:[%s0 + $0x170] sm:$0xff]
  %v3109 = vld [vmem:[%s0 + $0x178] sm:$0xff]
  %v3126 = vunpack.c.l.b16 %v3094
  %v3127 = vunpack.c.h.b16 %v3094
  %v3128 = vunpack.c.l.b16 %v3095
  %v3129 = vunpack.c.h.b16 %v3095
  %v3130 = vunpack.c.l.b16 %v3096
  %v3131 = vunpack.c.h.b16 %v3096
  %v3132 = vunpack.c.l.b16 %v3097
  %v3133 = vunpack.c.h.b16 %v3097
  %v3134 = vunpack.c.l.b16 %v3098
  %v3135 = vunpack.c.h.b16 %v3098
  %v3136 = vunpack.c.l.b16 %v3099
  %v3137 = vunpack.c.h.b16 %v3099
  %v3138 = vunpack.c.l.b16 %v3100
  %v3139 = vunpack.c.h.b16 %v3100
  %v3140 = vunpack.c.l.b16 %v3101
  %v3141 = vunpack.c.h.b16 %v3101
  %v3142 = vunpack.c.l.b16 %v3102
  %v3143 = vunpack.c.h.b16 %v3102
  %v3144 = vunpack.c.l.b16 %v3103
  %v3145 = vunpack.c.h.b16 %v3103
  %v3146 = vunpack.c.l.b16 %v3104
  %v3147 = vunpack.c.h.b16 %v3104
  %v3148 = vunpack.c.l.b16 %v3105
  %v3149 = vunpack.c.h.b16 %v3105
  %v3150 = vunpack.c.l.b16 %v3106
  %v3151 = vunpack.c.h.b16 %v3106
  %v3152 = vunpack.c.l.b16 %v3107
  %v3153 = vunpack.c.h.b16 %v3107
  %v3154 = vunpack.c.l.b16 %v3108
  %v3155 = vunpack.c.h.b16 %v3108
  %v3156 = vunpack.c.l.b16 %v3109
  %v3157 = vunpack.c.h.b16 %v3109
  %v3158 = vpack.c.b16 %v3128, %v3126
  %v3159 = vpack.c.b16 %v3129, %v3127
  %v3160 = vpack.c.b16 %v3132, %v3130
  %v3161 = vpack.c.b16 %v3133, %v3131
  %v3162 = vpack.c.b16 %v3136, %v3134
  %v3163 = vpack.c.b16 %v3137, %v3135
  %v3164 = vpack.c.b16 %v3140, %v3138
  %v3165 = vpack.c.b16 %v3141, %v3139
  %v3166 = vpack.c.b16 %v3144, %v3142
  %v3167 = vpack.c.b16 %v3145, %v3143
  %v3168 = vpack.c.b16 %v3148, %v3146
  %v3169 = vpack.c.b16 %v3149, %v3147
  %v3170 = vpack.c.b16 %v3152, %v3150
  %v3171 = vpack.c.b16 %v3153, %v3151
  %v3172 = vpack.c.b16 %v3156, %v3154
  %v3173 = vpack.c.b16 %v3157, %v3155
  %3190 = vmatprep.subr.bf16.mxu0 %v3159
  %3191 = vmatpush1.bf16.msra.mxu0 %v3158
  %3192 = vmatprep.subr.bf16.mxu0 %v3161
  %3193 = vmatpush1.bf16.msra.mxu0 %v3160
  %3194 = vmatprep.subr.bf16.mxu0 %v3163
  %3195 = vmatpush1.bf16.msra.mxu0 %v3162
  %3196 = vmatprep.subr.bf16.mxu0 %v3165
  %3197 = vmatpush1.bf16.msra.mxu0 %v3164
  %3198 = vmatprep.subr.bf16.mxu0 %v3167
  %3199 = vmatpush1.bf16.msra.mxu0 %v3166
  %3200 = vmatprep.subr.bf16.mxu0 %v3169
  %3201 = vmatpush1.bf16.msra.mxu0 %v3168
  %3202 = vmatprep.subr.bf16.mxu0 %v3171
  %3203 = vmatpush1.bf16.msra.mxu0 %v3170
  %3204 = vmatprep.subr.bf16.mxu0 %v3173
  %3205 = vmatpush1.bf16.msra.mxu0 %v3172
  %3206 = vmatprep.subr.bf16.mxu0 0
  %3207 = vmatpush1.bf16.msra.mxu0 0
  %3208 = vmatprep.subr.bf16.mxu0 0
  %3209 = vmatpush1.bf16.msra.mxu0 0
  %3210 = vmatprep.subr.bf16.mxu0 0
  %3211 = vmatpush1.bf16.msra.mxu0 0
  %3212 = vmatprep.subr.bf16.mxu0 0
  %3213 = vmatpush1.bf16.msra.mxu0 0
  %3214 = vmatprep.subr.bf16.mxu0 0
  %3215 = vmatpush1.bf16.msra.mxu0 0
  %3216 = vmatprep.subr.bf16.mxu0 0
  %3217 = vmatpush1.bf16.msra.mxu0 0
  %3218 = vmatprep.subr.bf16.mxu0 0
  %3219 = vmatpush1.bf16.msra.mxu0 0
  %3220 = vmatprep.subr.bf16.mxu0 0
  %3221 = vmatpush1.bf16.msra.mxu0 0
  %3222 = vmatprep.mubr.bf16.mxu0 0
  %3223 = vmatmul.mubr.bf16.gmra.mrb[0].mxu0 %v251
  %v3224 = vpop.f32.mrb[0].mxu0
  %v3225 = vadd.f32 0.0, %v3224
  %v3226 = vpop.f32.mrb[0].mxu0
  %v3227 = vadd.f32 0.0, %v3226
  %v3228 = vpop.f32.mrb[0].mxu0
  %v3229 = vadd.f32 0.0, %v3228
  %v3230 = vpop.f32.mrb[0].mxu0
  %v3231 = vadd.f32 0.0, %v3230
  %3232 = vmatprep.mubr.bf16.mxu0 0
  %3233 = vmatmul.mubr.bf16.gmra.mrb[0].mxu0 %v252
  %v3234 = vpop.f32.mrb[0].mxu0
  %v3235 = vadd.f32 0.0, %v3234
  %v3236 = vpop.f32.mrb[0].mxu0
  %v3237 = vadd.f32 0.0, %v3236
  %v3238 = vpop.f32.mrb[0].mxu0
  %v3239 = vadd.f32 0.0, %v3238
  %v3240 = vpop.f32.mrb[0].mxu0
  %v3241 = vadd.f32 0.0, %v3240
  %3242 = vmatprep.mubr.bf16.mxu0 0
  %3243 = vmatmul.mubr.bf16.gmra.mrb[0].mxu0 %v253
  %v3244 = vpop.f32.mrb[0].mxu0
  %v3245 = vadd.f32 0.0, %v3244
  %v3246 = vpop.f32.mrb[0].mxu0
  %v3247 = vadd.f32 0.0, %v3246
  %v3248 = vpop.f32.mrb[0].mxu0
  %v3249 = vadd.f32 0.0, %v3248
  %v3250 = vpop.f32.mrb[0].mxu0
  %v3251 = vadd.f32 0.0, %v3250
  %3252 = vmatprep.mubr.bf16.mxu0 0
  %3253 = vmatmul.mubr.bf16.gmra.mrb[0].mxu0 %v254
  %v3254 = vpop.f32.mrb[0].mxu0
  %v3255 = vadd.f32 0.0, %v3254
  %v3256 = vpop.f32.mrb[0].mxu0
  %v3257 = vadd.f32 0.0, %v3256
  %v3258 = vpop.f32.mrb[0].mxu0
  %v3259 = vadd.f32 0.0, %v3258
  %v3260 = vpop.f32.mrb[0].mxu0
  %v3261 = vadd.f32 0.0, %v3260
  %3262 = vmatprep.mubr.bf16.mxu0 0
  %3263 = vmatmul.mubr.bf16.gmra.mrb[0].mxu0 %v255
  %v3264 = vpop.f32.mrb[0].mxu0
  %v3265 = vadd.f32 0.0, %v3264
  %v3266 = vpop.f32.mrb[0].mxu0
  %v3267 = vadd.f32 0.0, %v3266
  %v3268 = vpop.f32.mrb[0].mxu0
  %v3269 = vadd.f32 0.0, %v3268
  %v3270 = vpop.f32.mrb[0].mxu0
  %v3271 = vadd.f32 0.0, %v3270
  %3272 = vmatprep.mubr.bf16.mxu0 0
  %3273 = vmatmul.mubr.bf16.gmra.mrb[0].mxu0 %v256
  %v3274 = vpop.f32.mrb[0].mxu0
  %v3275 = vadd.f32 0.0, %v3274
  %v3276 = vpop.f32.mrb[0].mxu0
  %v3277 = vadd.f32 0.0, %v3276
  %v3278 = vpop.f32.mrb[0].mxu0
  %v3279 = vadd.f32 0.0, %v3278
  %v3280 = vpop.f32.mrb[0].mxu0
  %v3281 = vadd.f32 0.0, %v3280
  %3282 = vmatprep.mubr.bf16.mxu0 0
  %3283 = vmatmul.mubr.bf16.gmra.mrb[0].mxu0 %v257
  %v3284 = vpop.f32.mrb[0].mxu0
  %v3285 = vadd.f32 0.0, %v3284
  %v3286 = vpop.f32.mrb[0].mxu0
  %v3287 = vadd.f32 0.0, %v3286
  %v3288 = vpop.f32.mrb[0].mxu0
  %v3289 = vadd.f32 0.0, %v3288
  %v3290 = vpop.f32.mrb[0].mxu0
  %v3291 = vadd.f32 0.0, %v3290
  %3292 = vmatprep.mubr.bf16.mxu0 0
  %3293 = vmatmul.mubr.bf16.gmra.mrb[0].mxu0 %v258
  %v3294 = vpop.f32.mrb[0].mxu0
  %v3295 = vadd.f32 0.0, %v3294
  %v3296 = vpop.f32.mrb[0].mxu0
  %v3297 = vadd.f32 0.0, %v3296
  %v3298 = vpop.f32.mrb[0].mxu0
  %v3299 = vadd.f32 0.0, %v3298
  %v3300 = vpop.f32.mrb[0].mxu0
  %v3301 = vadd.f32 0.0, %v3300
  %3302 = vmatprep.mubr.bf16.mxu0 0
  %3303 = vmatmul.mubr.bf16.gmra.mrb[0].mxu0 %v259
  %v3304 = vpop.f32.mrb[0].mxu0
  %v3305 = vadd.f32 0.0, %v3304
  %v3306 = vpop.f32.mrb[0].mxu0
  %v3307 = vadd.f32 0.0, %v3306
  %v3308 = vpop.f32.mrb[0].mxu0
  %v3309 = vadd.f32 0.0, %v3308
  %v3310 = vpop.f32.mrb[0].mxu0
  %v3311 = vadd.f32 0.0, %v3310
  %3312 = vmatprep.mubr.bf16.mxu0 0
  %3313 = vmatmul.mubr.bf16.gmra.mrb[0].mxu0 %v260
  %v3314 = vpop.f32.mrb[0].mxu0
  %v3315 = vadd.f32 0.0, %v3314
  %v3316 = vpop.f32.mrb[0].mxu0
  %v3317 = vadd.f32 0.0, %v3316
  %v3318 = vpop.f32.mrb[0].mxu0
  %v3319 = vadd.f32 0.0, %v3318
  %v3320 = vpop.f32.mrb[0].mxu0
  %v3321 = vadd.f32 0.0, %v3320
  %3322 = vmatprep.mubr.bf16.mxu0 0
  %3323 = vmatmul.mubr.bf16.gmra.mrb[0].mxu0 %v261
  %v3324 = vpop.f32.mrb[0].mxu0
  %v3325 = vadd.f32 0.0, %v3324
  %v3326 = vpop.f32.mrb[0].mxu0
  %v3327 = vadd.f32 0.0, %v3326
  %v3328 = vpop.f32.mrb[0].mxu0
  %v3329 = vadd.f32 0.0, %v3328
  %v3330 = vpop.f32.mrb[0].mxu0
  %v3331 = vadd.f32 0.0, %v3330
  %3332 = vmatprep.mubr.bf16.mxu0 0
  %3333 = vmatmul.mubr.bf16.gmra.mrb[0].mxu0 %v262
  %v3334 = vpop.f32.mrb[0].mxu0
  %v3335 = vadd.f32 0.0, %v3334
  %v3336 = vpop.f32.mrb[0].mxu0
  %v3337 = vadd.f32 0.0, %v3336
  %v3338 = vpop.f32.mrb[0].mxu0
  %v3339 = vadd.f32 0.0, %v3338
  %v3340 = vpop.f32.mrb[0].mxu0
  %v3341 = vadd.f32 0.0, %v3340
  %3342 = vmatprep.mubr.bf16.mxu0 0
  %3343 = vmatmul.mubr.bf16.gmra.mrb[0].mxu0 %v263
  %v3344 = vpop.f32.mrb[0].mxu0
  %v3345 = vadd.f32 0.0, %v3344
  %v3346 = vpop.f32.mrb[0].mxu0
  %v3347 = vadd.f32 0.0, %v3346
  %v3348 = vpop.f32.mrb[0].mxu0
  %v3349 = vadd.f32 0.0, %v3348
  %v3350 = vpop.f32.mrb[0].mxu0
  %v3351 = vadd.f32 0.0, %v3350
  %3352 = vmatprep.mubr.bf16.mxu0 0
  %3353 = vmatmul.mubr.bf16.gmra.mrb[0].mxu0 %v264
  %v3354 = vpop.f32.mrb[0].mxu0
  %v3355 = vadd.f32 0.0, %v3354
  %v3356 = vpop.f32.mrb[0].mxu0
  %v3357 = vadd.f32 0.0, %v3356
  %v3358 = vpop.f32.mrb[0].mxu0
  %v3359 = vadd.f32 0.0, %v3358
  %v3360 = vpop.f32.mrb[0].mxu0
  %v3361 = vadd.f32 0.0, %v3360
  %3362 = vmatprep.mubr.bf16.mxu0 0
  %3363 = vmatmul.mubr.bf16.gmra.mrb[0].mxu0 %v265
  %v3364 = vpop.f32.mrb[0].mxu0
  %v3365 = vadd.f32 0.0, %v3364
  %v3366 = vpop.f32.mrb[0].mxu0
  %v3367 = vadd.f32 0.0, %v3366
  %v3368 = vpop.f32.mrb[0].mxu0
  %v3369 = vadd.f32 0.0, %v3368
  %v3370 = vpop.f32.mrb[0].mxu0
  %v3371 = vadd.f32 0.0, %v3370
  %3372 = vmatprep.mubr.bf16.mxu0 0
  %3373 = vmatmul.mubr.bf16.gmra.mrb[0].mxu0 %v266
  %v3374 = vpop.f32.mrb[0].mxu0
  %v3375 = vadd.f32 0.0, %v3374
  %v3376 = vpop.f32.mrb[0].mxu0
  %v3377 = vadd.f32 0.0, %v3376
  %v3378 = vpop.f32.mrb[0].mxu0
  %v3379 = vadd.f32 0.0, %v3378
  %v3380 = vpop.f32.mrb[0].mxu0
  %v3381 = vadd.f32 0.0, %v3380
  %3382 = vmatprep.mubr.bf16.mxu0 0
  %3383 = vmatmul.mubr.bf16.gmra.mrb[0].mxu0 %v267
  %v3384 = vpop.f32.mrb[0].mxu0
  %v3385 = vadd.f32 0.0, %v3384
  %v3386 = vpop.f32.mrb[0].mxu0
  %v3387 = vadd.f32 0.0, %v3386
  %v3388 = vpop.f32.mrb[0].mxu0
  %v3389 = vadd.f32 0.0, %v3388
  %v3390 = vpop.f32.mrb[0].mxu0
  %v3391 = vadd.f32 0.0, %v3390
  %3392 = vmatprep.mubr.bf16.mxu0 0
  %3393 = vmatmul.mubr.bf16.gmra.mrb[0].mxu0 %v268
  %v3394 = vpop.f32.mrb[0].mxu0
  %v3395 = vadd.f32 0.0, %v3394
  %v3396 = vpop.f32.mrb[0].mxu0
  %v3397 = vadd.f32 0.0, %v3396
  %v3398 = vpop.f32.mrb[0].mxu0
  %v3399 = vadd.f32 0.0, %v3398
  %v3400 = vpop.f32.mrb[0].mxu0
  %v3401 = vadd.f32 0.0, %v3400
  %3402 = vmatprep.mubr.bf16.mxu0 0
  %3403 = vmatmul.mubr.bf16.gmra.mrb[0].mxu0 %v269
  %v3404 = vpop.f32.mrb[0].mxu0
  %v3405 = vadd.f32 0.0, %v3404
  %v3406 = vpop.f32.mrb[0].mxu0
  %v3407 = vadd.f32 0.0, %v3406
  %v3408 = vpop.f32.mrb[0].mxu0
  %v3409 = vadd.f32 0.0, %v3408
  %v3410 = vpop.f32.mrb[0].mxu0
  %v3411 = vadd.f32 0.0, %v3410
  %3412 = vmatprep.mubr.bf16.mxu0 0
  %3413 = vmatmul.mubr.bf16.gmra.mrb[0].mxu0 %v270
  %v3414 = vpop.f32.mrb[0].mxu0
  %v3415 = vadd.f32 0.0, %v3414
  %v3416 = vpop.f32.mrb[0].mxu0
  %v3417 = vadd.f32 0.0, %v3416
  %v3418 = vpop.f32.mrb[0].mxu0
  %v3419 = vadd.f32 0.0, %v3418
  %v3420 = vpop.f32.mrb[0].mxu0
  %v3421 = vadd.f32 0.0, %v3420
  %3422 = vmatprep.mubr.bf16.mxu0 0
  %3423 = vmatmul.mubr.bf16.gmra.mrb[0].mxu0 %v271
  %v3424 = vpop.f32.mrb[0].mxu0
  %v3425 = vadd.f32 0.0, %v3424
  %v3426 = vpop.f32.mrb[0].mxu0
  %v3427 = vadd.f32 0.0, %v3426
  %v3428 = vpop.f32.mrb[0].mxu0
  %v3429 = vadd.f32 0.0, %v3428
  %v3430 = vpop.f32.mrb[0].mxu0
  %v3431 = vadd.f32 0.0, %v3430
  %3432 = vmatprep.mubr.bf16.mxu0 0
  %3433 = vmatmul.mubr.bf16.gmra.mrb[0].mxu0 %v272
  %v3434 = vpop.f32.mrb[0].mxu0
  %v3435 = vadd.f32 0.0, %v3434
  %v3436 = vpop.f32.mrb[0].mxu0
  %v3437 = vadd.f32 0.0, %v3436
  %v3438 = vpop.f32.mrb[0].mxu0
  %v3439 = vadd.f32 0.0, %v3438
  %v3440 = vpop.f32.mrb[0].mxu0
  %v3441 = vadd.f32 0.0, %v3440
  %3442 = vmatprep.mubr.bf16.mxu0 0
  %3443 = vmatmul.mubr.bf16.gmra.mrb[0].mxu0 %v273
  %v3444 = vpop.f32.mrb[0].mxu0
  %v3445 = vadd.f32 0.0, %v3444
  %v3446 = vpop.f32.mrb[0].mxu0
  %v3447 = vadd.f32 0.0, %v3446
  %v3448 = vpop.f32.mrb[0].mxu0
  %v3449 = vadd.f32 0.0, %v3448
  %v3450 = vpop.f32.mrb[0].mxu0
  %v3451 = vadd.f32 0.0, %v3450
  %3452 = vmatprep.mubr.bf16.mxu0 0
  %3453 = vmatmul.mubr.bf16.gmra.mrb[0].mxu0 %v274
  %v3454 = vpop.f32.mrb[0].mxu0
  %v3455 = vadd.f32 0.0, %v3454
  %v3456 = vpop.f32.mrb[0].mxu0
  %v3457 = vadd.f32 0.0, %v3456
  %v3458 = vpop.f32.mrb[0].mxu0
  %v3459 = vadd.f32 0.0, %v3458
  %v3460 = vpop.f32.mrb[0].mxu0
  %v3461 = vadd.f32 0.0, %v3460
  %3462 = vmatprep.mubr.bf16.mxu0 0
  %3463 = vmatmul.mubr.bf16.gmra.mrb[0].mxu0 %v275
  %v3464 = vpop.f32.mrb[0].mxu0
  %v3465 = vadd.f32 0.0, %v3464
  %v3466 = vpop.f32.mrb[0].mxu0
  %v3467 = vadd.f32 0.0, %v3466
  %v3468 = vpop.f32.mrb[0].mxu0
  %v3469 = vadd.f32 0.0, %v3468
  %v3470 = vpop.f32.mrb[0].mxu0
  %v3471 = vadd.f32 0.0, %v3470
  %3472 = vmatprep.mubr.bf16.mxu0 0
  %3473 = vmatmul.mubr.bf16.gmra.mrb[0].mxu0 %v276
  %v3474 = vpop.f32.mrb[0].mxu0
  %v3475 = vadd.f32 0.0, %v3474
  %v3476 = vpop.f32.mrb[0].mxu0
  %v3477 = vadd.f32 0.0, %v3476
  %v3478 = vpop.f32.mrb[0].mxu0
  %v3479 = vadd.f32 0.0, %v3478
  %v3480 = vpop.f32.mrb[0].mxu0
  %v3481 = vadd.f32 0.0, %v3480
  %3482 = vmatprep.mubr.bf16.mxu0 0
  %3483 = vmatmul.mubr.bf16.gmra.mrb[0].mxu0 %v277
  %v3484 = vpop.f32.mrb[0].mxu0
  %v3485 = vadd.f32 0.0, %v3484
  %v3486 = vpop.f32.mrb[0].mxu0
  %v3487 = vadd.f32 0.0, %v3486
  %v3488 = vpop.f32.mrb[0].mxu0
  %v3489 = vadd.f32 0.0, %v3488
  %v3490 = vpop.f32.mrb[0].mxu0
  %v3491 = vadd.f32 0.0, %v3490
  %3492 = vmatprep.mubr.bf16.mxu0 0
  %3493 = vmatmul.mubr.bf16.gmra.mrb[0].mxu0 %v278
  %v3494 = vpop.f32.mrb[0].mxu0
  %v3495 = vadd.f32 0.0, %v3494
  %v3496 = vpop.f32.mrb[0].mxu0
  %v3497 = vadd.f32 0.0, %v3496
  %v3498 = vpop.f32.mrb[0].mxu0
  %v3499 = vadd.f32 0.0, %v3498
  %v3500 = vpop.f32.mrb[0].mxu0
  %v3501 = vadd.f32 0.0, %v3500
  %3502 = vmatprep.mubr.bf16.mxu0 0
  %3503 = vmatmul.mubr.bf16.gmra.mrb[0].mxu0 %v279
  %v3504 = vpop.f32.mrb[0].mxu0
  %v3505 = vadd.f32 0.0, %v3504
  %v3506 = vpop.f32.mrb[0].mxu0
  %v3507 = vadd.f32 0.0, %v3506
  %v3508 = vpop.f32.mrb[0].mxu0
  %v3509 = vadd.f32 0.0, %v3508
  %v3510 = vpop.f32.mrb[0].mxu0
  %v3511 = vadd.f32 0.0, %v3510
  %3512 = vmatprep.mubr.bf16.mxu0 0
  %3513 = vmatmul.mubr.bf16.gmra.mrb[0].mxu0 %v280
  %v3514 = vpop.f32.mrb[0].mxu0
  %v3515 = vadd.f32 0.0, %v3514
  %v3516 = vpop.f32.mrb[0].mxu0
  %v3517 = vadd.f32 0.0, %v3516
  %v3518 = vpop.f32.mrb[0].mxu0
  %v3519 = vadd.f32 0.0, %v3518
  %v3520 = vpop.f32.mrb[0].mxu0
  %v3521 = vadd.f32 0.0, %v3520
  %3522 = vmatprep.mubr.bf16.mxu0 0
  %3523 = vmatmul.mubr.bf16.gmra.mrb[0].mxu0 %v281
  %v3524 = vpop.f32.mrb[0].mxu0
  %v3525 = vadd.f32 0.0, %v3524
  %v3526 = vpop.f32.mrb[0].mxu0
  %v3527 = vadd.f32 0.0, %v3526
  %v3528 = vpop.f32.mrb[0].mxu0
  %v3529 = vadd.f32 0.0, %v3528
  %v3530 = vpop.f32.mrb[0].mxu0
  %v3531 = vadd.f32 0.0, %v3530
  %3532 = vmatprep.mubr.bf16.mxu0 0
  %3533 = vmatmul.mubr.bf16.gmra.mrb[0].mxu0 %v282
  %v3534 = vpop.f32.mrb[0].mxu0
  %v3535 = vadd.f32 0.0, %v3534
  %v3536 = vpop.f32.mrb[0].mxu0
  %v3537 = vadd.f32 0.0, %v3536
  %v3538 = vpop.f32.mrb[0].mxu0
  %v3539 = vadd.f32 0.0, %v3538
  %v3540 = vpop.f32.mrb[0].mxu0
  %v3541 = vadd.f32 0.0, %v3540
  %3542 = vdwg.mxu0
  %v3543 = vmax.f32 %v3225, %v3305
  %v3544 = vmax.f32 %v3227, %v3307
  %v3545 = vmax.f32 %v3229, %v3309
  %v3546 = vmax.f32 %v3231, %v3311
  %v3547 = vmax.f32 %v3235, %v3315
  %v3548 = vmax.f32 %v3237, %v3317
  %v3549 = vmax.f32 %v3239, %v3319
  %v3550 = vmax.f32 %v3241, %v3321
  %v3551 = vmax.f32 %v3245, %v3325
  %v3552 = vmax.f32 %v3247, %v3327
  %v3553 = vmax.f32 %v3249, %v3329
  %v3554 = vmax.f32 %v3251, %v3331
  %v3555 = vmax.f32 %v3255, %v3335
  %v3556 = vmax.f32 %v3257, %v3337
  %v3557 = vmax.f32 %v3259, %v3339
  %v3558 = vmax.f32 %v3261, %v3341
  %v3559 = vmax.f32 %v3265, %v3345
  %v3560 = vmax.f32 %v3267, %v3347
  %v3561 = vmax.f32 %v3269, %v3349
  %v3562 = vmax.f32 %v3271, %v3351
  %v3563 = vmax.f32 %v3275, %v3355
  %v3564 = vmax.f32 %v3277, %v3357
  %v3565 = vmax.f32 %v3279, %v3359
  %v3566 = vmax.f32 %v3281, %v3361
  %v3567 = vmax.f32 %v3285, %v3365
  %v3568 = vmax.f32 %v3287, %v3367
  %v3569 = vmax.f32 %v3289, %v3369
  %v3570 = vmax.f32 %v3291, %v3371
  %v3571 = vmax.f32 %v3295, %v3375
  %v3572 = vmax.f32 %v3297, %v3377
  %v3573 = vmax.f32 %v3299, %v3379
  %v3574 = vmax.f32 %v3301, %v3381
  %v3575 = vmax.f32 %v3385, %v3465
  %v3576 = vmax.f32 %v3387, %v3467
  %v3577 = vmax.f32 %v3389, %v3469
  %v3578 = vmax.f32 %v3391, %v3471
  %v3579 = vmax.f32 %v3395, %v3475
  %v3580 = vmax.f32 %v3397, %v3477
  %v3581 = vmax.f32 %v3399, %v3479
  %v3582 = vmax.f32 %v3401, %v3481
  %v3583 = vmax.f32 %v3405, %v3485
  %v3584 = vmax.f32 %v3407, %v3487
  %v3585 = vmax.f32 %v3409, %v3489
  %v3586 = vmax.f32 %v3411, %v3491
  %v3587 = vmax.f32 %v3415, %v3495
  %v3588 = vmax.f32 %v3417, %v3497
  %v3589 = vmax.f32 %v3419, %v3499
  %v3590 = vmax.f32 %v3421, %v3501
  %v3591 = vmax.f32 %v3425, %v3505
  %v3592 = vmax.f32 %v3427, %v3507
  %v3593 = vmax.f32 %v3429, %v3509
  %v3594 = vmax.f32 %v3431, %v3511
  %v3595 = vmax.f32 %v3435, %v3515
  %v3596 = vmax.f32 %v3437, %v3517
  %v3597 = vmax.f32 %v3439, %v3519
  %v3598 = vmax.f32 %v3441, %v3521
  %v3599 = vmax.f32 %v3445, %v3525
  %v3600 = vmax.f32 %v3447, %v3527
  %v3601 = vmax.f32 %v3449, %v3529
  %v3602 = vmax.f32 %v3451, %v3531
  %v3603 = vmax.f32 %v3455, %v3535
  %v3604 = vmax.f32 %v3457, %v3537
  %v3605 = vmax.f32 %v3459, %v3539
  %v3606 = vmax.f32 %v3461, %v3541
  %v3607 = vmax.f32 %v3543, %v3575
  %v3608 = vmax.f32 %v3544, %v3576
  %v3609 = vmax.f32 %v3545, %v3577
  %v3610 = vmax.f32 %v3546, %v3578
  %v3611 = vmax.f32 %v3547, %v3579
  %v3612 = vmax.f32 %v3548, %v3580
  %v3613 = vmax.f32 %v3549, %v3581
  %v3614 = vmax.f32 %v3550, %v3582
  %v3615 = vmax.f32 %v3551, %v3583
  %v3616 = vmax.f32 %v3552, %v3584
  %v3617 = vmax.f32 %v3553, %v3585
  %v3618 = vmax.f32 %v3554, %v3586
  %v3619 = vmax.f32 %v3555, %v3587
  %v3620 = vmax.f32 %v3556, %v3588
  %v3621 = vmax.f32 %v3557, %v3589
  %v3622 = vmax.f32 %v3558, %v3590
  %v3623 = vmax.f32 %v3559, %v3591
  %v3624 = vmax.f32 %v3560, %v3592
  %v3625 = vmax.f32 %v3561, %v3593
  %v3626 = vmax.f32 %v3562, %v3594
  %v3627 = vmax.f32 %v3563, %v3595
  %v3628 = vmax.f32 %v3564, %v3596
  %v3629 = vmax.f32 %v3565, %v3597
  %v3630 = vmax.f32 %v3566, %v3598
  %v3631 = vmax.f32 %v3567, %v3599
  %v3632 = vmax.f32 %v3568, %v3600
  %v3633 = vmax.f32 %v3569, %v3601
  %v3634 = vmax.f32 %v3570, %v3602
  %v3635 = vmax.f32 %v3571, %v3603
  %v3636 = vmax.f32 %v3572, %v3604
  %v3637 = vmax.f32 %v3573, %v3605
  %v3638 = vmax.f32 %v3574, %v3606
  %v3639 = vadd.f32 %v3607, %v847
  %v3640 = vadd.f32 %v3608, %v847
  %v3641 = vadd.f32 %v3609, %v852
  %v3642 = vadd.f32 %v3610, %v852
  %v3643 = vadd.f32 %v3611, %v857
  %v3644 = vadd.f32 %v3612, %v857
  %v3645 = vadd.f32 %v3613, %v862
  %v3646 = vadd.f32 %v3614, %v862
  %v3647 = vadd.f32 %v3615, %v867
  %v3648 = vadd.f32 %v3616, %v867
  %v3649 = vadd.f32 %v3617, %v872
  %v3650 = vadd.f32 %v3618, %v872
  %v3651 = vadd.f32 %v3619, %v877
  %v3652 = vadd.f32 %v3620, %v877
  %v3653 = vadd.f32 %v3621, %v882
  %v3654 = vadd.f32 %v3622, %v882
  %v3655 = vadd.f32 %v3623, %v887
  %v3656 = vadd.f32 %v3624, %v887
  %v3657 = vadd.f32 %v3625, %v892
  %v3658 = vadd.f32 %v3626, %v892
  %v3659 = vadd.f32 %v3627, %v897
  %v3660 = vadd.f32 %v3628, %v897
  %v3661 = vadd.f32 %v3629, %v902
  %v3662 = vadd.f32 %v3630, %v902
  %v3663 = vadd.f32 %v3631, %v907
  %v3664 = vadd.f32 %v3632, %v907
  %v3665 = vadd.f32 %v3633, %v912
  %v3666 = vadd.f32 %v3634, %v912
  %v3667 = vadd.f32 %v3635, %v917
  %v3668 = vadd.f32 %v3636, %v917
  %v3669 = vadd.f32 %v3637, %v922
  %v3670 = vadd.f32 %v3638, %v922
  %v3671 = vmax.f32 %v3639, 0.0
  %v3672 = vmax.f32 %v3640, 0.0
  %v3673 = vmax.f32 %v3641, 0.0
  %v3674 = vmax.f32 %v3642, 0.0
  %v3675 = vmax.f32 %v3643, 0.0
  %v3676 = vmax.f32 %v3644, 0.0
  %v3677 = vmax.f32 %v3645, 0.0
  %v3678 = vmax.f32 %v3646, 0.0
  %v3679 = vmax.f32 %v3647, 0.0
  %v3680 = vmax.f32 %v3648, 0.0
  %v3681 = vmax.f32 %v3649, 0.0
  %v3682 = vmax.f32 %v3650, 0.0
  %v3683 = vmax.f32 %v3651, 0.0
  %v3684 = vmax.f32 %v3652, 0.0
  %v3685 = vmax.f32 %v3653, 0.0
  %v3686 = vmax.f32 %v3654, 0.0
  %v3687 = vmax.f32 %v3655, 0.0
  %v3688 = vmax.f32 %v3656, 0.0
  %v3689 = vmax.f32 %v3657, 0.0
  %v3690 = vmax.f32 %v3658, 0.0
  %v3691 = vmax.f32 %v3659, 0.0
  %v3692 = vmax.f32 %v3660, 0.0
  %v3693 = vmax.f32 %v3661, 0.0
  %v3694 = vmax.f32 %v3662, 0.0
  %v3695 = vmax.f32 %v3663, 0.0
  %v3696 = vmax.f32 %v3664, 0.0
  %v3697 = vmax.f32 %v3665, 0.0
  %v3698 = vmax.f32 %v3666, 0.0
  %v3699 = vmax.f32 %v3667, 0.0
  %v3700 = vmax.f32 %v3668, 0.0
  %v3701 = vmax.f32 %v3669, 0.0
  %v3702 = vmax.f32 %v3670, 0.0
  %s3703 = scalar_lea.vmem %s3, 32
  %v3704 = vld [vmem:[%s3703] sm:$0xf]
  %v3705 = vld [vmem:[%s3703 + $0x4] sm:$0xf]
  %v3706 = vpack.c.bf16 %v3673, %v3671
  %v3707 = vpack.c.bf16 %v3674, %v3672
  %v3708 = vpack.c.bf16 %v3677, %v3675
  %v3709 = vpack.c.bf16 %v3678, %v3676
  %v3710 = vpack.c.bf16 %v3681, %v3679
  %v3711 = vpack.c.bf16 %v3682, %v3680
  %v3712 = vpack.c.bf16 %v3685, %v3683
  %v3713 = vpack.c.bf16 %v3686, %v3684
  %v3714 = vpack.c.bf16 %v3689, %v3687
  %v3715 = vpack.c.bf16 %v3690, %v3688
  %v3716 = vpack.c.bf16 %v3693, %v3691
  %v3717 = vpack.c.bf16 %v3694, %v3692
  %v3718 = vpack.c.bf16 %v3697, %v3695
  %v3719 = vpack.c.bf16 %v3698, %v3696
  %v3720 = vpack.c.bf16 %v3701, %v3699
  %v3721 = vpack.c.bf16 %v3702, %v3700
  %v3724 = vunpack.c.l.b16 %v3704
  %v3725 = vunpack.c.l.b16 %v3705
  %v3726 = vpack.c.b16 %v3725, %v3724
  %3728 = vmatprep.subr.bf16.mxu0 %v3707
  %3729 = vmatpush1.bf16.msra.mxu0 %v3706
  %3730 = vmatprep.subr.bf16.mxu0 %v3709
  %3731 = vmatpush1.bf16.msra.mxu0 %v3708
  %3732 = vmatprep.subr.bf16.mxu0 %v3711
  %3733 = vmatpush1.bf16.msra.mxu0 %v3710
  %3734 = vmatprep.subr.bf16.mxu0 %v3713
  %3735 = vmatpush1.bf16.msra.mxu0 %v3712
  %3736 = vmatprep.subr.bf16.mxu0 %v3715
  %3737 = vmatpush1.bf16.msra.mxu0 %v3714
  %3738 = vmatprep.subr.bf16.mxu0 %v3717
  %3739 = vmatpush1.bf16.msra.mxu0 %v3716
  %3740 = vmatprep.subr.bf16.mxu0 %v3719
  %3741 = vmatpush1.bf16.msra.mxu0 %v3718
  %3742 = vmatprep.subr.bf16.mxu0 %v3721
  %3743 = vmatpush1.bf16.msra.mxu0 %v3720
  %3744 = vmatprep.subr.bf16.mxu0 0
  %3745 = vmatpush1.bf16.msra.mxu0 0
  %3746 = vmatprep.subr.bf16.mxu0 0
  %3747 = vmatpush1.bf16.msra.mxu0 0
  %3748 = vmatprep.subr.bf16.mxu0 0
  %3749 = vmatpush1.bf16.msra.mxu0 0
  %3750 = vmatprep.subr.bf16.mxu0 0
  %3751 = vmatpush1.bf16.msra.mxu0 0
  %3752 = vmatprep.subr.bf16.mxu0 0
  %3753 = vmatpush1.bf16.msra.mxu0 0
  %3754 = vmatprep.subr.bf16.mxu0 0
  %3755 = vmatpush1.bf16.msra.mxu0 0
  %3756 = vmatprep.subr.bf16.mxu0 0
  %3757 = vmatpush1.bf16.msra.mxu0 0
  %3758 = vmatprep.subr.bf16.mxu0 0
  %3759 = vmatpush1.bf16.msra.mxu0 0
  %3760 = vmatprep.mubr.bf16.mxu0 0
  %3761 = vmatmul.mubr.bf16.gmra.mrb[0].mxu0 %v3726
  %v3762 = vpop.f32.mrb[0].mxu0
  %v3763 = vadd.f32 0.0, %v3762
  %v3764 = vpop.f32.mrb[0].mxu0
  %v3765 = vadd.f32 0.0, %v3764
  %v3766 = vpop.f32.mrb[0].mxu0
  %v3767 = vadd.f32 0.0, %v3766
  %v3768 = vpop.f32.mrb[0].mxu0
  %v3769 = vadd.f32 0.0, %v3768
  %3770 = vdwg.mxu0
  %v3771 = vadd.f32 %v3090, %v3763
  %v3772 = vadd.f32 %v3091, %v3765
  %v3773 = vadd.f32 %v3092, %v3767
  %v3774 = vadd.f32 %v3093, %v3769
  %v3775 = vld [vmem:[%s0 + $0x140] sm:$0xff]
  %v3776 = vld [vmem:[%s0 + $0x148] sm:$0xff]
  %v3777 = vld [vmem:[%s0 + $0x150] sm:$0xff]
  %v3778 = vld [vmem:[%s0 + $0x158] sm:$0xff]
  %v3779 = vld [vmem:[%s0 + $0x160] sm:$0xff]
  %v3780 = vld [vmem:[%s0 + $0x168] sm:$0xff]
  %v3781 = vld [vmem:[%s0 + $0x170] sm:$0xff]
  %v3782 = vld [vmem:[%s0 + $0x178] sm:$0xff]
  %v3783 = vld [vmem:[%s0 + $0x180] sm:$0xff]
  %v3784 = vld [vmem:[%s0 + $0x188] sm:$0xff]
  %v3785 = vld [vmem:[%s0 + $0x190] sm:$0xff]
  %v3786 = vld [vmem:[%s0 + $0x198] sm:$0xff]
  %v3787 = vld [vmem:[%s0 + $0x1a0] sm:$0xff]
  %v3788 = vld [vmem:[%s0 + $0x1a8] sm:$0xff]
  %v3789 = vld [vmem:[%s0 + $0x1b0] sm:$0xff]
  %v3790 = vld [vmem:[%s0 + $0x1b8] sm:$0xff]
  %v3807 = vunpack.c.l.b16 %v3775
  %v3808 = vunpack.c.h.b16 %v3775
  %v3809 = vunpack.c.l.b16 %v3776
  %v3810 = vunpack.c.h.b16 %v3776
  %v3811 = vunpack.c.l.b16 %v3777
  %v3812 = vunpack.c.h.b16 %v3777
  %v3813 = vunpack.c.l.b16 %v3778
  %v3814 = vunpack.c.h.b16 %v3778
  %v3815 = vunpack.c.l.b16 %v3779
  %v3816 = vunpack.c.h.b16 %v3779
  %v3817 = vunpack.c.l.b16 %v3780
  %v3818 = vunpack.c.h.b16 %v3780
  %v3819 = vunpack.c.l.b16 %v3781
  %v3820 = vunpack.c.h.b16 %v3781
  %v3821 = vunpack.c.l.b16 %v3782
  %v3822 = vunpack.c.h.b16 %v3782
  %v3823 = vunpack.c.l.b16 %v3783
  %v3824 = vunpack.c.h.b16 %v3783
  %v3825 = vunpack.c.l.b16 %v3784
  %v3826 = vunpack.c.h.b16 %v3784
  %v3827 = vunpack.c.l.b16 %v3785
  %v3828 = vunpack.c.h.b16 %v3785
  %v3829 = vunpack.c.l.b16 %v3786
  %v3830 = vunpack.c.h.b16 %v3786
  %v3831 = vunpack.c.l.b16 %v3787
  %v3832 = vunpack.c.h.b16 %v3787
  %v3833 = vunpack.c.l.b16 %v3788
  %v3834 = vunpack.c.h.b16 %v3788
  %v3835 = vunpack.c.l.b16 %v3789
  %v3836 = vunpack.c.h.b16 %v3789
  %v3837 = vunpack.c.l.b16 %v3790
  %v3838 = vunpack.c.h.b16 %v3790
  %v3839 = vpack.c.b16 %v3809, %v3807
  %v3840 = vpack.c.b16 %v3810, %v3808
  %v3841 = vpack.c.b16 %v3813, %v3811
  %v3842 = vpack.c.b16 %v3814, %v3812
  %v3843 = vpack.c.b16 %v3817, %v3815
  %v3844 = vpack.c.b16 %v3818, %v3816
  %v3845 = vpack.c.b16 %v3821, %v3819
  %v3846 = vpack.c.b16 %v3822, %v3820
  %v3847 = vpack.c.b16 %v3825, %v3823
  %v3848 = vpack.c.b16 %v3826, %v3824
  %v3849 = vpack.c.b16 %v3829, %v3827
  %v3850 = vpack.c.b16 %v3830, %v3828
  %v3851 = vpack.c.b16 %v3833, %v3831
  %v3852 = vpack.c.b16 %v3834, %v3832
  %v3853 = vpack.c.b16 %v3837, %v3835
  %v3854 = vpack.c.b16 %v3838, %v3836
  %3871 = vmatprep.subr.bf16.mxu0 %v3840
  %3872 = vmatpush1.bf16.msra.mxu0 %v3839
  %3873 = vmatprep.subr.bf16.mxu0 %v3842
  %3874 = vmatpush1.bf16.msra.mxu0 %v3841
  %3875 = vmatprep.subr.bf16.mxu0 %v3844
  %3876 = vmatpush1.bf16.msra.mxu0 %v3843
  %3877 = vmatprep.subr.bf16.mxu0 %v3846
  %3878 = vmatpush1.bf16.msra.mxu0 %v3845
  %3879 = vmatprep.subr.bf16.mxu0 %v3848
  %3880 = vmatpush1.bf16.msra.mxu0 %v3847
  %3881 = vmatprep.subr.bf16.mxu0 %v3850
  %3882 = vmatpush1.bf16.msra.mxu0 %v3849
  %3883 = vmatprep.subr.bf16.mxu0 %v3852
  %3884 = vmatpush1.bf16.msra.mxu0 %v3851
  %3885 = vmatprep.subr.bf16.mxu0 %v3854
  %3886 = vmatpush1.bf16.msra.mxu0 %v3853
  %3887 = vmatprep.subr.bf16.mxu0 0
  %3888 = vmatpush1.bf16.msra.mxu0 0
  %3889 = vmatprep.subr.bf16.mxu0 0
  %3890 = vmatpush1.bf16.msra.mxu0 0
  %3891 = vmatprep.subr.bf16.mxu0 0
  %3892 = vmatpush1.bf16.msra.mxu0 0
  %3893 = vmatprep.subr.bf16.mxu0 0
  %3894 = vmatpush1.bf16.msra.mxu0 0
  %3895 = vmatprep.subr.bf16.mxu0 0
  %3896 = vmatpush1.bf16.msra.mxu0 0
  %3897 = vmatprep.subr.bf16.mxu0 0
  %3898 = vmatpush1.bf16.msra.mxu0 0
  %3899 = vmatprep.subr.bf16.mxu0 0
  %3900 = vmatpush1.bf16.msra.mxu0 0
  %3901 = vmatprep.subr.bf16.mxu0 0
  %3902 = vmatpush1.bf16.msra.mxu0 0
  %3903 = vmatprep.mubr.bf16.mxu0 0
  %3904 = vmatmul.mubr.bf16.gmra.mrb[0].mxu0 %v251
  %v3905 = vpop.f32.mrb[0].mxu0
  %v3906 = vadd.f32 0.0, %v3905
  %v3907 = vpop.f32.mrb[0].mxu0
  %v3908 = vadd.f32 0.0, %v3907
  %v3909 = vpop.f32.mrb[0].mxu0
  %v3910 = vadd.f32 0.0, %v3909
  %v3911 = vpop.f32.mrb[0].mxu0
  %v3912 = vadd.f32 0.0, %v3911
  %3913 = vmatprep.mubr.bf16.mxu0 0
  %3914 = vmatmul.mubr.bf16.gmra.mrb[0].mxu0 %v252
  %v3915 = vpop.f32.mrb[0].mxu0
  %v3916 = vadd.f32 0.0, %v3915
  %v3917 = vpop.f32.mrb[0].mxu0
  %v3918 = vadd.f32 0.0, %v3917
  %v3919 = vpop.f32.mrb[0].mxu0
  %v3920 = vadd.f32 0.0, %v3919
  %v3921 = vpop.f32.mrb[0].mxu0
  %v3922 = vadd.f32 0.0, %v3921
  %3923 = vmatprep.mubr.bf16.mxu0 0
  %3924 = vmatmul.mubr.bf16.gmra.mrb[0].mxu0 %v253
  %v3925 = vpop.f32.mrb[0].mxu0
  %v3926 = vadd.f32 0.0, %v3925
  %v3927 = vpop.f32.mrb[0].mxu0
  %v3928 = vadd.f32 0.0, %v3927
  %v3929 = vpop.f32.mrb[0].mxu0
  %v3930 = vadd.f32 0.0, %v3929
  %v3931 = vpop.f32.mrb[0].mxu0
  %v3932 = vadd.f32 0.0, %v3931
  %3933 = vmatprep.mubr.bf16.mxu0 0
  %3934 = vmatmul.mubr.bf16.gmra.mrb[0].mxu0 %v254
  %v3935 = vpop.f32.mrb[0].mxu0
  %v3936 = vadd.f32 0.0, %v3935
  %v3937 = vpop.f32.mrb[0].mxu0
  %v3938 = vadd.f32 0.0, %v3937
  %v3939 = vpop.f32.mrb[0].mxu0
  %v3940 = vadd.f32 0.0, %v3939
  %v3941 = vpop.f32.mrb[0].mxu0
  %v3942 = vadd.f32 0.0, %v3941
  %3943 = vmatprep.mubr.bf16.mxu0 0
  %3944 = vmatmul.mubr.bf16.gmra.mrb[0].mxu0 %v255
  %v3945 = vpop.f32.mrb[0].mxu0
  %v3946 = vadd.f32 0.0, %v3945
  %v3947 = vpop.f32.mrb[0].mxu0
  %v3948 = vadd.f32 0.0, %v3947
  %v3949 = vpop.f32.mrb[0].mxu0
  %v3950 = vadd.f32 0.0, %v3949
  %v3951 = vpop.f32.mrb[0].mxu0
  %v3952 = vadd.f32 0.0, %v3951
  %3953 = vmatprep.mubr.bf16.mxu0 0
  %3954 = vmatmul.mubr.bf16.gmra.mrb[0].mxu0 %v256
  %v3955 = vpop.f32.mrb[0].mxu0
  %v3956 = vadd.f32 0.0, %v3955
  %v3957 = vpop.f32.mrb[0].mxu0
  %v3958 = vadd.f32 0.0, %v3957
  %v3959 = vpop.f32.mrb[0].mxu0
  %v3960 = vadd.f32 0.0, %v3959
  %v3961 = vpop.f32.mrb[0].mxu0
  %v3962 = vadd.f32 0.0, %v3961
  %3963 = vmatprep.mubr.bf16.mxu0 0
  %3964 = vmatmul.mubr.bf16.gmra.mrb[0].mxu0 %v257
  %v3965 = vpop.f32.mrb[0].mxu0
  %v3966 = vadd.f32 0.0, %v3965
  %v3967 = vpop.f32.mrb[0].mxu0
  %v3968 = vadd.f32 0.0, %v3967
  %v3969 = vpop.f32.mrb[0].mxu0
  %v3970 = vadd.f32 0.0, %v3969
  %v3971 = vpop.f32.mrb[0].mxu0
  %v3972 = vadd.f32 0.0, %v3971
  %3973 = vmatprep.mubr.bf16.mxu0 0
  %3974 = vmatmul.mubr.bf16.gmra.mrb[0].mxu0 %v258
  %v3975 = vpop.f32.mrb[0].mxu0
  %v3976 = vadd.f32 0.0, %v3975
  %v3977 = vpop.f32.mrb[0].mxu0
  %v3978 = vadd.f32 0.0, %v3977
  %v3979 = vpop.f32.mrb[0].mxu0
  %v3980 = vadd.f32 0.0, %v3979
  %v3981 = vpop.f32.mrb[0].mxu0
  %v3982 = vadd.f32 0.0, %v3981
  %3983 = vmatprep.mubr.bf16.mxu0 0
  %3984 = vmatmul.mubr.bf16.gmra.mrb[0].mxu0 %v259
  %v3985 = vpop.f32.mrb[0].mxu0
  %v3986 = vadd.f32 0.0, %v3985
  %v3987 = vpop.f32.mrb[0].mxu0
  %v3988 = vadd.f32 0.0, %v3987
  %v3989 = vpop.f32.mrb[0].mxu0
  %v3990 = vadd.f32 0.0, %v3989
  %v3991 = vpop.f32.mrb[0].mxu0
  %v3992 = vadd.f32 0.0, %v3991
  %3993 = vmatprep.mubr.bf16.mxu0 0
  %3994 = vmatmul.mubr.bf16.gmra.mrb[0].mxu0 %v260
  %v3995 = vpop.f32.mrb[0].mxu0
  %v3996 = vadd.f32 0.0, %v3995
  %v3997 = vpop.f32.mrb[0].mxu0
  %v3998 = vadd.f32 0.0, %v3997
  %v3999 = vpop.f32.mrb[0].mxu0
  %v4000 = vadd.f32 0.0, %v3999
  %v4001 = vpop.f32.mrb[0].mxu0
  %v4002 = vadd.f32 0.0, %v4001
  %4003 = vmatprep.mubr.bf16.mxu0 0
  %4004 = vmatmul.mubr.bf16.gmra.mrb[0].mxu0 %v261
  %v4005 = vpop.f32.mrb[0].mxu0
  %v4006 = vadd.f32 0.0, %v4005
  %v4007 = vpop.f32.mrb[0].mxu0
  %v4008 = vadd.f32 0.0, %v4007
  %v4009 = vpop.f32.mrb[0].mxu0
  %v4010 = vadd.f32 0.0, %v4009
  %v4011 = vpop.f32.mrb[0].mxu0
  %v4012 = vadd.f32 0.0, %v4011
  %4013 = vmatprep.mubr.bf16.mxu0 0
  %4014 = vmatmul.mubr.bf16.gmra.mrb[0].mxu0 %v262
  %v4015 = vpop.f32.mrb[0].mxu0
  %v4016 = vadd.f32 0.0, %v4015
  %v4017 = vpop.f32.mrb[0].mxu0
  %v4018 = vadd.f32 0.0, %v4017
  %v4019 = vpop.f32.mrb[0].mxu0
  %v4020 = vadd.f32 0.0, %v4019
  %v4021 = vpop.f32.mrb[0].mxu0
  %v4022 = vadd.f32 0.0, %v4021
  %4023 = vmatprep.mubr.bf16.mxu0 0
  %4024 = vmatmul.mubr.bf16.gmra.mrb[0].mxu0 %v263
  %v4025 = vpop.f32.mrb[0].mxu0
  %v4026 = vadd.f32 0.0, %v4025
  %v4027 = vpop.f32.mrb[0].mxu0
  %v4028 = vadd.f32 0.0, %v4027
  %v4029 = vpop.f32.mrb[0].mxu0
  %v4030 = vadd.f32 0.0, %v4029
  %v4031 = vpop.f32.mrb[0].mxu0
  %v4032 = vadd.f32 0.0, %v4031
  %4033 = vmatprep.mubr.bf16.mxu0 0
  %4034 = vmatmul.mubr.bf16.gmra.mrb[0].mxu0 %v264
  %v4035 = vpop.f32.mrb[0].mxu0
  %v4036 = vadd.f32 0.0, %v4035
  %v4037 = vpop.f32.mrb[0].mxu0
  %v4038 = vadd.f32 0.0, %v4037
  %v4039 = vpop.f32.mrb[0].mxu0
  %v4040 = vadd.f32 0.0, %v4039
  %v4041 = vpop.f32.mrb[0].mxu0
  %v4042 = vadd.f32 0.0, %v4041
  %4043 = vmatprep.mubr.bf16.mxu0 0
  %4044 = vmatmul.mubr.bf16.gmra.mrb[0].mxu0 %v265
  %v4045 = vpop.f32.mrb[0].mxu0
  %v4046 = vadd.f32 0.0, %v4045
  %v4047 = vpop.f32.mrb[0].mxu0
  %v4048 = vadd.f32 0.0, %v4047
  %v4049 = vpop.f32.mrb[0].mxu0
  %v4050 = vadd.f32 0.0, %v4049
  %v4051 = vpop.f32.mrb[0].mxu0
  %v4052 = vadd.f32 0.0, %v4051
  %4053 = vmatprep.mubr.bf16.mxu0 0
  %4054 = vmatmul.mubr.bf16.gmra.mrb[0].mxu0 %v266
  %v4055 = vpop.f32.mrb[0].mxu0
  %v4056 = vadd.f32 0.0, %v4055
  %v4057 = vpop.f32.mrb[0].mxu0
  %v4058 = vadd.f32 0.0, %v4057
  %v4059 = vpop.f32.mrb[0].mxu0
  %v4060 = vadd.f32 0.0, %v4059
  %v4061 = vpop.f32.mrb[0].mxu0
  %v4062 = vadd.f32 0.0, %v4061
  %4063 = vmatprep.mubr.bf16.mxu0 0
  %4064 = vmatmul.mubr.bf16.gmra.mrb[0].mxu0 %v267
  %v4065 = vpop.f32.mrb[0].mxu0
  %v4066 = vadd.f32 0.0, %v4065
  %v4067 = vpop.f32.mrb[0].mxu0
  %v4068 = vadd.f32 0.0, %v4067
  %v4069 = vpop.f32.mrb[0].mxu0
  %v4070 = vadd.f32 0.0, %v4069
  %v4071 = vpop.f32.mrb[0].mxu0
  %v4072 = vadd.f32 0.0, %v4071
  %4073 = vmatprep.mubr.bf16.mxu0 0
  %4074 = vmatmul.mubr.bf16.gmra.mrb[0].mxu0 %v268
  %v4075 = vpop.f32.mrb[0].mxu0
  %v4076 = vadd.f32 0.0, %v4075
  %v4077 = vpop.f32.mrb[0].mxu0
  %v4078 = vadd.f32 0.0, %v4077
  %v4079 = vpop.f32.mrb[0].mxu0
  %v4080 = vadd.f32 0.0, %v4079
  %v4081 = vpop.f32.mrb[0].mxu0
  %v4082 = vadd.f32 0.0, %v4081
  %4083 = vmatprep.mubr.bf16.mxu0 0
  %4084 = vmatmul.mubr.bf16.gmra.mrb[0].mxu0 %v269
  %v4085 = vpop.f32.mrb[0].mxu0
  %v4086 = vadd.f32 0.0, %v4085
  %v4087 = vpop.f32.mrb[0].mxu0
  %v4088 = vadd.f32 0.0, %v4087
  %v4089 = vpop.f32.mrb[0].mxu0
  %v4090 = vadd.f32 0.0, %v4089
  %v4091 = vpop.f32.mrb[0].mxu0
  %v4092 = vadd.f32 0.0, %v4091
  %4093 = vmatprep.mubr.bf16.mxu0 0
  %4094 = vmatmul.mubr.bf16.gmra.mrb[0].mxu0 %v270
  %v4095 = vpop.f32.mrb[0].mxu0
  %v4096 = vadd.f32 0.0, %v4095
  %v4097 = vpop.f32.mrb[0].mxu0
  %v4098 = vadd.f32 0.0, %v4097
  %v4099 = vpop.f32.mrb[0].mxu0
  %v4100 = vadd.f32 0.0, %v4099
  %v4101 = vpop.f32.mrb[0].mxu0
  %v4102 = vadd.f32 0.0, %v4101
  %4103 = vmatprep.mubr.bf16.mxu0 0
  %4104 = vmatmul.mubr.bf16.gmra.mrb[0].mxu0 %v271
  %v4105 = vpop.f32.mrb[0].mxu0
  %v4106 = vadd.f32 0.0, %v4105
  %v4107 = vpop.f32.mrb[0].mxu0
  %v4108 = vadd.f32 0.0, %v4107
  %v4109 = vpop.f32.mrb[0].mxu0
  %v4110 = vadd.f32 0.0, %v4109
  %v4111 = vpop.f32.mrb[0].mxu0
  %v4112 = vadd.f32 0.0, %v4111
  %4113 = vmatprep.mubr.bf16.mxu0 0
  %4114 = vmatmul.mubr.bf16.gmra.mrb[0].mxu0 %v272
  %v4115 = vpop.f32.mrb[0].mxu0
  %v4116 = vadd.f32 0.0, %v4115
  %v4117 = vpop.f32.mrb[0].mxu0
  %v4118 = vadd.f32 0.0, %v4117
  %v4119 = vpop.f32.mrb[0].mxu0
  %v4120 = vadd.f32 0.0, %v4119
  %v4121 = vpop.f32.mrb[0].mxu0
  %v4122 = vadd.f32 0.0, %v4121
  %4123 = vmatprep.mubr.bf16.mxu0 0
  %4124 = vmatmul.mubr.bf16.gmra.mrb[0].mxu0 %v273
  %v4125 = vpop.f32.mrb[0].mxu0
  %v4126 = vadd.f32 0.0, %v4125
  %v4127 = vpop.f32.mrb[0].mxu0
  %v4128 = vadd.f32 0.0, %v4127
  %v4129 = vpop.f32.mrb[0].mxu0
  %v4130 = vadd.f32 0.0, %v4129
  %v4131 = vpop.f32.mrb[0].mxu0
  %v4132 = vadd.f32 0.0, %v4131
  %4133 = vmatprep.mubr.bf16.mxu0 0
  %4134 = vmatmul.mubr.bf16.gmra.mrb[0].mxu0 %v274
  %v4135 = vpop.f32.mrb[0].mxu0
  %v4136 = vadd.f32 0.0, %v4135
  %v4137 = vpop.f32.mrb[0].mxu0
  %v4138 = vadd.f32 0.0, %v4137
  %v4139 = vpop.f32.mrb[0].mxu0
  %v4140 = vadd.f32 0.0, %v4139
  %v4141 = vpop.f32.mrb[0].mxu0
  %v4142 = vadd.f32 0.0, %v4141
  %4143 = vmatprep.mubr.bf16.mxu0 0
  %4144 = vmatmul.mubr.bf16.gmra.mrb[0].mxu0 %v275
  %v4145 = vpop.f32.mrb[0].mxu0
  %v4146 = vadd.f32 0.0, %v4145
  %v4147 = vpop.f32.mrb[0].mxu0
  %v4148 = vadd.f32 0.0, %v4147
  %v4149 = vpop.f32.mrb[0].mxu0
  %v4150 = vadd.f32 0.0, %v4149
  %v4151 = vpop.f32.mrb[0].mxu0
  %v4152 = vadd.f32 0.0, %v4151
  %4153 = vmatprep.mubr.bf16.mxu0 0
  %4154 = vmatmul.mubr.bf16.gmra.mrb[0].mxu0 %v276
  %v4155 = vpop.f32.mrb[0].mxu0
  %v4156 = vadd.f32 0.0, %v4155
  %v4157 = vpop.f32.mrb[0].mxu0
  %v4158 = vadd.f32 0.0, %v4157
  %v4159 = vpop.f32.mrb[0].mxu0
  %v4160 = vadd.f32 0.0, %v4159
  %v4161 = vpop.f32.mrb[0].mxu0
  %v4162 = vadd.f32 0.0, %v4161
  %4163 = vmatprep.mubr.bf16.mxu0 0
  %4164 = vmatmul.mubr.bf16.gmra.mrb[0].mxu0 %v277
  %v4165 = vpop.f32.mrb[0].mxu0
  %v4166 = vadd.f32 0.0, %v4165
  %v4167 = vpop.f32.mrb[0].mxu0
  %v4168 = vadd.f32 0.0, %v4167
  %v4169 = vpop.f32.mrb[0].mxu0
  %v4170 = vadd.f32 0.0, %v4169
  %v4171 = vpop.f32.mrb[0].mxu0
  %v4172 = vadd.f32 0.0, %v4171
  %4173 = vmatprep.mubr.bf16.mxu0 0
  %4174 = vmatmul.mubr.bf16.gmra.mrb[0].mxu0 %v278
  %v4175 = vpop.f32.mrb[0].mxu0
  %v4176 = vadd.f32 0.0, %v4175
  %v4177 = vpop.f32.mrb[0].mxu0
  %v4178 = vadd.f32 0.0, %v4177
  %v4179 = vpop.f32.mrb[0].mxu0
  %v4180 = vadd.f32 0.0, %v4179
  %v4181 = vpop.f32.mrb[0].mxu0
  %v4182 = vadd.f32 0.0, %v4181
  %4183 = vmatprep.mubr.bf16.mxu0 0
  %4184 = vmatmul.mubr.bf16.gmra.mrb[0].mxu0 %v279
  %v4185 = vpop.f32.mrb[0].mxu0
  %v4186 = vadd.f32 0.0, %v4185
  %v4187 = vpop.f32.mrb[0].mxu0
  %v4188 = vadd.f32 0.0, %v4187
  %v4189 = vpop.f32.mrb[0].mxu0
  %v4190 = vadd.f32 0.0, %v4189
  %v4191 = vpop.f32.mrb[0].mxu0
  %v4192 = vadd.f32 0.0, %v4191
  %4193 = vmatprep.mubr.bf16.mxu0 0
  %4194 = vmatmul.mubr.bf16.gmra.mrb[0].mxu0 %v280
  %v4195 = vpop.f32.mrb[0].mxu0
  %v4196 = vadd.f32 0.0, %v4195
  %v4197 = vpop.f32.mrb[0].mxu0
  %v4198 = vadd.f32 0.0, %v4197
  %v4199 = vpop.f32.mrb[0].mxu0
  %v4200 = vadd.f32 0.0, %v4199
  %v4201 = vpop.f32.mrb[0].mxu0
  %v4202 = vadd.f32 0.0, %v4201
  %4203 = vmatprep.mubr.bf16.mxu0 0
  %4204 = vmatmul.mubr.bf16.gmra.mrb[0].mxu0 %v281
  %v4205 = vpop.f32.mrb[0].mxu0
  %v4206 = vadd.f32 0.0, %v4205
  %v4207 = vpop.f32.mrb[0].mxu0
  %v4208 = vadd.f32 0.0, %v4207
  %v4209 = vpop.f32.mrb[0].mxu0
  %v4210 = vadd.f32 0.0, %v4209
  %v4211 = vpop.f32.mrb[0].mxu0
  %v4212 = vadd.f32 0.0, %v4211
  %4213 = vmatprep.mubr.bf16.mxu0 0
  %4214 = vmatmul.mubr.bf16.gmra.mrb[0].mxu0 %v282
  %v4215 = vpop.f32.mrb[0].mxu0
  %v4216 = vadd.f32 0.0, %v4215
  %v4217 = vpop.f32.mrb[0].mxu0
  %v4218 = vadd.f32 0.0, %v4217
  %v4219 = vpop.f32.mrb[0].mxu0
  %v4220 = vadd.f32 0.0, %v4219
  %v4221 = vpop.f32.mrb[0].mxu0
  %v4222 = vadd.f32 0.0, %v4221
  %4223 = vdwg.mxu0
  %v4224 = vmax.f32 %v3906, %v3986
  %v4225 = vmax.f32 %v3908, %v3988
  %v4226 = vmax.f32 %v3910, %v3990
  %v4227 = vmax.f32 %v3912, %v3992
  %v4228 = vmax.f32 %v3916, %v3996
  %v4229 = vmax.f32 %v3918, %v3998
  %v4230 = vmax.f32 %v3920, %v4000
  %v4231 = vmax.f32 %v3922, %v4002
  %v4232 = vmax.f32 %v3926, %v4006
  %v4233 = vmax.f32 %v3928, %v4008
  %v4234 = vmax.f32 %v3930, %v4010
  %v4235 = vmax.f32 %v3932, %v4012
  %v4236 = vmax.f32 %v3936, %v4016
  %v4237 = vmax.f32 %v3938, %v4018
  %v4238 = vmax.f32 %v3940, %v4020
  %v4239 = vmax.f32 %v3942, %v4022
  %v4240 = vmax.f32 %v3946, %v4026
  %v4241 = vmax.f32 %v3948, %v4028
  %v4242 = vmax.f32 %v3950, %v4030
  %v4243 = vmax.f32 %v3952, %v4032
  %v4244 = vmax.f32 %v3956, %v4036
  %v4245 = vmax.f32 %v3958, %v4038
  %v4246 = vmax.f32 %v3960, %v4040
  %v4247 = vmax.f32 %v3962, %v4042
  %v4248 = vmax.f32 %v3966, %v4046
  %v4249 = vmax.f32 %v3968, %v4048
  %v4250 = vmax.f32 %v3970, %v4050
  %v4251 = vmax.f32 %v3972, %v4052
  %v4252 = vmax.f32 %v3976, %v4056
  %v4253 = vmax.f32 %v3978, %v4058
  %v4254 = vmax.f32 %v3980, %v4060
  %v4255 = vmax.f32 %v3982, %v4062
  %v4256 = vmax.f32 %v4066, %v4146
  %v4257 = vmax.f32 %v4068, %v4148
  %v4258 = vmax.f32 %v4070, %v4150
  %v4259 = vmax.f32 %v4072, %v4152
  %v4260 = vmax.f32 %v4076, %v4156
  %v4261 = vmax.f32 %v4078, %v4158
  %v4262 = vmax.f32 %v4080, %v4160
  %v4263 = vmax.f32 %v4082, %v4162
  %v4264 = vmax.f32 %v4086, %v4166
  %v4265 = vmax.f32 %v4088, %v4168
  %v4266 = vmax.f32 %v4090, %v4170
  %v4267 = vmax.f32 %v4092, %v4172
  %v4268 = vmax.f32 %v4096, %v4176
  %v4269 = vmax.f32 %v4098, %v4178
  %v4270 = vmax.f32 %v4100, %v4180
  %v4271 = vmax.f32 %v4102, %v4182
  %v4272 = vmax.f32 %v4106, %v4186
  %v4273 = vmax.f32 %v4108, %v4188
  %v4274 = vmax.f32 %v4110, %v4190
  %v4275 = vmax.f32 %v4112, %v4192
  %v4276 = vmax.f32 %v4116, %v4196
  %v4277 = vmax.f32 %v4118, %v4198
  %v4278 = vmax.f32 %v4120, %v4200
  %v4279 = vmax.f32 %v4122, %v4202
  %v4280 = vmax.f32 %v4126, %v4206
  %v4281 = vmax.f32 %v4128, %v4208
  %v4282 = vmax.f32 %v4130, %v4210
  %v4283 = vmax.f32 %v4132, %v4212
  %v4284 = vmax.f32 %v4136, %v4216
  %v4285 = vmax.f32 %v4138, %v4218
  %v4286 = vmax.f32 %v4140, %v4220
  %v4287 = vmax.f32 %v4142, %v4222
  %v4288 = vmax.f32 %v4224, %v4256
  %v4289 = vmax.f32 %v4225, %v4257
  %v4290 = vmax.f32 %v4226, %v4258
  %v4291 = vmax.f32 %v4227, %v4259
  %v4292 = vmax.f32 %v4228, %v4260
  %v4293 = vmax.f32 %v4229, %v4261
  %v4294 = vmax.f32 %v4230, %v4262
  %v4295 = vmax.f32 %v4231, %v4263
  %v4296 = vmax.f32 %v4232, %v4264
  %v4297 = vmax.f32 %v4233, %v4265
  %v4298 = vmax.f32 %v4234, %v4266
  %v4299 = vmax.f32 %v4235, %v4267
  %v4300 = vmax.f32 %v4236, %v4268
  %v4301 = vmax.f32 %v4237, %v4269
  %v4302 = vmax.f32 %v4238, %v4270
  %v4303 = vmax.f32 %v4239, %v4271
  %v4304 = vmax.f32 %v4240, %v4272
  %v4305 = vmax.f32 %v4241, %v4273
  %v4306 = vmax.f32 %v4242, %v4274
  %v4307 = vmax.f32 %v4243, %v4275
  %v4308 = vmax.f32 %v4244, %v4276
  %v4309 = vmax.f32 %v4245, %v4277
  %v4310 = vmax.f32 %v4246, %v4278
  %v4311 = vmax.f32 %v4247, %v4279
  %v4312 = vmax.f32 %v4248, %v4280
  %v4313 = vmax.f32 %v4249, %v4281
  %v4314 = vmax.f32 %v4250, %v4282
  %v4315 = vmax.f32 %v4251, %v4283
  %v4316 = vmax.f32 %v4252, %v4284
  %v4317 = vmax.f32 %v4253, %v4285
  %v4318 = vmax.f32 %v4254, %v4286
  %v4319 = vmax.f32 %v4255, %v4287
  %v4320 = vadd.f32 %v4288, %v847
  %v4321 = vadd.f32 %v4289, %v847
  %v4322 = vadd.f32 %v4290, %v852
  %v4323 = vadd.f32 %v4291, %v852
  %v4324 = vadd.f32 %v4292, %v857
  %v4325 = vadd.f32 %v4293, %v857
  %v4326 = vadd.f32 %v4294, %v862
  %v4327 = vadd.f32 %v4295, %v862
  %v4328 = vadd.f32 %v4296, %v867
  %v4329 = vadd.f32 %v4297, %v867
  %v4330 = vadd.f32 %v4298, %v872
  %v4331 = vadd.f32 %v4299, %v872
  %v4332 = vadd.f32 %v4300, %v877
  %v4333 = vadd.f32 %v4301, %v877
  %v4334 = vadd.f32 %v4302, %v882
  %v4335 = vadd.f32 %v4303, %v882
  %v4336 = vadd.f32 %v4304, %v887
  %v4337 = vadd.f32 %v4305, %v887
  %v4338 = vadd.f32 %v4306, %v892
  %v4339 = vadd.f32 %v4307, %v892
  %v4340 = vadd.f32 %v4308, %v897
  %v4341 = vadd.f32 %v4309, %v897
  %v4342 = vadd.f32 %v4310, %v902
  %v4343 = vadd.f32 %v4311, %v902
  %v4344 = vadd.f32 %v4312, %v907
  %v4345 = vadd.f32 %v4313, %v907
  %v4346 = vadd.f32 %v4314, %v912
  %v4347 = vadd.f32 %v4315, %v912
  %v4348 = vadd.f32 %v4316, %v917
  %v4349 = vadd.f32 %v4317, %v917
  %v4350 = vadd.f32 %v4318, %v922
  %v4351 = vadd.f32 %v4319, %v922
  %v4352 = vmax.f32 %v4320, 0.0
  %v4353 = vmax.f32 %v4321, 0.0
  %v4354 = vmax.f32 %v4322, 0.0
  %v4355 = vmax.f32 %v4323, 0.0
  %v4356 = vmax.f32 %v4324, 0.0
  %v4357 = vmax.f32 %v4325, 0.0
  %v4358 = vmax.f32 %v4326, 0.0
  %v4359 = vmax.f32 %v4327, 0.0
  %v4360 = vmax.f32 %v4328, 0.0
  %v4361 = vmax.f32 %v4329, 0.0
  %v4362 = vmax.f32 %v4330, 0.0
  %v4363 = vmax.f32 %v4331, 0.0
  %v4364 = vmax.f32 %v4332, 0.0
  %v4365 = vmax.f32 %v4333, 0.0
  %v4366 = vmax.f32 %v4334, 0.0
  %v4367 = vmax.f32 %v4335, 0.0
  %v4368 = vmax.f32 %v4336, 0.0
  %v4369 = vmax.f32 %v4337, 0.0
  %v4370 = vmax.f32 %v4338, 0.0
  %v4371 = vmax.f32 %v4339, 0.0
  %v4372 = vmax.f32 %v4340, 0.0
  %v4373 = vmax.f32 %v4341, 0.0
  %v4374 = vmax.f32 %v4342, 0.0
  %v4375 = vmax.f32 %v4343, 0.0
  %v4376 = vmax.f32 %v4344, 0.0
  %v4377 = vmax.f32 %v4345, 0.0
  %v4378 = vmax.f32 %v4346, 0.0
  %v4379 = vmax.f32 %v4347, 0.0
  %v4380 = vmax.f32 %v4348, 0.0
  %v4381 = vmax.f32 %v4349, 0.0
  %v4382 = vmax.f32 %v4350, 0.0
  %v4383 = vmax.f32 %v4351, 0.0
  %s4384 = scalar_lea.vmem %s3, 40
  %v4385 = vld [vmem:[%s4384] sm:$0xf]
  %v4386 = vld [vmem:[%s4384 + $0x4] sm:$0xf]
  %v4387 = vpack.c.bf16 %v4354, %v4352
  %v4388 = vpack.c.bf16 %v4355, %v4353
  %v4389 = vpack.c.bf16 %v4358, %v4356
  %v4390 = vpack.c.bf16 %v4359, %v4357
  %v4391 = vpack.c.bf16 %v4362, %v4360
  %v4392 = vpack.c.bf16 %v4363, %v4361
  %v4393 = vpack.c.bf16 %v4366, %v4364
  %v4394 = vpack.c.bf16 %v4367, %v4365
  %v4395 = vpack.c.bf16 %v4370, %v4368
  %v4396 = vpack.c.bf16 %v4371, %v4369
  %v4397 = vpack.c.bf16 %v4374, %v4372
  %v4398 = vpack.c.bf16 %v4375, %v4373
  %v4399 = vpack.c.bf16 %v4378, %v4376
  %v4400 = vpack.c.bf16 %v4379, %v4377
  %v4401 = vpack.c.bf16 %v4382, %v4380
  %v4402 = vpack.c.bf16 %v4383, %v4381
  %v4405 = vunpack.c.l.b16 %v4385
  %v4406 = vunpack.c.l.b16 %v4386
  %v4407 = vpack.c.b16 %v4406, %v4405
  %4409 = vmatprep.subr.bf16.mxu0 %v4388
  %4410 = vmatpush1.bf16.msra.mxu0 %v4387
  %4411 = vmatprep.subr.bf16.mxu0 %v4390
  %4412 = vmatpush1.bf16.msra.mxu0 %v4389
  %4413 = vmatprep.subr.bf16.mxu0 %v4392
  %4414 = vmatpush1.bf16.msra.mxu0 %v4391
  %4415 = vmatprep.subr.bf16.mxu0 %v4394
  %4416 = vmatpush1.bf16.msra.mxu0 %v4393
  %4417 = vmatprep.subr.bf16.mxu0 %v4396
  %4418 = vmatpush1.bf16.msra.mxu0 %v4395
  %4419 = vmatprep.subr.bf16.mxu0 %v4398
  %4420 = vmatpush1.bf16.msra.mxu0 %v4397
  %4421 = vmatprep.subr.bf16.mxu0 %v4400
  %4422 = vmatpush1.bf16.msra.mxu0 %v4399
  %4423 = vmatprep.subr.bf16.mxu0 %v4402
  %4424 = vmatpush1.bf16.msra.mxu0 %v4401
  %4425 = vmatprep.subr.bf16.mxu0 0
  %4426 = vmatpush1.bf16.msra.mxu0 0
  %4427 = vmatprep.subr.bf16.mxu0 0
  %4428 = vmatpush1.bf16.msra.mxu0 0
  %4429 = vmatprep.subr.bf16.mxu0 0
  %4430 = vmatpush1.bf16.msra.mxu0 0
  %4431 = vmatprep.subr.bf16.mxu0 0
  %4432 = vmatpush1.bf16.msra.mxu0 0
  %4433 = vmatprep.subr.bf16.mxu0 0
  %4434 = vmatpush1.bf16.msra.mxu0 0
  %4435 = vmatprep.subr.bf16.mxu0 0
  %4436 = vmatpush1.bf16.msra.mxu0 0
  %4437 = vmatprep.subr.bf16.mxu0 0
  %4438 = vmatpush1.bf16.msra.mxu0 0
  %4439 = vmatprep.subr.bf16.mxu0 0
  %4440 = vmatpush1.bf16.msra.mxu0 0
  %4441 = vmatprep.mubr.bf16.mxu0 0
  %4442 = vmatmul.mubr.bf16.gmra.mrb[0].mxu0 %v4407
  %v4443 = vpop.f32.mrb[0].mxu0
  %v4444 = vadd.f32 0.0, %v4443
  %v4445 = vpop.f32.mrb[0].mxu0
  %v4446 = vadd.f32 0.0, %v4445
  %v4447 = vpop.f32.mrb[0].mxu0
  %v4448 = vadd.f32 0.0, %v4447
  %v4449 = vpop.f32.mrb[0].mxu0
  %v4450 = vadd.f32 0.0, %v4449
  %4451 = vdwg.mxu0
  %v4452 = vadd.f32 %v3771, %v4444
  %v4453 = vadd.f32 %v3772, %v4446
  %v4454 = vadd.f32 %v3773, %v4448
  %v4455 = vadd.f32 %v3774, %v4450
  %v4456 = vld [vmem:[%s0 + $0x180] sm:$0xff]
  %v4457 = vld [vmem:[%s0 + $0x188] sm:$0xff]
  %v4458 = vld [vmem:[%s0 + $0x190] sm:$0xff]
  %v4459 = vld [vmem:[%s0 + $0x198] sm:$0xff]
  %v4460 = vld [vmem:[%s0 + $0x1a0] sm:$0xff]
  %v4461 = vld [vmem:[%s0 + $0x1a8] sm:$0xff]
  %v4462 = vld [vmem:[%s0 + $0x1b0] sm:$0xff]
  %v4463 = vld [vmem:[%s0 + $0x1b8] sm:$0xff]
  %v4464 = vld [vmem:[%s0 + $0x1c0] sm:$0xff]
  %v4465 = vld [vmem:[%s0 + $0x1c8] sm:$0xff]
  %v4466 = vld [vmem:[%s0 + $0x1d0] sm:$0xff]
  %v4467 = vld [vmem:[%s0 + $0x1d8] sm:$0xff]
  %v4468 = vld [vmem:[%s0 + $0x1e0] sm:$0xff]
  %v4469 = vld [vmem:[%s0 + $0x1e8] sm:$0xff]
  %v4470 = vld [vmem:[%s0 + $0x1f0] sm:$0xff]
  %v4471 = vld [vmem:[%s0 + $0x1f8] sm:$0xff]
  %v4488 = vunpack.c.l.b16 %v4456
  %v4489 = vunpack.c.h.b16 %v4456
  %v4490 = vunpack.c.l.b16 %v4457
  %v4491 = vunpack.c.h.b16 %v4457
  %v4492 = vunpack.c.l.b16 %v4458
  %v4493 = vunpack.c.h.b16 %v4458
  %v4494 = vunpack.c.l.b16 %v4459
  %v4495 = vunpack.c.h.b16 %v4459
  %v4496 = vunpack.c.l.b16 %v4460
  %v4497 = vunpack.c.h.b16 %v4460
  %v4498 = vunpack.c.l.b16 %v4461
  %v4499 = vunpack.c.h.b16 %v4461
  %v4500 = vunpack.c.l.b16 %v4462
  %v4501 = vunpack.c.h.b16 %v4462
  %v4502 = vunpack.c.l.b16 %v4463
  %v4503 = vunpack.c.h.b16 %v4463
  %v4504 = vunpack.c.l.b16 %v4464
  %v4505 = vunpack.c.h.b16 %v4464
  %v4506 = vunpack.c.l.b16 %v4465
  %v4507 = vunpack.c.h.b16 %v4465
  %v4508 = vunpack.c.l.b16 %v4466
  %v4509 = vunpack.c.h.b16 %v4466
  %v4510 = vunpack.c.l.b16 %v4467
  %v4511 = vunpack.c.h.b16 %v4467
  %v4512 = vunpack.c.l.b16 %v4468
  %v4513 = vunpack.c.h.b16 %v4468
  %v4514 = vunpack.c.l.b16 %v4469
  %v4515 = vunpack.c.h.b16 %v4469
  %v4516 = vunpack.c.l.b16 %v4470
  %v4517 = vunpack.c.h.b16 %v4470
  %v4518 = vunpack.c.l.b16 %v4471
  %v4519 = vunpack.c.h.b16 %v4471
  %v4520 = vpack.c.b16 %v4490, %v4488
  %v4521 = vpack.c.b16 %v4491, %v4489
  %v4522 = vpack.c.b16 %v4494, %v4492
  %v4523 = vpack.c.b16 %v4495, %v4493
  %v4524 = vpack.c.b16 %v4498, %v4496
  %v4525 = vpack.c.b16 %v4499, %v4497
  %v4526 = vpack.c.b16 %v4502, %v4500
  %v4527 = vpack.c.b16 %v4503, %v4501
  %v4528 = vpack.c.b16 %v4506, %v4504
  %v4529 = vpack.c.b16 %v4507, %v4505
  %v4530 = vpack.c.b16 %v4510, %v4508
  %v4531 = vpack.c.b16 %v4511, %v4509
  %v4532 = vpack.c.b16 %v4514, %v4512
  %v4533 = vpack.c.b16 %v4515, %v4513
  %v4534 = vpack.c.b16 %v4518, %v4516
  %v4535 = vpack.c.b16 %v4519, %v4517
  %4552 = vmatprep.subr.bf16.mxu0 %v4521
  %4553 = vmatpush1.bf16.msra.mxu0 %v4520
  %4554 = vmatprep.subr.bf16.mxu0 %v4523
  %4555 = vmatpush1.bf16.msra.mxu0 %v4522
  %4556 = vmatprep.subr.bf16.mxu0 %v4525
  %4557 = vmatpush1.bf16.msra.mxu0 %v4524
  %4558 = vmatprep.subr.bf16.mxu0 %v4527
  %4559 = vmatpush1.bf16.msra.mxu0 %v4526
  %4560 = vmatprep.subr.bf16.mxu0 %v4529
  %4561 = vmatpush1.bf16.msra.mxu0 %v4528
  %4562 = vmatprep.subr.bf16.mxu0 %v4531
  %4563 = vmatpush1.bf16.msra.mxu0 %v4530
  %4564 = vmatprep.subr.bf16.mxu0 %v4533
  %4565 = vmatpush1.bf16.msra.mxu0 %v4532
  %4566 = vmatprep.subr.bf16.mxu0 %v4535
  %4567 = vmatpush1.bf16.msra.mxu0 %v4534
  %4568 = vmatprep.subr.bf16.mxu0 0
  %4569 = vmatpush1.bf16.msra.mxu0 0
  %4570 = vmatprep.subr.bf16.mxu0 0
  %4571 = vmatpush1.bf16.msra.mxu0 0
  %4572 = vmatprep.subr.bf16.mxu0 0
  %4573 = vmatpush1.bf16.msra.mxu0 0
  %4574 = vmatprep.subr.bf16.mxu0 0
  %4575 = vmatpush1.bf16.msra.mxu0 0
  %4576 = vmatprep.subr.bf16.mxu0 0
  %4577 = vmatpush1.bf16.msra.mxu0 0
  %4578 = vmatprep.subr.bf16.mxu0 0
  %4579 = vmatpush1.bf16.msra.mxu0 0
  %4580 = vmatprep.subr.bf16.mxu0 0
  %4581 = vmatpush1.bf16.msra.mxu0 0
  %4582 = vmatprep.subr.bf16.mxu0 0
  %4583 = vmatpush1.bf16.msra.mxu0 0
  %4584 = vmatprep.mubr.bf16.mxu0 0
  %4585 = vmatmul.mubr.bf16.gmra.mrb[0].mxu0 %v251
  %v4586 = vpop.f32.mrb[0].mxu0
  %v4587 = vadd.f32 0.0, %v4586
  %v4588 = vpop.f32.mrb[0].mxu0
  %v4589 = vadd.f32 0.0, %v4588
  %v4590 = vpop.f32.mrb[0].mxu0
  %v4591 = vadd.f32 0.0, %v4590
  %v4592 = vpop.f32.mrb[0].mxu0
  %v4593 = vadd.f32 0.0, %v4592
  %4594 = vmatprep.mubr.bf16.mxu0 0
  %4595 = vmatmul.mubr.bf16.gmra.mrb[0].mxu0 %v252
  %v4596 = vpop.f32.mrb[0].mxu0
  %v4597 = vadd.f32 0.0, %v4596
  %v4598 = vpop.f32.mrb[0].mxu0
  %v4599 = vadd.f32 0.0, %v4598
  %v4600 = vpop.f32.mrb[0].mxu0
  %v4601 = vadd.f32 0.0, %v4600
  %v4602 = vpop.f32.mrb[0].mxu0
  %v4603 = vadd.f32 0.0, %v4602
  %4604 = vmatprep.mubr.bf16.mxu0 0
  %4605 = vmatmul.mubr.bf16.gmra.mrb[0].mxu0 %v253
  %v4606 = vpop.f32.mrb[0].mxu0
  %v4607 = vadd.f32 0.0, %v4606
  %v4608 = vpop.f32.mrb[0].mxu0
  %v4609 = vadd.f32 0.0, %v4608
  %v4610 = vpop.f32.mrb[0].mxu0
  %v4611 = vadd.f32 0.0, %v4610
  %v4612 = vpop.f32.mrb[0].mxu0
  %v4613 = vadd.f32 0.0, %v4612
  %4614 = vmatprep.mubr.bf16.mxu0 0
  %4615 = vmatmul.mubr.bf16.gmra.mrb[0].mxu0 %v254
  %v4616 = vpop.f32.mrb[0].mxu0
  %v4617 = vadd.f32 0.0, %v4616
  %v4618 = vpop.f32.mrb[0].mxu0
  %v4619 = vadd.f32 0.0, %v4618
  %v4620 = vpop.f32.mrb[0].mxu0
  %v4621 = vadd.f32 0.0, %v4620
  %v4622 = vpop.f32.mrb[0].mxu0
  %v4623 = vadd.f32 0.0, %v4622
  %4624 = vmatprep.mubr.bf16.mxu0 0
  %4625 = vmatmul.mubr.bf16.gmra.mrb[0].mxu0 %v255
  %v4626 = vpop.f32.mrb[0].mxu0
  %v4627 = vadd.f32 0.0, %v4626
  %v4628 = vpop.f32.mrb[0].mxu0
  %v4629 = vadd.f32 0.0, %v4628
  %v4630 = vpop.f32.mrb[0].mxu0
  %v4631 = vadd.f32 0.0, %v4630
  %v4632 = vpop.f32.mrb[0].mxu0
  %v4633 = vadd.f32 0.0, %v4632
  %4634 = vmatprep.mubr.bf16.mxu0 0
  %4635 = vmatmul.mubr.bf16.gmra.mrb[0].mxu0 %v256
  %v4636 = vpop.f32.mrb[0].mxu0
  %v4637 = vadd.f32 0.0, %v4636
  %v4638 = vpop.f32.mrb[0].mxu0
  %v4639 = vadd.f32 0.0, %v4638
  %v4640 = vpop.f32.mrb[0].mxu0
  %v4641 = vadd.f32 0.0, %v4640
  %v4642 = vpop.f32.mrb[0].mxu0
  %v4643 = vadd.f32 0.0, %v4642
  %4644 = vmatprep.mubr.bf16.mxu0 0
  %4645 = vmatmul.mubr.bf16.gmra.mrb[0].mxu0 %v257
  %v4646 = vpop.f32.mrb[0].mxu0
  %v4647 = vadd.f32 0.0, %v4646
  %v4648 = vpop.f32.mrb[0].mxu0
  %v4649 = vadd.f32 0.0, %v4648
  %v4650 = vpop.f32.mrb[0].mxu0
  %v4651 = vadd.f32 0.0, %v4650
  %v4652 = vpop.f32.mrb[0].mxu0
  %v4653 = vadd.f32 0.0, %v4652
  %4654 = vmatprep.mubr.bf16.mxu0 0
  %4655 = vmatmul.mubr.bf16.gmra.mrb[0].mxu0 %v258
  %v4656 = vpop.f32.mrb[0].mxu0
  %v4657 = vadd.f32 0.0, %v4656
  %v4658 = vpop.f32.mrb[0].mxu0
  %v4659 = vadd.f32 0.0, %v4658
  %v4660 = vpop.f32.mrb[0].mxu0
  %v4661 = vadd.f32 0.0, %v4660
  %v4662 = vpop.f32.mrb[0].mxu0
  %v4663 = vadd.f32 0.0, %v4662
  %4664 = vmatprep.mubr.bf16.mxu0 0
  %4665 = vmatmul.mubr.bf16.gmra.mrb[0].mxu0 %v259
  %v4666 = vpop.f32.mrb[0].mxu0
  %v4667 = vadd.f32 0.0, %v4666
  %v4668 = vpop.f32.mrb[0].mxu0
  %v4669 = vadd.f32 0.0, %v4668
  %v4670 = vpop.f32.mrb[0].mxu0
  %v4671 = vadd.f32 0.0, %v4670
  %v4672 = vpop.f32.mrb[0].mxu0
  %v4673 = vadd.f32 0.0, %v4672
  %4674 = vmatprep.mubr.bf16.mxu0 0
  %4675 = vmatmul.mubr.bf16.gmra.mrb[0].mxu0 %v260
  %v4676 = vpop.f32.mrb[0].mxu0
  %v4677 = vadd.f32 0.0, %v4676
  %v4678 = vpop.f32.mrb[0].mxu0
  %v4679 = vadd.f32 0.0, %v4678
  %v4680 = vpop.f32.mrb[0].mxu0
  %v4681 = vadd.f32 0.0, %v4680
  %v4682 = vpop.f32.mrb[0].mxu0
  %v4683 = vadd.f32 0.0, %v4682
  %4684 = vmatprep.mubr.bf16.mxu0 0
  %4685 = vmatmul.mubr.bf16.gmra.mrb[0].mxu0 %v261
  %v4686 = vpop.f32.mrb[0].mxu0
  %v4687 = vadd.f32 0.0, %v4686
  %v4688 = vpop.f32.mrb[0].mxu0
  %v4689 = vadd.f32 0.0, %v4688
  %v4690 = vpop.f32.mrb[0].mxu0
  %v4691 = vadd.f32 0.0, %v4690
  %v4692 = vpop.f32.mrb[0].mxu0
  %v4693 = vadd.f32 0.0, %v4692
  %4694 = vmatprep.mubr.bf16.mxu0 0
  %4695 = vmatmul.mubr.bf16.gmra.mrb[0].mxu0 %v262
  %v4696 = vpop.f32.mrb[0].mxu0
  %v4697 = vadd.f32 0.0, %v4696
  %v4698 = vpop.f32.mrb[0].mxu0
  %v4699 = vadd.f32 0.0, %v4698
  %v4700 = vpop.f32.mrb[0].mxu0
  %v4701 = vadd.f32 0.0, %v4700
  %v4702 = vpop.f32.mrb[0].mxu0
  %v4703 = vadd.f32 0.0, %v4702
  %4704 = vmatprep.mubr.bf16.mxu0 0
  %4705 = vmatmul.mubr.bf16.gmra.mrb[0].mxu0 %v263
  %v4706 = vpop.f32.mrb[0].mxu0
  %v4707 = vadd.f32 0.0, %v4706
  %v4708 = vpop.f32.mrb[0].mxu0
  %v4709 = vadd.f32 0.0, %v4708
  %v4710 = vpop.f32.mrb[0].mxu0
  %v4711 = vadd.f32 0.0, %v4710
  %v4712 = vpop.f32.mrb[0].mxu0
  %v4713 = vadd.f32 0.0, %v4712
  %4714 = vmatprep.mubr.bf16.mxu0 0
  %4715 = vmatmul.mubr.bf16.gmra.mrb[0].mxu0 %v264
  %v4716 = vpop.f32.mrb[0].mxu0
  %v4717 = vadd.f32 0.0, %v4716
  %v4718 = vpop.f32.mrb[0].mxu0
  %v4719 = vadd.f32 0.0, %v4718
  %v4720 = vpop.f32.mrb[0].mxu0
  %v4721 = vadd.f32 0.0, %v4720
  %v4722 = vpop.f32.mrb[0].mxu0
  %v4723 = vadd.f32 0.0, %v4722
  %4724 = vmatprep.mubr.bf16.mxu0 0
  %4725 = vmatmul.mubr.bf16.gmra.mrb[0].mxu0 %v265
  %v4726 = vpop.f32.mrb[0].mxu0
  %v4727 = vadd.f32 0.0, %v4726
  %v4728 = vpop.f32.mrb[0].mxu0
  %v4729 = vadd.f32 0.0, %v4728
  %v4730 = vpop.f32.mrb[0].mxu0
  %v4731 = vadd.f32 0.0, %v4730
  %v4732 = vpop.f32.mrb[0].mxu0
  %v4733 = vadd.f32 0.0, %v4732
  %4734 = vmatprep.mubr.bf16.mxu0 0
  %4735 = vmatmul.mubr.bf16.gmra.mrb[0].mxu0 %v266
  %v4736 = vpop.f32.mrb[0].mxu0
  %v4737 = vadd.f32 0.0, %v4736
  %v4738 = vpop.f32.mrb[0].mxu0
  %v4739 = vadd.f32 0.0, %v4738
  %v4740 = vpop.f32.mrb[0].mxu0
  %v4741 = vadd.f32 0.0, %v4740
  %v4742 = vpop.f32.mrb[0].mxu0
  %v4743 = vadd.f32 0.0, %v4742
  %4744 = vmatprep.mubr.bf16.mxu0 0
  %4745 = vmatmul.mubr.bf16.gmra.mrb[0].mxu0 %v267
  %v4746 = vpop.f32.mrb[0].mxu0
  %v4747 = vadd.f32 0.0, %v4746
  %v4748 = vpop.f32.mrb[0].mxu0
  %v4749 = vadd.f32 0.0, %v4748
  %v4750 = vpop.f32.mrb[0].mxu0
  %v4751 = vadd.f32 0.0, %v4750
  %v4752 = vpop.f32.mrb[0].mxu0
  %v4753 = vadd.f32 0.0, %v4752
  %4754 = vmatprep.mubr.bf16.mxu0 0
  %4755 = vmatmul.mubr.bf16.gmra.mrb[0].mxu0 %v268
  %v4756 = vpop.f32.mrb[0].mxu0
  %v4757 = vadd.f32 0.0, %v4756
  %v4758 = vpop.f32.mrb[0].mxu0
  %v4759 = vadd.f32 0.0, %v4758
  %v4760 = vpop.f32.mrb[0].mxu0
  %v4761 = vadd.f32 0.0, %v4760
  %v4762 = vpop.f32.mrb[0].mxu0
  %v4763 = vadd.f32 0.0, %v4762
  %4764 = vmatprep.mubr.bf16.mxu0 0
  %4765 = vmatmul.mubr.bf16.gmra.mrb[0].mxu0 %v269
  %v4766 = vpop.f32.mrb[0].mxu0
  %v4767 = vadd.f32 0.0, %v4766
  %v4768 = vpop.f32.mrb[0].mxu0
  %v4769 = vadd.f32 0.0, %v4768
  %v4770 = vpop.f32.mrb[0].mxu0
  %v4771 = vadd.f32 0.0, %v4770
  %v4772 = vpop.f32.mrb[0].mxu0
  %v4773 = vadd.f32 0.0, %v4772
  %4774 = vmatprep.mubr.bf16.mxu0 0
  %4775 = vmatmul.mubr.bf16.gmra.mrb[0].mxu0 %v270
  %v4776 = vpop.f32.mrb[0].mxu0
  %v4777 = vadd.f32 0.0, %v4776
  %v4778 = vpop.f32.mrb[0].mxu0
  %v4779 = vadd.f32 0.0, %v4778
  %v4780 = vpop.f32.mrb[0].mxu0
  %v4781 = vadd.f32 0.0, %v4780
  %v4782 = vpop.f32.mrb[0].mxu0
  %v4783 = vadd.f32 0.0, %v4782
  %4784 = vmatprep.mubr.bf16.mxu0 0
  %4785 = vmatmul.mubr.bf16.gmra.mrb[0].mxu0 %v271
  %v4786 = vpop.f32.mrb[0].mxu0
  %v4787 = vadd.f32 0.0, %v4786
  %v4788 = vpop.f32.mrb[0].mxu0
  %v4789 = vadd.f32 0.0, %v4788
  %v4790 = vpop.f32.mrb[0].mxu0
  %v4791 = vadd.f32 0.0, %v4790
  %v4792 = vpop.f32.mrb[0].mxu0
  %v4793 = vadd.f32 0.0, %v4792
  %4794 = vmatprep.mubr.bf16.mxu0 0
  %4795 = vmatmul.mubr.bf16.gmra.mrb[0].mxu0 %v272
  %v4796 = vpop.f32.mrb[0].mxu0
  %v4797 = vadd.f32 0.0, %v4796
  %v4798 = vpop.f32.mrb[0].mxu0
  %v4799 = vadd.f32 0.0, %v4798
  %v4800 = vpop.f32.mrb[0].mxu0
  %v4801 = vadd.f32 0.0, %v4800
  %v4802 = vpop.f32.mrb[0].mxu0
  %v4803 = vadd.f32 0.0, %v4802
  %4804 = vmatprep.mubr.bf16.mxu0 0
  %4805 = vmatmul.mubr.bf16.gmra.mrb[0].mxu0 %v273
  %v4806 = vpop.f32.mrb[0].mxu0
  %v4807 = vadd.f32 0.0, %v4806
  %v4808 = vpop.f32.mrb[0].mxu0
  %v4809 = vadd.f32 0.0, %v4808
  %v4810 = vpop.f32.mrb[0].mxu0
  %v4811 = vadd.f32 0.0, %v4810
  %v4812 = vpop.f32.mrb[0].mxu0
  %v4813 = vadd.f32 0.0, %v4812
  %4814 = vmatprep.mubr.bf16.mxu0 0
  %4815 = vmatmul.mubr.bf16.gmra.mrb[0].mxu0 %v274
  %v4816 = vpop.f32.mrb[0].mxu0
  %v4817 = vadd.f32 0.0, %v4816
  %v4818 = vpop.f32.mrb[0].mxu0
  %v4819 = vadd.f32 0.0, %v4818
  %v4820 = vpop.f32.mrb[0].mxu0
  %v4821 = vadd.f32 0.0, %v4820
  %v4822 = vpop.f32.mrb[0].mxu0
  %v4823 = vadd.f32 0.0, %v4822
  %4824 = vmatprep.mubr.bf16.mxu0 0
  %4825 = vmatmul.mubr.bf16.gmra.mrb[0].mxu0 %v275
  %v4826 = vpop.f32.mrb[0].mxu0
  %v4827 = vadd.f32 0.0, %v4826
  %v4828 = vpop.f32.mrb[0].mxu0
  %v4829 = vadd.f32 0.0, %v4828
  %v4830 = vpop.f32.mrb[0].mxu0
  %v4831 = vadd.f32 0.0, %v4830
  %v4832 = vpop.f32.mrb[0].mxu0
  %v4833 = vadd.f32 0.0, %v4832
  %4834 = vmatprep.mubr.bf16.mxu0 0
  %4835 = vmatmul.mubr.bf16.gmra.mrb[0].mxu0 %v276
  %v4836 = vpop.f32.mrb[0].mxu0
  %v4837 = vadd.f32 0.0, %v4836
  %v4838 = vpop.f32.mrb[0].mxu0
  %v4839 = vadd.f32 0.0, %v4838
  %v4840 = vpop.f32.mrb[0].mxu0
  %v4841 = vadd.f32 0.0, %v4840
  %v4842 = vpop.f32.mrb[0].mxu0
  %v4843 = vadd.f32 0.0, %v4842
  %4844 = vmatprep.mubr.bf16.mxu0 0
  %4845 = vmatmul.mubr.bf16.gmra.mrb[0].mxu0 %v277
  %v4846 = vpop.f32.mrb[0].mxu0
  %v4847 = vadd.f32 0.0, %v4846
  %v4848 = vpop.f32.mrb[0].mxu0
  %v4849 = vadd.f32 0.0, %v4848
  %v4850 = vpop.f32.mrb[0].mxu0
  %v4851 = vadd.f32 0.0, %v4850
  %v4852 = vpop.f32.mrb[0].mxu0
  %v4853 = vadd.f32 0.0, %v4852
  %4854 = vmatprep.mubr.bf16.mxu0 0
  %4855 = vmatmul.mubr.bf16.gmra.mrb[0].mxu0 %v278
  %v4856 = vpop.f32.mrb[0].mxu0
  %v4857 = vadd.f32 0.0, %v4856
  %v4858 = vpop.f32.mrb[0].mxu0
  %v4859 = vadd.f32 0.0, %v4858
  %v4860 = vpop.f32.mrb[0].mxu0
  %v4861 = vadd.f32 0.0, %v4860
  %v4862 = vpop.f32.mrb[0].mxu0
  %v4863 = vadd.f32 0.0, %v4862
  %4864 = vmatprep.mubr.bf16.mxu0 0
  %4865 = vmatmul.mubr.bf16.gmra.mrb[0].mxu0 %v279
  %v4866 = vpop.f32.mrb[0].mxu0
  %v4867 = vadd.f32 0.0, %v4866
  %v4868 = vpop.f32.mrb[0].mxu0
  %v4869 = vadd.f32 0.0, %v4868
  %v4870 = vpop.f32.mrb[0].mxu0
  %v4871 = vadd.f32 0.0, %v4870
  %v4872 = vpop.f32.mrb[0].mxu0
  %v4873 = vadd.f32 0.0, %v4872
  %4874 = vmatprep.mubr.bf16.mxu0 0
  %4875 = vmatmul.mubr.bf16.gmra.mrb[0].mxu0 %v280
  %v4876 = vpop.f32.mrb[0].mxu0
  %v4877 = vadd.f32 0.0, %v4876
  %v4878 = vpop.f32.mrb[0].mxu0
  %v4879 = vadd.f32 0.0, %v4878
  %v4880 = vpop.f32.mrb[0].mxu0
  %v4881 = vadd.f32 0.0, %v4880
  %v4882 = vpop.f32.mrb[0].mxu0
  %v4883 = vadd.f32 0.0, %v4882
  %4884 = vmatprep.mubr.bf16.mxu0 0
  %4885 = vmatmul.mubr.bf16.gmra.mrb[0].mxu0 %v281
  %v4886 = vpop.f32.mrb[0].mxu0
  %v4887 = vadd.f32 0.0, %v4886
  %v4888 = vpop.f32.mrb[0].mxu0
  %v4889 = vadd.f32 0.0, %v4888
  %v4890 = vpop.f32.mrb[0].mxu0
  %v4891 = vadd.f32 0.0, %v4890
  %v4892 = vpop.f32.mrb[0].mxu0
  %v4893 = vadd.f32 0.0, %v4892
  %4894 = vmatprep.mubr.bf16.mxu0 0
  %4895 = vmatmul.mubr.bf16.gmra.mrb[0].mxu0 %v282
  %v4896 = vpop.f32.mrb[0].mxu0
  %v4897 = vadd.f32 0.0, %v4896
  %v4898 = vpop.f32.mrb[0].mxu0
  %v4899 = vadd.f32 0.0, %v4898
  %v4900 = vpop.f32.mrb[0].mxu0
  %v4901 = vadd.f32 0.0, %v4900
  %v4902 = vpop.f32.mrb[0].mxu0
  %v4903 = vadd.f32 0.0, %v4902
  %4904 = vdwg.mxu0
  %v4905 = vmax.f32 %v4587, %v4667
  %v4906 = vmax.f32 %v4589, %v4669
  %v4907 = vmax.f32 %v4591, %v4671
  %v4908 = vmax.f32 %v4593, %v4673
  %v4909 = vmax.f32 %v4597, %v4677
  %v4910 = vmax.f32 %v4599, %v4679
  %v4911 = vmax.f32 %v4601, %v4681
  %v4912 = vmax.f32 %v4603, %v4683
  %v4913 = vmax.f32 %v4607, %v4687
  %v4914 = vmax.f32 %v4609, %v4689
  %v4915 = vmax.f32 %v4611, %v4691
  %v4916 = vmax.f32 %v4613, %v4693
  %v4917 = vmax.f32 %v4617, %v4697
  %v4918 = vmax.f32 %v4619, %v4699
  %v4919 = vmax.f32 %v4621, %v4701
  %v4920 = vmax.f32 %v4623, %v4703
  %v4921 = vmax.f32 %v4627, %v4707
  %v4922 = vmax.f32 %v4629, %v4709
  %v4923 = vmax.f32 %v4631, %v4711
  %v4924 = vmax.f32 %v4633, %v4713
  %v4925 = vmax.f32 %v4637, %v4717
  %v4926 = vmax.f32 %v4639, %v4719
  %v4927 = vmax.f32 %v4641, %v4721
  %v4928 = vmax.f32 %v4643, %v4723
  %v4929 = vmax.f32 %v4647, %v4727
  %v4930 = vmax.f32 %v4649, %v4729
  %v4931 = vmax.f32 %v4651, %v4731
  %v4932 = vmax.f32 %v4653, %v4733
  %v4933 = vmax.f32 %v4657, %v4737
  %v4934 = vmax.f32 %v4659, %v4739
  %v4935 = vmax.f32 %v4661, %v4741
  %v4936 = vmax.f32 %v4663, %v4743
  %v4937 = vmax.f32 %v4747, %v4827
  %v4938 = vmax.f32 %v4749, %v4829
  %v4939 = vmax.f32 %v4751, %v4831
  %v4940 = vmax.f32 %v4753, %v4833
  %v4941 = vmax.f32 %v4757, %v4837
  %v4942 = vmax.f32 %v4759, %v4839
  %v4943 = vmax.f32 %v4761, %v4841
  %v4944 = vmax.f32 %v4763, %v4843
  %v4945 = vmax.f32 %v4767, %v4847
  %v4946 = vmax.f32 %v4769, %v4849
  %v4947 = vmax.f32 %v4771, %v4851
  %v4948 = vmax.f32 %v4773, %v4853
  %v4949 = vmax.f32 %v4777, %v4857
  %v4950 = vmax.f32 %v4779, %v4859
  %v4951 = vmax.f32 %v4781, %v4861
  %v4952 = vmax.f32 %v4783, %v4863
  %v4953 = vmax.f32 %v4787, %v4867
  %v4954 = vmax.f32 %v4789, %v4869
  %v4955 = vmax.f32 %v4791, %v4871
  %v4956 = vmax.f32 %v4793, %v4873
  %v4957 = vmax.f32 %v4797, %v4877
  %v4958 = vmax.f32 %v4799, %v4879
  %v4959 = vmax.f32 %v4801, %v4881
  %v4960 = vmax.f32 %v4803, %v4883
  %v4961 = vmax.f32 %v4807, %v4887
  %v4962 = vmax.f32 %v4809, %v4889
  %v4963 = vmax.f32 %v4811, %v4891
  %v4964 = vmax.f32 %v4813, %v4893
  %v4965 = vmax.f32 %v4817, %v4897
  %v4966 = vmax.f32 %v4819, %v4899
  %v4967 = vmax.f32 %v4821, %v4901
  %v4968 = vmax.f32 %v4823, %v4903
  %v4969 = vmax.f32 %v4905, %v4937
  %v4970 = vmax.f32 %v4906, %v4938
  %v4971 = vmax.f32 %v4907, %v4939
  %v4972 = vmax.f32 %v4908, %v4940
  %v4973 = vmax.f32 %v4909, %v4941
  %v4974 = vmax.f32 %v4910, %v4942
  %v4975 = vmax.f32 %v4911, %v4943
  %v4976 = vmax.f32 %v4912, %v4944
  %v4977 = vmax.f32 %v4913, %v4945
  %v4978 = vmax.f32 %v4914, %v4946
  %v4979 = vmax.f32 %v4915, %v4947
  %v4980 = vmax.f32 %v4916, %v4948
  %v4981 = vmax.f32 %v4917, %v4949
  %v4982 = vmax.f32 %v4918, %v4950
  %v4983 = vmax.f32 %v4919, %v4951
  %v4984 = vmax.f32 %v4920, %v4952
  %v4985 = vmax.f32 %v4921, %v4953
  %v4986 = vmax.f32 %v4922, %v4954
  %v4987 = vmax.f32 %v4923, %v4955
  %v4988 = vmax.f32 %v4924, %v4956
  %v4989 = vmax.f32 %v4925, %v4957
  %v4990 = vmax.f32 %v4926, %v4958
  %v4991 = vmax.f32 %v4927, %v4959
  %v4992 = vmax.f32 %v4928, %v4960
  %v4993 = vmax.f32 %v4929, %v4961
  %v4994 = vmax.f32 %v4930, %v4962
  %v4995 = vmax.f32 %v4931, %v4963
  %v4996 = vmax.f32 %v4932, %v4964
  %v4997 = vmax.f32 %v4933, %v4965
  %v4998 = vmax.f32 %v4934, %v4966
  %v4999 = vmax.f32 %v4935, %v4967
  %v5000 = vmax.f32 %v4936, %v4968
  %v5001 = vadd.f32 %v4969, %v847
  %v5002 = vadd.f32 %v4970, %v847
  %v5003 = vadd.f32 %v4971, %v852
  %v5004 = vadd.f32 %v4972, %v852
  %v5005 = vadd.f32 %v4973, %v857
  %v5006 = vadd.f32 %v4974, %v857
  %v5007 = vadd.f32 %v4975, %v862
  %v5008 = vadd.f32 %v4976, %v862
  %v5009 = vadd.f32 %v4977, %v867
  %v5010 = vadd.f32 %v4978, %v867
  %v5011 = vadd.f32 %v4979, %v872
  %v5012 = vadd.f32 %v4980, %v872
  %v5013 = vadd.f32 %v4981, %v877
  %v5014 = vadd.f32 %v4982, %v877
  %v5015 = vadd.f32 %v4983, %v882
  %v5016 = vadd.f32 %v4984, %v882
  %v5017 = vadd.f32 %v4985, %v887
  %v5018 = vadd.f32 %v4986, %v887
  %v5019 = vadd.f32 %v4987, %v892
  %v5020 = vadd.f32 %v4988, %v892
  %v5021 = vadd.f32 %v4989, %v897
  %v5022 = vadd.f32 %v4990, %v897
  %v5023 = vadd.f32 %v4991, %v902
  %v5024 = vadd.f32 %v4992, %v902
  %v5025 = vadd.f32 %v4993, %v907
  %v5026 = vadd.f32 %v4994, %v907
  %v5027 = vadd.f32 %v4995, %v912
  %v5028 = vadd.f32 %v4996, %v912
  %v5029 = vadd.f32 %v4997, %v917
  %v5030 = vadd.f32 %v4998, %v917
  %v5031 = vadd.f32 %v4999, %v922
  %v5032 = vadd.f32 %v5000, %v922
  %v5033 = vmax.f32 %v5001, 0.0
  %v5034 = vmax.f32 %v5002, 0.0
  %v5035 = vmax.f32 %v5003, 0.0
  %v5036 = vmax.f32 %v5004, 0.0
  %v5037 = vmax.f32 %v5005, 0.0
  %v5038 = vmax.f32 %v5006, 0.0
  %v5039 = vmax.f32 %v5007, 0.0
  %v5040 = vmax.f32 %v5008, 0.0
  %v5041 = vmax.f32 %v5009, 0.0
  %v5042 = vmax.f32 %v5010, 0.0
  %v5043 = vmax.f32 %v5011, 0.0
  %v5044 = vmax.f32 %v5012, 0.0
  %v5045 = vmax.f32 %v5013, 0.0
  %v5046 = vmax.f32 %v5014, 0.0
  %v5047 = vmax.f32 %v5015, 0.0
  %v5048 = vmax.f32 %v5016, 0.0
  %v5049 = vmax.f32 %v5017, 0.0
  %v5050 = vmax.f32 %v5018, 0.0
  %v5051 = vmax.f32 %v5019, 0.0
  %v5052 = vmax.f32 %v5020, 0.0
  %v5053 = vmax.f32 %v5021, 0.0
  %v5054 = vmax.f32 %v5022, 0.0
  %v5055 = vmax.f32 %v5023, 0.0
  %v5056 = vmax.f32 %v5024, 0.0
  %v5057 = vmax.f32 %v5025, 0.0
  %v5058 = vmax.f32 %v5026, 0.0
  %v5059 = vmax.f32 %v5027, 0.0
  %v5060 = vmax.f32 %v5028, 0.0
  %v5061 = vmax.f32 %v5029, 0.0
  %v5062 = vmax.f32 %v5030, 0.0
  %v5063 = vmax.f32 %v5031, 0.0
  %v5064 = vmax.f32 %v5032, 0.0
  %s5065 = scalar_lea.vmem %s3, 48
  %v5066 = vld [vmem:[%s5065] sm:$0xf]
  %v5067 = vld [vmem:[%s5065 + $0x4] sm:$0xf]
  %v5068 = vpack.c.bf16 %v5035, %v5033
  %v5069 = vpack.c.bf16 %v5036, %v5034
  %v5070 = vpack.c.bf16 %v5039, %v5037
  %v5071 = vpack.c.bf16 %v5040, %v5038
  %v5072 = vpack.c.bf16 %v5043, %v5041
  %v5073 = vpack.c.bf16 %v5044, %v5042
  %v5074 = vpack.c.bf16 %v5047, %v5045
  %v5075 = vpack.c.bf16 %v5048, %v5046
  %v5076 = vpack.c.bf16 %v5051, %v5049
  %v5077 = vpack.c.bf16 %v5052, %v5050
  %v5078 = vpack.c.bf16 %v5055, %v5053
  %v5079 = vpack.c.bf16 %v5056, %v5054
  %v5080 = vpack.c.bf16 %v5059, %v5057
  %v5081 = vpack.c.bf16 %v5060, %v5058
  %v5082 = vpack.c.bf16 %v5063, %v5061
  %v5083 = vpack.c.bf16 %v5064, %v5062
  %v5086 = vunpack.c.l.b16 %v5066
  %v5087 = vunpack.c.l.b16 %v5067
  %v5088 = vpack.c.b16 %v5087, %v5086
  %5090 = vmatprep.subr.bf16.mxu0 %v5069
  %5091 = vmatpush1.bf16.msra.mxu0 %v5068
  %5092 = vmatprep.subr.bf16.mxu0 %v5071
  %5093 = vmatpush1.bf16.msra.mxu0 %v5070
  %5094 = vmatprep.subr.bf16.mxu0 %v5073
  %5095 = vmatpush1.bf16.msra.mxu0 %v5072
  %5096 = vmatprep.subr.bf16.mxu0 %v5075
  %5097 = vmatpush1.bf16.msra.mxu0 %v5074
  %5098 = vmatprep.subr.bf16.mxu0 %v5077
  %5099 = vmatpush1.bf16.msra.mxu0 %v5076
  %5100 = vmatprep.subr.bf16.mxu0 %v5079
  %5101 = vmatpush1.bf16.msra.mxu0 %v5078
  %5102 = vmatprep.subr.bf16.mxu0 %v5081
  %5103 = vmatpush1.bf16.msra.mxu0 %v5080
  %5104 = vmatprep.subr.bf16.mxu0 %v5083
  %5105 = vmatpush1.bf16.msra.mxu0 %v5082
  %5106 = vmatprep.subr.bf16.mxu0 0
  %5107 = vmatpush1.bf16.msra.mxu0 0
  %5108 = vmatprep.subr.bf16.mxu0 0
  %5109 = vmatpush1.bf16.msra.mxu0 0
  %5110 = vmatprep.subr.bf16.mxu0 0
  %5111 = vmatpush1.bf16.msra.mxu0 0
  %5112 = vmatprep.subr.bf16.mxu0 0
  %5113 = vmatpush1.bf16.msra.mxu0 0
  %5114 = vmatprep.subr.bf16.mxu0 0
  %5115 = vmatpush1.bf16.msra.mxu0 0
  %5116 = vmatprep.subr.bf16.mxu0 0
  %5117 = vmatpush1.bf16.msra.mxu0 0
  %5118 = vmatprep.subr.bf16.mxu0 0
  %5119 = vmatpush1.bf16.msra.mxu0 0
  %5120 = vmatprep.subr.bf16.mxu0 0
  %5121 = vmatpush1.bf16.msra.mxu0 0
  %5122 = vmatprep.mubr.bf16.mxu0 0
  %5123 = vmatmul.mubr.bf16.gmra.mrb[0].mxu0 %v5088
  %v5124 = vpop.f32.mrb[0].mxu0
  %v5125 = vadd.f32 0.0, %v5124
  %v5126 = vpop.f32.mrb[0].mxu0
  %v5127 = vadd.f32 0.0, %v5126
  %v5128 = vpop.f32.mrb[0].mxu0
  %v5129 = vadd.f32 0.0, %v5128
  %v5130 = vpop.f32.mrb[0].mxu0
  %v5131 = vadd.f32 0.0, %v5130
  %5132 = vdwg.mxu0
  %v5133 = vadd.f32 %v4452, %v5125
  %v5134 = vadd.f32 %v4453, %v5127
  %v5135 = vadd.f32 %v4454, %v5129
  %v5136 = vadd.f32 %v4455, %v5131
  %v5137 = vld [vmem:[%s0 + $0x1c0] sm:$0xff]
  %v5138 = vld [vmem:[%s0 + $0x1c8] sm:$0xff]
  %v5139 = vld [vmem:[%s0 + $0x1d0] sm:$0xff]
  %v5140 = vld [vmem:[%s0 + $0x1d8] sm:$0xff]
  %v5141 = vld [vmem:[%s0 + $0x1e0] sm:$0xff]
  %v5142 = vld [vmem:[%s0 + $0x1e8] sm:$0xff]
  %v5143 = vld [vmem:[%s0 + $0x1f0] sm:$0xff]
  %v5144 = vld [vmem:[%s0 + $0x1f8] sm:$0xff]
  %v5145 = vld [vmem:[%s0 + $0x200] sm:$0xff]
  %v5146 = vld [vmem:[%s0 + $0x208] sm:$0xff]
  %v5147 = vld [vmem:[%s0 + $0x210] sm:$0xff]
  %v5148 = vld [vmem:[%s0 + $0x218] sm:$0xff]
  %v5149 = vld [vmem:[%s0 + $0x220] sm:$0xff]
  %v5150 = vld [vmem:[%s0 + $0x228] sm:$0xff]
  %v5151 = vld [vmem:[%s0 + $0x230] sm:$0xff]
  %v5152 = vld [vmem:[%s0 + $0x238] sm:$0xff]
  %v5169 = vunpack.c.l.b16 %v5137
  %v5170 = vunpack.c.h.b16 %v5137
  %v5171 = vunpack.c.l.b16 %v5138
  %v5172 = vunpack.c.h.b16 %v5138
  %v5173 = vunpack.c.l.b16 %v5139
  %v5174 = vunpack.c.h.b16 %v5139
  %v5175 = vunpack.c.l.b16 %v5140
  %v5176 = vunpack.c.h.b16 %v5140
  %v5177 = vunpack.c.l.b16 %v5141
  %v5178 = vunpack.c.h.b16 %v5141
  %v5179 = vunpack.c.l.b16 %v5142
  %v5180 = vunpack.c.h.b16 %v5142
  %v5181 = vunpack.c.l.b16 %v5143
  %v5182 = vunpack.c.h.b16 %v5143
  %v5183 = vunpack.c.l.b16 %v5144
  %v5184 = vunpack.c.h.b16 %v5144
  %v5185 = vunpack.c.l.b16 %v5145
  %v5186 = vunpack.c.h.b16 %v5145
  %v5187 = vunpack.c.l.b16 %v5146
  %v5188 = vunpack.c.h.b16 %v5146
  %v5189 = vunpack.c.l.b16 %v5147
  %v5190 = vunpack.c.h.b16 %v5147
  %v5191 = vunpack.c.l.b16 %v5148
  %v5192 = vunpack.c.h.b16 %v5148
  %v5193 = vunpack.c.l.b16 %v5149
  %v5194 = vunpack.c.h.b16 %v5149
  %v5195 = vunpack.c.l.b16 %v5150
  %v5196 = vunpack.c.h.b16 %v5150
  %v5197 = vunpack.c.l.b16 %v5151
  %v5198 = vunpack.c.h.b16 %v5151
  %v5199 = vunpack.c.l.b16 %v5152
  %v5200 = vunpack.c.h.b16 %v5152
  %v5201 = vpack.c.b16 %v5171, %v5169
  %v5202 = vpack.c.b16 %v5172, %v5170
  %v5203 = vpack.c.b16 %v5175, %v5173
  %v5204 = vpack.c.b16 %v5176, %v5174
  %v5205 = vpack.c.b16 %v5179, %v5177
  %v5206 = vpack.c.b16 %v5180, %v5178
  %v5207 = vpack.c.b16 %v5183, %v5181
  %v5208 = vpack.c.b16 %v5184, %v5182
  %v5209 = vpack.c.b16 %v5187, %v5185
  %v5210 = vpack.c.b16 %v5188, %v5186
  %v5211 = vpack.c.b16 %v5191, %v5189
  %v5212 = vpack.c.b16 %v5192, %v5190
  %v5213 = vpack.c.b16 %v5195, %v5193
  %v5214 = vpack.c.b16 %v5196, %v5194
  %v5215 = vpack.c.b16 %v5199, %v5197
  %v5216 = vpack.c.b16 %v5200, %v5198
  %5233 = vmatprep.subr.bf16.mxu0 %v5202
  %5234 = vmatpush1.bf16.msra.mxu0 %v5201
  %5235 = vmatprep.subr.bf16.mxu0 %v5204
  %5236 = vmatpush1.bf16.msra.mxu0 %v5203
  %5237 = vmatprep.subr.bf16.mxu0 %v5206
  %5238 = vmatpush1.bf16.msra.mxu0 %v5205
  %5239 = vmatprep.subr.bf16.mxu0 %v5208
  %5240 = vmatpush1.bf16.msra.mxu0 %v5207
  %5241 = vmatprep.subr.bf16.mxu0 %v5210
  %5242 = vmatpush1.bf16.msra.mxu0 %v5209
  %5243 = vmatprep.subr.bf16.mxu0 %v5212
  %5244 = vmatpush1.bf16.msra.mxu0 %v5211
  %5245 = vmatprep.subr.bf16.mxu0 %v5214
  %5246 = vmatpush1.bf16.msra.mxu0 %v5213
  %5247 = vmatprep.subr.bf16.mxu0 %v5216
  %5248 = vmatpush1.bf16.msra.mxu0 %v5215
  %5249 = vmatprep.subr.bf16.mxu0 0
  %5250 = vmatpush1.bf16.msra.mxu0 0
  %5251 = vmatprep.subr.bf16.mxu0 0
  %5252 = vmatpush1.bf16.msra.mxu0 0
  %5253 = vmatprep.subr.bf16.mxu0 0
  %5254 = vmatpush1.bf16.msra.mxu0 0
  %5255 = vmatprep.subr.bf16.mxu0 0
  %5256 = vmatpush1.bf16.msra.mxu0 0
  %5257 = vmatprep.subr.bf16.mxu0 0
  %5258 = vmatpush1.bf16.msra.mxu0 0
  %5259 = vmatprep.subr.bf16.mxu0 0
  %5260 = vmatpush1.bf16.msra.mxu0 0
  %5261 = vmatprep.subr.bf16.mxu0 0
  %5262 = vmatpush1.bf16.msra.mxu0 0
  %5263 = vmatprep.subr.bf16.mxu0 0
  %5264 = vmatpush1.bf16.msra.mxu0 0
  %5265 = vmatprep.mubr.bf16.mxu0 0
  %5266 = vmatmul.mubr.bf16.gmra.mrb[0].mxu0 %v251
  %v5267 = vpop.f32.mrb[0].mxu0
  %v5268 = vadd.f32 0.0, %v5267
  %v5269 = vpop.f32.mrb[0].mxu0
  %v5270 = vadd.f32 0.0, %v5269
  %v5271 = vpop.f32.mrb[0].mxu0
  %v5272 = vadd.f32 0.0, %v5271
  %v5273 = vpop.f32.mrb[0].mxu0
  %v5274 = vadd.f32 0.0, %v5273
  %5275 = vmatprep.mubr.bf16.mxu0 0
  %5276 = vmatmul.mubr.bf16.gmra.mrb[0].mxu0 %v252
  %v5277 = vpop.f32.mrb[0].mxu0
  %v5278 = vadd.f32 0.0, %v5277
  %v5279 = vpop.f32.mrb[0].mxu0
  %v5280 = vadd.f32 0.0, %v5279
  %v5281 = vpop.f32.mrb[0].mxu0
  %v5282 = vadd.f32 0.0, %v5281
  %v5283 = vpop.f32.mrb[0].mxu0
  %v5284 = vadd.f32 0.0, %v5283
  %5285 = vmatprep.mubr.bf16.mxu0 0
  %5286 = vmatmul.mubr.bf16.gmra.mrb[0].mxu0 %v253
  %v5287 = vpop.f32.mrb[0].mxu0
  %v5288 = vadd.f32 0.0, %v5287
  %v5289 = vpop.f32.mrb[0].mxu0
  %v5290 = vadd.f32 0.0, %v5289
  %v5291 = vpop.f32.mrb[0].mxu0
  %v5292 = vadd.f32 0.0, %v5291
  %v5293 = vpop.f32.mrb[0].mxu0
  %v5294 = vadd.f32 0.0, %v5293
  %5295 = vmatprep.mubr.bf16.mxu0 0
  %5296 = vmatmul.mubr.bf16.gmra.mrb[0].mxu0 %v254
  %v5297 = vpop.f32.mrb[0].mxu0
  %v5298 = vadd.f32 0.0, %v5297
  %v5299 = vpop.f32.mrb[0].mxu0
  %v5300 = vadd.f32 0.0, %v5299
  %v5301 = vpop.f32.mrb[0].mxu0
  %v5302 = vadd.f32 0.0, %v5301
  %v5303 = vpop.f32.mrb[0].mxu0
  %v5304 = vadd.f32 0.0, %v5303
  %5305 = vmatprep.mubr.bf16.mxu0 0
  %5306 = vmatmul.mubr.bf16.gmra.mrb[0].mxu0 %v255
  %v5307 = vpop.f32.mrb[0].mxu0
  %v5308 = vadd.f32 0.0, %v5307
  %v5309 = vpop.f32.mrb[0].mxu0
  %v5310 = vadd.f32 0.0, %v5309
  %v5311 = vpop.f32.mrb[0].mxu0
  %v5312 = vadd.f32 0.0, %v5311
  %v5313 = vpop.f32.mrb[0].mxu0
  %v5314 = vadd.f32 0.0, %v5313
  %5315 = vmatprep.mubr.bf16.mxu0 0
  %5316 = vmatmul.mubr.bf16.gmra.mrb[0].mxu0 %v256
  %v5317 = vpop.f32.mrb[0].mxu0
  %v5318 = vadd.f32 0.0, %v5317
  %v5319 = vpop.f32.mrb[0].mxu0
  %v5320 = vadd.f32 0.0, %v5319
  %v5321 = vpop.f32.mrb[0].mxu0
  %v5322 = vadd.f32 0.0, %v5321
  %v5323 = vpop.f32.mrb[0].mxu0
  %v5324 = vadd.f32 0.0, %v5323
  %5325 = vmatprep.mubr.bf16.mxu0 0
  %5326 = vmatmul.mubr.bf16.gmra.mrb[0].mxu0 %v257
  %v5327 = vpop.f32.mrb[0].mxu0
  %v5328 = vadd.f32 0.0, %v5327
  %v5329 = vpop.f32.mrb[0].mxu0
  %v5330 = vadd.f32 0.0, %v5329
  %v5331 = vpop.f32.mrb[0].mxu0
  %v5332 = vadd.f32 0.0, %v5331
  %v5333 = vpop.f32.mrb[0].mxu0
  %v5334 = vadd.f32 0.0, %v5333
  %5335 = vmatprep.mubr.bf16.mxu0 0
  %5336 = vmatmul.mubr.bf16.gmra.mrb[0].mxu0 %v258
  %v5337 = vpop.f32.mrb[0].mxu0
  %v5338 = vadd.f32 0.0, %v5337
  %v5339 = vpop.f32.mrb[0].mxu0
  %v5340 = vadd.f32 0.0, %v5339
  %v5341 = vpop.f32.mrb[0].mxu0
  %v5342 = vadd.f32 0.0, %v5341
  %v5343 = vpop.f32.mrb[0].mxu0
  %v5344 = vadd.f32 0.0, %v5343
  %5345 = vmatprep.mubr.bf16.mxu0 0
  %5346 = vmatmul.mubr.bf16.gmra.mrb[0].mxu0 %v259
  %v5347 = vpop.f32.mrb[0].mxu0
  %v5348 = vadd.f32 0.0, %v5347
  %v5349 = vpop.f32.mrb[0].mxu0
  %v5350 = vadd.f32 0.0, %v5349
  %v5351 = vpop.f32.mrb[0].mxu0
  %v5352 = vadd.f32 0.0, %v5351
  %v5353 = vpop.f32.mrb[0].mxu0
  %v5354 = vadd.f32 0.0, %v5353
  %5355 = vmatprep.mubr.bf16.mxu0 0
  %5356 = vmatmul.mubr.bf16.gmra.mrb[0].mxu0 %v260
  %v5357 = vpop.f32.mrb[0].mxu0
  %v5358 = vadd.f32 0.0, %v5357
  %v5359 = vpop.f32.mrb[0].mxu0
  %v5360 = vadd.f32 0.0, %v5359
  %v5361 = vpop.f32.mrb[0].mxu0
  %v5362 = vadd.f32 0.0, %v5361
  %v5363 = vpop.f32.mrb[0].mxu0
  %v5364 = vadd.f32 0.0, %v5363
  %5365 = vmatprep.mubr.bf16.mxu0 0
  %5366 = vmatmul.mubr.bf16.gmra.mrb[0].mxu0 %v261
  %v5367 = vpop.f32.mrb[0].mxu0
  %v5368 = vadd.f32 0.0, %v5367
  %v5369 = vpop.f32.mrb[0].mxu0
  %v5370 = vadd.f32 0.0, %v5369
  %v5371 = vpop.f32.mrb[0].mxu0
  %v5372 = vadd.f32 0.0, %v5371
  %v5373 = vpop.f32.mrb[0].mxu0
  %v5374 = vadd.f32 0.0, %v5373
  %5375 = vmatprep.mubr.bf16.mxu0 0
  %5376 = vmatmul.mubr.bf16.gmra.mrb[0].mxu0 %v262
  %v5377 = vpop.f32.mrb[0].mxu0
  %v5378 = vadd.f32 0.0, %v5377
  %v5379 = vpop.f32.mrb[0].mxu0
  %v5380 = vadd.f32 0.0, %v5379
  %v5381 = vpop.f32.mrb[0].mxu0
  %v5382 = vadd.f32 0.0, %v5381
  %v5383 = vpop.f32.mrb[0].mxu0
  %v5384 = vadd.f32 0.0, %v5383
  %5385 = vmatprep.mubr.bf16.mxu0 0
  %5386 = vmatmul.mubr.bf16.gmra.mrb[0].mxu0 %v263
  %v5387 = vpop.f32.mrb[0].mxu0
  %v5388 = vadd.f32 0.0, %v5387
  %v5389 = vpop.f32.mrb[0].mxu0
  %v5390 = vadd.f32 0.0, %v5389
  %v5391 = vpop.f32.mrb[0].mxu0
  %v5392 = vadd.f32 0.0, %v5391
  %v5393 = vpop.f32.mrb[0].mxu0
  %v5394 = vadd.f32 0.0, %v5393
  %5395 = vmatprep.mubr.bf16.mxu0 0
  %5396 = vmatmul.mubr.bf16.gmra.mrb[0].mxu0 %v264
  %v5397 = vpop.f32.mrb[0].mxu0
  %v5398 = vadd.f32 0.0, %v5397
  %v5399 = vpop.f32.mrb[0].mxu0
  %v5400 = vadd.f32 0.0, %v5399
  %v5401 = vpop.f32.mrb[0].mxu0
  %v5402 = vadd.f32 0.0, %v5401
  %v5403 = vpop.f32.mrb[0].mxu0
  %v5404 = vadd.f32 0.0, %v5403
  %5405 = vmatprep.mubr.bf16.mxu0 0
  %5406 = vmatmul.mubr.bf16.gmra.mrb[0].mxu0 %v265
  %v5407 = vpop.f32.mrb[0].mxu0
  %v5408 = vadd.f32 0.0, %v5407
  %v5409 = vpop.f32.mrb[0].mxu0
  %v5410 = vadd.f32 0.0, %v5409
  %v5411 = vpop.f32.mrb[0].mxu0
  %v5412 = vadd.f32 0.0, %v5411
  %v5413 = vpop.f32.mrb[0].mxu0
  %v5414 = vadd.f32 0.0, %v5413
  %5415 = vmatprep.mubr.bf16.mxu0 0
  %5416 = vmatmul.mubr.bf16.gmra.mrb[0].mxu0 %v266
  %v5417 = vpop.f32.mrb[0].mxu0
  %v5418 = vadd.f32 0.0, %v5417
  %v5419 = vpop.f32.mrb[0].mxu0
  %v5420 = vadd.f32 0.0, %v5419
  %v5421 = vpop.f32.mrb[0].mxu0
  %v5422 = vadd.f32 0.0, %v5421
  %v5423 = vpop.f32.mrb[0].mxu0
  %v5424 = vadd.f32 0.0, %v5423
  %5425 = vmatprep.mubr.bf16.mxu0 0
  %5426 = vmatmul.mubr.bf16.gmra.mrb[0].mxu0 %v267
  %v5427 = vpop.f32.mrb[0].mxu0
  %v5428 = vadd.f32 0.0, %v5427
  %v5429 = vpop.f32.mrb[0].mxu0
  %v5430 = vadd.f32 0.0, %v5429
  %v5431 = vpop.f32.mrb[0].mxu0
  %v5432 = vadd.f32 0.0, %v5431
  %v5433 = vpop.f32.mrb[0].mxu0
  %v5434 = vadd.f32 0.0, %v5433
  %5435 = vmatprep.mubr.bf16.mxu0 0
  %5436 = vmatmul.mubr.bf16.gmra.mrb[0].mxu0 %v268
  %v5437 = vpop.f32.mrb[0].mxu0
  %v5438 = vadd.f32 0.0, %v5437
  %v5439 = vpop.f32.mrb[0].mxu0
  %v5440 = vadd.f32 0.0, %v5439
  %v5441 = vpop.f32.mrb[0].mxu0
  %v5442 = vadd.f32 0.0, %v5441
  %v5443 = vpop.f32.mrb[0].mxu0
  %v5444 = vadd.f32 0.0, %v5443
  %5445 = vmatprep.mubr.bf16.mxu0 0
  %5446 = vmatmul.mubr.bf16.gmra.mrb[0].mxu0 %v269
  %v5447 = vpop.f32.mrb[0].mxu0
  %v5448 = vadd.f32 0.0, %v5447
  %v5449 = vpop.f32.mrb[0].mxu0
  %v5450 = vadd.f32 0.0, %v5449
  %v5451 = vpop.f32.mrb[0].mxu0
  %v5452 = vadd.f32 0.0, %v5451
  %v5453 = vpop.f32.mrb[0].mxu0
  %v5454 = vadd.f32 0.0, %v5453
  %5455 = vmatprep.mubr.bf16.mxu0 0
  %5456 = vmatmul.mubr.bf16.gmra.mrb[0].mxu0 %v270
  %v5457 = vpop.f32.mrb[0].mxu0
  %v5458 = vadd.f32 0.0, %v5457
  %v5459 = vpop.f32.mrb[0].mxu0
  %v5460 = vadd.f32 0.0, %v5459
  %v5461 = vpop.f32.mrb[0].mxu0
  %v5462 = vadd.f32 0.0, %v5461
  %v5463 = vpop.f32.mrb[0].mxu0
  %v5464 = vadd.f32 0.0, %v5463
  %5465 = vmatprep.mubr.bf16.mxu0 0
  %5466 = vmatmul.mubr.bf16.gmra.mrb[0].mxu0 %v271
  %v5467 = vpop.f32.mrb[0].mxu0
  %v5468 = vadd.f32 0.0, %v5467
  %v5469 = vpop.f32.mrb[0].mxu0
  %v5470 = vadd.f32 0.0, %v5469
  %v5471 = vpop.f32.mrb[0].mxu0
  %v5472 = vadd.f32 0.0, %v5471
  %v5473 = vpop.f32.mrb[0].mxu0
  %v5474 = vadd.f32 0.0, %v5473
  %5475 = vmatprep.mubr.bf16.mxu0 0
  %5476 = vmatmul.mubr.bf16.gmra.mrb[0].mxu0 %v272
  %v5477 = vpop.f32.mrb[0].mxu0
  %v5478 = vadd.f32 0.0, %v5477
  %v5479 = vpop.f32.mrb[0].mxu0
  %v5480 = vadd.f32 0.0, %v5479
  %v5481 = vpop.f32.mrb[0].mxu0
  %v5482 = vadd.f32 0.0, %v5481
  %v5483 = vpop.f32.mrb[0].mxu0
  %v5484 = vadd.f32 0.0, %v5483
  %5485 = vmatprep.mubr.bf16.mxu0 0
  %5486 = vmatmul.mubr.bf16.gmra.mrb[0].mxu0 %v273
  %v5487 = vpop.f32.mrb[0].mxu0
  %v5488 = vadd.f32 0.0, %v5487
  %v5489 = vpop.f32.mrb[0].mxu0
  %v5490 = vadd.f32 0.0, %v5489
  %v5491 = vpop.f32.mrb[0].mxu0
  %v5492 = vadd.f32 0.0, %v5491
  %v5493 = vpop.f32.mrb[0].mxu0
  %v5494 = vadd.f32 0.0, %v5493
  %5495 = vmatprep.mubr.bf16.mxu0 0
  %5496 = vmatmul.mubr.bf16.gmra.mrb[0].mxu0 %v274
  %v5497 = vpop.f32.mrb[0].mxu0
  %v5498 = vadd.f32 0.0, %v5497
  %v5499 = vpop.f32.mrb[0].mxu0
  %v5500 = vadd.f32 0.0, %v5499
  %v5501 = vpop.f32.mrb[0].mxu0
  %v5502 = vadd.f32 0.0, %v5501
  %v5503 = vpop.f32.mrb[0].mxu0
  %v5504 = vadd.f32 0.0, %v5503
  %5505 = vmatprep.mubr.bf16.mxu0 0
  %5506 = vmatmul.mubr.bf16.gmra.mrb[0].mxu0 %v275
  %v5507 = vpop.f32.mrb[0].mxu0
  %v5508 = vadd.f32 0.0, %v5507
  %v5509 = vpop.f32.mrb[0].mxu0
  %v5510 = vadd.f32 0.0, %v5509
  %v5511 = vpop.f32.mrb[0].mxu0
  %v5512 = vadd.f32 0.0, %v5511
  %v5513 = vpop.f32.mrb[0].mxu0
  %v5514 = vadd.f32 0.0, %v5513
  %5515 = vmatprep.mubr.bf16.mxu0 0
  %5516 = vmatmul.mubr.bf16.gmra.mrb[0].mxu0 %v276
  %v5517 = vpop.f32.mrb[0].mxu0
  %v5518 = vadd.f32 0.0, %v5517
  %v5519 = vpop.f32.mrb[0].mxu0
  %v5520 = vadd.f32 0.0, %v5519
  %v5521 = vpop.f32.mrb[0].mxu0
  %v5522 = vadd.f32 0.0, %v5521
  %v5523 = vpop.f32.mrb[0].mxu0
  %v5524 = vadd.f32 0.0, %v5523
  %5525 = vmatprep.mubr.bf16.mxu0 0
  %5526 = vmatmul.mubr.bf16.gmra.mrb[0].mxu0 %v277
  %v5527 = vpop.f32.mrb[0].mxu0
  %v5528 = vadd.f32 0.0, %v5527
  %v5529 = vpop.f32.mrb[0].mxu0
  %v5530 = vadd.f32 0.0, %v5529
  %v5531 = vpop.f32.mrb[0].mxu0
  %v5532 = vadd.f32 0.0, %v5531
  %v5533 = vpop.f32.mrb[0].mxu0
  %v5534 = vadd.f32 0.0, %v5533
  %5535 = vmatprep.mubr.bf16.mxu0 0
  %5536 = vmatmul.mubr.bf16.gmra.mrb[0].mxu0 %v278
  %v5537 = vpop.f32.mrb[0].mxu0
  %v5538 = vadd.f32 0.0, %v5537
  %v5539 = vpop.f32.mrb[0].mxu0
  %v5540 = vadd.f32 0.0, %v5539
  %v5541 = vpop.f32.mrb[0].mxu0
  %v5542 = vadd.f32 0.0, %v5541
  %v5543 = vpop.f32.mrb[0].mxu0
  %v5544 = vadd.f32 0.0, %v5543
  %5545 = vmatprep.mubr.bf16.mxu0 0
  %5546 = vmatmul.mubr.bf16.gmra.mrb[0].mxu0 %v279
  %v5547 = vpop.f32.mrb[0].mxu0
  %v5548 = vadd.f32 0.0, %v5547
  %v5549 = vpop.f32.mrb[0].mxu0
  %v5550 = vadd.f32 0.0, %v5549
  %v5551 = vpop.f32.mrb[0].mxu0
  %v5552 = vadd.f32 0.0, %v5551
  %v5553 = vpop.f32.mrb[0].mxu0
  %v5554 = vadd.f32 0.0, %v5553
  %5555 = vmatprep.mubr.bf16.mxu0 0
  %5556 = vmatmul.mubr.bf16.gmra.mrb[0].mxu0 %v280
  %v5557 = vpop.f32.mrb[0].mxu0
  %v5558 = vadd.f32 0.0, %v5557
  %v5559 = vpop.f32.mrb[0].mxu0
  %v5560 = vadd.f32 0.0, %v5559
  %v5561 = vpop.f32.mrb[0].mxu0
  %v5562 = vadd.f32 0.0, %v5561
  %v5563 = vpop.f32.mrb[0].mxu0
  %v5564 = vadd.f32 0.0, %v5563
  %5565 = vmatprep.mubr.bf16.mxu0 0
  %5566 = vmatmul.mubr.bf16.gmra.mrb[0].mxu0 %v281
  %v5567 = vpop.f32.mrb[0].mxu0
  %v5568 = vadd.f32 0.0, %v5567
  %v5569 = vpop.f32.mrb[0].mxu0
  %v5570 = vadd.f32 0.0, %v5569
  %v5571 = vpop.f32.mrb[0].mxu0
  %v5572 = vadd.f32 0.0, %v5571
  %v5573 = vpop.f32.mrb[0].mxu0
  %v5574 = vadd.f32 0.0, %v5573
  %5575 = vmatprep.mubr.bf16.mxu0 0
  %5576 = vmatmul.mubr.bf16.gmra.mrb[0].mxu0 %v282
  %v5577 = vpop.f32.mrb[0].mxu0
  %v5578 = vadd.f32 0.0, %v5577
  %v5579 = vpop.f32.mrb[0].mxu0
  %v5580 = vadd.f32 0.0, %v5579
  %v5581 = vpop.f32.mrb[0].mxu0
  %v5582 = vadd.f32 0.0, %v5581
  %v5583 = vpop.f32.mrb[0].mxu0
  %v5584 = vadd.f32 0.0, %v5583
  %5585 = vdwg.mxu0
  %v5586 = vmax.f32 %v5268, %v5348
  %v5587 = vmax.f32 %v5270, %v5350
  %v5588 = vmax.f32 %v5272, %v5352
  %v5589 = vmax.f32 %v5274, %v5354
  %v5590 = vmax.f32 %v5278, %v5358
  %v5591 = vmax.f32 %v5280, %v5360
  %v5592 = vmax.f32 %v5282, %v5362
  %v5593 = vmax.f32 %v5284, %v5364
  %v5594 = vmax.f32 %v5288, %v5368
  %v5595 = vmax.f32 %v5290, %v5370
  %v5596 = vmax.f32 %v5292, %v5372
  %v5597 = vmax.f32 %v5294, %v5374
  %v5598 = vmax.f32 %v5298, %v5378
  %v5599 = vmax.f32 %v5300, %v5380
  %v5600 = vmax.f32 %v5302, %v5382
  %v5601 = vmax.f32 %v5304, %v5384
  %v5602 = vmax.f32 %v5308, %v5388
  %v5603 = vmax.f32 %v5310, %v5390
  %v5604 = vmax.f32 %v5312, %v5392
  %v5605 = vmax.f32 %v5314, %v5394
  %v5606 = vmax.f32 %v5318, %v5398
  %v5607 = vmax.f32 %v5320, %v5400
  %v5608 = vmax.f32 %v5322, %v5402
  %v5609 = vmax.f32 %v5324, %v5404
  %v5610 = vmax.f32 %v5328, %v5408
  %v5611 = vmax.f32 %v5330, %v5410
  %v5612 = vmax.f32 %v5332, %v5412
  %v5613 = vmax.f32 %v5334, %v5414
  %v5614 = vmax.f32 %v5338, %v5418
  %v5615 = vmax.f32 %v5340, %v5420
  %v5616 = vmax.f32 %v5342, %v5422
  %v5617 = vmax.f32 %v5344, %v5424
  %v5618 = vmax.f32 %v5428, %v5508
  %v5619 = vmax.f32 %v5430, %v5510
  %v5620 = vmax.f32 %v5432, %v5512
  %v5621 = vmax.f32 %v5434, %v5514
  %v5622 = vmax.f32 %v5438, %v5518
  %v5623 = vmax.f32 %v5440, %v5520
  %v5624 = vmax.f32 %v5442, %v5522
  %v5625 = vmax.f32 %v5444, %v5524
  %v5626 = vmax.f32 %v5448, %v5528
  %v5627 = vmax.f32 %v5450, %v5530
  %v5628 = vmax.f32 %v5452, %v5532
  %v5629 = vmax.f32 %v5454, %v5534
  %v5630 = vmax.f32 %v5458, %v5538
  %v5631 = vmax.f32 %v5460, %v5540
  %v5632 = vmax.f32 %v5462, %v5542
  %v5633 = vmax.f32 %v5464, %v5544
  %v5634 = vmax.f32 %v5468, %v5548
  %v5635 = vmax.f32 %v5470, %v5550
  %v5636 = vmax.f32 %v5472, %v5552
  %v5637 = vmax.f32 %v5474, %v5554
  %v5638 = vmax.f32 %v5478, %v5558
  %v5639 = vmax.f32 %v5480, %v5560
  %v5640 = vmax.f32 %v5482, %v5562
  %v5641 = vmax.f32 %v5484, %v5564
  %v5642 = vmax.f32 %v5488, %v5568
  %v5643 = vmax.f32 %v5490, %v5570
  %v5644 = vmax.f32 %v5492, %v5572
  %v5645 = vmax.f32 %v5494, %v5574
  %v5646 = vmax.f32 %v5498, %v5578
  %v5647 = vmax.f32 %v5500, %v5580
  %v5648 = vmax.f32 %v5502, %v5582
  %v5649 = vmax.f32 %v5504, %v5584
  %v5650 = vmax.f32 %v5586, %v5618
  %v5651 = vmax.f32 %v5587, %v5619
  %v5652 = vmax.f32 %v5588, %v5620
  %v5653 = vmax.f32 %v5589, %v5621
  %v5654 = vmax.f32 %v5590, %v5622
  %v5655 = vmax.f32 %v5591, %v5623
  %v5656 = vmax.f32 %v5592, %v5624
  %v5657 = vmax.f32 %v5593, %v5625
  %v5658 = vmax.f32 %v5594, %v5626
  %v5659 = vmax.f32 %v5595, %v5627
  %v5660 = vmax.f32 %v5596, %v5628
  %v5661 = vmax.f32 %v5597, %v5629
  %v5662 = vmax.f32 %v5598, %v5630
  %v5663 = vmax.f32 %v5599, %v5631
  %v5664 = vmax.f32 %v5600, %v5632
  %v5665 = vmax.f32 %v5601, %v5633
  %v5666 = vmax.f32 %v5602, %v5634
  %v5667 = vmax.f32 %v5603, %v5635
  %v5668 = vmax.f32 %v5604, %v5636
  %v5669 = vmax.f32 %v5605, %v5637
  %v5670 = vmax.f32 %v5606, %v5638
  %v5671 = vmax.f32 %v5607, %v5639
  %v5672 = vmax.f32 %v5608, %v5640
  %v5673 = vmax.f32 %v5609, %v5641
  %v5674 = vmax.f32 %v5610, %v5642
  %v5675 = vmax.f32 %v5611, %v5643
  %v5676 = vmax.f32 %v5612, %v5644
  %v5677 = vmax.f32 %v5613, %v5645
  %v5678 = vmax.f32 %v5614, %v5646
  %v5679 = vmax.f32 %v5615, %v5647
  %v5680 = vmax.f32 %v5616, %v5648
  %v5681 = vmax.f32 %v5617, %v5649
  %v5682 = vadd.f32 %v5650, %v847
  %v5683 = vadd.f32 %v5651, %v847
  %v5684 = vadd.f32 %v5652, %v852
  %v5685 = vadd.f32 %v5653, %v852
  %v5686 = vadd.f32 %v5654, %v857
  %v5687 = vadd.f32 %v5655, %v857
  %v5688 = vadd.f32 %v5656, %v862
  %v5689 = vadd.f32 %v5657, %v862
  %v5690 = vadd.f32 %v5658, %v867
  %v5691 = vadd.f32 %v5659, %v867
  %v5692 = vadd.f32 %v5660, %v872
  %v5693 = vadd.f32 %v5661, %v872
  %v5694 = vadd.f32 %v5662, %v877
  %v5695 = vadd.f32 %v5663, %v877
  %v5696 = vadd.f32 %v5664, %v882
  %v5697 = vadd.f32 %v5665, %v882
  %v5698 = vadd.f32 %v5666, %v887
  %v5699 = vadd.f32 %v5667, %v887
  %v5700 = vadd.f32 %v5668, %v892
  %v5701 = vadd.f32 %v5669, %v892
  %v5702 = vadd.f32 %v5670, %v897
  %v5703 = vadd.f32 %v5671, %v897
  %v5704 = vadd.f32 %v5672, %v902
  %v5705 = vadd.f32 %v5673, %v902
  %v5706 = vadd.f32 %v5674, %v907
  %v5707 = vadd.f32 %v5675, %v907
  %v5708 = vadd.f32 %v5676, %v912
  %v5709 = vadd.f32 %v5677, %v912
  %v5710 = vadd.f32 %v5678, %v917
  %v5711 = vadd.f32 %v5679, %v917
  %v5712 = vadd.f32 %v5680, %v922
  %v5713 = vadd.f32 %v5681, %v922
  %v5714 = vmax.f32 %v5682, 0.0
  %v5715 = vmax.f32 %v5683, 0.0
  %v5716 = vmax.f32 %v5684, 0.0
  %v5717 = vmax.f32 %v5685, 0.0
  %v5718 = vmax.f32 %v5686, 0.0
  %v5719 = vmax.f32 %v5687, 0.0
  %v5720 = vmax.f32 %v5688, 0.0
  %v5721 = vmax.f32 %v5689, 0.0
  %v5722 = vmax.f32 %v5690, 0.0
  %v5723 = vmax.f32 %v5691, 0.0
  %v5724 = vmax.f32 %v5692, 0.0
  %v5725 = vmax.f32 %v5693, 0.0
  %v5726 = vmax.f32 %v5694, 0.0
  %v5727 = vmax.f32 %v5695, 0.0
  %v5728 = vmax.f32 %v5696, 0.0
  %v5729 = vmax.f32 %v5697, 0.0
  %v5730 = vmax.f32 %v5698, 0.0
  %v5731 = vmax.f32 %v5699, 0.0
  %v5732 = vmax.f32 %v5700, 0.0
  %v5733 = vmax.f32 %v5701, 0.0
  %v5734 = vmax.f32 %v5702, 0.0
  %v5735 = vmax.f32 %v5703, 0.0
  %v5736 = vmax.f32 %v5704, 0.0
  %v5737 = vmax.f32 %v5705, 0.0
  %v5738 = vmax.f32 %v5706, 0.0
  %v5739 = vmax.f32 %v5707, 0.0
  %v5740 = vmax.f32 %v5708, 0.0
  %v5741 = vmax.f32 %v5709, 0.0
  %v5742 = vmax.f32 %v5710, 0.0
  %v5743 = vmax.f32 %v5711, 0.0
  %v5744 = vmax.f32 %v5712, 0.0
  %v5745 = vmax.f32 %v5713, 0.0
  %s5746 = scalar_lea.vmem %s3, 56
  %v5747 = vld [vmem:[%s5746] sm:$0xf]
  %v5748 = vld [vmem:[%s5746 + $0x4] sm:$0xf]
  %v5749 = vpack.c.bf16 %v5716, %v5714
  %v5750 = vpack.c.bf16 %v5717, %v5715
  %v5751 = vpack.c.bf16 %v5720, %v5718
  %v5752 = vpack.c.bf16 %v5721, %v5719
  %v5753 = vpack.c.bf16 %v5724, %v5722
  %v5754 = vpack.c.bf16 %v5725, %v5723
  %v5755 = vpack.c.bf16 %v5728, %v5726
  %v5756 = vpack.c.bf16 %v5729, %v5727
  %v5757 = vpack.c.bf16 %v5732, %v5730
  %v5758 = vpack.c.bf16 %v5733, %v5731
  %v5759 = vpack.c.bf16 %v5736, %v5734
  %v5760 = vpack.c.bf16 %v5737, %v5735
  %v5761 = vpack.c.bf16 %v5740, %v5738
  %v5762 = vpack.c.bf16 %v5741, %v5739
  %v5763 = vpack.c.bf16 %v5744, %v5742
  %v5764 = vpack.c.bf16 %v5745, %v5743
  %v5767 = vunpack.c.l.b16 %v5747
  %v5768 = vunpack.c.l.b16 %v5748
  %v5769 = vpack.c.b16 %v5768, %v5767
  %5771 = vmatprep.subr.bf16.mxu0 %v5750
  %5772 = vmatpush1.bf16.msra.mxu0 %v5749
  %5773 = vmatprep.subr.bf16.mxu0 %v5752
  %5774 = vmatpush1.bf16.msra.mxu0 %v5751
  %5775 = vmatprep.subr.bf16.mxu0 %v5754
  %5776 = vmatpush1.bf16.msra.mxu0 %v5753
  %5777 = vmatprep.subr.bf16.mxu0 %v5756
  %5778 = vmatpush1.bf16.msra.mxu0 %v5755
  %5779 = vmatprep.subr.bf16.mxu0 %v5758
  %5780 = vmatpush1.bf16.msra.mxu0 %v5757
  %5781 = vmatprep.subr.bf16.mxu0 %v5760
  %5782 = vmatpush1.bf16.msra.mxu0 %v5759
  %5783 = vmatprep.subr.bf16.mxu0 %v5762
  %5784 = vmatpush1.bf16.msra.mxu0 %v5761
  %5785 = vmatprep.subr.bf16.mxu0 %v5764
  %5786 = vmatpush1.bf16.msra.mxu0 %v5763
  %5787 = vmatprep.subr.bf16.mxu0 0
  %5788 = vmatpush1.bf16.msra.mxu0 0
  %5789 = vmatprep.subr.bf16.mxu0 0
  %5790 = vmatpush1.bf16.msra.mxu0 0
  %5791 = vmatprep.subr.bf16.mxu0 0
  %5792 = vmatpush1.bf16.msra.mxu0 0
  %5793 = vmatprep.subr.bf16.mxu0 0
  %5794 = vmatpush1.bf16.msra.mxu0 0
  %5795 = vmatprep.subr.bf16.mxu0 0
  %5796 = vmatpush1.bf16.msra.mxu0 0
  %5797 = vmatprep.subr.bf16.mxu0 0
  %5798 = vmatpush1.bf16.msra.mxu0 0
  %5799 = vmatprep.subr.bf16.mxu0 0
  %5800 = vmatpush1.bf16.msra.mxu0 0
  %5801 = vmatprep.subr.bf16.mxu0 0
  %5802 = vmatpush1.bf16.msra.mxu0 0
  %5803 = vmatprep.mubr.bf16.mxu0 0
  %5804 = vmatmul.mubr.bf16.gmra.mrb[0].mxu0 %v5769
  %v5805 = vpop.f32.mrb[0].mxu0
  %v5806 = vadd.f32 0.0, %v5805
  %v5807 = vpop.f32.mrb[0].mxu0
  %v5808 = vadd.f32 0.0, %v5807
  %v5809 = vpop.f32.mrb[0].mxu0
  %v5810 = vadd.f32 0.0, %v5809
  %v5811 = vpop.f32.mrb[0].mxu0
  %v5812 = vadd.f32 0.0, %v5811
  %5813 = vdwg.mxu0
  %v5814 = vadd.f32 %v5133, %v5806
  %v5815 = vadd.f32 %v5134, %v5808
  %v5816 = vadd.f32 %v5135, %v5810
  %v5817 = vadd.f32 %v5136, %v5812
  %v5818 = vld [vmem:[%s0 + $0x200] sm:$0xff]
  %v5819 = vld [vmem:[%s0 + $0x208] sm:$0xff]
  %v5820 = vld [vmem:[%s0 + $0x210] sm:$0xff]
  %v5821 = vld [vmem:[%s0 + $0x218] sm:$0xff]
  %v5822 = vld [vmem:[%s0 + $0x220] sm:$0xff]
  %v5823 = vld [vmem:[%s0 + $0x228] sm:$0xff]
  %v5824 = vld [vmem:[%s0 + $0x230] sm:$0xff]
  %v5825 = vld [vmem:[%s0 + $0x238] sm:$0xff]
  %v5826 = vld [vmem:[%s0 + $0x240] sm:$0xff]
  %v5827 = vld [vmem:[%s0 + $0x248] sm:$0xff]
  %v5828 = vld [vmem:[%s0 + $0x250] sm:$0xff]
  %v5829 = vld [vmem:[%s0 + $0x258] sm:$0xff]
  %v5830 = vld [vmem:[%s0 + $0x260] sm:$0xff]
  %v5831 = vld [vmem:[%s0 + $0x268] sm:$0xff]
  %v5832 = vld [vmem:[%s0 + $0x270] sm:$0xff]
  %v5833 = vld [vmem:[%s0 + $0x278] sm:$0xff]
  %v5850 = vunpack.c.l.b16 %v5818
  %v5851 = vunpack.c.h.b16 %v5818
  %v5852 = vunpack.c.l.b16 %v5819
  %v5853 = vunpack.c.h.b16 %v5819
  %v5854 = vunpack.c.l.b16 %v5820
  %v5855 = vunpack.c.h.b16 %v5820
  %v5856 = vunpack.c.l.b16 %v5821
  %v5857 = vunpack.c.h.b16 %v5821
  %v5858 = vunpack.c.l.b16 %v5822
  %v5859 = vunpack.c.h.b16 %v5822
  %v5860 = vunpack.c.l.b16 %v5823
  %v5861 = vunpack.c.h.b16 %v5823
  %v5862 = vunpack.c.l.b16 %v5824
  %v5863 = vunpack.c.h.b16 %v5824
  %v5864 = vunpack.c.l.b16 %v5825
  %v5865 = vunpack.c.h.b16 %v5825
  %v5866 = vunpack.c.l.b16 %v5826
  %v5867 = vunpack.c.h.b16 %v5826
  %v5868 = vunpack.c.l.b16 %v5827
  %v5869 = vunpack.c.h.b16 %v5827
  %v5870 = vunpack.c.l.b16 %v5828
  %v5871 = vunpack.c.h.b16 %v5828
  %v5872 = vunpack.c.l.b16 %v5829
  %v5873 = vunpack.c.h.b16 %v5829
  %v5874 = vunpack.c.l.b16 %v5830
  %v5875 = vunpack.c.h.b16 %v5830
  %v5876 = vunpack.c.l.b16 %v5831
  %v5877 = vunpack.c.h.b16 %v5831
  %v5878 = vunpack.c.l.b16 %v5832
  %v5879 = vunpack.c.h.b16 %v5832
  %v5880 = vunpack.c.l.b16 %v5833
  %v5881 = vunpack.c.h.b16 %v5833
  %v5882 = vpack.c.b16 %v5852, %v5850
  %v5883 = vpack.c.b16 %v5853, %v5851
  %v5884 = vpack.c.b16 %v5856, %v5854
  %v5885 = vpack.c.b16 %v5857, %v5855
  %v5886 = vpack.c.b16 %v5860, %v5858
  %v5887 = vpack.c.b16 %v5861, %v5859
  %v5888 = vpack.c.b16 %v5864, %v5862
  %v5889 = vpack.c.b16 %v5865, %v5863
  %v5890 = vpack.c.b16 %v5868, %v5866
  %v5891 = vpack.c.b16 %v5869, %v5867
  %v5892 = vpack.c.b16 %v5872, %v5870
  %v5893 = vpack.c.b16 %v5873, %v5871
  %v5894 = vpack.c.b16 %v5876, %v5874
  %v5895 = vpack.c.b16 %v5877, %v5875
  %v5896 = vpack.c.b16 %v5880, %v5878
  %v5897 = vpack.c.b16 %v5881, %v5879
  %5914 = vmatprep.subr.bf16.mxu0 %v5883
  %5915 = vmatpush1.bf16.msra.mxu0 %v5882
  %5916 = vmatprep.subr.bf16.mxu0 %v5885
  %5917 = vmatpush1.bf16.msra.mxu0 %v5884
  %5918 = vmatprep.subr.bf16.mxu0 %v5887
  %5919 = vmatpush1.bf16.msra.mxu0 %v5886
  %5920 = vmatprep.subr.bf16.mxu0 %v5889
  %5921 = vmatpush1.bf16.msra.mxu0 %v5888
  %5922 = vmatprep.subr.bf16.mxu0 %v5891
  %5923 = vmatpush1.bf16.msra.mxu0 %v5890
  %5924 = vmatprep.subr.bf16.mxu0 %v5893
  %5925 = vmatpush1.bf16.msra.mxu0 %v5892
  %5926 = vmatprep.subr.bf16.mxu0 %v5895
  %5927 = vmatpush1.bf16.msra.mxu0 %v5894
  %5928 = vmatprep.subr.bf16.mxu0 %v5897
  %5929 = vmatpush1.bf16.msra.mxu0 %v5896
  %5930 = vmatprep.subr.bf16.mxu0 0
  %5931 = vmatpush1.bf16.msra.mxu0 0
  %5932 = vmatprep.subr.bf16.mxu0 0
  %5933 = vmatpush1.bf16.msra.mxu0 0
  %5934 = vmatprep.subr.bf16.mxu0 0
  %5935 = vmatpush1.bf16.msra.mxu0 0
  %5936 = vmatprep.subr.bf16.mxu0 0
  %5937 = vmatpush1.bf16.msra.mxu0 0
  %5938 = vmatprep.subr.bf16.mxu0 0
  %5939 = vmatpush1.bf16.msra.mxu0 0
  %5940 = vmatprep.subr.bf16.mxu0 0
  %5941 = vmatpush1.bf16.msra.mxu0 0
  %5942 = vmatprep.subr.bf16.mxu0 0
  %5943 = vmatpush1.bf16.msra.mxu0 0
  %5944 = vmatprep.subr.bf16.mxu0 0
  %5945 = vmatpush1.bf16.msra.mxu0 0
  %5946 = vmatprep.mubr.bf16.mxu0 0
  %5947 = vmatmul.mubr.bf16.gmra.mrb[0].mxu0 %v251
  %v5948 = vpop.f32.mrb[0].mxu0
  %v5949 = vadd.f32 0.0, %v5948
  %v5950 = vpop.f32.mrb[0].mxu0
  %v5951 = vadd.f32 0.0, %v5950
  %v5952 = vpop.f32.mrb[0].mxu0
  %v5953 = vadd.f32 0.0, %v5952
  %v5954 = vpop.f32.mrb[0].mxu0
  %v5955 = vadd.f32 0.0, %v5954
  %5956 = vmatprep.mubr.bf16.mxu0 0
  %5957 = vmatmul.mubr.bf16.gmra.mrb[0].mxu0 %v252
  %v5958 = vpop.f32.mrb[0].mxu0
  %v5959 = vadd.f32 0.0, %v5958
  %v5960 = vpop.f32.mrb[0].mxu0
  %v5961 = vadd.f32 0.0, %v5960
  %v5962 = vpop.f32.mrb[0].mxu0
  %v5963 = vadd.f32 0.0, %v5962
  %v5964 = vpop.f32.mrb[0].mxu0
  %v5965 = vadd.f32 0.0, %v5964
  %5966 = vmatprep.mubr.bf16.mxu0 0
  %5967 = vmatmul.mubr.bf16.gmra.mrb[0].mxu0 %v253
  %v5968 = vpop.f32.mrb[0].mxu0
  %v5969 = vadd.f32 0.0, %v5968
  %v5970 = vpop.f32.mrb[0].mxu0
  %v5971 = vadd.f32 0.0, %v5970
  %v5972 = vpop.f32.mrb[0].mxu0
  %v5973 = vadd.f32 0.0, %v5972
  %v5974 = vpop.f32.mrb[0].mxu0
  %v5975 = vadd.f32 0.0, %v5974
  %5976 = vmatprep.mubr.bf16.mxu0 0
  %5977 = vmatmul.mubr.bf16.gmra.mrb[0].mxu0 %v254
  %v5978 = vpop.f32.mrb[0].mxu0
  %v5979 = vadd.f32 0.0, %v5978
  %v5980 = vpop.f32.mrb[0].mxu0
  %v5981 = vadd.f32 0.0, %v5980
  %v5982 = vpop.f32.mrb[0].mxu0
  %v5983 = vadd.f32 0.0, %v5982
  %v5984 = vpop.f32.mrb[0].mxu0
  %v5985 = vadd.f32 0.0, %v5984
  %5986 = vmatprep.mubr.bf16.mxu0 0
  %5987 = vmatmul.mubr.bf16.gmra.mrb[0].mxu0 %v255
  %v5988 = vpop.f32.mrb[0].mxu0
  %v5989 = vadd.f32 0.0, %v5988
  %v5990 = vpop.f32.mrb[0].mxu0
  %v5991 = vadd.f32 0.0, %v5990
  %v5992 = vpop.f32.mrb[0].mxu0
  %v5993 = vadd.f32 0.0, %v5992
  %v5994 = vpop.f32.mrb[0].mxu0
  %v5995 = vadd.f32 0.0, %v5994
  %5996 = vmatprep.mubr.bf16.mxu0 0
  %5997 = vmatmul.mubr.bf16.gmra.mrb[0].mxu0 %v256
  %v5998 = vpop.f32.mrb[0].mxu0
  %v5999 = vadd.f32 0.0, %v5998
  %v6000 = vpop.f32.mrb[0].mxu0
  %v6001 = vadd.f32 0.0, %v6000
  %v6002 = vpop.f32.mrb[0].mxu0
  %v6003 = vadd.f32 0.0, %v6002
  %v6004 = vpop.f32.mrb[0].mxu0
  %v6005 = vadd.f32 0.0, %v6004
  %6006 = vmatprep.mubr.bf16.mxu0 0
  %6007 = vmatmul.mubr.bf16.gmra.mrb[0].mxu0 %v257
  %v6008 = vpop.f32.mrb[0].mxu0
  %v6009 = vadd.f32 0.0, %v6008
  %v6010 = vpop.f32.mrb[0].mxu0
  %v6011 = vadd.f32 0.0, %v6010
  %v6012 = vpop.f32.mrb[0].mxu0
  %v6013 = vadd.f32 0.0, %v6012
  %v6014 = vpop.f32.mrb[0].mxu0
  %v6015 = vadd.f32 0.0, %v6014
  %6016 = vmatprep.mubr.bf16.mxu0 0
  %6017 = vmatmul.mubr.bf16.gmra.mrb[0].mxu0 %v258
  %v6018 = vpop.f32.mrb[0].mxu0
  %v6019 = vadd.f32 0.0, %v6018
  %v6020 = vpop.f32.mrb[0].mxu0
  %v6021 = vadd.f32 0.0, %v6020
  %v6022 = vpop.f32.mrb[0].mxu0
  %v6023 = vadd.f32 0.0, %v6022
  %v6024 = vpop.f32.mrb[0].mxu0
  %v6025 = vadd.f32 0.0, %v6024
  %6026 = vmatprep.mubr.bf16.mxu0 0
  %6027 = vmatmul.mubr.bf16.gmra.mrb[0].mxu0 %v259
  %v6028 = vpop.f32.mrb[0].mxu0
  %v6029 = vadd.f32 0.0, %v6028
  %v6030 = vpop.f32.mrb[0].mxu0
  %v6031 = vadd.f32 0.0, %v6030
  %v6032 = vpop.f32.mrb[0].mxu0
  %v6033 = vadd.f32 0.0, %v6032
  %v6034 = vpop.f32.mrb[0].mxu0
  %v6035 = vadd.f32 0.0, %v6034
  %6036 = vmatprep.mubr.bf16.mxu0 0
  %6037 = vmatmul.mubr.bf16.gmra.mrb[0].mxu0 %v260
  %v6038 = vpop.f32.mrb[0].mxu0
  %v6039 = vadd.f32 0.0, %v6038
  %v6040 = vpop.f32.mrb[0].mxu0
  %v6041 = vadd.f32 0.0, %v6040
  %v6042 = vpop.f32.mrb[0].mxu0
  %v6043 = vadd.f32 0.0, %v6042
  %v6044 = vpop.f32.mrb[0].mxu0
  %v6045 = vadd.f32 0.0, %v6044
  %6046 = vmatprep.mubr.bf16.mxu0 0
  %6047 = vmatmul.mubr.bf16.gmra.mrb[0].mxu0 %v261
  %v6048 = vpop.f32.mrb[0].mxu0
  %v6049 = vadd.f32 0.0, %v6048
  %v6050 = vpop.f32.mrb[0].mxu0
  %v6051 = vadd.f32 0.0, %v6050
  %v6052 = vpop.f32.mrb[0].mxu0
  %v6053 = vadd.f32 0.0, %v6052
  %v6054 = vpop.f32.mrb[0].mxu0
  %v6055 = vadd.f32 0.0, %v6054
  %6056 = vmatprep.mubr.bf16.mxu0 0
  %6057 = vmatmul.mubr.bf16.gmra.mrb[0].mxu0 %v262
  %v6058 = vpop.f32.mrb[0].mxu0
  %v6059 = vadd.f32 0.0, %v6058
  %v6060 = vpop.f32.mrb[0].mxu0
  %v6061 = vadd.f32 0.0, %v6060
  %v6062 = vpop.f32.mrb[0].mxu0
  %v6063 = vadd.f32 0.0, %v6062
  %v6064 = vpop.f32.mrb[0].mxu0
  %v6065 = vadd.f32 0.0, %v6064
  %6066 = vmatprep.mubr.bf16.mxu0 0
  %6067 = vmatmul.mubr.bf16.gmra.mrb[0].mxu0 %v263
  %v6068 = vpop.f32.mrb[0].mxu0
  %v6069 = vadd.f32 0.0, %v6068
  %v6070 = vpop.f32.mrb[0].mxu0
  %v6071 = vadd.f32 0.0, %v6070
  %v6072 = vpop.f32.mrb[0].mxu0
  %v6073 = vadd.f32 0.0, %v6072
  %v6074 = vpop.f32.mrb[0].mxu0
  %v6075 = vadd.f32 0.0, %v6074
  %6076 = vmatprep.mubr.bf16.mxu0 0
  %6077 = vmatmul.mubr.bf16.gmra.mrb[0].mxu0 %v264
  %v6078 = vpop.f32.mrb[0].mxu0
  %v6079 = vadd.f32 0.0, %v6078
  %v6080 = vpop.f32.mrb[0].mxu0
  %v6081 = vadd.f32 0.0, %v6080
  %v6082 = vpop.f32.mrb[0].mxu0
  %v6083 = vadd.f32 0.0, %v6082
  %v6084 = vpop.f32.mrb[0].mxu0
  %v6085 = vadd.f32 0.0, %v6084
  %6086 = vmatprep.mubr.bf16.mxu0 0
  %6087 = vmatmul.mubr.bf16.gmra.mrb[0].mxu0 %v265
  %v6088 = vpop.f32.mrb[0].mxu0
  %v6089 = vadd.f32 0.0, %v6088
  %v6090 = vpop.f32.mrb[0].mxu0
  %v6091 = vadd.f32 0.0, %v6090
  %v6092 = vpop.f32.mrb[0].mxu0
  %v6093 = vadd.f32 0.0, %v6092
  %v6094 = vpop.f32.mrb[0].mxu0
  %v6095 = vadd.f32 0.0, %v6094
  %6096 = vmatprep.mubr.bf16.mxu0 0
  %6097 = vmatmul.mubr.bf16.gmra.mrb[0].mxu0 %v266
  %v6098 = vpop.f32.mrb[0].mxu0
  %v6099 = vadd.f32 0.0, %v6098
  %v6100 = vpop.f32.mrb[0].mxu0
  %v6101 = vadd.f32 0.0, %v6100
  %v6102 = vpop.f32.mrb[0].mxu0
  %v6103 = vadd.f32 0.0, %v6102
  %v6104 = vpop.f32.mrb[0].mxu0
  %v6105 = vadd.f32 0.0, %v6104
  %6106 = vmatprep.mubr.bf16.mxu0 0
  %6107 = vmatmul.mubr.bf16.gmra.mrb[0].mxu0 %v267
  %v6108 = vpop.f32.mrb[0].mxu0
  %v6109 = vadd.f32 0.0, %v6108
  %v6110 = vpop.f32.mrb[0].mxu0
  %v6111 = vadd.f32 0.0, %v6110
  %v6112 = vpop.f32.mrb[0].mxu0
  %v6113 = vadd.f32 0.0, %v6112
  %v6114 = vpop.f32.mrb[0].mxu0
  %v6115 = vadd.f32 0.0, %v6114
  %6116 = vmatprep.mubr.bf16.mxu0 0
  %6117 = vmatmul.mubr.bf16.gmra.mrb[0].mxu0 %v268
  %v6118 = vpop.f32.mrb[0].mxu0
  %v6119 = vadd.f32 0.0, %v6118
  %v6120 = vpop.f32.mrb[0].mxu0
  %v6121 = vadd.f32 0.0, %v6120
  %v6122 = vpop.f32.mrb[0].mxu0
  %v6123 = vadd.f32 0.0, %v6122
  %v6124 = vpop.f32.mrb[0].mxu0
  %v6125 = vadd.f32 0.0, %v6124
  %6126 = vmatprep.mubr.bf16.mxu0 0
  %6127 = vmatmul.mubr.bf16.gmra.mrb[0].mxu0 %v269
  %v6128 = vpop.f32.mrb[0].mxu0
  %v6129 = vadd.f32 0.0, %v6128
  %v6130 = vpop.f32.mrb[0].mxu0
  %v6131 = vadd.f32 0.0, %v6130
  %v6132 = vpop.f32.mrb[0].mxu0
  %v6133 = vadd.f32 0.0, %v6132
  %v6134 = vpop.f32.mrb[0].mxu0
  %v6135 = vadd.f32 0.0, %v6134
  %6136 = vmatprep.mubr.bf16.mxu0 0
  %6137 = vmatmul.mubr.bf16.gmra.mrb[0].mxu0 %v270
  %v6138 = vpop.f32.mrb[0].mxu0
  %v6139 = vadd.f32 0.0, %v6138
  %v6140 = vpop.f32.mrb[0].mxu0
  %v6141 = vadd.f32 0.0, %v6140
  %v6142 = vpop.f32.mrb[0].mxu0
  %v6143 = vadd.f32 0.0, %v6142
  %v6144 = vpop.f32.mrb[0].mxu0
  %v6145 = vadd.f32 0.0, %v6144
  %6146 = vmatprep.mubr.bf16.mxu0 0
  %6147 = vmatmul.mubr.bf16.gmra.mrb[0].mxu0 %v271
  %v6148 = vpop.f32.mrb[0].mxu0
  %v6149 = vadd.f32 0.0, %v6148
  %v6150 = vpop.f32.mrb[0].mxu0
  %v6151 = vadd.f32 0.0, %v6150
  %v6152 = vpop.f32.mrb[0].mxu0
  %v6153 = vadd.f32 0.0, %v6152
  %v6154 = vpop.f32.mrb[0].mxu0
  %v6155 = vadd.f32 0.0, %v6154
  %6156 = vmatprep.mubr.bf16.mxu0 0
  %6157 = vmatmul.mubr.bf16.gmra.mrb[0].mxu0 %v272
  %v6158 = vpop.f32.mrb[0].mxu0
  %v6159 = vadd.f32 0.0, %v6158
  %v6160 = vpop.f32.mrb[0].mxu0
  %v6161 = vadd.f32 0.0, %v6160
  %v6162 = vpop.f32.mrb[0].mxu0
  %v6163 = vadd.f32 0.0, %v6162
  %v6164 = vpop.f32.mrb[0].mxu0
  %v6165 = vadd.f32 0.0, %v6164
  %6166 = vmatprep.mubr.bf16.mxu0 0
  %6167 = vmatmul.mubr.bf16.gmra.mrb[0].mxu0 %v273
  %v6168 = vpop.f32.mrb[0].mxu0
  %v6169 = vadd.f32 0.0, %v6168
  %v6170 = vpop.f32.mrb[0].mxu0
  %v6171 = vadd.f32 0.0, %v6170
  %v6172 = vpop.f32.mrb[0].mxu0
  %v6173 = vadd.f32 0.0, %v6172
  %v6174 = vpop.f32.mrb[0].mxu0
  %v6175 = vadd.f32 0.0, %v6174
  %6176 = vmatprep.mubr.bf16.mxu0 0
  %6177 = vmatmul.mubr.bf16.gmra.mrb[0].mxu0 %v274
  %v6178 = vpop.f32.mrb[0].mxu0
  %v6179 = vadd.f32 0.0, %v6178
  %v6180 = vpop.f32.mrb[0].mxu0
  %v6181 = vadd.f32 0.0, %v6180
  %v6182 = vpop.f32.mrb[0].mxu0
  %v6183 = vadd.f32 0.0, %v6182
  %v6184 = vpop.f32.mrb[0].mxu0
  %v6185 = vadd.f32 0.0, %v6184
  %6186 = vmatprep.mubr.bf16.mxu0 0
  %6187 = vmatmul.mubr.bf16.gmra.mrb[0].mxu0 %v275
  %v6188 = vpop.f32.mrb[0].mxu0
  %v6189 = vadd.f32 0.0, %v6188
  %v6190 = vpop.f32.mrb[0].mxu0
  %v6191 = vadd.f32 0.0, %v6190
  %v6192 = vpop.f32.mrb[0].mxu0
  %v6193 = vadd.f32 0.0, %v6192
  %v6194 = vpop.f32.mrb[0].mxu0
  %v6195 = vadd.f32 0.0, %v6194
  %6196 = vmatprep.mubr.bf16.mxu0 0
  %6197 = vmatmul.mubr.bf16.gmra.mrb[0].mxu0 %v276
  %v6198 = vpop.f32.mrb[0].mxu0
  %v6199 = vadd.f32 0.0, %v6198
  %v6200 = vpop.f32.mrb[0].mxu0
  %v6201 = vadd.f32 0.0, %v6200
  %v6202 = vpop.f32.mrb[0].mxu0
  %v6203 = vadd.f32 0.0, %v6202
  %v6204 = vpop.f32.mrb[0].mxu0
  %v6205 = vadd.f32 0.0, %v6204
  %6206 = vmatprep.mubr.bf16.mxu0 0
  %6207 = vmatmul.mubr.bf16.gmra.mrb[0].mxu0 %v277
  %v6208 = vpop.f32.mrb[0].mxu0
  %v6209 = vadd.f32 0.0, %v6208
  %v6210 = vpop.f32.mrb[0].mxu0
  %v6211 = vadd.f32 0.0, %v6210
  %v6212 = vpop.f32.mrb[0].mxu0
  %v6213 = vadd.f32 0.0, %v6212
  %v6214 = vpop.f32.mrb[0].mxu0
  %v6215 = vadd.f32 0.0, %v6214
  %6216 = vmatprep.mubr.bf16.mxu0 0
  %6217 = vmatmul.mubr.bf16.gmra.mrb[0].mxu0 %v278
  %v6218 = vpop.f32.mrb[0].mxu0
  %v6219 = vadd.f32 0.0, %v6218
  %v6220 = vpop.f32.mrb[0].mxu0
  %v6221 = vadd.f32 0.0, %v6220
  %v6222 = vpop.f32.mrb[0].mxu0
  %v6223 = vadd.f32 0.0, %v6222
  %v6224 = vpop.f32.mrb[0].mxu0
  %v6225 = vadd.f32 0.0, %v6224
  %6226 = vmatprep.mubr.bf16.mxu0 0
  %6227 = vmatmul.mubr.bf16.gmra.mrb[0].mxu0 %v279
  %v6228 = vpop.f32.mrb[0].mxu0
  %v6229 = vadd.f32 0.0, %v6228
  %v6230 = vpop.f32.mrb[0].mxu0
  %v6231 = vadd.f32 0.0, %v6230
  %v6232 = vpop.f32.mrb[0].mxu0
  %v6233 = vadd.f32 0.0, %v6232
  %v6234 = vpop.f32.mrb[0].mxu0
  %v6235 = vadd.f32 0.0, %v6234
  %6236 = vmatprep.mubr.bf16.mxu0 0
  %6237 = vmatmul.mubr.bf16.gmra.mrb[0].mxu0 %v280
  %v6238 = vpop.f32.mrb[0].mxu0
  %v6239 = vadd.f32 0.0, %v6238
  %v6240 = vpop.f32.mrb[0].mxu0
  %v6241 = vadd.f32 0.0, %v6240
  %v6242 = vpop.f32.mrb[0].mxu0
  %v6243 = vadd.f32 0.0, %v6242
  %v6244 = vpop.f32.mrb[0].mxu0
  %v6245 = vadd.f32 0.0, %v6244
  %6246 = vmatprep.mubr.bf16.mxu0 0
  %6247 = vmatmul.mubr.bf16.gmra.mrb[0].mxu0 %v281
  %v6248 = vpop.f32.mrb[0].mxu0
  %v6249 = vadd.f32 0.0, %v6248
  %v6250 = vpop.f32.mrb[0].mxu0
  %v6251 = vadd.f32 0.0, %v6250
  %v6252 = vpop.f32.mrb[0].mxu0
  %v6253 = vadd.f32 0.0, %v6252
  %v6254 = vpop.f32.mrb[0].mxu0
  %v6255 = vadd.f32 0.0, %v6254
  %6256 = vmatprep.mubr.bf16.mxu0 0
  %6257 = vmatmul.mubr.bf16.gmra.mrb[0].mxu0 %v282
  %v6258 = vpop.f32.mrb[0].mxu0
  %v6259 = vadd.f32 0.0, %v6258
  %v6260 = vpop.f32.mrb[0].mxu0
  %v6261 = vadd.f32 0.0, %v6260
  %v6262 = vpop.f32.mrb[0].mxu0
  %v6263 = vadd.f32 0.0, %v6262
  %v6264 = vpop.f32.mrb[0].mxu0
  %v6265 = vadd.f32 0.0, %v6264
  %6266 = vdwg.mxu0
  %v6267 = vmax.f32 %v5949, %v6029
  %v6268 = vmax.f32 %v5951, %v6031
  %v6269 = vmax.f32 %v5953, %v6033
  %v6270 = vmax.f32 %v5955, %v6035
  %v6271 = vmax.f32 %v5959, %v6039
  %v6272 = vmax.f32 %v5961, %v6041
  %v6273 = vmax.f32 %v5963, %v6043
  %v6274 = vmax.f32 %v5965, %v6045
  %v6275 = vmax.f32 %v5969, %v6049
  %v6276 = vmax.f32 %v5971, %v6051
  %v6277 = vmax.f32 %v5973, %v6053
  %v6278 = vmax.f32 %v5975, %v6055
  %v6279 = vmax.f32 %v5979, %v6059
  %v6280 = vmax.f32 %v5981, %v6061
  %v6281 = vmax.f32 %v5983, %v6063
  %v6282 = vmax.f32 %v5985, %v6065
  %v6283 = vmax.f32 %v5989, %v6069
  %v6284 = vmax.f32 %v5991, %v6071
  %v6285 = vmax.f32 %v5993, %v6073
  %v6286 = vmax.f32 %v5995, %v6075
  %v6287 = vmax.f32 %v5999, %v6079
  %v6288 = vmax.f32 %v6001, %v6081
  %v6289 = vmax.f32 %v6003, %v6083
  %v6290 = vmax.f32 %v6005, %v6085
  %v6291 = vmax.f32 %v6009, %v6089
  %v6292 = vmax.f32 %v6011, %v6091
  %v6293 = vmax.f32 %v6013, %v6093
  %v6294 = vmax.f32 %v6015, %v6095
  %v6295 = vmax.f32 %v6019, %v6099
  %v6296 = vmax.f32 %v6021, %v6101
  %v6297 = vmax.f32 %v6023, %v6103
  %v6298 = vmax.f32 %v6025, %v6105
  %v6299 = vmax.f32 %v6109, %v6189
  %v6300 = vmax.f32 %v6111, %v6191
  %v6301 = vmax.f32 %v6113, %v6193
  %v6302 = vmax.f32 %v6115, %v6195
  %v6303 = vmax.f32 %v6119, %v6199
  %v6304 = vmax.f32 %v6121, %v6201
  %v6305 = vmax.f32 %v6123, %v6203
  %v6306 = vmax.f32 %v6125, %v6205
  %v6307 = vmax.f32 %v6129, %v6209
  %v6308 = vmax.f32 %v6131, %v6211
  %v6309 = vmax.f32 %v6133, %v6213
  %v6310 = vmax.f32 %v6135, %v6215
  %v6311 = vmax.f32 %v6139, %v6219
  %v6312 = vmax.f32 %v6141, %v6221
  %v6313 = vmax.f32 %v6143, %v6223
  %v6314 = vmax.f32 %v6145, %v6225
  %v6315 = vmax.f32 %v6149, %v6229
  %v6316 = vmax.f32 %v6151, %v6231
  %v6317 = vmax.f32 %v6153, %v6233
  %v6318 = vmax.f32 %v6155, %v6235
  %v6319 = vmax.f32 %v6159, %v6239
  %v6320 = vmax.f32 %v6161, %v6241
  %v6321 = vmax.f32 %v6163, %v6243
  %v6322 = vmax.f32 %v6165, %v6245
  %v6323 = vmax.f32 %v6169, %v6249
  %v6324 = vmax.f32 %v6171, %v6251
  %v6325 = vmax.f32 %v6173, %v6253
  %v6326 = vmax.f32 %v6175, %v6255
  %v6327 = vmax.f32 %v6179, %v6259
  %v6328 = vmax.f32 %v6181, %v6261
  %v6329 = vmax.f32 %v6183, %v6263
  %v6330 = vmax.f32 %v6185, %v6265
  %v6331 = vmax.f32 %v6267, %v6299
  %v6332 = vmax.f32 %v6268, %v6300
  %v6333 = vmax.f32 %v6269, %v6301
  %v6334 = vmax.f32 %v6270, %v6302
  %v6335 = vmax.f32 %v6271, %v6303
  %v6336 = vmax.f32 %v6272, %v6304
  %v6337 = vmax.f32 %v6273, %v6305
  %v6338 = vmax.f32 %v6274, %v6306
  %v6339 = vmax.f32 %v6275, %v6307
  %v6340 = vmax.f32 %v6276, %v6308
  %v6341 = vmax.f32 %v6277, %v6309
  %v6342 = vmax.f32 %v6278, %v6310
  %v6343 = vmax.f32 %v6279, %v6311
  %v6344 = vmax.f32 %v6280, %v6312
  %v6345 = vmax.f32 %v6281, %v6313
  %v6346 = vmax.f32 %v6282, %v6314
  %v6347 = vmax.f32 %v6283, %v6315
  %v6348 = vmax.f32 %v6284, %v6316
  %v6349 = vmax.f32 %v6285, %v6317
  %v6350 = vmax.f32 %v6286, %v6318
  %v6351 = vmax.f32 %v6287, %v6319
  %v6352 = vmax.f32 %v6288, %v6320
  %v6353 = vmax.f32 %v6289, %v6321
  %v6354 = vmax.f32 %v6290, %v6322
  %v6355 = vmax.f32 %v6291, %v6323
  %v6356 = vmax.f32 %v6292, %v6324
  %v6357 = vmax.f32 %v6293, %v6325
  %v6358 = vmax.f32 %v6294, %v6326
  %v6359 = vmax.f32 %v6295, %v6327
  %v6360 = vmax.f32 %v6296, %v6328
  %v6361 = vmax.f32 %v6297, %v6329
  %v6362 = vmax.f32 %v6298, %v6330
  %v6363 = vadd.f32 %v6331, %v847
  %v6364 = vadd.f32 %v6332, %v847
  %v6365 = vadd.f32 %v6333, %v852
  %v6366 = vadd.f32 %v6334, %v852
  %v6367 = vadd.f32 %v6335, %v857
  %v6368 = vadd.f32 %v6336, %v857
  %v6369 = vadd.f32 %v6337, %v862
  %v6370 = vadd.f32 %v6338, %v862
  %v6371 = vadd.f32 %v6339, %v867
  %v6372 = vadd.f32 %v6340, %v867
  %v6373 = vadd.f32 %v6341, %v872
  %v6374 = vadd.f32 %v6342, %v872
  %v6375 = vadd.f32 %v6343, %v877
  %v6376 = vadd.f32 %v6344, %v877
  %v6377 = vadd.f32 %v6345, %v882
  %v6378 = vadd.f32 %v6346, %v882
  %v6379 = vadd.f32 %v6347, %v887
  %v6380 = vadd.f32 %v6348, %v887
  %v6381 = vadd.f32 %v6349, %v892
  %v6382 = vadd.f32 %v6350, %v892
  %v6383 = vadd.f32 %v6351, %v897
  %v6384 = vadd.f32 %v6352, %v897
  %v6385 = vadd.f32 %v6353, %v902
  %v6386 = vadd.f32 %v6354, %v902
  %v6387 = vadd.f32 %v6355, %v907
  %v6388 = vadd.f32 %v6356, %v907
  %v6389 = vadd.f32 %v6357, %v912
  %v6390 = vadd.f32 %v6358, %v912
  %v6391 = vadd.f32 %v6359, %v917
  %v6392 = vadd.f32 %v6360, %v917
  %v6393 = vadd.f32 %v6361, %v922
  %v6394 = vadd.f32 %v6362, %v922
  %v6395 = vmax.f32 %v6363, 0.0
  %v6396 = vmax.f32 %v6364, 0.0
  %v6397 = vmax.f32 %v6365, 0.0
  %v6398 = vmax.f32 %v6366, 0.0
  %v6399 = vmax.f32 %v6367, 0.0
  %v6400 = vmax.f32 %v6368, 0.0
  %v6401 = vmax.f32 %v6369, 0.0
  %v6402 = vmax.f32 %v6370, 0.0
  %v6403 = vmax.f32 %v6371, 0.0
  %v6404 = vmax.f32 %v6372, 0.0
  %v6405 = vmax.f32 %v6373, 0.0
  %v6406 = vmax.f32 %v6374, 0.0
  %v6407 = vmax.f32 %v6375, 0.0
  %v6408 = vmax.f32 %v6376, 0.0
  %v6409 = vmax.f32 %v6377, 0.0
  %v6410 = vmax.f32 %v6378, 0.0
  %v6411 = vmax.f32 %v6379, 0.0
  %v6412 = vmax.f32 %v6380, 0.0
  %v6413 = vmax.f32 %v6381, 0.0
  %v6414 = vmax.f32 %v6382, 0.0
  %v6415 = vmax.f32 %v6383, 0.0
  %v6416 = vmax.f32 %v6384, 0.0
  %v6417 = vmax.f32 %v6385, 0.0
  %v6418 = vmax.f32 %v6386, 0.0
  %v6419 = vmax.f32 %v6387, 0.0
  %v6420 = vmax.f32 %v6388, 0.0
  %v6421 = vmax.f32 %v6389, 0.0
  %v6422 = vmax.f32 %v6390, 0.0
  %v6423 = vmax.f32 %v6391, 0.0
  %v6424 = vmax.f32 %v6392, 0.0
  %v6425 = vmax.f32 %v6393, 0.0
  %v6426 = vmax.f32 %v6394, 0.0
  %s6427 = scalar_lea.vmem %s3, 64
  %v6428 = vld [vmem:[%s6427] sm:$0xf]
  %v6429 = vld [vmem:[%s6427 + $0x4] sm:$0xf]
  %v6430 = vpack.c.bf16 %v6397, %v6395
  %v6431 = vpack.c.bf16 %v6398, %v6396
  %v6432 = vpack.c.bf16 %v6401, %v6399
  %v6433 = vpack.c.bf16 %v6402, %v6400
  %v6434 = vpack.c.bf16 %v6405, %v6403
  %v6435 = vpack.c.bf16 %v6406, %v6404
  %v6436 = vpack.c.bf16 %v6409, %v6407
  %v6437 = vpack.c.bf16 %v6410, %v6408
  %v6438 = vpack.c.bf16 %v6413, %v6411
  %v6439 = vpack.c.bf16 %v6414, %v6412
  %v6440 = vpack.c.bf16 %v6417, %v6415
  %v6441 = vpack.c.bf16 %v6418, %v6416
  %v6442 = vpack.c.bf16 %v6421, %v6419
  %v6443 = vpack.c.bf16 %v6422, %v6420
  %v6444 = vpack.c.bf16 %v6425, %v6423
  %v6445 = vpack.c.bf16 %v6426, %v6424
  %v6448 = vunpack.c.l.b16 %v6428
  %v6449 = vunpack.c.l.b16 %v6429
  %v6450 = vpack.c.b16 %v6449, %v6448
  %6452 = vmatprep.subr.bf16.mxu0 %v6431
  %6453 = vmatpush1.bf16.msra.mxu0 %v6430
  %6454 = vmatprep.subr.bf16.mxu0 %v6433
  %6455 = vmatpush1.bf16.msra.mxu0 %v6432
  %6456 = vmatprep.subr.bf16.mxu0 %v6435
  %6457 = vmatpush1.bf16.msra.mxu0 %v6434
  %6458 = vmatprep.subr.bf16.mxu0 %v6437
  %6459 = vmatpush1.bf16.msra.mxu0 %v6436
  %6460 = vmatprep.subr.bf16.mxu0 %v6439
  %6461 = vmatpush1.bf16.msra.mxu0 %v6438
  %6462 = vmatprep.subr.bf16.mxu0 %v6441
  %6463 = vmatpush1.bf16.msra.mxu0 %v6440
  %6464 = vmatprep.subr.bf16.mxu0 %v6443
  %6465 = vmatpush1.bf16.msra.mxu0 %v6442
  %6466 = vmatprep.subr.bf16.mxu0 %v6445
  %6467 = vmatpush1.bf16.msra.mxu0 %v6444
  %6468 = vmatprep.subr.bf16.mxu0 0
  %6469 = vmatpush1.bf16.msra.mxu0 0
  %6470 = vmatprep.subr.bf16.mxu0 0
  %6471 = vmatpush1.bf16.msra.mxu0 0
  %6472 = vmatprep.subr.bf16.mxu0 0
  %6473 = vmatpush1.bf16.msra.mxu0 0
  %6474 = vmatprep.subr.bf16.mxu0 0
  %6475 = vmatpush1.bf16.msra.mxu0 0
  %6476 = vmatprep.subr.bf16.mxu0 0
  %6477 = vmatpush1.bf16.msra.mxu0 0
  %6478 = vmatprep.subr.bf16.mxu0 0
  %6479 = vmatpush1.bf16.msra.mxu0 0
  %6480 = vmatprep.subr.bf16.mxu0 0
  %6481 = vmatpush1.bf16.msra.mxu0 0
  %6482 = vmatprep.subr.bf16.mxu0 0
  %6483 = vmatpush1.bf16.msra.mxu0 0
  %6484 = vmatprep.mubr.bf16.mxu0 0
  %6485 = vmatmul.mubr.bf16.gmra.mrb[0].mxu0 %v6450
  %v6486 = vpop.f32.mrb[0].mxu0
  %v6487 = vadd.f32 0.0, %v6486
  %v6488 = vpop.f32.mrb[0].mxu0
  %v6489 = vadd.f32 0.0, %v6488
  %v6490 = vpop.f32.mrb[0].mxu0
  %v6491 = vadd.f32 0.0, %v6490
  %v6492 = vpop.f32.mrb[0].mxu0
  %v6493 = vadd.f32 0.0, %v6492
  %6494 = vdwg.mxu0
  %v6495 = vadd.f32 %v5814, %v6487
  %v6496 = vadd.f32 %v5815, %v6489
  %v6497 = vadd.f32 %v5816, %v6491
  %v6498 = vadd.f32 %v5817, %v6493
  %v6499 = vld [vmem:[%s0 + $0x240] sm:$0xff]
  %v6500 = vld [vmem:[%s0 + $0x248] sm:$0xff]
  %v6501 = vld [vmem:[%s0 + $0x250] sm:$0xff]
  %v6502 = vld [vmem:[%s0 + $0x258] sm:$0xff]
  %v6503 = vld [vmem:[%s0 + $0x260] sm:$0xff]
  %v6504 = vld [vmem:[%s0 + $0x268] sm:$0xff]
  %v6505 = vld [vmem:[%s0 + $0x270] sm:$0xff]
  %v6506 = vld [vmem:[%s0 + $0x278] sm:$0xff]
  %v6507 = vld [vmem:[%s0 + $0x280] sm:$0xff]
  %v6508 = vld [vmem:[%s0 + $0x288] sm:$0xff]
  %v6509 = vld [vmem:[%s0 + $0x290] sm:$0xff]
  %v6510 = vld [vmem:[%s0 + $0x298] sm:$0xff]
  %v6511 = vld [vmem:[%s0 + $0x2a0] sm:$0xff]
  %v6512 = vld [vmem:[%s0 + $0x2a8] sm:$0xff]
  %v6513 = vld [vmem:[%s0 + $0x2b0] sm:$0xff]
  %v6514 = vld [vmem:[%s0 + $0x2b8] sm:$0xff]
  %v6531 = vunpack.c.l.b16 %v6499
  %v6532 = vunpack.c.h.b16 %v6499
  %v6533 = vunpack.c.l.b16 %v6500
  %v6534 = vunpack.c.h.b16 %v6500
  %v6535 = vunpack.c.l.b16 %v6501
  %v6536 = vunpack.c.h.b16 %v6501
  %v6537 = vunpack.c.l.b16 %v6502
  %v6538 = vunpack.c.h.b16 %v6502
  %v6539 = vunpack.c.l.b16 %v6503
  %v6540 = vunpack.c.h.b16 %v6503
  %v6541 = vunpack.c.l.b16 %v6504
  %v6542 = vunpack.c.h.b16 %v6504
  %v6543 = vunpack.c.l.b16 %v6505
  %v6544 = vunpack.c.h.b16 %v6505
  %v6545 = vunpack.c.l.b16 %v6506
  %v6546 = vunpack.c.h.b16 %v6506
  %v6547 = vunpack.c.l.b16 %v6507
  %v6548 = vunpack.c.h.b16 %v6507
  %v6549 = vunpack.c.l.b16 %v6508
  %v6550 = vunpack.c.h.b16 %v6508
  %v6551 = vunpack.c.l.b16 %v6509
  %v6552 = vunpack.c.h.b16 %v6509
  %v6553 = vunpack.c.l.b16 %v6510
  %v6554 = vunpack.c.h.b16 %v6510
  %v6555 = vunpack.c.l.b16 %v6511
  %v6556 = vunpack.c.h.b16 %v6511
  %v6557 = vunpack.c.l.b16 %v6512
  %v6558 = vunpack.c.h.b16 %v6512
  %v6559 = vunpack.c.l.b16 %v6513
  %v6560 = vunpack.c.h.b16 %v6513
  %v6561 = vunpack.c.l.b16 %v6514
  %v6562 = vunpack.c.h.b16 %v6514
  %v6563 = vpack.c.b16 %v6533, %v6531
  %v6564 = vpack.c.b16 %v6534, %v6532
  %v6565 = vpack.c.b16 %v6537, %v6535
  %v6566 = vpack.c.b16 %v6538, %v6536
  %v6567 = vpack.c.b16 %v6541, %v6539
  %v6568 = vpack.c.b16 %v6542, %v6540
  %v6569 = vpack.c.b16 %v6545, %v6543
  %v6570 = vpack.c.b16 %v6546, %v6544
  %v6571 = vpack.c.b16 %v6549, %v6547
  %v6572 = vpack.c.b16 %v6550, %v6548
  %v6573 = vpack.c.b16 %v6553, %v6551
  %v6574 = vpack.c.b16 %v6554, %v6552
  %v6575 = vpack.c.b16 %v6557, %v6555
  %v6576 = vpack.c.b16 %v6558, %v6556
  %v6577 = vpack.c.b16 %v6561, %v6559
  %v6578 = vpack.c.b16 %v6562, %v6560
  %6595 = vmatprep.subr.bf16.mxu0 %v6564
  %6596 = vmatpush1.bf16.msra.mxu0 %v6563
  %6597 = vmatprep.subr.bf16.mxu0 %v6566
  %6598 = vmatpush1.bf16.msra.mxu0 %v6565
  %6599 = vmatprep.subr.bf16.mxu0 %v6568
  %6600 = vmatpush1.bf16.msra.mxu0 %v6567
  %6601 = vmatprep.subr.bf16.mxu0 %v6570
  %6602 = vmatpush1.bf16.msra.mxu0 %v6569
  %6603 = vmatprep.subr.bf16.mxu0 %v6572
  %6604 = vmatpush1.bf16.msra.mxu0 %v6571
  %6605 = vmatprep.subr.bf16.mxu0 %v6574
  %6606 = vmatpush1.bf16.msra.mxu0 %v6573
  %6607 = vmatprep.subr.bf16.mxu0 %v6576
  %6608 = vmatpush1.bf16.msra.mxu0 %v6575
  %6609 = vmatprep.subr.bf16.mxu0 %v6578
  %6610 = vmatpush1.bf16.msra.mxu0 %v6577
  %6611 = vmatprep.subr.bf16.mxu0 0
  %6612 = vmatpush1.bf16.msra.mxu0 0
  %6613 = vmatprep.subr.bf16.mxu0 0
  %6614 = vmatpush1.bf16.msra.mxu0 0
  %6615 = vmatprep.subr.bf16.mxu0 0
  %6616 = vmatpush1.bf16.msra.mxu0 0
  %6617 = vmatprep.subr.bf16.mxu0 0
  %6618 = vmatpush1.bf16.msra.mxu0 0
  %6619 = vmatprep.subr.bf16.mxu0 0
  %6620 = vmatpush1.bf16.msra.mxu0 0
  %6621 = vmatprep.subr.bf16.mxu0 0
  %6622 = vmatpush1.bf16.msra.mxu0 0
  %6623 = vmatprep.subr.bf16.mxu0 0
  %6624 = vmatpush1.bf16.msra.mxu0 0
  %6625 = vmatprep.subr.bf16.mxu0 0
  %6626 = vmatpush1.bf16.msra.mxu0 0
  %6627 = vmatprep.mubr.bf16.mxu0 0
  %6628 = vmatmul.mubr.bf16.gmra.mrb[0].mxu0 %v251
  %v6629 = vpop.f32.mrb[0].mxu0
  %v6630 = vadd.f32 0.0, %v6629
  %v6631 = vpop.f32.mrb[0].mxu0
  %v6632 = vadd.f32 0.0, %v6631
  %v6633 = vpop.f32.mrb[0].mxu0
  %v6634 = vadd.f32 0.0, %v6633
  %v6635 = vpop.f32.mrb[0].mxu0
  %v6636 = vadd.f32 0.0, %v6635
  %6637 = vmatprep.mubr.bf16.mxu0 0
  %6638 = vmatmul.mubr.bf16.gmra.mrb[0].mxu0 %v252
  %v6639 = vpop.f32.mrb[0].mxu0
  %v6640 = vadd.f32 0.0, %v6639
  %v6641 = vpop.f32.mrb[0].mxu0
  %v6642 = vadd.f32 0.0, %v6641
  %v6643 = vpop.f32.mrb[0].mxu0
  %v6644 = vadd.f32 0.0, %v6643
  %v6645 = vpop.f32.mrb[0].mxu0
  %v6646 = vadd.f32 0.0, %v6645
  %6647 = vmatprep.mubr.bf16.mxu0 0
  %6648 = vmatmul.mubr.bf16.gmra.mrb[0].mxu0 %v253
  %v6649 = vpop.f32.mrb[0].mxu0
  %v6650 = vadd.f32 0.0, %v6649
  %v6651 = vpop.f32.mrb[0].mxu0
  %v6652 = vadd.f32 0.0, %v6651
  %v6653 = vpop.f32.mrb[0].mxu0
  %v6654 = vadd.f32 0.0, %v6653
  %v6655 = vpop.f32.mrb[0].mxu0
  %v6656 = vadd.f32 0.0, %v6655
  %6657 = vmatprep.mubr.bf16.mxu0 0
  %6658 = vmatmul.mubr.bf16.gmra.mrb[0].mxu0 %v254
  %v6659 = vpop.f32.mrb[0].mxu0
  %v6660 = vadd.f32 0.0, %v6659
  %v6661 = vpop.f32.mrb[0].mxu0
  %v6662 = vadd.f32 0.0, %v6661
  %v6663 = vpop.f32.mrb[0].mxu0
  %v6664 = vadd.f32 0.0, %v6663
  %v6665 = vpop.f32.mrb[0].mxu0
  %v6666 = vadd.f32 0.0, %v6665
  %6667 = vmatprep.mubr.bf16.mxu0 0
  %6668 = vmatmul.mubr.bf16.gmra.mrb[0].mxu0 %v255
  %v6669 = vpop.f32.mrb[0].mxu0
  %v6670 = vadd.f32 0.0, %v6669
  %v6671 = vpop.f32.mrb[0].mxu0
  %v6672 = vadd.f32 0.0, %v6671
  %v6673 = vpop.f32.mrb[0].mxu0
  %v6674 = vadd.f32 0.0, %v6673
  %v6675 = vpop.f32.mrb[0].mxu0
  %v6676 = vadd.f32 0.0, %v6675
  %6677 = vmatprep.mubr.bf16.mxu0 0
  %6678 = vmatmul.mubr.bf16.gmra.mrb[0].mxu0 %v256
  %v6679 = vpop.f32.mrb[0].mxu0
  %v6680 = vadd.f32 0.0, %v6679
  %v6681 = vpop.f32.mrb[0].mxu0
  %v6682 = vadd.f32 0.0, %v6681
  %v6683 = vpop.f32.mrb[0].mxu0
  %v6684 = vadd.f32 0.0, %v6683
  %v6685 = vpop.f32.mrb[0].mxu0
  %v6686 = vadd.f32 0.0, %v6685
  %6687 = vmatprep.mubr.bf16.mxu0 0
  %6688 = vmatmul.mubr.bf16.gmra.mrb[0].mxu0 %v257
  %v6689 = vpop.f32.mrb[0].mxu0
  %v6690 = vadd.f32 0.0, %v6689
  %v6691 = vpop.f32.mrb[0].mxu0
  %v6692 = vadd.f32 0.0, %v6691
  %v6693 = vpop.f32.mrb[0].mxu0
  %v6694 = vadd.f32 0.0, %v6693
  %v6695 = vpop.f32.mrb[0].mxu0
  %v6696 = vadd.f32 0.0, %v6695
  %6697 = vmatprep.mubr.bf16.mxu0 0
  %6698 = vmatmul.mubr.bf16.gmra.mrb[0].mxu0 %v258
  %v6699 = vpop.f32.mrb[0].mxu0
  %v6700 = vadd.f32 0.0, %v6699
  %v6701 = vpop.f32.mrb[0].mxu0
  %v6702 = vadd.f32 0.0, %v6701
  %v6703 = vpop.f32.mrb[0].mxu0
  %v6704 = vadd.f32 0.0, %v6703
  %v6705 = vpop.f32.mrb[0].mxu0
  %v6706 = vadd.f32 0.0, %v6705
  %6707 = vmatprep.mubr.bf16.mxu0 0
  %6708 = vmatmul.mubr.bf16.gmra.mrb[0].mxu0 %v259
  %v6709 = vpop.f32.mrb[0].mxu0
  %v6710 = vadd.f32 0.0, %v6709
  %v6711 = vpop.f32.mrb[0].mxu0
  %v6712 = vadd.f32 0.0, %v6711
  %v6713 = vpop.f32.mrb[0].mxu0
  %v6714 = vadd.f32 0.0, %v6713
  %v6715 = vpop.f32.mrb[0].mxu0
  %v6716 = vadd.f32 0.0, %v6715
  %6717 = vmatprep.mubr.bf16.mxu0 0
  %6718 = vmatmul.mubr.bf16.gmra.mrb[0].mxu0 %v260
  %v6719 = vpop.f32.mrb[0].mxu0
  %v6720 = vadd.f32 0.0, %v6719
  %v6721 = vpop.f32.mrb[0].mxu0
  %v6722 = vadd.f32 0.0, %v6721
  %v6723 = vpop.f32.mrb[0].mxu0
  %v6724 = vadd.f32 0.0, %v6723
  %v6725 = vpop.f32.mrb[0].mxu0
  %v6726 = vadd.f32 0.0, %v6725
  %6727 = vmatprep.mubr.bf16.mxu0 0
  %6728 = vmatmul.mubr.bf16.gmra.mrb[0].mxu0 %v261
  %v6729 = vpop.f32.mrb[0].mxu0
  %v6730 = vadd.f32 0.0, %v6729
  %v6731 = vpop.f32.mrb[0].mxu0
  %v6732 = vadd.f32 0.0, %v6731
  %v6733 = vpop.f32.mrb[0].mxu0
  %v6734 = vadd.f32 0.0, %v6733
  %v6735 = vpop.f32.mrb[0].mxu0
  %v6736 = vadd.f32 0.0, %v6735
  %6737 = vmatprep.mubr.bf16.mxu0 0
  %6738 = vmatmul.mubr.bf16.gmra.mrb[0].mxu0 %v262
  %v6739 = vpop.f32.mrb[0].mxu0
  %v6740 = vadd.f32 0.0, %v6739
  %v6741 = vpop.f32.mrb[0].mxu0
  %v6742 = vadd.f32 0.0, %v6741
  %v6743 = vpop.f32.mrb[0].mxu0
  %v6744 = vadd.f32 0.0, %v6743
  %v6745 = vpop.f32.mrb[0].mxu0
  %v6746 = vadd.f32 0.0, %v6745
  %6747 = vmatprep.mubr.bf16.mxu0 0
  %6748 = vmatmul.mubr.bf16.gmra.mrb[0].mxu0 %v263
  %v6749 = vpop.f32.mrb[0].mxu0
  %v6750 = vadd.f32 0.0, %v6749
  %v6751 = vpop.f32.mrb[0].mxu0
  %v6752 = vadd.f32 0.0, %v6751
  %v6753 = vpop.f32.mrb[0].mxu0
  %v6754 = vadd.f32 0.0, %v6753
  %v6755 = vpop.f32.mrb[0].mxu0
  %v6756 = vadd.f32 0.0, %v6755
  %6757 = vmatprep.mubr.bf16.mxu0 0
  %6758 = vmatmul.mubr.bf16.gmra.mrb[0].mxu0 %v264
  %v6759 = vpop.f32.mrb[0].mxu0
  %v6760 = vadd.f32 0.0, %v6759
  %v6761 = vpop.f32.mrb[0].mxu0
  %v6762 = vadd.f32 0.0, %v6761
  %v6763 = vpop.f32.mrb[0].mxu0
  %v6764 = vadd.f32 0.0, %v6763
  %v6765 = vpop.f32.mrb[0].mxu0
  %v6766 = vadd.f32 0.0, %v6765
  %6767 = vmatprep.mubr.bf16.mxu0 0
  %6768 = vmatmul.mubr.bf16.gmra.mrb[0].mxu0 %v265
  %v6769 = vpop.f32.mrb[0].mxu0
  %v6770 = vadd.f32 0.0, %v6769
  %v6771 = vpop.f32.mrb[0].mxu0
  %v6772 = vadd.f32 0.0, %v6771
  %v6773 = vpop.f32.mrb[0].mxu0
  %v6774 = vadd.f32 0.0, %v6773
  %v6775 = vpop.f32.mrb[0].mxu0
  %v6776 = vadd.f32 0.0, %v6775
  %6777 = vmatprep.mubr.bf16.mxu0 0
  %6778 = vmatmul.mubr.bf16.gmra.mrb[0].mxu0 %v266
  %v6779 = vpop.f32.mrb[0].mxu0
  %v6780 = vadd.f32 0.0, %v6779
  %v6781 = vpop.f32.mrb[0].mxu0
  %v6782 = vadd.f32 0.0, %v6781
  %v6783 = vpop.f32.mrb[0].mxu0
  %v6784 = vadd.f32 0.0, %v6783
  %v6785 = vpop.f32.mrb[0].mxu0
  %v6786 = vadd.f32 0.0, %v6785
  %6787 = vmatprep.mubr.bf16.mxu0 0
  %6788 = vmatmul.mubr.bf16.gmra.mrb[0].mxu0 %v267
  %v6789 = vpop.f32.mrb[0].mxu0
  %v6790 = vadd.f32 0.0, %v6789
  %v6791 = vpop.f32.mrb[0].mxu0
  %v6792 = vadd.f32 0.0, %v6791
  %v6793 = vpop.f32.mrb[0].mxu0
  %v6794 = vadd.f32 0.0, %v6793
  %v6795 = vpop.f32.mrb[0].mxu0
  %v6796 = vadd.f32 0.0, %v6795
  %6797 = vmatprep.mubr.bf16.mxu0 0
  %6798 = vmatmul.mubr.bf16.gmra.mrb[0].mxu0 %v268
  %v6799 = vpop.f32.mrb[0].mxu0
  %v6800 = vadd.f32 0.0, %v6799
  %v6801 = vpop.f32.mrb[0].mxu0
  %v6802 = vadd.f32 0.0, %v6801
  %v6803 = vpop.f32.mrb[0].mxu0
  %v6804 = vadd.f32 0.0, %v6803
  %v6805 = vpop.f32.mrb[0].mxu0
  %v6806 = vadd.f32 0.0, %v6805
  %6807 = vmatprep.mubr.bf16.mxu0 0
  %6808 = vmatmul.mubr.bf16.gmra.mrb[0].mxu0 %v269
  %v6809 = vpop.f32.mrb[0].mxu0
  %v6810 = vadd.f32 0.0, %v6809
  %v6811 = vpop.f32.mrb[0].mxu0
  %v6812 = vadd.f32 0.0, %v6811
  %v6813 = vpop.f32.mrb[0].mxu0
  %v6814 = vadd.f32 0.0, %v6813
  %v6815 = vpop.f32.mrb[0].mxu0
  %v6816 = vadd.f32 0.0, %v6815
  %6817 = vmatprep.mubr.bf16.mxu0 0
  %6818 = vmatmul.mubr.bf16.gmra.mrb[0].mxu0 %v270
  %v6819 = vpop.f32.mrb[0].mxu0
  %v6820 = vadd.f32 0.0, %v6819
  %v6821 = vpop.f32.mrb[0].mxu0
  %v6822 = vadd.f32 0.0, %v6821
  %v6823 = vpop.f32.mrb[0].mxu0
  %v6824 = vadd.f32 0.0, %v6823
  %v6825 = vpop.f32.mrb[0].mxu0
  %v6826 = vadd.f32 0.0, %v6825
  %6827 = vmatprep.mubr.bf16.mxu0 0
  %6828 = vmatmul.mubr.bf16.gmra.mrb[0].mxu0 %v271
  %v6829 = vpop.f32.mrb[0].mxu0
  %v6830 = vadd.f32 0.0, %v6829
  %v6831 = vpop.f32.mrb[0].mxu0
  %v6832 = vadd.f32 0.0, %v6831
  %v6833 = vpop.f32.mrb[0].mxu0
  %v6834 = vadd.f32 0.0, %v6833
  %v6835 = vpop.f32.mrb[0].mxu0
  %v6836 = vadd.f32 0.0, %v6835
  %6837 = vmatprep.mubr.bf16.mxu0 0
  %6838 = vmatmul.mubr.bf16.gmra.mrb[0].mxu0 %v272
  %v6839 = vpop.f32.mrb[0].mxu0
  %v6840 = vadd.f32 0.0, %v6839
  %v6841 = vpop.f32.mrb[0].mxu0
  %v6842 = vadd.f32 0.0, %v6841
  %v6843 = vpop.f32.mrb[0].mxu0
  %v6844 = vadd.f32 0.0, %v6843
  %v6845 = vpop.f32.mrb[0].mxu0
  %v6846 = vadd.f32 0.0, %v6845
  %6847 = vmatprep.mubr.bf16.mxu0 0
  %6848 = vmatmul.mubr.bf16.gmra.mrb[0].mxu0 %v273
  %v6849 = vpop.f32.mrb[0].mxu0
  %v6850 = vadd.f32 0.0, %v6849
  %v6851 = vpop.f32.mrb[0].mxu0
  %v6852 = vadd.f32 0.0, %v6851
  %v6853 = vpop.f32.mrb[0].mxu0
  %v6854 = vadd.f32 0.0, %v6853
  %v6855 = vpop.f32.mrb[0].mxu0
  %v6856 = vadd.f32 0.0, %v6855
  %6857 = vmatprep.mubr.bf16.mxu0 0
  %6858 = vmatmul.mubr.bf16.gmra.mrb[0].mxu0 %v274
  %v6859 = vpop.f32.mrb[0].mxu0
  %v6860 = vadd.f32 0.0, %v6859
  %v6861 = vpop.f32.mrb[0].mxu0
  %v6862 = vadd.f32 0.0, %v6861
  %v6863 = vpop.f32.mrb[0].mxu0
  %v6864 = vadd.f32 0.0, %v6863
  %v6865 = vpop.f32.mrb[0].mxu0
  %v6866 = vadd.f32 0.0, %v6865
  %6867 = vmatprep.mubr.bf16.mxu0 0
  %6868 = vmatmul.mubr.bf16.gmra.mrb[0].mxu0 %v275
  %v6869 = vpop.f32.mrb[0].mxu0
  %v6870 = vadd.f32 0.0, %v6869
  %v6871 = vpop.f32.mrb[0].mxu0
  %v6872 = vadd.f32 0.0, %v6871
  %v6873 = vpop.f32.mrb[0].mxu0
  %v6874 = vadd.f32 0.0, %v6873
  %v6875 = vpop.f32.mrb[0].mxu0
  %v6876 = vadd.f32 0.0, %v6875
  %6877 = vmatprep.mubr.bf16.mxu0 0
  %6878 = vmatmul.mubr.bf16.gmra.mrb[0].mxu0 %v276
  %v6879 = vpop.f32.mrb[0].mxu0
  %v6880 = vadd.f32 0.0, %v6879
  %v6881 = vpop.f32.mrb[0].mxu0
  %v6882 = vadd.f32 0.0, %v6881
  %v6883 = vpop.f32.mrb[0].mxu0
  %v6884 = vadd.f32 0.0, %v6883
  %v6885 = vpop.f32.mrb[0].mxu0
  %v6886 = vadd.f32 0.0, %v6885
  %6887 = vmatprep.mubr.bf16.mxu0 0
  %6888 = vmatmul.mubr.bf16.gmra.mrb[0].mxu0 %v277
  %v6889 = vpop.f32.mrb[0].mxu0
  %v6890 = vadd.f32 0.0, %v6889
  %v6891 = vpop.f32.mrb[0].mxu0
  %v6892 = vadd.f32 0.0, %v6891
  %v6893 = vpop.f32.mrb[0].mxu0
  %v6894 = vadd.f32 0.0, %v6893
  %v6895 = vpop.f32.mrb[0].mxu0
  %v6896 = vadd.f32 0.0, %v6895
  %6897 = vmatprep.mubr.bf16.mxu0 0
  %6898 = vmatmul.mubr.bf16.gmra.mrb[0].mxu0 %v278
  %v6899 = vpop.f32.mrb[0].mxu0
  %v6900 = vadd.f32 0.0, %v6899
  %v6901 = vpop.f32.mrb[0].mxu0
  %v6902 = vadd.f32 0.0, %v6901
  %v6903 = vpop.f32.mrb[0].mxu0
  %v6904 = vadd.f32 0.0, %v6903
  %v6905 = vpop.f32.mrb[0].mxu0
  %v6906 = vadd.f32 0.0, %v6905
  %6907 = vmatprep.mubr.bf16.mxu0 0
  %6908 = vmatmul.mubr.bf16.gmra.mrb[0].mxu0 %v279
  %v6909 = vpop.f32.mrb[0].mxu0
  %v6910 = vadd.f32 0.0, %v6909
  %v6911 = vpop.f32.mrb[0].mxu0
  %v6912 = vadd.f32 0.0, %v6911
  %v6913 = vpop.f32.mrb[0].mxu0
  %v6914 = vadd.f32 0.0, %v6913
  %v6915 = vpop.f32.mrb[0].mxu0
  %v6916 = vadd.f32 0.0, %v6915
  %6917 = vmatprep.mubr.bf16.mxu0 0
  %6918 = vmatmul.mubr.bf16.gmra.mrb[0].mxu0 %v280
  %v6919 = vpop.f32.mrb[0].mxu0
  %v6920 = vadd.f32 0.0, %v6919
  %v6921 = vpop.f32.mrb[0].mxu0
  %v6922 = vadd.f32 0.0, %v6921
  %v6923 = vpop.f32.mrb[0].mxu0
  %v6924 = vadd.f32 0.0, %v6923
  %v6925 = vpop.f32.mrb[0].mxu0
  %v6926 = vadd.f32 0.0, %v6925
  %6927 = vmatprep.mubr.bf16.mxu0 0
  %6928 = vmatmul.mubr.bf16.gmra.mrb[0].mxu0 %v281
  %v6929 = vpop.f32.mrb[0].mxu0
  %v6930 = vadd.f32 0.0, %v6929
  %v6931 = vpop.f32.mrb[0].mxu0
  %v6932 = vadd.f32 0.0, %v6931
  %v6933 = vpop.f32.mrb[0].mxu0
  %v6934 = vadd.f32 0.0, %v6933
  %v6935 = vpop.f32.mrb[0].mxu0
  %v6936 = vadd.f32 0.0, %v6935
  %6937 = vmatprep.mubr.bf16.mxu0 0
  %6938 = vmatmul.mubr.bf16.gmra.mrb[0].mxu0 %v282
  %v6939 = vpop.f32.mrb[0].mxu0
  %v6940 = vadd.f32 0.0, %v6939
  %v6941 = vpop.f32.mrb[0].mxu0
  %v6942 = vadd.f32 0.0, %v6941
  %v6943 = vpop.f32.mrb[0].mxu0
  %v6944 = vadd.f32 0.0, %v6943
  %v6945 = vpop.f32.mrb[0].mxu0
  %v6946 = vadd.f32 0.0, %v6945
  %6947 = vdwg.mxu0
  %v6948 = vmax.f32 %v6630, %v6710
  %v6949 = vmax.f32 %v6632, %v6712
  %v6950 = vmax.f32 %v6634, %v6714
  %v6951 = vmax.f32 %v6636, %v6716
  %v6952 = vmax.f32 %v6640, %v6720
  %v6953 = vmax.f32 %v6642, %v6722
  %v6954 = vmax.f32 %v6644, %v6724
  %v6955 = vmax.f32 %v6646, %v6726
  %v6956 = vmax.f32 %v6650, %v6730
  %v6957 = vmax.f32 %v6652, %v6732
  %v6958 = vmax.f32 %v6654, %v6734
  %v6959 = vmax.f32 %v6656, %v6736
  %v6960 = vmax.f32 %v6660, %v6740
  %v6961 = vmax.f32 %v6662, %v6742
  %v6962 = vmax.f32 %v6664, %v6744
  %v6963 = vmax.f32 %v6666, %v6746
  %v6964 = vmax.f32 %v6670, %v6750
  %v6965 = vmax.f32 %v6672, %v6752
  %v6966 = vmax.f32 %v6674, %v6754
  %v6967 = vmax.f32 %v6676, %v6756
  %v6968 = vmax.f32 %v6680, %v6760
  %v6969 = vmax.f32 %v6682, %v6762
  %v6970 = vmax.f32 %v6684, %v6764
  %v6971 = vmax.f32 %v6686, %v6766
  %v6972 = vmax.f32 %v6690, %v6770
  %v6973 = vmax.f32 %v6692, %v6772
  %v6974 = vmax.f32 %v6694, %v6774
  %v6975 = vmax.f32 %v6696, %v6776
  %v6976 = vmax.f32 %v6700, %v6780
  %v6977 = vmax.f32 %v6702, %v6782
  %v6978 = vmax.f32 %v6704, %v6784
  %v6979 = vmax.f32 %v6706, %v6786
  %v6980 = vmax.f32 %v6790, %v6870
  %v6981 = vmax.f32 %v6792, %v6872
  %v6982 = vmax.f32 %v6794, %v6874
  %v6983 = vmax.f32 %v6796, %v6876
  %v6984 = vmax.f32 %v6800, %v6880
  %v6985 = vmax.f32 %v6802, %v6882
  %v6986 = vmax.f32 %v6804, %v6884
  %v6987 = vmax.f32 %v6806, %v6886
  %v6988 = vmax.f32 %v6810, %v6890
  %v6989 = vmax.f32 %v6812, %v6892
  %v6990 = vmax.f32 %v6814, %v6894
  %v6991 = vmax.f32 %v6816, %v6896
  %v6992 = vmax.f32 %v6820, %v6900
  %v6993 = vmax.f32 %v6822, %v6902
  %v6994 = vmax.f32 %v6824, %v6904
  %v6995 = vmax.f32 %v6826, %v6906
  %v6996 = vmax.f32 %v6830, %v6910
  %v6997 = vmax.f32 %v6832, %v6912
  %v6998 = vmax.f32 %v6834, %v6914
  %v6999 = vmax.f32 %v6836, %v6916
  %v7000 = vmax.f32 %v6840, %v6920
  %v7001 = vmax.f32 %v6842, %v6922
  %v7002 = vmax.f32 %v6844, %v6924
  %v7003 = vmax.f32 %v6846, %v6926
  %v7004 = vmax.f32 %v6850, %v6930
  %v7005 = vmax.f32 %v6852, %v6932
  %v7006 = vmax.f32 %v6854, %v6934
  %v7007 = vmax.f32 %v6856, %v6936
  %v7008 = vmax.f32 %v6860, %v6940
  %v7009 = vmax.f32 %v6862, %v6942
  %v7010 = vmax.f32 %v6864, %v6944
  %v7011 = vmax.f32 %v6866, %v6946
  %v7012 = vmax.f32 %v6948, %v6980
  %v7013 = vmax.f32 %v6949, %v6981
  %v7014 = vmax.f32 %v6950, %v6982
  %v7015 = vmax.f32 %v6951, %v6983
  %v7016 = vmax.f32 %v6952, %v6984
  %v7017 = vmax.f32 %v6953, %v6985
  %v7018 = vmax.f32 %v6954, %v6986
  %v7019 = vmax.f32 %v6955, %v6987
  %v7020 = vmax.f32 %v6956, %v6988
  %v7021 = vmax.f32 %v6957, %v6989
  %v7022 = vmax.f32 %v6958, %v6990
  %v7023 = vmax.f32 %v6959, %v6991
  %v7024 = vmax.f32 %v6960, %v6992
  %v7025 = vmax.f32 %v6961, %v6993
  %v7026 = vmax.f32 %v6962, %v6994
  %v7027 = vmax.f32 %v6963, %v6995
  %v7028 = vmax.f32 %v6964, %v6996
  %v7029 = vmax.f32 %v6965, %v6997
  %v7030 = vmax.f32 %v6966, %v6998
  %v7031 = vmax.f32 %v6967, %v6999
  %v7032 = vmax.f32 %v6968, %v7000
  %v7033 = vmax.f32 %v6969, %v7001
  %v7034 = vmax.f32 %v6970, %v7002
  %v7035 = vmax.f32 %v6971, %v7003
  %v7036 = vmax.f32 %v6972, %v7004
  %v7037 = vmax.f32 %v6973, %v7005
  %v7038 = vmax.f32 %v6974, %v7006
  %v7039 = vmax.f32 %v6975, %v7007
  %v7040 = vmax.f32 %v6976, %v7008
  %v7041 = vmax.f32 %v6977, %v7009
  %v7042 = vmax.f32 %v6978, %v7010
  %v7043 = vmax.f32 %v6979, %v7011
  %v7044 = vadd.f32 %v7012, %v847
  %v7045 = vadd.f32 %v7013, %v847
  %v7046 = vadd.f32 %v7014, %v852
  %v7047 = vadd.f32 %v7015, %v852
  %v7048 = vadd.f32 %v7016, %v857
  %v7049 = vadd.f32 %v7017, %v857
  %v7050 = vadd.f32 %v7018, %v862
  %v7051 = vadd.f32 %v7019, %v862
  %v7052 = vadd.f32 %v7020, %v867
  %v7053 = vadd.f32 %v7021, %v867
  %v7054 = vadd.f32 %v7022, %v872
  %v7055 = vadd.f32 %v7023, %v872
  %v7056 = vadd.f32 %v7024, %v877
  %v7057 = vadd.f32 %v7025, %v877
  %v7058 = vadd.f32 %v7026, %v882
  %v7059 = vadd.f32 %v7027, %v882
  %v7060 = vadd.f32 %v7028, %v887
  %v7061 = vadd.f32 %v7029, %v887
  %v7062 = vadd.f32 %v7030, %v892
  %v7063 = vadd.f32 %v7031, %v892
  %v7064 = vadd.f32 %v7032, %v897
  %v7065 = vadd.f32 %v7033, %v897
  %v7066 = vadd.f32 %v7034, %v902
  %v7067 = vadd.f32 %v7035, %v902
  %v7068 = vadd.f32 %v7036, %v907
  %v7069 = vadd.f32 %v7037, %v907
  %v7070 = vadd.f32 %v7038, %v912
  %v7071 = vadd.f32 %v7039, %v912
  %v7072 = vadd.f32 %v7040, %v917
  %v7073 = vadd.f32 %v7041, %v917
  %v7074 = vadd.f32 %v7042, %v922
  %v7075 = vadd.f32 %v7043, %v922
  %v7076 = vmax.f32 %v7044, 0.0
  %v7077 = vmax.f32 %v7045, 0.0
  %v7078 = vmax.f32 %v7046, 0.0
  %v7079 = vmax.f32 %v7047, 0.0
  %v7080 = vmax.f32 %v7048, 0.0
  %v7081 = vmax.f32 %v7049, 0.0
  %v7082 = vmax.f32 %v7050, 0.0
  %v7083 = vmax.f32 %v7051, 0.0
  %v7084 = vmax.f32 %v7052, 0.0
  %v7085 = vmax.f32 %v7053, 0.0
  %v7086 = vmax.f32 %v7054, 0.0
  %v7087 = vmax.f32 %v7055, 0.0
  %v7088 = vmax.f32 %v7056, 0.0
  %v7089 = vmax.f32 %v7057, 0.0
  %v7090 = vmax.f32 %v7058, 0.0
  %v7091 = vmax.f32 %v7059, 0.0
  %v7092 = vmax.f32 %v7060, 0.0
  %v7093 = vmax.f32 %v7061, 0.0
  %v7094 = vmax.f32 %v7062, 0.0
  %v7095 = vmax.f32 %v7063, 0.0
  %v7096 = vmax.f32 %v7064, 0.0
  %v7097 = vmax.f32 %v7065, 0.0
  %v7098 = vmax.f32 %v7066, 0.0
  %v7099 = vmax.f32 %v7067, 0.0
  %v7100 = vmax.f32 %v7068, 0.0
  %v7101 = vmax.f32 %v7069, 0.0
  %v7102 = vmax.f32 %v7070, 0.0
  %v7103 = vmax.f32 %v7071, 0.0
  %v7104 = vmax.f32 %v7072, 0.0
  %v7105 = vmax.f32 %v7073, 0.0
  %v7106 = vmax.f32 %v7074, 0.0
  %v7107 = vmax.f32 %v7075, 0.0
  %s7108 = scalar_lea.vmem %s3, 72
  %v7109 = vld [vmem:[%s7108] sm:$0xf]
  %v7110 = vld [vmem:[%s7108 + $0x4] sm:$0xf]
  %v7111 = vpack.c.bf16 %v7078, %v7076
  %v7112 = vpack.c.bf16 %v7079, %v7077
  %v7113 = vpack.c.bf16 %v7082, %v7080
  %v7114 = vpack.c.bf16 %v7083, %v7081
  %v7115 = vpack.c.bf16 %v7086, %v7084
  %v7116 = vpack.c.bf16 %v7087, %v7085
  %v7117 = vpack.c.bf16 %v7090, %v7088
  %v7118 = vpack.c.bf16 %v7091, %v7089
  %v7119 = vpack.c.bf16 %v7094, %v7092
  %v7120 = vpack.c.bf16 %v7095, %v7093
  %v7121 = vpack.c.bf16 %v7098, %v7096
  %v7122 = vpack.c.bf16 %v7099, %v7097
  %v7123 = vpack.c.bf16 %v7102, %v7100
  %v7124 = vpack.c.bf16 %v7103, %v7101
  %v7125 = vpack.c.bf16 %v7106, %v7104
  %v7126 = vpack.c.bf16 %v7107, %v7105
  %v7129 = vunpack.c.l.b16 %v7109
  %v7130 = vunpack.c.l.b16 %v7110
  %v7131 = vpack.c.b16 %v7130, %v7129
  %7133 = vmatprep.subr.bf16.mxu0 %v7112
  %7134 = vmatpush1.bf16.msra.mxu0 %v7111
  %7135 = vmatprep.subr.bf16.mxu0 %v7114
  %7136 = vmatpush1.bf16.msra.mxu0 %v7113
  %7137 = vmatprep.subr.bf16.mxu0 %v7116
  %7138 = vmatpush1.bf16.msra.mxu0 %v7115
  %7139 = vmatprep.subr.bf16.mxu0 %v7118
  %7140 = vmatpush1.bf16.msra.mxu0 %v7117
  %7141 = vmatprep.subr.bf16.mxu0 %v7120
  %7142 = vmatpush1.bf16.msra.mxu0 %v7119
  %7143 = vmatprep.subr.bf16.mxu0 %v7122
  %7144 = vmatpush1.bf16.msra.mxu0 %v7121
  %7145 = vmatprep.subr.bf16.mxu0 %v7124
  %7146 = vmatpush1.bf16.msra.mxu0 %v7123
  %7147 = vmatprep.subr.bf16.mxu0 %v7126
  %7148 = vmatpush1.bf16.msra.mxu0 %v7125
  %7149 = vmatprep.subr.bf16.mxu0 0
  %7150 = vmatpush1.bf16.msra.mxu0 0
  %7151 = vmatprep.subr.bf16.mxu0 0
  %7152 = vmatpush1.bf16.msra.mxu0 0
  %7153 = vmatprep.subr.bf16.mxu0 0
  %7154 = vmatpush1.bf16.msra.mxu0 0
  %7155 = vmatprep.subr.bf16.mxu0 0
  %7156 = vmatpush1.bf16.msra.mxu0 0
  %7157 = vmatprep.subr.bf16.mxu0 0
  %7158 = vmatpush1.bf16.msra.mxu0 0
  %7159 = vmatprep.subr.bf16.mxu0 0
  %7160 = vmatpush1.bf16.msra.mxu0 0
  %7161 = vmatprep.subr.bf16.mxu0 0
  %7162 = vmatpush1.bf16.msra.mxu0 0
  %7163 = vmatprep.subr.bf16.mxu0 0
  %7164 = vmatpush1.bf16.msra.mxu0 0
  %7165 = vmatprep.mubr.bf16.mxu0 0
  %7166 = vmatmul.mubr.bf16.gmra.mrb[0].mxu0 %v7131
  %v7167 = vpop.f32.mrb[0].mxu0
  %v7168 = vadd.f32 0.0, %v7167
  %v7169 = vpop.f32.mrb[0].mxu0
  %v7170 = vadd.f32 0.0, %v7169
  %v7171 = vpop.f32.mrb[0].mxu0
  %v7172 = vadd.f32 0.0, %v7171
  %v7173 = vpop.f32.mrb[0].mxu0
  %v7174 = vadd.f32 0.0, %v7173
  %7175 = vdwg.mxu0
  %v7176 = vadd.f32 %v6495, %v7168
  %v7177 = vadd.f32 %v6496, %v7170
  %v7178 = vadd.f32 %v6497, %v7172
  %v7179 = vadd.f32 %v6498, %v7174
  %v7180 = vld [vmem:[%s0 + $0x280] sm:$0xff]
  %v7181 = vld [vmem:[%s0 + $0x288] sm:$0xff]
  %v7182 = vld [vmem:[%s0 + $0x290] sm:$0xff]
  %v7183 = vld [vmem:[%s0 + $0x298] sm:$0xff]
  %v7184 = vld [vmem:[%s0 + $0x2a0] sm:$0xff]
  %v7185 = vld [vmem:[%s0 + $0x2a8] sm:$0xff]
  %v7186 = vld [vmem:[%s0 + $0x2b0] sm:$0xff]
  %v7187 = vld [vmem:[%s0 + $0x2b8] sm:$0xff]
  %v7188 = vld [vmem:[%s0 + $0x2c0] sm:$0xff]
  %v7189 = vld [vmem:[%s0 + $0x2c8] sm:$0xff]
  %v7190 = vld [vmem:[%s0 + $0x2d0] sm:$0xff]
  %v7191 = vld [vmem:[%s0 + $0x2d8] sm:$0xff]
  %v7192 = vld [vmem:[%s0 + $0x2e0] sm:$0xff]
  %v7193 = vld [vmem:[%s0 + $0x2e8] sm:$0xff]
  %v7194 = vld [vmem:[%s0 + $0x2f0] sm:$0xff]
  %v7195 = vld [vmem:[%s0 + $0x2f8] sm:$0xff]
  %v7212 = vunpack.c.l.b16 %v7180
  %v7213 = vunpack.c.h.b16 %v7180
  %v7214 = vunpack.c.l.b16 %v7181
  %v7215 = vunpack.c.h.b16 %v7181
  %v7216 = vunpack.c.l.b16 %v7182
  %v7217 = vunpack.c.h.b16 %v7182
  %v7218 = vunpack.c.l.b16 %v7183
  %v7219 = vunpack.c.h.b16 %v7183
  %v7220 = vunpack.c.l.b16 %v7184
  %v7221 = vunpack.c.h.b16 %v7184
  %v7222 = vunpack.c.l.b16 %v7185
  %v7223 = vunpack.c.h.b16 %v7185
  %v7224 = vunpack.c.l.b16 %v7186
  %v7225 = vunpack.c.h.b16 %v7186
  %v7226 = vunpack.c.l.b16 %v7187
  %v7227 = vunpack.c.h.b16 %v7187
  %v7228 = vunpack.c.l.b16 %v7188
  %v7229 = vunpack.c.h.b16 %v7188
  %v7230 = vunpack.c.l.b16 %v7189
  %v7231 = vunpack.c.h.b16 %v7189
  %v7232 = vunpack.c.l.b16 %v7190
  %v7233 = vunpack.c.h.b16 %v7190
  %v7234 = vunpack.c.l.b16 %v7191
  %v7235 = vunpack.c.h.b16 %v7191
  %v7236 = vunpack.c.l.b16 %v7192
  %v7237 = vunpack.c.h.b16 %v7192
  %v7238 = vunpack.c.l.b16 %v7193
  %v7239 = vunpack.c.h.b16 %v7193
  %v7240 = vunpack.c.l.b16 %v7194
  %v7241 = vunpack.c.h.b16 %v7194
  %v7242 = vunpack.c.l.b16 %v7195
  %v7243 = vunpack.c.h.b16 %v7195
  %v7244 = vpack.c.b16 %v7214, %v7212
  %v7245 = vpack.c.b16 %v7215, %v7213
  %v7246 = vpack.c.b16 %v7218, %v7216
  %v7247 = vpack.c.b16 %v7219, %v7217
  %v7248 = vpack.c.b16 %v7222, %v7220
  %v7249 = vpack.c.b16 %v7223, %v7221
  %v7250 = vpack.c.b16 %v7226, %v7224
  %v7251 = vpack.c.b16 %v7227, %v7225
  %v7252 = vpack.c.b16 %v7230, %v7228
  %v7253 = vpack.c.b16 %v7231, %v7229
  %v7254 = vpack.c.b16 %v7234, %v7232
  %v7255 = vpack.c.b16 %v7235, %v7233
  %v7256 = vpack.c.b16 %v7238, %v7236
  %v7257 = vpack.c.b16 %v7239, %v7237
  %v7258 = vpack.c.b16 %v7242, %v7240
  %v7259 = vpack.c.b16 %v7243, %v7241
  %7276 = vmatprep.subr.bf16.mxu0 %v7245
  %7277 = vmatpush1.bf16.msra.mxu0 %v7244
  %7278 = vmatprep.subr.bf16.mxu0 %v7247
  %7279 = vmatpush1.bf16.msra.mxu0 %v7246
  %7280 = vmatprep.subr.bf16.mxu0 %v7249
  %7281 = vmatpush1.bf16.msra.mxu0 %v7248
  %7282 = vmatprep.subr.bf16.mxu0 %v7251
  %7283 = vmatpush1.bf16.msra.mxu0 %v7250
  %7284 = vmatprep.subr.bf16.mxu0 %v7253
  %7285 = vmatpush1.bf16.msra.mxu0 %v7252
  %7286 = vmatprep.subr.bf16.mxu0 %v7255
  %7287 = vmatpush1.bf16.msra.mxu0 %v7254
  %7288 = vmatprep.subr.bf16.mxu0 %v7257
  %7289 = vmatpush1.bf16.msra.mxu0 %v7256
  %7290 = vmatprep.subr.bf16.mxu0 %v7259
  %7291 = vmatpush1.bf16.msra.mxu0 %v7258
  %7292 = vmatprep.subr.bf16.mxu0 0
  %7293 = vmatpush1.bf16.msra.mxu0 0
  %7294 = vmatprep.subr.bf16.mxu0 0
  %7295 = vmatpush1.bf16.msra.mxu0 0
  %7296 = vmatprep.subr.bf16.mxu0 0
  %7297 = vmatpush1.bf16.msra.mxu0 0
  %7298 = vmatprep.subr.bf16.mxu0 0
  %7299 = vmatpush1.bf16.msra.mxu0 0
  %7300 = vmatprep.subr.bf16.mxu0 0
  %7301 = vmatpush1.bf16.msra.mxu0 0
  %7302 = vmatprep.subr.bf16.mxu0 0
  %7303 = vmatpush1.bf16.msra.mxu0 0
  %7304 = vmatprep.subr.bf16.mxu0 0
  %7305 = vmatpush1.bf16.msra.mxu0 0
  %7306 = vmatprep.subr.bf16.mxu0 0
  %7307 = vmatpush1.bf16.msra.mxu0 0
  %7308 = vmatprep.mubr.bf16.mxu0 0
  %7309 = vmatmul.mubr.bf16.gmra.mrb[0].mxu0 %v251
  %v7310 = vpop.f32.mrb[0].mxu0
  %v7311 = vadd.f32 0.0, %v7310
  %v7312 = vpop.f32.mrb[0].mxu0
  %v7313 = vadd.f32 0.0, %v7312
  %v7314 = vpop.f32.mrb[0].mxu0
  %v7315 = vadd.f32 0.0, %v7314
  %v7316 = vpop.f32.mrb[0].mxu0
  %v7317 = vadd.f32 0.0, %v7316
  %7318 = vmatprep.mubr.bf16.mxu0 0
  %7319 = vmatmul.mubr.bf16.gmra.mrb[0].mxu0 %v252
  %v7320 = vpop.f32.mrb[0].mxu0
  %v7321 = vadd.f32 0.0, %v7320
  %v7322 = vpop.f32.mrb[0].mxu0
  %v7323 = vadd.f32 0.0, %v7322
  %v7324 = vpop.f32.mrb[0].mxu0
  %v7325 = vadd.f32 0.0, %v7324
  %v7326 = vpop.f32.mrb[0].mxu0
  %v7327 = vadd.f32 0.0, %v7326
  %7328 = vmatprep.mubr.bf16.mxu0 0
  %7329 = vmatmul.mubr.bf16.gmra.mrb[0].mxu0 %v253
  %v7330 = vpop.f32.mrb[0].mxu0
  %v7331 = vadd.f32 0.0, %v7330
  %v7332 = vpop.f32.mrb[0].mxu0
  %v7333 = vadd.f32 0.0, %v7332
  %v7334 = vpop.f32.mrb[0].mxu0
  %v7335 = vadd.f32 0.0, %v7334
  %v7336 = vpop.f32.mrb[0].mxu0
  %v7337 = vadd.f32 0.0, %v7336
  %7338 = vmatprep.mubr.bf16.mxu0 0
  %7339 = vmatmul.mubr.bf16.gmra.mrb[0].mxu0 %v254
  %v7340 = vpop.f32.mrb[0].mxu0
  %v7341 = vadd.f32 0.0, %v7340
  %v7342 = vpop.f32.mrb[0].mxu0
  %v7343 = vadd.f32 0.0, %v7342
  %v7344 = vpop.f32.mrb[0].mxu0
  %v7345 = vadd.f32 0.0, %v7344
  %v7346 = vpop.f32.mrb[0].mxu0
  %v7347 = vadd.f32 0.0, %v7346
  %7348 = vmatprep.mubr.bf16.mxu0 0
  %7349 = vmatmul.mubr.bf16.gmra.mrb[0].mxu0 %v255
  %v7350 = vpop.f32.mrb[0].mxu0
  %v7351 = vadd.f32 0.0, %v7350
  %v7352 = vpop.f32.mrb[0].mxu0
  %v7353 = vadd.f32 0.0, %v7352
  %v7354 = vpop.f32.mrb[0].mxu0
  %v7355 = vadd.f32 0.0, %v7354
  %v7356 = vpop.f32.mrb[0].mxu0
  %v7357 = vadd.f32 0.0, %v7356
  %7358 = vmatprep.mubr.bf16.mxu0 0
  %7359 = vmatmul.mubr.bf16.gmra.mrb[0].mxu0 %v256
  %v7360 = vpop.f32.mrb[0].mxu0
  %v7361 = vadd.f32 0.0, %v7360
  %v7362 = vpop.f32.mrb[0].mxu0
  %v7363 = vadd.f32 0.0, %v7362
  %v7364 = vpop.f32.mrb[0].mxu0
  %v7365 = vadd.f32 0.0, %v7364
  %v7366 = vpop.f32.mrb[0].mxu0
  %v7367 = vadd.f32 0.0, %v7366
  %7368 = vmatprep.mubr.bf16.mxu0 0
  %7369 = vmatmul.mubr.bf16.gmra.mrb[0].mxu0 %v257
  %v7370 = vpop.f32.mrb[0].mxu0
  %v7371 = vadd.f32 0.0, %v7370
  %v7372 = vpop.f32.mrb[0].mxu0
  %v7373 = vadd.f32 0.0, %v7372
  %v7374 = vpop.f32.mrb[0].mxu0
  %v7375 = vadd.f32 0.0, %v7374
  %v7376 = vpop.f32.mrb[0].mxu0
  %v7377 = vadd.f32 0.0, %v7376
  %7378 = vmatprep.mubr.bf16.mxu0 0
  %7379 = vmatmul.mubr.bf16.gmra.mrb[0].mxu0 %v258
  %v7380 = vpop.f32.mrb[0].mxu0
  %v7381 = vadd.f32 0.0, %v7380
  %v7382 = vpop.f32.mrb[0].mxu0
  %v7383 = vadd.f32 0.0, %v7382
  %v7384 = vpop.f32.mrb[0].mxu0
  %v7385 = vadd.f32 0.0, %v7384
  %v7386 = vpop.f32.mrb[0].mxu0
  %v7387 = vadd.f32 0.0, %v7386
  %7388 = vmatprep.mubr.bf16.mxu0 0
  %7389 = vmatmul.mubr.bf16.gmra.mrb[0].mxu0 %v259
  %v7390 = vpop.f32.mrb[0].mxu0
  %v7391 = vadd.f32 0.0, %v7390
  %v7392 = vpop.f32.mrb[0].mxu0
  %v7393 = vadd.f32 0.0, %v7392
  %v7394 = vpop.f32.mrb[0].mxu0
  %v7395 = vadd.f32 0.0, %v7394
  %v7396 = vpop.f32.mrb[0].mxu0
  %v7397 = vadd.f32 0.0, %v7396
  %7398 = vmatprep.mubr.bf16.mxu0 0
  %7399 = vmatmul.mubr.bf16.gmra.mrb[0].mxu0 %v260
  %v7400 = vpop.f32.mrb[0].mxu0
  %v7401 = vadd.f32 0.0, %v7400
  %v7402 = vpop.f32.mrb[0].mxu0
  %v7403 = vadd.f32 0.0, %v7402
  %v7404 = vpop.f32.mrb[0].mxu0
  %v7405 = vadd.f32 0.0, %v7404
  %v7406 = vpop.f32.mrb[0].mxu0
  %v7407 = vadd.f32 0.0, %v7406
  %7408 = vmatprep.mubr.bf16.mxu0 0
  %7409 = vmatmul.mubr.bf16.gmra.mrb[0].mxu0 %v261
  %v7410 = vpop.f32.mrb[0].mxu0
  %v7411 = vadd.f32 0.0, %v7410
  %v7412 = vpop.f32.mrb[0].mxu0
  %v7413 = vadd.f32 0.0, %v7412
  %v7414 = vpop.f32.mrb[0].mxu0
  %v7415 = vadd.f32 0.0, %v7414
  %v7416 = vpop.f32.mrb[0].mxu0
  %v7417 = vadd.f32 0.0, %v7416
  %7418 = vmatprep.mubr.bf16.mxu0 0
  %7419 = vmatmul.mubr.bf16.gmra.mrb[0].mxu0 %v262
  %v7420 = vpop.f32.mrb[0].mxu0
  %v7421 = vadd.f32 0.0, %v7420
  %v7422 = vpop.f32.mrb[0].mxu0
  %v7423 = vadd.f32 0.0, %v7422
  %v7424 = vpop.f32.mrb[0].mxu0
  %v7425 = vadd.f32 0.0, %v7424
  %v7426 = vpop.f32.mrb[0].mxu0
  %v7427 = vadd.f32 0.0, %v7426
  %7428 = vmatprep.mubr.bf16.mxu0 0
  %7429 = vmatmul.mubr.bf16.gmra.mrb[0].mxu0 %v263
  %v7430 = vpop.f32.mrb[0].mxu0
  %v7431 = vadd.f32 0.0, %v7430
  %v7432 = vpop.f32.mrb[0].mxu0
  %v7433 = vadd.f32 0.0, %v7432
  %v7434 = vpop.f32.mrb[0].mxu0
  %v7435 = vadd.f32 0.0, %v7434
  %v7436 = vpop.f32.mrb[0].mxu0
  %v7437 = vadd.f32 0.0, %v7436
  %7438 = vmatprep.mubr.bf16.mxu0 0
  %7439 = vmatmul.mubr.bf16.gmra.mrb[0].mxu0 %v264
  %v7440 = vpop.f32.mrb[0].mxu0
  %v7441 = vadd.f32 0.0, %v7440
  %v7442 = vpop.f32.mrb[0].mxu0
  %v7443 = vadd.f32 0.0, %v7442
  %v7444 = vpop.f32.mrb[0].mxu0
  %v7445 = vadd.f32 0.0, %v7444
  %v7446 = vpop.f32.mrb[0].mxu0
  %v7447 = vadd.f32 0.0, %v7446
  %7448 = vmatprep.mubr.bf16.mxu0 0
  %7449 = vmatmul.mubr.bf16.gmra.mrb[0].mxu0 %v265
  %v7450 = vpop.f32.mrb[0].mxu0
  %v7451 = vadd.f32 0.0, %v7450
  %v7452 = vpop.f32.mrb[0].mxu0
  %v7453 = vadd.f32 0.0, %v7452
  %v7454 = vpop.f32.mrb[0].mxu0
  %v7455 = vadd.f32 0.0, %v7454
  %v7456 = vpop.f32.mrb[0].mxu0
  %v7457 = vadd.f32 0.0, %v7456
  %7458 = vmatprep.mubr.bf16.mxu0 0
  %7459 = vmatmul.mubr.bf16.gmra.mrb[0].mxu0 %v266
  %v7460 = vpop.f32.mrb[0].mxu0
  %v7461 = vadd.f32 0.0, %v7460
  %v7462 = vpop.f32.mrb[0].mxu0
  %v7463 = vadd.f32 0.0, %v7462
  %v7464 = vpop.f32.mrb[0].mxu0
  %v7465 = vadd.f32 0.0, %v7464
  %v7466 = vpop.f32.mrb[0].mxu0
  %v7467 = vadd.f32 0.0, %v7466
  %7468 = vmatprep.mubr.bf16.mxu0 0
  %7469 = vmatmul.mubr.bf16.gmra.mrb[0].mxu0 %v267
  %v7470 = vpop.f32.mrb[0].mxu0
  %v7471 = vadd.f32 0.0, %v7470
  %v7472 = vpop.f32.mrb[0].mxu0
  %v7473 = vadd.f32 0.0, %v7472
  %v7474 = vpop.f32.mrb[0].mxu0
  %v7475 = vadd.f32 0.0, %v7474
  %v7476 = vpop.f32.mrb[0].mxu0
  %v7477 = vadd.f32 0.0, %v7476
  %7478 = vmatprep.mubr.bf16.mxu0 0
  %7479 = vmatmul.mubr.bf16.gmra.mrb[0].mxu0 %v268
  %v7480 = vpop.f32.mrb[0].mxu0
  %v7481 = vadd.f32 0.0, %v7480
  %v7482 = vpop.f32.mrb[0].mxu0
  %v7483 = vadd.f32 0.0, %v7482
  %v7484 = vpop.f32.mrb[0].mxu0
  %v7485 = vadd.f32 0.0, %v7484
  %v7486 = vpop.f32.mrb[0].mxu0
  %v7487 = vadd.f32 0.0, %v7486
  %7488 = vmatprep.mubr.bf16.mxu0 0
  %7489 = vmatmul.mubr.bf16.gmra.mrb[0].mxu0 %v269
  %v7490 = vpop.f32.mrb[0].mxu0
  %v7491 = vadd.f32 0.0, %v7490
  %v7492 = vpop.f32.mrb[0].mxu0
  %v7493 = vadd.f32 0.0, %v7492
  %v7494 = vpop.f32.mrb[0].mxu0
  %v7495 = vadd.f32 0.0, %v7494
  %v7496 = vpop.f32.mrb[0].mxu0
  %v7497 = vadd.f32 0.0, %v7496
  %7498 = vmatprep.mubr.bf16.mxu0 0
  %7499 = vmatmul.mubr.bf16.gmra.mrb[0].mxu0 %v270
  %v7500 = vpop.f32.mrb[0].mxu0
  %v7501 = vadd.f32 0.0, %v7500
  %v7502 = vpop.f32.mrb[0].mxu0
  %v7503 = vadd.f32 0.0, %v7502
  %v7504 = vpop.f32.mrb[0].mxu0
  %v7505 = vadd.f32 0.0, %v7504
  %v7506 = vpop.f32.mrb[0].mxu0
  %v7507 = vadd.f32 0.0, %v7506
  %7508 = vmatprep.mubr.bf16.mxu0 0
  %7509 = vmatmul.mubr.bf16.gmra.mrb[0].mxu0 %v271
  %v7510 = vpop.f32.mrb[0].mxu0
  %v7511 = vadd.f32 0.0, %v7510
  %v7512 = vpop.f32.mrb[0].mxu0
  %v7513 = vadd.f32 0.0, %v7512
  %v7514 = vpop.f32.mrb[0].mxu0
  %v7515 = vadd.f32 0.0, %v7514
  %v7516 = vpop.f32.mrb[0].mxu0
  %v7517 = vadd.f32 0.0, %v7516
  %7518 = vmatprep.mubr.bf16.mxu0 0
  %7519 = vmatmul.mubr.bf16.gmra.mrb[0].mxu0 %v272
  %v7520 = vpop.f32.mrb[0].mxu0
  %v7521 = vadd.f32 0.0, %v7520
  %v7522 = vpop.f32.mrb[0].mxu0
  %v7523 = vadd.f32 0.0, %v7522
  %v7524 = vpop.f32.mrb[0].mxu0
  %v7525 = vadd.f32 0.0, %v7524
  %v7526 = vpop.f32.mrb[0].mxu0
  %v7527 = vadd.f32 0.0, %v7526
  %7528 = vmatprep.mubr.bf16.mxu0 0
  %7529 = vmatmul.mubr.bf16.gmra.mrb[0].mxu0 %v273
  %v7530 = vpop.f32.mrb[0].mxu0
  %v7531 = vadd.f32 0.0, %v7530
  %v7532 = vpop.f32.mrb[0].mxu0
  %v7533 = vadd.f32 0.0, %v7532
  %v7534 = vpop.f32.mrb[0].mxu0
  %v7535 = vadd.f32 0.0, %v7534
  %v7536 = vpop.f32.mrb[0].mxu0
  %v7537 = vadd.f32 0.0, %v7536
  %7538 = vmatprep.mubr.bf16.mxu0 0
  %7539 = vmatmul.mubr.bf16.gmra.mrb[0].mxu0 %v274
  %v7540 = vpop.f32.mrb[0].mxu0
  %v7541 = vadd.f32 0.0, %v7540
  %v7542 = vpop.f32.mrb[0].mxu0
  %v7543 = vadd.f32 0.0, %v7542
  %v7544 = vpop.f32.mrb[0].mxu0
  %v7545 = vadd.f32 0.0, %v7544
  %v7546 = vpop.f32.mrb[0].mxu0
  %v7547 = vadd.f32 0.0, %v7546
  %7548 = vmatprep.mubr.bf16.mxu0 0
  %7549 = vmatmul.mubr.bf16.gmra.mrb[0].mxu0 %v275
  %v7550 = vpop.f32.mrb[0].mxu0
  %v7551 = vadd.f32 0.0, %v7550
  %v7552 = vpop.f32.mrb[0].mxu0
  %v7553 = vadd.f32 0.0, %v7552
  %v7554 = vpop.f32.mrb[0].mxu0
  %v7555 = vadd.f32 0.0, %v7554
  %v7556 = vpop.f32.mrb[0].mxu0
  %v7557 = vadd.f32 0.0, %v7556
  %7558 = vmatprep.mubr.bf16.mxu0 0
  %7559 = vmatmul.mubr.bf16.gmra.mrb[0].mxu0 %v276
  %v7560 = vpop.f32.mrb[0].mxu0
  %v7561 = vadd.f32 0.0, %v7560
  %v7562 = vpop.f32.mrb[0].mxu0
  %v7563 = vadd.f32 0.0, %v7562
  %v7564 = vpop.f32.mrb[0].mxu0
  %v7565 = vadd.f32 0.0, %v7564
  %v7566 = vpop.f32.mrb[0].mxu0
  %v7567 = vadd.f32 0.0, %v7566
  %7568 = vmatprep.mubr.bf16.mxu0 0
  %7569 = vmatmul.mubr.bf16.gmra.mrb[0].mxu0 %v277
  %v7570 = vpop.f32.mrb[0].mxu0
  %v7571 = vadd.f32 0.0, %v7570
  %v7572 = vpop.f32.mrb[0].mxu0
  %v7573 = vadd.f32 0.0, %v7572
  %v7574 = vpop.f32.mrb[0].mxu0
  %v7575 = vadd.f32 0.0, %v7574
  %v7576 = vpop.f32.mrb[0].mxu0
  %v7577 = vadd.f32 0.0, %v7576
  %7578 = vmatprep.mubr.bf16.mxu0 0
  %7579 = vmatmul.mubr.bf16.gmra.mrb[0].mxu0 %v278
  %v7580 = vpop.f32.mrb[0].mxu0
  %v7581 = vadd.f32 0.0, %v7580
  %v7582 = vpop.f32.mrb[0].mxu0
  %v7583 = vadd.f32 0.0, %v7582
  %v7584 = vpop.f32.mrb[0].mxu0
  %v7585 = vadd.f32 0.0, %v7584
  %v7586 = vpop.f32.mrb[0].mxu0
  %v7587 = vadd.f32 0.0, %v7586
  %7588 = vmatprep.mubr.bf16.mxu0 0
  %7589 = vmatmul.mubr.bf16.gmra.mrb[0].mxu0 %v279
  %v7590 = vpop.f32.mrb[0].mxu0
  %v7591 = vadd.f32 0.0, %v7590
  %v7592 = vpop.f32.mrb[0].mxu0
  %v7593 = vadd.f32 0.0, %v7592
  %v7594 = vpop.f32.mrb[0].mxu0
  %v7595 = vadd.f32 0.0, %v7594
  %v7596 = vpop.f32.mrb[0].mxu0
  %v7597 = vadd.f32 0.0, %v7596
  %7598 = vmatprep.mubr.bf16.mxu0 0
  %7599 = vmatmul.mubr.bf16.gmra.mrb[0].mxu0 %v280
  %v7600 = vpop.f32.mrb[0].mxu0
  %v7601 = vadd.f32 0.0, %v7600
  %v7602 = vpop.f32.mrb[0].mxu0
  %v7603 = vadd.f32 0.0, %v7602
  %v7604 = vpop.f32.mrb[0].mxu0
  %v7605 = vadd.f32 0.0, %v7604
  %v7606 = vpop.f32.mrb[0].mxu0
  %v7607 = vadd.f32 0.0, %v7606
  %7608 = vmatprep.mubr.bf16.mxu0 0
  %7609 = vmatmul.mubr.bf16.gmra.mrb[0].mxu0 %v281
  %v7610 = vpop.f32.mrb[0].mxu0
  %v7611 = vadd.f32 0.0, %v7610
  %v7612 = vpop.f32.mrb[0].mxu0
  %v7613 = vadd.f32 0.0, %v7612
  %v7614 = vpop.f32.mrb[0].mxu0
  %v7615 = vadd.f32 0.0, %v7614
  %v7616 = vpop.f32.mrb[0].mxu0
  %v7617 = vadd.f32 0.0, %v7616
  %7618 = vmatprep.mubr.bf16.mxu0 0
  %7619 = vmatmul.mubr.bf16.gmra.mrb[0].mxu0 %v282
  %v7620 = vpop.f32.mrb[0].mxu0
  %v7621 = vadd.f32 0.0, %v7620
  %v7622 = vpop.f32.mrb[0].mxu0
  %v7623 = vadd.f32 0.0, %v7622
  %v7624 = vpop.f32.mrb[0].mxu0
  %v7625 = vadd.f32 0.0, %v7624
  %v7626 = vpop.f32.mrb[0].mxu0
  %v7627 = vadd.f32 0.0, %v7626
  %7628 = vdwg.mxu0
  %v7629 = vmax.f32 %v7311, %v7391
  %v7630 = vmax.f32 %v7313, %v7393
  %v7631 = vmax.f32 %v7315, %v7395
  %v7632 = vmax.f32 %v7317, %v7397
  %v7633 = vmax.f32 %v7321, %v7401
  %v7634 = vmax.f32 %v7323, %v7403
  %v7635 = vmax.f32 %v7325, %v7405
  %v7636 = vmax.f32 %v7327, %v7407
  %v7637 = vmax.f32 %v7331, %v7411
  %v7638 = vmax.f32 %v7333, %v7413
  %v7639 = vmax.f32 %v7335, %v7415
  %v7640 = vmax.f32 %v7337, %v7417
  %v7641 = vmax.f32 %v7341, %v7421
  %v7642 = vmax.f32 %v7343, %v7423
  %v7643 = vmax.f32 %v7345, %v7425
  %v7644 = vmax.f32 %v7347, %v7427
  %v7645 = vmax.f32 %v7351, %v7431
  %v7646 = vmax.f32 %v7353, %v7433
  %v7647 = vmax.f32 %v7355, %v7435
  %v7648 = vmax.f32 %v7357, %v7437
  %v7649 = vmax.f32 %v7361, %v7441
  %v7650 = vmax.f32 %v7363, %v7443
  %v7651 = vmax.f32 %v7365, %v7445
  %v7652 = vmax.f32 %v7367, %v7447
  %v7653 = vmax.f32 %v7371, %v7451
  %v7654 = vmax.f32 %v7373, %v7453
  %v7655 = vmax.f32 %v7375, %v7455
  %v7656 = vmax.f32 %v7377, %v7457
  %v7657 = vmax.f32 %v7381, %v7461
  %v7658 = vmax.f32 %v7383, %v7463
  %v7659 = vmax.f32 %v7385, %v7465
  %v7660 = vmax.f32 %v7387, %v7467
  %v7661 = vmax.f32 %v7471, %v7551
  %v7662 = vmax.f32 %v7473, %v7553
  %v7663 = vmax.f32 %v7475, %v7555
  %v7664 = vmax.f32 %v7477, %v7557
  %v7665 = vmax.f32 %v7481, %v7561
  %v7666 = vmax.f32 %v7483, %v7563
  %v7667 = vmax.f32 %v7485, %v7565
  %v7668 = vmax.f32 %v7487, %v7567
  %v7669 = vmax.f32 %v7491, %v7571
  %v7670 = vmax.f32 %v7493, %v7573
  %v7671 = vmax.f32 %v7495, %v7575
  %v7672 = vmax.f32 %v7497, %v7577
  %v7673 = vmax.f32 %v7501, %v7581
  %v7674 = vmax.f32 %v7503, %v7583
  %v7675 = vmax.f32 %v7505, %v7585
  %v7676 = vmax.f32 %v7507, %v7587
  %v7677 = vmax.f32 %v7511, %v7591
  %v7678 = vmax.f32 %v7513, %v7593
  %v7679 = vmax.f32 %v7515, %v7595
  %v7680 = vmax.f32 %v7517, %v7597
  %v7681 = vmax.f32 %v7521, %v7601
  %v7682 = vmax.f32 %v7523, %v7603
  %v7683 = vmax.f32 %v7525, %v7605
  %v7684 = vmax.f32 %v7527, %v7607
  %v7685 = vmax.f32 %v7531, %v7611
  %v7686 = vmax.f32 %v7533, %v7613
  %v7687 = vmax.f32 %v7535, %v7615
  %v7688 = vmax.f32 %v7537, %v7617
  %v7689 = vmax.f32 %v7541, %v7621
  %v7690 = vmax.f32 %v7543, %v7623
  %v7691 = vmax.f32 %v7545, %v7625
  %v7692 = vmax.f32 %v7547, %v7627
  %v7693 = vmax.f32 %v7629, %v7661
  %v7694 = vmax.f32 %v7630, %v7662
  %v7695 = vmax.f32 %v7631, %v7663
  %v7696 = vmax.f32 %v7632, %v7664
  %v7697 = vmax.f32 %v7633, %v7665
  %v7698 = vmax.f32 %v7634, %v7666
  %v7699 = vmax.f32 %v7635, %v7667
  %v7700 = vmax.f32 %v7636, %v7668
  %v7701 = vmax.f32 %v7637, %v7669
  %v7702 = vmax.f32 %v7638, %v7670
  %v7703 = vmax.f32 %v7639, %v7671
  %v7704 = vmax.f32 %v7640, %v7672
  %v7705 = vmax.f32 %v7641, %v7673
  %v7706 = vmax.f32 %v7642, %v7674
  %v7707 = vmax.f32 %v7643, %v7675
  %v7708 = vmax.f32 %v7644, %v7676
  %v7709 = vmax.f32 %v7645, %v7677
  %v7710 = vmax.f32 %v7646, %v7678
  %v7711 = vmax.f32 %v7647, %v7679
  %v7712 = vmax.f32 %v7648, %v7680
  %v7713 = vmax.f32 %v7649, %v7681
  %v7714 = vmax.f32 %v7650, %v7682
  %v7715 = vmax.f32 %v7651, %v7683
  %v7716 = vmax.f32 %v7652, %v7684
  %v7717 = vmax.f32 %v7653, %v7685
  %v7718 = vmax.f32 %v7654, %v7686
  %v7719 = vmax.f32 %v7655, %v7687
  %v7720 = vmax.f32 %v7656, %v7688
  %v7721 = vmax.f32 %v7657, %v7689
  %v7722 = vmax.f32 %v7658, %v7690
  %v7723 = vmax.f32 %v7659, %v7691
  %v7724 = vmax.f32 %v7660, %v7692
  %v7725 = vadd.f32 %v7693, %v847
  %v7726 = vadd.f32 %v7694, %v847
  %v7727 = vadd.f32 %v7695, %v852
  %v7728 = vadd.f32 %v7696, %v852
  %v7729 = vadd.f32 %v7697, %v857
  %v7730 = vadd.f32 %v7698, %v857
  %v7731 = vadd.f32 %v7699, %v862
  %v7732 = vadd.f32 %v7700, %v862
  %v7733 = vadd.f32 %v7701, %v867
  %v7734 = vadd.f32 %v7702, %v867
  %v7735 = vadd.f32 %v7703, %v872
  %v7736 = vadd.f32 %v7704, %v872
  %v7737 = vadd.f32 %v7705, %v877
  %v7738 = vadd.f32 %v7706, %v877
  %v7739 = vadd.f32 %v7707, %v882
  %v7740 = vadd.f32 %v7708, %v882
  %v7741 = vadd.f32 %v7709, %v887
  %v7742 = vadd.f32 %v7710, %v887
  %v7743 = vadd.f32 %v7711, %v892
  %v7744 = vadd.f32 %v7712, %v892
  %v7745 = vadd.f32 %v7713, %v897
  %v7746 = vadd.f32 %v7714, %v897
  %v7747 = vadd.f32 %v7715, %v902
  %v7748 = vadd.f32 %v7716, %v902
  %v7749 = vadd.f32 %v7717, %v907
  %v7750 = vadd.f32 %v7718, %v907
  %v7751 = vadd.f32 %v7719, %v912
  %v7752 = vadd.f32 %v7720, %v912
  %v7753 = vadd.f32 %v7721, %v917
  %v7754 = vadd.f32 %v7722, %v917
  %v7755 = vadd.f32 %v7723, %v922
  %v7756 = vadd.f32 %v7724, %v922
  %v7757 = vmax.f32 %v7725, 0.0
  %v7758 = vmax.f32 %v7726, 0.0
  %v7759 = vmax.f32 %v7727, 0.0
  %v7760 = vmax.f32 %v7728, 0.0
  %v7761 = vmax.f32 %v7729, 0.0
  %v7762 = vmax.f32 %v7730, 0.0
  %v7763 = vmax.f32 %v7731, 0.0
  %v7764 = vmax.f32 %v7732, 0.0
  %v7765 = vmax.f32 %v7733, 0.0
  %v7766 = vmax.f32 %v7734, 0.0
  %v7767 = vmax.f32 %v7735, 0.0
  %v7768 = vmax.f32 %v7736, 0.0
  %v7769 = vmax.f32 %v7737, 0.0
  %v7770 = vmax.f32 %v7738, 0.0
  %v7771 = vmax.f32 %v7739, 0.0
  %v7772 = vmax.f32 %v7740, 0.0
  %v7773 = vmax.f32 %v7741, 0.0
  %v7774 = vmax.f32 %v7742, 0.0
  %v7775 = vmax.f32 %v7743, 0.0
  %v7776 = vmax.f32 %v7744, 0.0
  %v7777 = vmax.f32 %v7745, 0.0
  %v7778 = vmax.f32 %v7746, 0.0
  %v7779 = vmax.f32 %v7747, 0.0
  %v7780 = vmax.f32 %v7748, 0.0
  %v7781 = vmax.f32 %v7749, 0.0
  %v7782 = vmax.f32 %v7750, 0.0
  %v7783 = vmax.f32 %v7751, 0.0
  %v7784 = vmax.f32 %v7752, 0.0
  %v7785 = vmax.f32 %v7753, 0.0
  %v7786 = vmax.f32 %v7754, 0.0
  %v7787 = vmax.f32 %v7755, 0.0
  %v7788 = vmax.f32 %v7756, 0.0
  %s7789 = scalar_lea.vmem %s3, 80
  %v7790 = vld [vmem:[%s7789] sm:$0xf]
  %v7791 = vld [vmem:[%s7789 + $0x4] sm:$0xf]
  %v7792 = vpack.c.bf16 %v7759, %v7757
  %v7793 = vpack.c.bf16 %v7760, %v7758
  %v7794 = vpack.c.bf16 %v7763, %v7761
  %v7795 = vpack.c.bf16 %v7764, %v7762
  %v7796 = vpack.c.bf16 %v7767, %v7765
  %v7797 = vpack.c.bf16 %v7768, %v7766
  %v7798 = vpack.c.bf16 %v7771, %v7769
  %v7799 = vpack.c.bf16 %v7772, %v7770
  %v7800 = vpack.c.bf16 %v7775, %v7773
  %v7801 = vpack.c.bf16 %v7776, %v7774
  %v7802 = vpack.c.bf16 %v7779, %v7777
  %v7803 = vpack.c.bf16 %v7780, %v7778
  %v7804 = vpack.c.bf16 %v7783, %v7781
  %v7805 = vpack.c.bf16 %v7784, %v7782
  %v7806 = vpack.c.bf16 %v7787, %v7785
  %v7807 = vpack.c.bf16 %v7788, %v7786
  %v7810 = vunpack.c.l.b16 %v7790
  %v7811 = vunpack.c.l.b16 %v7791
  %v7812 = vpack.c.b16 %v7811, %v7810
  %7814 = vmatprep.subr.bf16.mxu0 %v7793
  %7815 = vmatpush1.bf16.msra.mxu0 %v7792
  %7816 = vmatprep.subr.bf16.mxu0 %v7795
  %7817 = vmatpush1.bf16.msra.mxu0 %v7794
  %7818 = vmatprep.subr.bf16.mxu0 %v7797
  %7819 = vmatpush1.bf16.msra.mxu0 %v7796
  %7820 = vmatprep.subr.bf16.mxu0 %v7799
  %7821 = vmatpush1.bf16.msra.mxu0 %v7798
  %7822 = vmatprep.subr.bf16.mxu0 %v7801
  %7823 = vmatpush1.bf16.msra.mxu0 %v7800
  %7824 = vmatprep.subr.bf16.mxu0 %v7803
  %7825 = vmatpush1.bf16.msra.mxu0 %v7802
  %7826 = vmatprep.subr.bf16.mxu0 %v7805
  %7827 = vmatpush1.bf16.msra.mxu0 %v7804
  %7828 = vmatprep.subr.bf16.mxu0 %v7807
  %7829 = vmatpush1.bf16.msra.mxu0 %v7806
  %7830 = vmatprep.subr.bf16.mxu0 0
  %7831 = vmatpush1.bf16.msra.mxu0 0
  %7832 = vmatprep.subr.bf16.mxu0 0
  %7833 = vmatpush1.bf16.msra.mxu0 0
  %7834 = vmatprep.subr.bf16.mxu0 0
  %7835 = vmatpush1.bf16.msra.mxu0 0
  %7836 = vmatprep.subr.bf16.mxu0 0
  %7837 = vmatpush1.bf16.msra.mxu0 0
  %7838 = vmatprep.subr.bf16.mxu0 0
  %7839 = vmatpush1.bf16.msra.mxu0 0
  %7840 = vmatprep.subr.bf16.mxu0 0
  %7841 = vmatpush1.bf16.msra.mxu0 0
  %7842 = vmatprep.subr.bf16.mxu0 0
  %7843 = vmatpush1.bf16.msra.mxu0 0
  %7844 = vmatprep.subr.bf16.mxu0 0
  %7845 = vmatpush1.bf16.msra.mxu0 0
  %7846 = vmatprep.mubr.bf16.mxu0 0
  %7847 = vmatmul.mubr.bf16.gmra.mrb[0].mxu0 %v7812
  %v7848 = vpop.f32.mrb[0].mxu0
  %v7849 = vadd.f32 0.0, %v7848
  %v7850 = vpop.f32.mrb[0].mxu0
  %v7851 = vadd.f32 0.0, %v7850
  %v7852 = vpop.f32.mrb[0].mxu0
  %v7853 = vadd.f32 0.0, %v7852
  %v7854 = vpop.f32.mrb[0].mxu0
  %v7855 = vadd.f32 0.0, %v7854
  %7856 = vdwg.mxu0
  %v7857 = vadd.f32 %v7176, %v7849
  %v7858 = vadd.f32 %v7177, %v7851
  %v7859 = vadd.f32 %v7178, %v7853
  %v7860 = vadd.f32 %v7179, %v7855
  %v7861 = vld [vmem:[%s0 + $0x2c0] sm:$0xff]
  %v7862 = vld [vmem:[%s0 + $0x2c8] sm:$0xff]
  %v7863 = vld [vmem:[%s0 + $0x2d0] sm:$0xff]
  %v7864 = vld [vmem:[%s0 + $0x2d8] sm:$0xff]
  %v7865 = vld [vmem:[%s0 + $0x2e0] sm:$0xff]
  %v7866 = vld [vmem:[%s0 + $0x2e8] sm:$0xff]
  %v7867 = vld [vmem:[%s0 + $0x2f0] sm:$0xff]
  %v7868 = vld [vmem:[%s0 + $0x2f8] sm:$0xff]
  %v7869 = vld [vmem:[%s0 + $0x300] sm:$0xff]
  %v7870 = vld [vmem:[%s0 + $0x308] sm:$0xff]
  %v7871 = vld [vmem:[%s0 + $0x310] sm:$0xff]
  %v7872 = vld [vmem:[%s0 + $0x318] sm:$0xff]
  %v7873 = vld [vmem:[%s0 + $0x320] sm:$0xff]
  %v7874 = vld [vmem:[%s0 + $0x328] sm:$0xff]
  %v7875 = vld [vmem:[%s0 + $0x330] sm:$0xff]
  %v7876 = vld [vmem:[%s0 + $0x338] sm:$0xff]
  %v7893 = vunpack.c.l.b16 %v7861
  %v7894 = vunpack.c.h.b16 %v7861
  %v7895 = vunpack.c.l.b16 %v7862
  %v7896 = vunpack.c.h.b16 %v7862
  %v7897 = vunpack.c.l.b16 %v7863
  %v7898 = vunpack.c.h.b16 %v7863
  %v7899 = vunpack.c.l.b16 %v7864
  %v7900 = vunpack.c.h.b16 %v7864
  %v7901 = vunpack.c.l.b16 %v7865
  %v7902 = vunpack.c.h.b16 %v7865
  %v7903 = vunpack.c.l.b16 %v7866
  %v7904 = vunpack.c.h.b16 %v7866
  %v7905 = vunpack.c.l.b16 %v7867
  %v7906 = vunpack.c.h.b16 %v7867
  %v7907 = vunpack.c.l.b16 %v7868
  %v7908 = vunpack.c.h.b16 %v7868
  %v7909 = vunpack.c.l.b16 %v7869
  %v7910 = vunpack.c.h.b16 %v7869
  %v7911 = vunpack.c.l.b16 %v7870
  %v7912 = vunpack.c.h.b16 %v7870
  %v7913 = vunpack.c.l.b16 %v7871
  %v7914 = vunpack.c.h.b16 %v7871
  %v7915 = vunpack.c.l.b16 %v7872
  %v7916 = vunpack.c.h.b16 %v7872
  %v7917 = vunpack.c.l.b16 %v7873
  %v7918 = vunpack.c.h.b16 %v7873
  %v7919 = vunpack.c.l.b16 %v7874
  %v7920 = vunpack.c.h.b16 %v7874
  %v7921 = vunpack.c.l.b16 %v7875
  %v7922 = vunpack.c.h.b16 %v7875
  %v7923 = vunpack.c.l.b16 %v7876
  %v7924 = vunpack.c.h.b16 %v7876
  %v7925 = vpack.c.b16 %v7895, %v7893
  %v7926 = vpack.c.b16 %v7896, %v7894
  %v7927 = vpack.c.b16 %v7899, %v7897
  %v7928 = vpack.c.b16 %v7900, %v7898
  %v7929 = vpack.c.b16 %v7903, %v7901
  %v7930 = vpack.c.b16 %v7904, %v7902
  %v7931 = vpack.c.b16 %v7907, %v7905
  %v7932 = vpack.c.b16 %v7908, %v7906
  %v7933 = vpack.c.b16 %v7911, %v7909
  %v7934 = vpack.c.b16 %v7912, %v7910
  %v7935 = vpack.c.b16 %v7915, %v7913
  %v7936 = vpack.c.b16 %v7916, %v7914
  %v7937 = vpack.c.b16 %v7919, %v7917
  %v7938 = vpack.c.b16 %v7920, %v7918
  %v7939 = vpack.c.b16 %v7923, %v7921
  %v7940 = vpack.c.b16 %v7924, %v7922
  %7957 = vmatprep.subr.bf16.mxu0 %v7926
  %7958 = vmatpush1.bf16.msra.mxu0 %v7925
  %7959 = vmatprep.subr.bf16.mxu0 %v7928
  %7960 = vmatpush1.bf16.msra.mxu0 %v7927
  %7961 = vmatprep.subr.bf16.mxu0 %v7930
  %7962 = vmatpush1.bf16.msra.mxu0 %v7929
  %7963 = vmatprep.subr.bf16.mxu0 %v7932
  %7964 = vmatpush1.bf16.msra.mxu0 %v7931
  %7965 = vmatprep.subr.bf16.mxu0 %v7934
  %7966 = vmatpush1.bf16.msra.mxu0 %v7933
  %7967 = vmatprep.subr.bf16.mxu0 %v7936
  %7968 = vmatpush1.bf16.msra.mxu0 %v7935
  %7969 = vmatprep.subr.bf16.mxu0 %v7938
  %7970 = vmatpush1.bf16.msra.mxu0 %v7937
  %7971 = vmatprep.subr.bf16.mxu0 %v7940
  %7972 = vmatpush1.bf16.msra.mxu0 %v7939
  %7973 = vmatprep.subr.bf16.mxu0 0
  %7974 = vmatpush1.bf16.msra.mxu0 0
  %7975 = vmatprep.subr.bf16.mxu0 0
  %7976 = vmatpush1.bf16.msra.mxu0 0
  %7977 = vmatprep.subr.bf16.mxu0 0
  %7978 = vmatpush1.bf16.msra.mxu0 0
  %7979 = vmatprep.subr.bf16.mxu0 0
  %7980 = vmatpush1.bf16.msra.mxu0 0
  %7981 = vmatprep.subr.bf16.mxu0 0
  %7982 = vmatpush1.bf16.msra.mxu0 0
  %7983 = vmatprep.subr.bf16.mxu0 0
  %7984 = vmatpush1.bf16.msra.mxu0 0
  %7985 = vmatprep.subr.bf16.mxu0 0
  %7986 = vmatpush1.bf16.msra.mxu0 0
  %7987 = vmatprep.subr.bf16.mxu0 0
  %7988 = vmatpush1.bf16.msra.mxu0 0
  %7989 = vmatprep.mubr.bf16.mxu0 0
  %7990 = vmatmul.mubr.bf16.gmra.mrb[0].mxu0 %v251
  %v7991 = vpop.f32.mrb[0].mxu0
  %v7992 = vadd.f32 0.0, %v7991
  %v7993 = vpop.f32.mrb[0].mxu0
  %v7994 = vadd.f32 0.0, %v7993
  %v7995 = vpop.f32.mrb[0].mxu0
  %v7996 = vadd.f32 0.0, %v7995
  %v7997 = vpop.f32.mrb[0].mxu0
  %v7998 = vadd.f32 0.0, %v7997
  %7999 = vmatprep.mubr.bf16.mxu0 0
  %8000 = vmatmul.mubr.bf16.gmra.mrb[0].mxu0 %v252
  %v8001 = vpop.f32.mrb[0].mxu0
  %v8002 = vadd.f32 0.0, %v8001
  %v8003 = vpop.f32.mrb[0].mxu0
  %v8004 = vadd.f32 0.0, %v8003
  %v8005 = vpop.f32.mrb[0].mxu0
  %v8006 = vadd.f32 0.0, %v8005
  %v8007 = vpop.f32.mrb[0].mxu0
  %v8008 = vadd.f32 0.0, %v8007
  %8009 = vmatprep.mubr.bf16.mxu0 0
  %8010 = vmatmul.mubr.bf16.gmra.mrb[0].mxu0 %v253
  %v8011 = vpop.f32.mrb[0].mxu0
  %v8012 = vadd.f32 0.0, %v8011
  %v8013 = vpop.f32.mrb[0].mxu0
  %v8014 = vadd.f32 0.0, %v8013
  %v8015 = vpop.f32.mrb[0].mxu0
  %v8016 = vadd.f32 0.0, %v8015
  %v8017 = vpop.f32.mrb[0].mxu0
  %v8018 = vadd.f32 0.0, %v8017
  %8019 = vmatprep.mubr.bf16.mxu0 0
  %8020 = vmatmul.mubr.bf16.gmra.mrb[0].mxu0 %v254
  %v8021 = vpop.f32.mrb[0].mxu0
  %v8022 = vadd.f32 0.0, %v8021
  %v8023 = vpop.f32.mrb[0].mxu0
  %v8024 = vadd.f32 0.0, %v8023
  %v8025 = vpop.f32.mrb[0].mxu0
  %v8026 = vadd.f32 0.0, %v8025
  %v8027 = vpop.f32.mrb[0].mxu0
  %v8028 = vadd.f32 0.0, %v8027
  %8029 = vmatprep.mubr.bf16.mxu0 0
  %8030 = vmatmul.mubr.bf16.gmra.mrb[0].mxu0 %v255
  %v8031 = vpop.f32.mrb[0].mxu0
  %v8032 = vadd.f32 0.0, %v8031
  %v8033 = vpop.f32.mrb[0].mxu0
  %v8034 = vadd.f32 0.0, %v8033
  %v8035 = vpop.f32.mrb[0].mxu0
  %v8036 = vadd.f32 0.0, %v8035
  %v8037 = vpop.f32.mrb[0].mxu0
  %v8038 = vadd.f32 0.0, %v8037
  %8039 = vmatprep.mubr.bf16.mxu0 0
  %8040 = vmatmul.mubr.bf16.gmra.mrb[0].mxu0 %v256
  %v8041 = vpop.f32.mrb[0].mxu0
  %v8042 = vadd.f32 0.0, %v8041
  %v8043 = vpop.f32.mrb[0].mxu0
  %v8044 = vadd.f32 0.0, %v8043
  %v8045 = vpop.f32.mrb[0].mxu0
  %v8046 = vadd.f32 0.0, %v8045
  %v8047 = vpop.f32.mrb[0].mxu0
  %v8048 = vadd.f32 0.0, %v8047
  %8049 = vmatprep.mubr.bf16.mxu0 0
  %8050 = vmatmul.mubr.bf16.gmra.mrb[0].mxu0 %v257
  %v8051 = vpop.f32.mrb[0].mxu0
  %v8052 = vadd.f32 0.0, %v8051
  %v8053 = vpop.f32.mrb[0].mxu0
  %v8054 = vadd.f32 0.0, %v8053
  %v8055 = vpop.f32.mrb[0].mxu0
  %v8056 = vadd.f32 0.0, %v8055
  %v8057 = vpop.f32.mrb[0].mxu0
  %v8058 = vadd.f32 0.0, %v8057
  %8059 = vmatprep.mubr.bf16.mxu0 0
  %8060 = vmatmul.mubr.bf16.gmra.mrb[0].mxu0 %v258
  %v8061 = vpop.f32.mrb[0].mxu0
  %v8062 = vadd.f32 0.0, %v8061
  %v8063 = vpop.f32.mrb[0].mxu0
  %v8064 = vadd.f32 0.0, %v8063
  %v8065 = vpop.f32.mrb[0].mxu0
  %v8066 = vadd.f32 0.0, %v8065
  %v8067 = vpop.f32.mrb[0].mxu0
  %v8068 = vadd.f32 0.0, %v8067
  %8069 = vmatprep.mubr.bf16.mxu0 0
  %8070 = vmatmul.mubr.bf16.gmra.mrb[0].mxu0 %v259
  %v8071 = vpop.f32.mrb[0].mxu0
  %v8072 = vadd.f32 0.0, %v8071
  %v8073 = vpop.f32.mrb[0].mxu0
  %v8074 = vadd.f32 0.0, %v8073
  %v8075 = vpop.f32.mrb[0].mxu0
  %v8076 = vadd.f32 0.0, %v8075
  %v8077 = vpop.f32.mrb[0].mxu0
  %v8078 = vadd.f32 0.0, %v8077
  %8079 = vmatprep.mubr.bf16.mxu0 0
  %8080 = vmatmul.mubr.bf16.gmra.mrb[0].mxu0 %v260
  %v8081 = vpop.f32.mrb[0].mxu0
  %v8082 = vadd.f32 0.0, %v8081
  %v8083 = vpop.f32.mrb[0].mxu0
  %v8084 = vadd.f32 0.0, %v8083
  %v8085 = vpop.f32.mrb[0].mxu0
  %v8086 = vadd.f32 0.0, %v8085
  %v8087 = vpop.f32.mrb[0].mxu0
  %v8088 = vadd.f32 0.0, %v8087
  %8089 = vmatprep.mubr.bf16.mxu0 0
  %8090 = vmatmul.mubr.bf16.gmra.mrb[0].mxu0 %v261
  %v8091 = vpop.f32.mrb[0].mxu0
  %v8092 = vadd.f32 0.0, %v8091
  %v8093 = vpop.f32.mrb[0].mxu0
  %v8094 = vadd.f32 0.0, %v8093
  %v8095 = vpop.f32.mrb[0].mxu0
  %v8096 = vadd.f32 0.0, %v8095
  %v8097 = vpop.f32.mrb[0].mxu0
  %v8098 = vadd.f32 0.0, %v8097
  %8099 = vmatprep.mubr.bf16.mxu0 0
  %8100 = vmatmul.mubr.bf16.gmra.mrb[0].mxu0 %v262
  %v8101 = vpop.f32.mrb[0].mxu0
  %v8102 = vadd.f32 0.0, %v8101
  %v8103 = vpop.f32.mrb[0].mxu0
  %v8104 = vadd.f32 0.0, %v8103
  %v8105 = vpop.f32.mrb[0].mxu0
  %v8106 = vadd.f32 0.0, %v8105
  %v8107 = vpop.f32.mrb[0].mxu0
  %v8108 = vadd.f32 0.0, %v8107
  %8109 = vmatprep.mubr.bf16.mxu0 0
  %8110 = vmatmul.mubr.bf16.gmra.mrb[0].mxu0 %v263
  %v8111 = vpop.f32.mrb[0].mxu0
  %v8112 = vadd.f32 0.0, %v8111
  %v8113 = vpop.f32.mrb[0].mxu0
  %v8114 = vadd.f32 0.0, %v8113
  %v8115 = vpop.f32.mrb[0].mxu0
  %v8116 = vadd.f32 0.0, %v8115
  %v8117 = vpop.f32.mrb[0].mxu0
  %v8118 = vadd.f32 0.0, %v8117
  %8119 = vmatprep.mubr.bf16.mxu0 0
  %8120 = vmatmul.mubr.bf16.gmra.mrb[0].mxu0 %v264
  %v8121 = vpop.f32.mrb[0].mxu0
  %v8122 = vadd.f32 0.0, %v8121
  %v8123 = vpop.f32.mrb[0].mxu0
  %v8124 = vadd.f32 0.0, %v8123
  %v8125 = vpop.f32.mrb[0].mxu0
  %v8126 = vadd.f32 0.0, %v8125
  %v8127 = vpop.f32.mrb[0].mxu0
  %v8128 = vadd.f32 0.0, %v8127
  %8129 = vmatprep.mubr.bf16.mxu0 0
  %8130 = vmatmul.mubr.bf16.gmra.mrb[0].mxu0 %v265
  %v8131 = vpop.f32.mrb[0].mxu0
  %v8132 = vadd.f32 0.0, %v8131
  %v8133 = vpop.f32.mrb[0].mxu0
  %v8134 = vadd.f32 0.0, %v8133
  %v8135 = vpop.f32.mrb[0].mxu0
  %v8136 = vadd.f32 0.0, %v8135
  %v8137 = vpop.f32.mrb[0].mxu0
  %v8138 = vadd.f32 0.0, %v8137
  %8139 = vmatprep.mubr.bf16.mxu0 0
  %8140 = vmatmul.mubr.bf16.gmra.mrb[0].mxu0 %v266
  %v8141 = vpop.f32.mrb[0].mxu0
  %v8142 = vadd.f32 0.0, %v8141
  %v8143 = vpop.f32.mrb[0].mxu0
  %v8144 = vadd.f32 0.0, %v8143
  %v8145 = vpop.f32.mrb[0].mxu0
  %v8146 = vadd.f32 0.0, %v8145
  %v8147 = vpop.f32.mrb[0].mxu0
  %v8148 = vadd.f32 0.0, %v8147
  %8149 = vmatprep.mubr.bf16.mxu0 0
  %8150 = vmatmul.mubr.bf16.gmra.mrb[0].mxu0 %v267
  %v8151 = vpop.f32.mrb[0].mxu0
  %v8152 = vadd.f32 0.0, %v8151
  %v8153 = vpop.f32.mrb[0].mxu0
  %v8154 = vadd.f32 0.0, %v8153
  %v8155 = vpop.f32.mrb[0].mxu0
  %v8156 = vadd.f32 0.0, %v8155
  %v8157 = vpop.f32.mrb[0].mxu0
  %v8158 = vadd.f32 0.0, %v8157
  %8159 = vmatprep.mubr.bf16.mxu0 0
  %8160 = vmatmul.mubr.bf16.gmra.mrb[0].mxu0 %v268
  %v8161 = vpop.f32.mrb[0].mxu0
  %v8162 = vadd.f32 0.0, %v8161
  %v8163 = vpop.f32.mrb[0].mxu0
  %v8164 = vadd.f32 0.0, %v8163
  %v8165 = vpop.f32.mrb[0].mxu0
  %v8166 = vadd.f32 0.0, %v8165
  %v8167 = vpop.f32.mrb[0].mxu0
  %v8168 = vadd.f32 0.0, %v8167
  %8169 = vmatprep.mubr.bf16.mxu0 0
  %8170 = vmatmul.mubr.bf16.gmra.mrb[0].mxu0 %v269
  %v8171 = vpop.f32.mrb[0].mxu0
  %v8172 = vadd.f32 0.0, %v8171
  %v8173 = vpop.f32.mrb[0].mxu0
  %v8174 = vadd.f32 0.0, %v8173
  %v8175 = vpop.f32.mrb[0].mxu0
  %v8176 = vadd.f32 0.0, %v8175
  %v8177 = vpop.f32.mrb[0].mxu0
  %v8178 = vadd.f32 0.0, %v8177
  %8179 = vmatprep.mubr.bf16.mxu0 0
  %8180 = vmatmul.mubr.bf16.gmra.mrb[0].mxu0 %v270
  %v8181 = vpop.f32.mrb[0].mxu0
  %v8182 = vadd.f32 0.0, %v8181
  %v8183 = vpop.f32.mrb[0].mxu0
  %v8184 = vadd.f32 0.0, %v8183
  %v8185 = vpop.f32.mrb[0].mxu0
  %v8186 = vadd.f32 0.0, %v8185
  %v8187 = vpop.f32.mrb[0].mxu0
  %v8188 = vadd.f32 0.0, %v8187
  %8189 = vmatprep.mubr.bf16.mxu0 0
  %8190 = vmatmul.mubr.bf16.gmra.mrb[0].mxu0 %v271
  %v8191 = vpop.f32.mrb[0].mxu0
  %v8192 = vadd.f32 0.0, %v8191
  %v8193 = vpop.f32.mrb[0].mxu0
  %v8194 = vadd.f32 0.0, %v8193
  %v8195 = vpop.f32.mrb[0].mxu0
  %v8196 = vadd.f32 0.0, %v8195
  %v8197 = vpop.f32.mrb[0].mxu0
  %v8198 = vadd.f32 0.0, %v8197
  %8199 = vmatprep.mubr.bf16.mxu0 0
  %8200 = vmatmul.mubr.bf16.gmra.mrb[0].mxu0 %v272
  %v8201 = vpop.f32.mrb[0].mxu0
  %v8202 = vadd.f32 0.0, %v8201
  %v8203 = vpop.f32.mrb[0].mxu0
  %v8204 = vadd.f32 0.0, %v8203
  %v8205 = vpop.f32.mrb[0].mxu0
  %v8206 = vadd.f32 0.0, %v8205
  %v8207 = vpop.f32.mrb[0].mxu0
  %v8208 = vadd.f32 0.0, %v8207
  %8209 = vmatprep.mubr.bf16.mxu0 0
  %8210 = vmatmul.mubr.bf16.gmra.mrb[0].mxu0 %v273
  %v8211 = vpop.f32.mrb[0].mxu0
  %v8212 = vadd.f32 0.0, %v8211
  %v8213 = vpop.f32.mrb[0].mxu0
  %v8214 = vadd.f32 0.0, %v8213
  %v8215 = vpop.f32.mrb[0].mxu0
  %v8216 = vadd.f32 0.0, %v8215
  %v8217 = vpop.f32.mrb[0].mxu0
  %v8218 = vadd.f32 0.0, %v8217
  %8219 = vmatprep.mubr.bf16.mxu0 0
  %8220 = vmatmul.mubr.bf16.gmra.mrb[0].mxu0 %v274
  %v8221 = vpop.f32.mrb[0].mxu0
  %v8222 = vadd.f32 0.0, %v8221
  %v8223 = vpop.f32.mrb[0].mxu0
  %v8224 = vadd.f32 0.0, %v8223
  %v8225 = vpop.f32.mrb[0].mxu0
  %v8226 = vadd.f32 0.0, %v8225
  %v8227 = vpop.f32.mrb[0].mxu0
  %v8228 = vadd.f32 0.0, %v8227
  %8229 = vmatprep.mubr.bf16.mxu0 0
  %8230 = vmatmul.mubr.bf16.gmra.mrb[0].mxu0 %v275
  %v8231 = vpop.f32.mrb[0].mxu0
  %v8232 = vadd.f32 0.0, %v8231
  %v8233 = vpop.f32.mrb[0].mxu0
  %v8234 = vadd.f32 0.0, %v8233
  %v8235 = vpop.f32.mrb[0].mxu0
  %v8236 = vadd.f32 0.0, %v8235
  %v8237 = vpop.f32.mrb[0].mxu0
  %v8238 = vadd.f32 0.0, %v8237
  %8239 = vmatprep.mubr.bf16.mxu0 0
  %8240 = vmatmul.mubr.bf16.gmra.mrb[0].mxu0 %v276
  %v8241 = vpop.f32.mrb[0].mxu0
  %v8242 = vadd.f32 0.0, %v8241
  %v8243 = vpop.f32.mrb[0].mxu0
  %v8244 = vadd.f32 0.0, %v8243
  %v8245 = vpop.f32.mrb[0].mxu0
  %v8246 = vadd.f32 0.0, %v8245
  %v8247 = vpop.f32.mrb[0].mxu0
  %v8248 = vadd.f32 0.0, %v8247
  %8249 = vmatprep.mubr.bf16.mxu0 0
  %8250 = vmatmul.mubr.bf16.gmra.mrb[0].mxu0 %v277
  %v8251 = vpop.f32.mrb[0].mxu0
  %v8252 = vadd.f32 0.0, %v8251
  %v8253 = vpop.f32.mrb[0].mxu0
  %v8254 = vadd.f32 0.0, %v8253
  %v8255 = vpop.f32.mrb[0].mxu0
  %v8256 = vadd.f32 0.0, %v8255
  %v8257 = vpop.f32.mrb[0].mxu0
  %v8258 = vadd.f32 0.0, %v8257
  %8259 = vmatprep.mubr.bf16.mxu0 0
  %8260 = vmatmul.mubr.bf16.gmra.mrb[0].mxu0 %v278
  %v8261 = vpop.f32.mrb[0].mxu0
  %v8262 = vadd.f32 0.0, %v8261
  %v8263 = vpop.f32.mrb[0].mxu0
  %v8264 = vadd.f32 0.0, %v8263
  %v8265 = vpop.f32.mrb[0].mxu0
  %v8266 = vadd.f32 0.0, %v8265
  %v8267 = vpop.f32.mrb[0].mxu0
  %v8268 = vadd.f32 0.0, %v8267
  %8269 = vmatprep.mubr.bf16.mxu0 0
  %8270 = vmatmul.mubr.bf16.gmra.mrb[0].mxu0 %v279
  %v8271 = vpop.f32.mrb[0].mxu0
  %v8272 = vadd.f32 0.0, %v8271
  %v8273 = vpop.f32.mrb[0].mxu0
  %v8274 = vadd.f32 0.0, %v8273
  %v8275 = vpop.f32.mrb[0].mxu0
  %v8276 = vadd.f32 0.0, %v8275
  %v8277 = vpop.f32.mrb[0].mxu0
  %v8278 = vadd.f32 0.0, %v8277
  %8279 = vmatprep.mubr.bf16.mxu0 0
  %8280 = vmatmul.mubr.bf16.gmra.mrb[0].mxu0 %v280
  %v8281 = vpop.f32.mrb[0].mxu0
  %v8282 = vadd.f32 0.0, %v8281
  %v8283 = vpop.f32.mrb[0].mxu0
  %v8284 = vadd.f32 0.0, %v8283
  %v8285 = vpop.f32.mrb[0].mxu0
  %v8286 = vadd.f32 0.0, %v8285
  %v8287 = vpop.f32.mrb[0].mxu0
  %v8288 = vadd.f32 0.0, %v8287
  %8289 = vmatprep.mubr.bf16.mxu0 0
  %8290 = vmatmul.mubr.bf16.gmra.mrb[0].mxu0 %v281
  %v8291 = vpop.f32.mrb[0].mxu0
  %v8292 = vadd.f32 0.0, %v8291
  %v8293 = vpop.f32.mrb[0].mxu0
  %v8294 = vadd.f32 0.0, %v8293
  %v8295 = vpop.f32.mrb[0].mxu0
  %v8296 = vadd.f32 0.0, %v8295
  %v8297 = vpop.f32.mrb[0].mxu0
  %v8298 = vadd.f32 0.0, %v8297
  %8299 = vmatprep.mubr.bf16.mxu0 0
  %8300 = vmatmul.mubr.bf16.gmra.mrb[0].mxu0 %v282
  %v8301 = vpop.f32.mrb[0].mxu0
  %v8302 = vadd.f32 0.0, %v8301
  %v8303 = vpop.f32.mrb[0].mxu0
  %v8304 = vadd.f32 0.0, %v8303
  %v8305 = vpop.f32.mrb[0].mxu0
  %v8306 = vadd.f32 0.0, %v8305
  %v8307 = vpop.f32.mrb[0].mxu0
  %v8308 = vadd.f32 0.0, %v8307
  %8309 = vdwg.mxu0
  %v8310 = vmax.f32 %v7992, %v8072
  %v8311 = vmax.f32 %v7994, %v8074
  %v8312 = vmax.f32 %v7996, %v8076
  %v8313 = vmax.f32 %v7998, %v8078
  %v8314 = vmax.f32 %v8002, %v8082
  %v8315 = vmax.f32 %v8004, %v8084
  %v8316 = vmax.f32 %v8006, %v8086
  %v8317 = vmax.f32 %v8008, %v8088
  %v8318 = vmax.f32 %v8012, %v8092
  %v8319 = vmax.f32 %v8014, %v8094
  %v8320 = vmax.f32 %v8016, %v8096
  %v8321 = vmax.f32 %v8018, %v8098
  %v8322 = vmax.f32 %v8022, %v8102
  %v8323 = vmax.f32 %v8024, %v8104
  %v8324 = vmax.f32 %v8026, %v8106
  %v8325 = vmax.f32 %v8028, %v8108
  %v8326 = vmax.f32 %v8032, %v8112
  %v8327 = vmax.f32 %v8034, %v8114
  %v8328 = vmax.f32 %v8036, %v8116
  %v8329 = vmax.f32 %v8038, %v8118
  %v8330 = vmax.f32 %v8042, %v8122
  %v8331 = vmax.f32 %v8044, %v8124
  %v8332 = vmax.f32 %v8046, %v8126
  %v8333 = vmax.f32 %v8048, %v8128
  %v8334 = vmax.f32 %v8052, %v8132
  %v8335 = vmax.f32 %v8054, %v8134
  %v8336 = vmax.f32 %v8056, %v8136
  %v8337 = vmax.f32 %v8058, %v8138
  %v8338 = vmax.f32 %v8062, %v8142
  %v8339 = vmax.f32 %v8064, %v8144
  %v8340 = vmax.f32 %v8066, %v8146
  %v8341 = vmax.f32 %v8068, %v8148
  %v8342 = vmax.f32 %v8152, %v8232
  %v8343 = vmax.f32 %v8154, %v8234
  %v8344 = vmax.f32 %v8156, %v8236
  %v8345 = vmax.f32 %v8158, %v8238
  %v8346 = vmax.f32 %v8162, %v8242
  %v8347 = vmax.f32 %v8164, %v8244
  %v8348 = vmax.f32 %v8166, %v8246
  %v8349 = vmax.f32 %v8168, %v8248
  %v8350 = vmax.f32 %v8172, %v8252
  %v8351 = vmax.f32 %v8174, %v8254
  %v8352 = vmax.f32 %v8176, %v8256
  %v8353 = vmax.f32 %v8178, %v8258
  %v8354 = vmax.f32 %v8182, %v8262
  %v8355 = vmax.f32 %v8184, %v8264
  %v8356 = vmax.f32 %v8186, %v8266
  %v8357 = vmax.f32 %v8188, %v8268
  %v8358 = vmax.f32 %v8192, %v8272
  %v8359 = vmax.f32 %v8194, %v8274
  %v8360 = vmax.f32 %v8196, %v8276
  %v8361 = vmax.f32 %v8198, %v8278
  %v8362 = vmax.f32 %v8202, %v8282
  %v8363 = vmax.f32 %v8204, %v8284
  %v8364 = vmax.f32 %v8206, %v8286
  %v8365 = vmax.f32 %v8208, %v8288
  %v8366 = vmax.f32 %v8212, %v8292
  %v8367 = vmax.f32 %v8214, %v8294
  %v8368 = vmax.f32 %v8216, %v8296
  %v8369 = vmax.f32 %v8218, %v8298
  %v8370 = vmax.f32 %v8222, %v8302
  %v8371 = vmax.f32 %v8224, %v8304
  %v8372 = vmax.f32 %v8226, %v8306
  %v8373 = vmax.f32 %v8228, %v8308
  %v8374 = vmax.f32 %v8310, %v8342
  %v8375 = vmax.f32 %v8311, %v8343
  %v8376 = vmax.f32 %v8312, %v8344
  %v8377 = vmax.f32 %v8313, %v8345
  %v8378 = vmax.f32 %v8314, %v8346
  %v8379 = vmax.f32 %v8315, %v8347
  %v8380 = vmax.f32 %v8316, %v8348
  %v8381 = vmax.f32 %v8317, %v8349
  %v8382 = vmax.f32 %v8318, %v8350
  %v8383 = vmax.f32 %v8319, %v8351
  %v8384 = vmax.f32 %v8320, %v8352
  %v8385 = vmax.f32 %v8321, %v8353
  %v8386 = vmax.f32 %v8322, %v8354
  %v8387 = vmax.f32 %v8323, %v8355
  %v8388 = vmax.f32 %v8324, %v8356
  %v8389 = vmax.f32 %v8325, %v8357
  %v8390 = vmax.f32 %v8326, %v8358
  %v8391 = vmax.f32 %v8327, %v8359
  %v8392 = vmax.f32 %v8328, %v8360
  %v8393 = vmax.f32 %v8329, %v8361
  %v8394 = vmax.f32 %v8330, %v8362
  %v8395 = vmax.f32 %v8331, %v8363
  %v8396 = vmax.f32 %v8332, %v8364
  %v8397 = vmax.f32 %v8333, %v8365
  %v8398 = vmax.f32 %v8334, %v8366
  %v8399 = vmax.f32 %v8335, %v8367
  %v8400 = vmax.f32 %v8336, %v8368
  %v8401 = vmax.f32 %v8337, %v8369
  %v8402 = vmax.f32 %v8338, %v8370
  %v8403 = vmax.f32 %v8339, %v8371
  %v8404 = vmax.f32 %v8340, %v8372
  %v8405 = vmax.f32 %v8341, %v8373
  %v8406 = vadd.f32 %v8374, %v847
  %v8407 = vadd.f32 %v8375, %v847
  %v8408 = vadd.f32 %v8376, %v852
  %v8409 = vadd.f32 %v8377, %v852
  %v8410 = vadd.f32 %v8378, %v857
  %v8411 = vadd.f32 %v8379, %v857
  %v8412 = vadd.f32 %v8380, %v862
  %v8413 = vadd.f32 %v8381, %v862
  %v8414 = vadd.f32 %v8382, %v867
  %v8415 = vadd.f32 %v8383, %v867
  %v8416 = vadd.f32 %v8384, %v872
  %v8417 = vadd.f32 %v8385, %v872
  %v8418 = vadd.f32 %v8386, %v877
  %v8419 = vadd.f32 %v8387, %v877
  %v8420 = vadd.f32 %v8388, %v882
  %v8421 = vadd.f32 %v8389, %v882
  %v8422 = vadd.f32 %v8390, %v887
  %v8423 = vadd.f32 %v8391, %v887
  %v8424 = vadd.f32 %v8392, %v892
  %v8425 = vadd.f32 %v8393, %v892
  %v8426 = vadd.f32 %v8394, %v897
  %v8427 = vadd.f32 %v8395, %v897
  %v8428 = vadd.f32 %v8396, %v902
  %v8429 = vadd.f32 %v8397, %v902
  %v8430 = vadd.f32 %v8398, %v907
  %v8431 = vadd.f32 %v8399, %v907
  %v8432 = vadd.f32 %v8400, %v912
  %v8433 = vadd.f32 %v8401, %v912
  %v8434 = vadd.f32 %v8402, %v917
  %v8435 = vadd.f32 %v8403, %v917
  %v8436 = vadd.f32 %v8404, %v922
  %v8437 = vadd.f32 %v8405, %v922
  %v8438 = vmax.f32 %v8406, 0.0
  %v8439 = vmax.f32 %v8407, 0.0
  %v8440 = vmax.f32 %v8408, 0.0
  %v8441 = vmax.f32 %v8409, 0.0
  %v8442 = vmax.f32 %v8410, 0.0
  %v8443 = vmax.f32 %v8411, 0.0
  %v8444 = vmax.f32 %v8412, 0.0
  %v8445 = vmax.f32 %v8413, 0.0
  %v8446 = vmax.f32 %v8414, 0.0
  %v8447 = vmax.f32 %v8415, 0.0
  %v8448 = vmax.f32 %v8416, 0.0
  %v8449 = vmax.f32 %v8417, 0.0
  %v8450 = vmax.f32 %v8418, 0.0
  %v8451 = vmax.f32 %v8419, 0.0
  %v8452 = vmax.f32 %v8420, 0.0
  %v8453 = vmax.f32 %v8421, 0.0
  %v8454 = vmax.f32 %v8422, 0.0
  %v8455 = vmax.f32 %v8423, 0.0
  %v8456 = vmax.f32 %v8424, 0.0
  %v8457 = vmax.f32 %v8425, 0.0
  %v8458 = vmax.f32 %v8426, 0.0
  %v8459 = vmax.f32 %v8427, 0.0
  %v8460 = vmax.f32 %v8428, 0.0
  %v8461 = vmax.f32 %v8429, 0.0
  %v8462 = vmax.f32 %v8430, 0.0
  %v8463 = vmax.f32 %v8431, 0.0
  %v8464 = vmax.f32 %v8432, 0.0
  %v8465 = vmax.f32 %v8433, 0.0
  %v8466 = vmax.f32 %v8434, 0.0
  %v8467 = vmax.f32 %v8435, 0.0
  %v8468 = vmax.f32 %v8436, 0.0
  %v8469 = vmax.f32 %v8437, 0.0
  %s8470 = scalar_lea.vmem %s3, 88
  %v8471 = vld [vmem:[%s8470] sm:$0xf]
  %v8472 = vld [vmem:[%s8470 + $0x4] sm:$0xf]
  %v8473 = vpack.c.bf16 %v8440, %v8438
  %v8474 = vpack.c.bf16 %v8441, %v8439
  %v8475 = vpack.c.bf16 %v8444, %v8442
  %v8476 = vpack.c.bf16 %v8445, %v8443
  %v8477 = vpack.c.bf16 %v8448, %v8446
  %v8478 = vpack.c.bf16 %v8449, %v8447
  %v8479 = vpack.c.bf16 %v8452, %v8450
  %v8480 = vpack.c.bf16 %v8453, %v8451
  %v8481 = vpack.c.bf16 %v8456, %v8454
  %v8482 = vpack.c.bf16 %v8457, %v8455
  %v8483 = vpack.c.bf16 %v8460, %v8458
  %v8484 = vpack.c.bf16 %v8461, %v8459
  %v8485 = vpack.c.bf16 %v8464, %v8462
  %v8486 = vpack.c.bf16 %v8465, %v8463
  %v8487 = vpack.c.bf16 %v8468, %v8466
  %v8488 = vpack.c.bf16 %v8469, %v8467
  %v8491 = vunpack.c.l.b16 %v8471
  %v8492 = vunpack.c.l.b16 %v8472
  %v8493 = vpack.c.b16 %v8492, %v8491
  %8495 = vmatprep.subr.bf16.mxu0 %v8474
  %8496 = vmatpush1.bf16.msra.mxu0 %v8473
  %8497 = vmatprep.subr.bf16.mxu0 %v8476
  %8498 = vmatpush1.bf16.msra.mxu0 %v8475
  %8499 = vmatprep.subr.bf16.mxu0 %v8478
  %8500 = vmatpush1.bf16.msra.mxu0 %v8477
  %8501 = vmatprep.subr.bf16.mxu0 %v8480
  %8502 = vmatpush1.bf16.msra.mxu0 %v8479
  %8503 = vmatprep.subr.bf16.mxu0 %v8482
  %8504 = vmatpush1.bf16.msra.mxu0 %v8481
  %8505 = vmatprep.subr.bf16.mxu0 %v8484
  %8506 = vmatpush1.bf16.msra.mxu0 %v8483
  %8507 = vmatprep.subr.bf16.mxu0 %v8486
  %8508 = vmatpush1.bf16.msra.mxu0 %v8485
  %8509 = vmatprep.subr.bf16.mxu0 %v8488
  %8510 = vmatpush1.bf16.msra.mxu0 %v8487
  %8511 = vmatprep.subr.bf16.mxu0 0
  %8512 = vmatpush1.bf16.msra.mxu0 0
  %8513 = vmatprep.subr.bf16.mxu0 0
  %8514 = vmatpush1.bf16.msra.mxu0 0
  %8515 = vmatprep.subr.bf16.mxu0 0
  %8516 = vmatpush1.bf16.msra.mxu0 0
  %8517 = vmatprep.subr.bf16.mxu0 0
  %8518 = vmatpush1.bf16.msra.mxu0 0
  %8519 = vmatprep.subr.bf16.mxu0 0
  %8520 = vmatpush1.bf16.msra.mxu0 0
  %8521 = vmatprep.subr.bf16.mxu0 0
  %8522 = vmatpush1.bf16.msra.mxu0 0
  %8523 = vmatprep.subr.bf16.mxu0 0
  %8524 = vmatpush1.bf16.msra.mxu0 0
  %8525 = vmatprep.subr.bf16.mxu0 0
  %8526 = vmatpush1.bf16.msra.mxu0 0
  %8527 = vmatprep.mubr.bf16.mxu0 0
  %8528 = vmatmul.mubr.bf16.gmra.mrb[0].mxu0 %v8493
  %v8529 = vpop.f32.mrb[0].mxu0
  %v8530 = vadd.f32 0.0, %v8529
  %v8531 = vpop.f32.mrb[0].mxu0
  %v8532 = vadd.f32 0.0, %v8531
  %v8533 = vpop.f32.mrb[0].mxu0
  %v8534 = vadd.f32 0.0, %v8533
  %v8535 = vpop.f32.mrb[0].mxu0
  %v8536 = vadd.f32 0.0, %v8535
  %8537 = vdwg.mxu0
  %v8538 = vadd.f32 %v7857, %v8530
  %v8539 = vadd.f32 %v7858, %v8532
  %v8540 = vadd.f32 %v7859, %v8534
  %v8541 = vadd.f32 %v7860, %v8536
  %v8542 = vld [vmem:[%s0 + $0x300] sm:$0xff]
  %v8543 = vld [vmem:[%s0 + $0x308] sm:$0xff]
  %v8544 = vld [vmem:[%s0 + $0x310] sm:$0xff]
  %v8545 = vld [vmem:[%s0 + $0x318] sm:$0xff]
  %v8546 = vld [vmem:[%s0 + $0x320] sm:$0xff]
  %v8547 = vld [vmem:[%s0 + $0x328] sm:$0xff]
  %v8548 = vld [vmem:[%s0 + $0x330] sm:$0xff]
  %v8549 = vld [vmem:[%s0 + $0x338] sm:$0xff]
  %v8550 = vld [vmem:[%s0 + $0x340] sm:$0xff]
  %v8551 = vld [vmem:[%s0 + $0x348] sm:$0xff]
  %v8552 = vld [vmem:[%s0 + $0x350] sm:$0xff]
  %v8553 = vld [vmem:[%s0 + $0x358] sm:$0xff]
  %v8554 = vld [vmem:[%s0 + $0x360] sm:$0xff]
  %v8555 = vld [vmem:[%s0 + $0x368] sm:$0xff]
  %v8556 = vld [vmem:[%s0 + $0x370] sm:$0xff]
  %v8557 = vld [vmem:[%s0 + $0x378] sm:$0xff]
  %v8574 = vunpack.c.l.b16 %v8542
  %v8575 = vunpack.c.h.b16 %v8542
  %v8576 = vunpack.c.l.b16 %v8543
  %v8577 = vunpack.c.h.b16 %v8543
  %v8578 = vunpack.c.l.b16 %v8544
  %v8579 = vunpack.c.h.b16 %v8544
  %v8580 = vunpack.c.l.b16 %v8545
  %v8581 = vunpack.c.h.b16 %v8545
  %v8582 = vunpack.c.l.b16 %v8546
  %v8583 = vunpack.c.h.b16 %v8546
  %v8584 = vunpack.c.l.b16 %v8547
  %v8585 = vunpack.c.h.b16 %v8547
  %v8586 = vunpack.c.l.b16 %v8548
  %v8587 = vunpack.c.h.b16 %v8548
  %v8588 = vunpack.c.l.b16 %v8549
  %v8589 = vunpack.c.h.b16 %v8549
  %v8590 = vunpack.c.l.b16 %v8550
  %v8591 = vunpack.c.h.b16 %v8550
  %v8592 = vunpack.c.l.b16 %v8551
  %v8593 = vunpack.c.h.b16 %v8551
  %v8594 = vunpack.c.l.b16 %v8552
  %v8595 = vunpack.c.h.b16 %v8552
  %v8596 = vunpack.c.l.b16 %v8553
  %v8597 = vunpack.c.h.b16 %v8553
  %v8598 = vunpack.c.l.b16 %v8554
  %v8599 = vunpack.c.h.b16 %v8554
  %v8600 = vunpack.c.l.b16 %v8555
  %v8601 = vunpack.c.h.b16 %v8555
  %v8602 = vunpack.c.l.b16 %v8556
  %v8603 = vunpack.c.h.b16 %v8556
  %v8604 = vunpack.c.l.b16 %v8557
  %v8605 = vunpack.c.h.b16 %v8557
  %v8606 = vpack.c.b16 %v8576, %v8574
  %v8607 = vpack.c.b16 %v8577, %v8575
  %v8608 = vpack.c.b16 %v8580, %v8578
  %v8609 = vpack.c.b16 %v8581, %v8579
  %v8610 = vpack.c.b16 %v8584, %v8582
  %v8611 = vpack.c.b16 %v8585, %v8583
  %v8612 = vpack.c.b16 %v8588, %v8586
  %v8613 = vpack.c.b16 %v8589, %v8587
  %v8614 = vpack.c.b16 %v8592, %v8590
  %v8615 = vpack.c.b16 %v8593, %v8591
  %v8616 = vpack.c.b16 %v8596, %v8594
  %v8617 = vpack.c.b16 %v8597, %v8595
  %v8618 = vpack.c.b16 %v8600, %v8598
  %v8619 = vpack.c.b16 %v8601, %v8599
  %v8620 = vpack.c.b16 %v8604, %v8602
  %v8621 = vpack.c.b16 %v8605, %v8603
  %8638 = vmatprep.subr.bf16.mxu0 %v8607
  %8639 = vmatpush1.bf16.msra.mxu0 %v8606
  %8640 = vmatprep.subr.bf16.mxu0 %v8609
  %8641 = vmatpush1.bf16.msra.mxu0 %v8608
  %8642 = vmatprep.subr.bf16.mxu0 %v8611
  %8643 = vmatpush1.bf16.msra.mxu0 %v8610
  %8644 = vmatprep.subr.bf16.mxu0 %v8613
  %8645 = vmatpush1.bf16.msra.mxu0 %v8612
  %8646 = vmatprep.subr.bf16.mxu0 %v8615
  %8647 = vmatpush1.bf16.msra.mxu0 %v8614
  %8648 = vmatprep.subr.bf16.mxu0 %v8617
  %8649 = vmatpush1.bf16.msra.mxu0 %v8616
  %8650 = vmatprep.subr.bf16.mxu0 %v8619
  %8651 = vmatpush1.bf16.msra.mxu0 %v8618
  %8652 = vmatprep.subr.bf16.mxu0 %v8621
  %8653 = vmatpush1.bf16.msra.mxu0 %v8620
  %8654 = vmatprep.subr.bf16.mxu0 0
  %8655 = vmatpush1.bf16.msra.mxu0 0
  %8656 = vmatprep.subr.bf16.mxu0 0
  %8657 = vmatpush1.bf16.msra.mxu0 0
  %8658 = vmatprep.subr.bf16.mxu0 0
  %8659 = vmatpush1.bf16.msra.mxu0 0
  %8660 = vmatprep.subr.bf16.mxu0 0
  %8661 = vmatpush1.bf16.msra.mxu0 0
  %8662 = vmatprep.subr.bf16.mxu0 0
  %8663 = vmatpush1.bf16.msra.mxu0 0
  %8664 = vmatprep.subr.bf16.mxu0 0
  %8665 = vmatpush1.bf16.msra.mxu0 0
  %8666 = vmatprep.subr.bf16.mxu0 0
  %8667 = vmatpush1.bf16.msra.mxu0 0
  %8668 = vmatprep.subr.bf16.mxu0 0
  %8669 = vmatpush1.bf16.msra.mxu0 0
  %8670 = vmatprep.mubr.bf16.mxu0 0
  %8671 = vmatmul.mubr.bf16.gmra.mrb[0].mxu0 %v251
  %v8672 = vpop.f32.mrb[0].mxu0
  %v8673 = vadd.f32 0.0, %v8672
  %v8674 = vpop.f32.mrb[0].mxu0
  %v8675 = vadd.f32 0.0, %v8674
  %v8676 = vpop.f32.mrb[0].mxu0
  %v8677 = vadd.f32 0.0, %v8676
  %v8678 = vpop.f32.mrb[0].mxu0
  %v8679 = vadd.f32 0.0, %v8678
  %8680 = vmatprep.mubr.bf16.mxu0 0
  %8681 = vmatmul.mubr.bf16.gmra.mrb[0].mxu0 %v252
  %v8682 = vpop.f32.mrb[0].mxu0
  %v8683 = vadd.f32 0.0, %v8682
  %v8684 = vpop.f32.mrb[0].mxu0
  %v8685 = vadd.f32 0.0, %v8684
  %v8686 = vpop.f32.mrb[0].mxu0
  %v8687 = vadd.f32 0.0, %v8686
  %v8688 = vpop.f32.mrb[0].mxu0
  %v8689 = vadd.f32 0.0, %v8688
  %8690 = vmatprep.mubr.bf16.mxu0 0
  %8691 = vmatmul.mubr.bf16.gmra.mrb[0].mxu0 %v253
  %v8692 = vpop.f32.mrb[0].mxu0
  %v8693 = vadd.f32 0.0, %v8692
  %v8694 = vpop.f32.mrb[0].mxu0
  %v8695 = vadd.f32 0.0, %v8694
  %v8696 = vpop.f32.mrb[0].mxu0
  %v8697 = vadd.f32 0.0, %v8696
  %v8698 = vpop.f32.mrb[0].mxu0
  %v8699 = vadd.f32 0.0, %v8698
  %8700 = vmatprep.mubr.bf16.mxu0 0
  %8701 = vmatmul.mubr.bf16.gmra.mrb[0].mxu0 %v254
  %v8702 = vpop.f32.mrb[0].mxu0
  %v8703 = vadd.f32 0.0, %v8702
  %v8704 = vpop.f32.mrb[0].mxu0
  %v8705 = vadd.f32 0.0, %v8704
  %v8706 = vpop.f32.mrb[0].mxu0
  %v8707 = vadd.f32 0.0, %v8706
  %v8708 = vpop.f32.mrb[0].mxu0
  %v8709 = vadd.f32 0.0, %v8708
  %8710 = vmatprep.mubr.bf16.mxu0 0
  %8711 = vmatmul.mubr.bf16.gmra.mrb[0].mxu0 %v255
  %v8712 = vpop.f32.mrb[0].mxu0
  %v8713 = vadd.f32 0.0, %v8712
  %v8714 = vpop.f32.mrb[0].mxu0
  %v8715 = vadd.f32 0.0, %v8714
  %v8716 = vpop.f32.mrb[0].mxu0
  %v8717 = vadd.f32 0.0, %v8716
  %v8718 = vpop.f32.mrb[0].mxu0
  %v8719 = vadd.f32 0.0, %v8718
  %8720 = vmatprep.mubr.bf16.mxu0 0
  %8721 = vmatmul.mubr.bf16.gmra.mrb[0].mxu0 %v256
  %v8722 = vpop.f32.mrb[0].mxu0
  %v8723 = vadd.f32 0.0, %v8722
  %v8724 = vpop.f32.mrb[0].mxu0
  %v8725 = vadd.f32 0.0, %v8724
  %v8726 = vpop.f32.mrb[0].mxu0
  %v8727 = vadd.f32 0.0, %v8726
  %v8728 = vpop.f32.mrb[0].mxu0
  %v8729 = vadd.f32 0.0, %v8728
  %8730 = vmatprep.mubr.bf16.mxu0 0
  %8731 = vmatmul.mubr.bf16.gmra.mrb[0].mxu0 %v257
  %v8732 = vpop.f32.mrb[0].mxu0
  %v8733 = vadd.f32 0.0, %v8732
  %v8734 = vpop.f32.mrb[0].mxu0
  %v8735 = vadd.f32 0.0, %v8734
  %v8736 = vpop.f32.mrb[0].mxu0
  %v8737 = vadd.f32 0.0, %v8736
  %v8738 = vpop.f32.mrb[0].mxu0
  %v8739 = vadd.f32 0.0, %v8738
  %8740 = vmatprep.mubr.bf16.mxu0 0
  %8741 = vmatmul.mubr.bf16.gmra.mrb[0].mxu0 %v258
  %v8742 = vpop.f32.mrb[0].mxu0
  %v8743 = vadd.f32 0.0, %v8742
  %v8744 = vpop.f32.mrb[0].mxu0
  %v8745 = vadd.f32 0.0, %v8744
  %v8746 = vpop.f32.mrb[0].mxu0
  %v8747 = vadd.f32 0.0, %v8746
  %v8748 = vpop.f32.mrb[0].mxu0
  %v8749 = vadd.f32 0.0, %v8748
  %8750 = vmatprep.mubr.bf16.mxu0 0
  %8751 = vmatmul.mubr.bf16.gmra.mrb[0].mxu0 %v259
  %v8752 = vpop.f32.mrb[0].mxu0
  %v8753 = vadd.f32 0.0, %v8752
  %v8754 = vpop.f32.mrb[0].mxu0
  %v8755 = vadd.f32 0.0, %v8754
  %v8756 = vpop.f32.mrb[0].mxu0
  %v8757 = vadd.f32 0.0, %v8756
  %v8758 = vpop.f32.mrb[0].mxu0
  %v8759 = vadd.f32 0.0, %v8758
  %8760 = vmatprep.mubr.bf16.mxu0 0
  %8761 = vmatmul.mubr.bf16.gmra.mrb[0].mxu0 %v260
  %v8762 = vpop.f32.mrb[0].mxu0
  %v8763 = vadd.f32 0.0, %v8762
  %v8764 = vpop.f32.mrb[0].mxu0
  %v8765 = vadd.f32 0.0, %v8764
  %v8766 = vpop.f32.mrb[0].mxu0
  %v8767 = vadd.f32 0.0, %v8766
  %v8768 = vpop.f32.mrb[0].mxu0
  %v8769 = vadd.f32 0.0, %v8768
  %8770 = vmatprep.mubr.bf16.mxu0 0
  %8771 = vmatmul.mubr.bf16.gmra.mrb[0].mxu0 %v261
  %v8772 = vpop.f32.mrb[0].mxu0
  %v8773 = vadd.f32 0.0, %v8772
  %v8774 = vpop.f32.mrb[0].mxu0
  %v8775 = vadd.f32 0.0, %v8774
  %v8776 = vpop.f32.mrb[0].mxu0
  %v8777 = vadd.f32 0.0, %v8776
  %v8778 = vpop.f32.mrb[0].mxu0
  %v8779 = vadd.f32 0.0, %v8778
  %8780 = vmatprep.mubr.bf16.mxu0 0
  %8781 = vmatmul.mubr.bf16.gmra.mrb[0].mxu0 %v262
  %v8782 = vpop.f32.mrb[0].mxu0
  %v8783 = vadd.f32 0.0, %v8782
  %v8784 = vpop.f32.mrb[0].mxu0
  %v8785 = vadd.f32 0.0, %v8784
  %v8786 = vpop.f32.mrb[0].mxu0
  %v8787 = vadd.f32 0.0, %v8786
  %v8788 = vpop.f32.mrb[0].mxu0
  %v8789 = vadd.f32 0.0, %v8788
  %8790 = vmatprep.mubr.bf16.mxu0 0
  %8791 = vmatmul.mubr.bf16.gmra.mrb[0].mxu0 %v263
  %v8792 = vpop.f32.mrb[0].mxu0
  %v8793 = vadd.f32 0.0, %v8792
  %v8794 = vpop.f32.mrb[0].mxu0
  %v8795 = vadd.f32 0.0, %v8794
  %v8796 = vpop.f32.mrb[0].mxu0
  %v8797 = vadd.f32 0.0, %v8796
  %v8798 = vpop.f32.mrb[0].mxu0
  %v8799 = vadd.f32 0.0, %v8798
  %8800 = vmatprep.mubr.bf16.mxu0 0
  %8801 = vmatmul.mubr.bf16.gmra.mrb[0].mxu0 %v264
  %v8802 = vpop.f32.mrb[0].mxu0
  %v8803 = vadd.f32 0.0, %v8802
  %v8804 = vpop.f32.mrb[0].mxu0
  %v8805 = vadd.f32 0.0, %v8804
  %v8806 = vpop.f32.mrb[0].mxu0
  %v8807 = vadd.f32 0.0, %v8806
  %v8808 = vpop.f32.mrb[0].mxu0
  %v8809 = vadd.f32 0.0, %v8808
  %8810 = vmatprep.mubr.bf16.mxu0 0
  %8811 = vmatmul.mubr.bf16.gmra.mrb[0].mxu0 %v265
  %v8812 = vpop.f32.mrb[0].mxu0
  %v8813 = vadd.f32 0.0, %v8812
  %v8814 = vpop.f32.mrb[0].mxu0
  %v8815 = vadd.f32 0.0, %v8814
  %v8816 = vpop.f32.mrb[0].mxu0
  %v8817 = vadd.f32 0.0, %v8816
  %v8818 = vpop.f32.mrb[0].mxu0
  %v8819 = vadd.f32 0.0, %v8818
  %8820 = vmatprep.mubr.bf16.mxu0 0
  %8821 = vmatmul.mubr.bf16.gmra.mrb[0].mxu0 %v266
  %v8822 = vpop.f32.mrb[0].mxu0
  %v8823 = vadd.f32 0.0, %v8822
  %v8824 = vpop.f32.mrb[0].mxu0
  %v8825 = vadd.f32 0.0, %v8824
  %v8826 = vpop.f32.mrb[0].mxu0
  %v8827 = vadd.f32 0.0, %v8826
  %v8828 = vpop.f32.mrb[0].mxu0
  %v8829 = vadd.f32 0.0, %v8828
  %8830 = vmatprep.mubr.bf16.mxu0 0
  %8831 = vmatmul.mubr.bf16.gmra.mrb[0].mxu0 %v267
  %v8832 = vpop.f32.mrb[0].mxu0
  %v8833 = vadd.f32 0.0, %v8832
  %v8834 = vpop.f32.mrb[0].mxu0
  %v8835 = vadd.f32 0.0, %v8834
  %v8836 = vpop.f32.mrb[0].mxu0
  %v8837 = vadd.f32 0.0, %v8836
  %v8838 = vpop.f32.mrb[0].mxu0
  %v8839 = vadd.f32 0.0, %v8838
  %8840 = vmatprep.mubr.bf16.mxu0 0
  %8841 = vmatmul.mubr.bf16.gmra.mrb[0].mxu0 %v268
  %v8842 = vpop.f32.mrb[0].mxu0
  %v8843 = vadd.f32 0.0, %v8842
  %v8844 = vpop.f32.mrb[0].mxu0
  %v8845 = vadd.f32 0.0, %v8844
  %v8846 = vpop.f32.mrb[0].mxu0
  %v8847 = vadd.f32 0.0, %v8846
  %v8848 = vpop.f32.mrb[0].mxu0
  %v8849 = vadd.f32 0.0, %v8848
  %8850 = vmatprep.mubr.bf16.mxu0 0
  %8851 = vmatmul.mubr.bf16.gmra.mrb[0].mxu0 %v269
  %v8852 = vpop.f32.mrb[0].mxu0
  %v8853 = vadd.f32 0.0, %v8852
  %v8854 = vpop.f32.mrb[0].mxu0
  %v8855 = vadd.f32 0.0, %v8854
  %v8856 = vpop.f32.mrb[0].mxu0
  %v8857 = vadd.f32 0.0, %v8856
  %v8858 = vpop.f32.mrb[0].mxu0
  %v8859 = vadd.f32 0.0, %v8858
  %8860 = vmatprep.mubr.bf16.mxu0 0
  %8861 = vmatmul.mubr.bf16.gmra.mrb[0].mxu0 %v270
  %v8862 = vpop.f32.mrb[0].mxu0
  %v8863 = vadd.f32 0.0, %v8862
  %v8864 = vpop.f32.mrb[0].mxu0
  %v8865 = vadd.f32 0.0, %v8864
  %v8866 = vpop.f32.mrb[0].mxu0
  %v8867 = vadd.f32 0.0, %v8866
  %v8868 = vpop.f32.mrb[0].mxu0
  %v8869 = vadd.f32 0.0, %v8868
  %8870 = vmatprep.mubr.bf16.mxu0 0
  %8871 = vmatmul.mubr.bf16.gmra.mrb[0].mxu0 %v271
  %v8872 = vpop.f32.mrb[0].mxu0
  %v8873 = vadd.f32 0.0, %v8872
  %v8874 = vpop.f32.mrb[0].mxu0
  %v8875 = vadd.f32 0.0, %v8874
  %v8876 = vpop.f32.mrb[0].mxu0
  %v8877 = vadd.f32 0.0, %v8876
  %v8878 = vpop.f32.mrb[0].mxu0
  %v8879 = vadd.f32 0.0, %v8878
  %8880 = vmatprep.mubr.bf16.mxu0 0
  %8881 = vmatmul.mubr.bf16.gmra.mrb[0].mxu0 %v272
  %v8882 = vpop.f32.mrb[0].mxu0
  %v8883 = vadd.f32 0.0, %v8882
  %v8884 = vpop.f32.mrb[0].mxu0
  %v8885 = vadd.f32 0.0, %v8884
  %v8886 = vpop.f32.mrb[0].mxu0
  %v8887 = vadd.f32 0.0, %v8886
  %v8888 = vpop.f32.mrb[0].mxu0
  %v8889 = vadd.f32 0.0, %v8888
  %8890 = vmatprep.mubr.bf16.mxu0 0
  %8891 = vmatmul.mubr.bf16.gmra.mrb[0].mxu0 %v273
  %v8892 = vpop.f32.mrb[0].mxu0
  %v8893 = vadd.f32 0.0, %v8892
  %v8894 = vpop.f32.mrb[0].mxu0
  %v8895 = vadd.f32 0.0, %v8894
  %v8896 = vpop.f32.mrb[0].mxu0
  %v8897 = vadd.f32 0.0, %v8896
  %v8898 = vpop.f32.mrb[0].mxu0
  %v8899 = vadd.f32 0.0, %v8898
  %8900 = vmatprep.mubr.bf16.mxu0 0
  %8901 = vmatmul.mubr.bf16.gmra.mrb[0].mxu0 %v274
  %v8902 = vpop.f32.mrb[0].mxu0
  %v8903 = vadd.f32 0.0, %v8902
  %v8904 = vpop.f32.mrb[0].mxu0
  %v8905 = vadd.f32 0.0, %v8904
  %v8906 = vpop.f32.mrb[0].mxu0
  %v8907 = vadd.f32 0.0, %v8906
  %v8908 = vpop.f32.mrb[0].mxu0
  %v8909 = vadd.f32 0.0, %v8908
  %8910 = vmatprep.mubr.bf16.mxu0 0
  %8911 = vmatmul.mubr.bf16.gmra.mrb[0].mxu0 %v275
  %v8912 = vpop.f32.mrb[0].mxu0
  %v8913 = vadd.f32 0.0, %v8912
  %v8914 = vpop.f32.mrb[0].mxu0
  %v8915 = vadd.f32 0.0, %v8914
  %v8916 = vpop.f32.mrb[0].mxu0
  %v8917 = vadd.f32 0.0, %v8916
  %v8918 = vpop.f32.mrb[0].mxu0
  %v8919 = vadd.f32 0.0, %v8918
  %8920 = vmatprep.mubr.bf16.mxu0 0
  %8921 = vmatmul.mubr.bf16.gmra.mrb[0].mxu0 %v276
  %v8922 = vpop.f32.mrb[0].mxu0
  %v8923 = vadd.f32 0.0, %v8922
  %v8924 = vpop.f32.mrb[0].mxu0
  %v8925 = vadd.f32 0.0, %v8924
  %v8926 = vpop.f32.mrb[0].mxu0
  %v8927 = vadd.f32 0.0, %v8926
  %v8928 = vpop.f32.mrb[0].mxu0
  %v8929 = vadd.f32 0.0, %v8928
  %8930 = vmatprep.mubr.bf16.mxu0 0
  %8931 = vmatmul.mubr.bf16.gmra.mrb[0].mxu0 %v277
  %v8932 = vpop.f32.mrb[0].mxu0
  %v8933 = vadd.f32 0.0, %v8932
  %v8934 = vpop.f32.mrb[0].mxu0
  %v8935 = vadd.f32 0.0, %v8934
  %v8936 = vpop.f32.mrb[0].mxu0
  %v8937 = vadd.f32 0.0, %v8936
  %v8938 = vpop.f32.mrb[0].mxu0
  %v8939 = vadd.f32 0.0, %v8938
  %8940 = vmatprep.mubr.bf16.mxu0 0
  %8941 = vmatmul.mubr.bf16.gmra.mrb[0].mxu0 %v278
  %v8942 = vpop.f32.mrb[0].mxu0
  %v8943 = vadd.f32 0.0, %v8942
  %v8944 = vpop.f32.mrb[0].mxu0
  %v8945 = vadd.f32 0.0, %v8944
  %v8946 = vpop.f32.mrb[0].mxu0
  %v8947 = vadd.f32 0.0, %v8946
  %v8948 = vpop.f32.mrb[0].mxu0
  %v8949 = vadd.f32 0.0, %v8948
  %8950 = vmatprep.mubr.bf16.mxu0 0
  %8951 = vmatmul.mubr.bf16.gmra.mrb[0].mxu0 %v279
  %v8952 = vpop.f32.mrb[0].mxu0
  %v8953 = vadd.f32 0.0, %v8952
  %v8954 = vpop.f32.mrb[0].mxu0
  %v8955 = vadd.f32 0.0, %v8954
  %v8956 = vpop.f32.mrb[0].mxu0
  %v8957 = vadd.f32 0.0, %v8956
  %v8958 = vpop.f32.mrb[0].mxu0
  %v8959 = vadd.f32 0.0, %v8958
  %8960 = vmatprep.mubr.bf16.mxu0 0
  %8961 = vmatmul.mubr.bf16.gmra.mrb[0].mxu0 %v280
  %v8962 = vpop.f32.mrb[0].mxu0
  %v8963 = vadd.f32 0.0, %v8962
  %v8964 = vpop.f32.mrb[0].mxu0
  %v8965 = vadd.f32 0.0, %v8964
  %v8966 = vpop.f32.mrb[0].mxu0
  %v8967 = vadd.f32 0.0, %v8966
  %v8968 = vpop.f32.mrb[0].mxu0
  %v8969 = vadd.f32 0.0, %v8968
  %8970 = vmatprep.mubr.bf16.mxu0 0
  %8971 = vmatmul.mubr.bf16.gmra.mrb[0].mxu0 %v281
  %v8972 = vpop.f32.mrb[0].mxu0
  %v8973 = vadd.f32 0.0, %v8972
  %v8974 = vpop.f32.mrb[0].mxu0
  %v8975 = vadd.f32 0.0, %v8974
  %v8976 = vpop.f32.mrb[0].mxu0
  %v8977 = vadd.f32 0.0, %v8976
  %v8978 = vpop.f32.mrb[0].mxu0
  %v8979 = vadd.f32 0.0, %v8978
  %8980 = vmatprep.mubr.bf16.mxu0 0
  %8981 = vmatmul.mubr.bf16.gmra.mrb[0].mxu0 %v282
  %v8982 = vpop.f32.mrb[0].mxu0
  %v8983 = vadd.f32 0.0, %v8982
  %v8984 = vpop.f32.mrb[0].mxu0
  %v8985 = vadd.f32 0.0, %v8984
  %v8986 = vpop.f32.mrb[0].mxu0
  %v8987 = vadd.f32 0.0, %v8986
  %v8988 = vpop.f32.mrb[0].mxu0
  %v8989 = vadd.f32 0.0, %v8988
  %8990 = vdwg.mxu0
  %v8991 = vmax.f32 %v8673, %v8753
  %v8992 = vmax.f32 %v8675, %v8755
  %v8993 = vmax.f32 %v8677, %v8757
  %v8994 = vmax.f32 %v8679, %v8759
  %v8995 = vmax.f32 %v8683, %v8763
  %v8996 = vmax.f32 %v8685, %v8765
  %v8997 = vmax.f32 %v8687, %v8767
  %v8998 = vmax.f32 %v8689, %v8769
  %v8999 = vmax.f32 %v8693, %v8773
  %v9000 = vmax.f32 %v8695, %v8775
  %v9001 = vmax.f32 %v8697, %v8777
  %v9002 = vmax.f32 %v8699, %v8779
  %v9003 = vmax.f32 %v8703, %v8783
  %v9004 = vmax.f32 %v8705, %v8785
  %v9005 = vmax.f32 %v8707, %v8787
  %v9006 = vmax.f32 %v8709, %v8789
  %v9007 = vmax.f32 %v8713, %v8793
  %v9008 = vmax.f32 %v8715, %v8795
  %v9009 = vmax.f32 %v8717, %v8797
  %v9010 = vmax.f32 %v8719, %v8799
  %v9011 = vmax.f32 %v8723, %v8803
  %v9012 = vmax.f32 %v8725, %v8805
  %v9013 = vmax.f32 %v8727, %v8807
  %v9014 = vmax.f32 %v8729, %v8809
  %v9015 = vmax.f32 %v8733, %v8813
  %v9016 = vmax.f32 %v8735, %v8815
  %v9017 = vmax.f32 %v8737, %v8817
  %v9018 = vmax.f32 %v8739, %v8819
  %v9019 = vmax.f32 %v8743, %v8823
  %v9020 = vmax.f32 %v8745, %v8825
  %v9021 = vmax.f32 %v8747, %v8827
  %v9022 = vmax.f32 %v8749, %v8829
  %v9023 = vmax.f32 %v8833, %v8913
  %v9024 = vmax.f32 %v8835, %v8915
  %v9025 = vmax.f32 %v8837, %v8917
  %v9026 = vmax.f32 %v8839, %v8919
  %v9027 = vmax.f32 %v8843, %v8923
  %v9028 = vmax.f32 %v8845, %v8925
  %v9029 = vmax.f32 %v8847, %v8927
  %v9030 = vmax.f32 %v8849, %v8929
  %v9031 = vmax.f32 %v8853, %v8933
  %v9032 = vmax.f32 %v8855, %v8935
  %v9033 = vmax.f32 %v8857, %v8937
  %v9034 = vmax.f32 %v8859, %v8939
  %v9035 = vmax.f32 %v8863, %v8943
  %v9036 = vmax.f32 %v8865, %v8945
  %v9037 = vmax.f32 %v8867, %v8947
  %v9038 = vmax.f32 %v8869, %v8949
  %v9039 = vmax.f32 %v8873, %v8953
  %v9040 = vmax.f32 %v8875, %v8955
  %v9041 = vmax.f32 %v8877, %v8957
  %v9042 = vmax.f32 %v8879, %v8959
  %v9043 = vmax.f32 %v8883, %v8963
  %v9044 = vmax.f32 %v8885, %v8965
  %v9045 = vmax.f32 %v8887, %v8967
  %v9046 = vmax.f32 %v8889, %v8969
  %v9047 = vmax.f32 %v8893, %v8973
  %v9048 = vmax.f32 %v8895, %v8975
  %v9049 = vmax.f32 %v8897, %v8977
  %v9050 = vmax.f32 %v8899, %v8979
  %v9051 = vmax.f32 %v8903, %v8983
  %v9052 = vmax.f32 %v8905, %v8985
  %v9053 = vmax.f32 %v8907, %v8987
  %v9054 = vmax.f32 %v8909, %v8989
  %v9055 = vmax.f32 %v8991, %v9023
  %v9056 = vmax.f32 %v8992, %v9024
  %v9057 = vmax.f32 %v8993, %v9025
  %v9058 = vmax.f32 %v8994, %v9026
  %v9059 = vmax.f32 %v8995, %v9027
  %v9060 = vmax.f32 %v8996, %v9028
  %v9061 = vmax.f32 %v8997, %v9029
  %v9062 = vmax.f32 %v8998, %v9030
  %v9063 = vmax.f32 %v8999, %v9031
  %v9064 = vmax.f32 %v9000, %v9032
  %v9065 = vmax.f32 %v9001, %v9033
  %v9066 = vmax.f32 %v9002, %v9034
  %v9067 = vmax.f32 %v9003, %v9035
  %v9068 = vmax.f32 %v9004, %v9036
  %v9069 = vmax.f32 %v9005, %v9037
  %v9070 = vmax.f32 %v9006, %v9038
  %v9071 = vmax.f32 %v9007, %v9039
  %v9072 = vmax.f32 %v9008, %v9040
  %v9073 = vmax.f32 %v9009, %v9041
  %v9074 = vmax.f32 %v9010, %v9042
  %v9075 = vmax.f32 %v9011, %v9043
  %v9076 = vmax.f32 %v9012, %v9044
  %v9077 = vmax.f32 %v9013, %v9045
  %v9078 = vmax.f32 %v9014, %v9046
  %v9079 = vmax.f32 %v9015, %v9047
  %v9080 = vmax.f32 %v9016, %v9048
  %v9081 = vmax.f32 %v9017, %v9049
  %v9082 = vmax.f32 %v9018, %v9050
  %v9083 = vmax.f32 %v9019, %v9051
  %v9084 = vmax.f32 %v9020, %v9052
  %v9085 = vmax.f32 %v9021, %v9053
  %v9086 = vmax.f32 %v9022, %v9054
  %v9087 = vadd.f32 %v9055, %v847
  %v9088 = vadd.f32 %v9056, %v847
  %v9089 = vadd.f32 %v9057, %v852
  %v9090 = vadd.f32 %v9058, %v852
  %v9091 = vadd.f32 %v9059, %v857
  %v9092 = vadd.f32 %v9060, %v857
  %v9093 = vadd.f32 %v9061, %v862
  %v9094 = vadd.f32 %v9062, %v862
  %v9095 = vadd.f32 %v9063, %v867
  %v9096 = vadd.f32 %v9064, %v867
  %v9097 = vadd.f32 %v9065, %v872
  %v9098 = vadd.f32 %v9066, %v872
  %v9099 = vadd.f32 %v9067, %v877
  %v9100 = vadd.f32 %v9068, %v877
  %v9101 = vadd.f32 %v9069, %v882
  %v9102 = vadd.f32 %v9070, %v882
  %v9103 = vadd.f32 %v9071, %v887
  %v9104 = vadd.f32 %v9072, %v887
  %v9105 = vadd.f32 %v9073, %v892
  %v9106 = vadd.f32 %v9074, %v892
  %v9107 = vadd.f32 %v9075, %v897
  %v9108 = vadd.f32 %v9076, %v897
  %v9109 = vadd.f32 %v9077, %v902
  %v9110 = vadd.f32 %v9078, %v902
  %v9111 = vadd.f32 %v9079, %v907
  %v9112 = vadd.f32 %v9080, %v907
  %v9113 = vadd.f32 %v9081, %v912
  %v9114 = vadd.f32 %v9082, %v912
  %v9115 = vadd.f32 %v9083, %v917
  %v9116 = vadd.f32 %v9084, %v917
  %v9117 = vadd.f32 %v9085, %v922
  %v9118 = vadd.f32 %v9086, %v922
  %v9119 = vmax.f32 %v9087, 0.0
  %v9120 = vmax.f32 %v9088, 0.0
  %v9121 = vmax.f32 %v9089, 0.0
  %v9122 = vmax.f32 %v9090, 0.0
  %v9123 = vmax.f32 %v9091, 0.0
  %v9124 = vmax.f32 %v9092, 0.0
  %v9125 = vmax.f32 %v9093, 0.0
  %v9126 = vmax.f32 %v9094, 0.0
  %v9127 = vmax.f32 %v9095, 0.0
  %v9128 = vmax.f32 %v9096, 0.0
  %v9129 = vmax.f32 %v9097, 0.0
  %v9130 = vmax.f32 %v9098, 0.0
  %v9131 = vmax.f32 %v9099, 0.0
  %v9132 = vmax.f32 %v9100, 0.0
  %v9133 = vmax.f32 %v9101, 0.0
  %v9134 = vmax.f32 %v9102, 0.0
  %v9135 = vmax.f32 %v9103, 0.0
  %v9136 = vmax.f32 %v9104, 0.0
  %v9137 = vmax.f32 %v9105, 0.0
  %v9138 = vmax.f32 %v9106, 0.0
  %v9139 = vmax.f32 %v9107, 0.0
  %v9140 = vmax.f32 %v9108, 0.0
  %v9141 = vmax.f32 %v9109, 0.0
  %v9142 = vmax.f32 %v9110, 0.0
  %v9143 = vmax.f32 %v9111, 0.0
  %v9144 = vmax.f32 %v9112, 0.0
  %v9145 = vmax.f32 %v9113, 0.0
  %v9146 = vmax.f32 %v9114, 0.0
  %v9147 = vmax.f32 %v9115, 0.0
  %v9148 = vmax.f32 %v9116, 0.0
  %v9149 = vmax.f32 %v9117, 0.0
  %v9150 = vmax.f32 %v9118, 0.0
  %s9151 = scalar_lea.vmem %s3, 96
  %v9152 = vld [vmem:[%s9151] sm:$0xf]
  %v9153 = vld [vmem:[%s9151 + $0x4] sm:$0xf]
  %v9154 = vpack.c.bf16 %v9121, %v9119
  %v9155 = vpack.c.bf16 %v9122, %v9120
  %v9156 = vpack.c.bf16 %v9125, %v9123
  %v9157 = vpack.c.bf16 %v9126, %v9124
  %v9158 = vpack.c.bf16 %v9129, %v9127
  %v9159 = vpack.c.bf16 %v9130, %v9128
  %v9160 = vpack.c.bf16 %v9133, %v9131
  %v9161 = vpack.c.bf16 %v9134, %v9132
  %v9162 = vpack.c.bf16 %v9137, %v9135
  %v9163 = vpack.c.bf16 %v9138, %v9136
  %v9164 = vpack.c.bf16 %v9141, %v9139
  %v9165 = vpack.c.bf16 %v9142, %v9140
  %v9166 = vpack.c.bf16 %v9145, %v9143
  %v9167 = vpack.c.bf16 %v9146, %v9144
  %v9168 = vpack.c.bf16 %v9149, %v9147
  %v9169 = vpack.c.bf16 %v9150, %v9148
  %v9172 = vunpack.c.l.b16 %v9152
  %v9173 = vunpack.c.l.b16 %v9153
  %v9174 = vpack.c.b16 %v9173, %v9172
  %9176 = vmatprep.subr.bf16.mxu0 %v9155
  %9177 = vmatpush1.bf16.msra.mxu0 %v9154
  %9178 = vmatprep.subr.bf16.mxu0 %v9157
  %9179 = vmatpush1.bf16.msra.mxu0 %v9156
  %9180 = vmatprep.subr.bf16.mxu0 %v9159
  %9181 = vmatpush1.bf16.msra.mxu0 %v9158
  %9182 = vmatprep.subr.bf16.mxu0 %v9161
  %9183 = vmatpush1.bf16.msra.mxu0 %v9160
  %9184 = vmatprep.subr.bf16.mxu0 %v9163
  %9185 = vmatpush1.bf16.msra.mxu0 %v9162
  %9186 = vmatprep.subr.bf16.mxu0 %v9165
  %9187 = vmatpush1.bf16.msra.mxu0 %v9164
  %9188 = vmatprep.subr.bf16.mxu0 %v9167
  %9189 = vmatpush1.bf16.msra.mxu0 %v9166
  %9190 = vmatprep.subr.bf16.mxu0 %v9169
  %9191 = vmatpush1.bf16.msra.mxu0 %v9168
  %9192 = vmatprep.subr.bf16.mxu0 0
  %9193 = vmatpush1.bf16.msra.mxu0 0
  %9194 = vmatprep.subr.bf16.mxu0 0
  %9195 = vmatpush1.bf16.msra.mxu0 0
  %9196 = vmatprep.subr.bf16.mxu0 0
  %9197 = vmatpush1.bf16.msra.mxu0 0
  %9198 = vmatprep.subr.bf16.mxu0 0
  %9199 = vmatpush1.bf16.msra.mxu0 0
  %9200 = vmatprep.subr.bf16.mxu0 0
  %9201 = vmatpush1.bf16.msra.mxu0 0
  %9202 = vmatprep.subr.bf16.mxu0 0
  %9203 = vmatpush1.bf16.msra.mxu0 0
  %9204 = vmatprep.subr.bf16.mxu0 0
  %9205 = vmatpush1.bf16.msra.mxu0 0
  %9206 = vmatprep.subr.bf16.mxu0 0
  %9207 = vmatpush1.bf16.msra.mxu0 0
  %9208 = vmatprep.mubr.bf16.mxu0 0
  %9209 = vmatmul.mubr.bf16.gmra.mrb[0].mxu0 %v9174
  %v9210 = vpop.f32.mrb[0].mxu0
  %v9211 = vadd.f32 0.0, %v9210
  %v9212 = vpop.f32.mrb[0].mxu0
  %v9213 = vadd.f32 0.0, %v9212
  %v9214 = vpop.f32.mrb[0].mxu0
  %v9215 = vadd.f32 0.0, %v9214
  %v9216 = vpop.f32.mrb[0].mxu0
  %v9217 = vadd.f32 0.0, %v9216
  %9218 = vdwg.mxu0
  %v9219 = vadd.f32 %v8538, %v9211
  %v9220 = vadd.f32 %v8539, %v9213
  %v9221 = vadd.f32 %v8540, %v9215
  %v9222 = vadd.f32 %v8541, %v9217
  %v9223 = vld [vmem:[%s4] sm:$0xff]
  %v9224 = vld [vmem:[%s4 + $0x8] sm:$0xff]
  %9226 = vset.pattern.permute.xlu0 0
  %9227 = vperm.xlu0 %9226, %v9223
  %v9228 = vpop.permute.xlu0 %9227
  %9231 = vset.pattern.permute.xlu0 0
  %9232 = vperm.xlu0 %9231, %v9224
  %v9233 = vpop.permute.xlu0 %9232
  %v9235 = vadd.f32 %v9219, %v9228
  %v9236 = vadd.f32 %v9220, %v9228
  %v9237 = vadd.f32 %v9221, %v9233
  %v9238 = vadd.f32 %v9222, %v9233
  %v9239 = vmax.f32 %v9235, 0.0
  %v9240 = vmax.f32 %v9236, 0.0
  %v9241 = vmax.f32 %v9237, 0.0
  %v9242 = vmax.f32 %v9238, 0.0
  %v9243 = vld [vmem:[%s5] sm:$0xf]
  %v9244 = vld [vmem:[%s5 + $0x4] sm:$0x1]
  %v9245 = vpack.c.bf16 %v9241, %v9239
  %v9246 = vpack.c.bf16 %v9242, %v9240
  %v9247 = vld [vmem:[%s6] sm:$0xff]
  %v9248 = vld [vmem:[%s6 + $0x8] sm:$0x3]
  %9250 = vset.pattern.permute.xlu0 0
  %9251 = vperm.xlu0 %9250, %v9247
  %v9252 = vpop.permute.xlu0 %9251
  %9255 = vset.pattern.permute.xlu0 0
  %9256 = vperm.xlu0 %9255, %v9248
  %v9257 = vpop.permute.xlu0 %9256
  %v9261 = vunpack.c.l.b16 %v9243
  %v9262 = vunpack.c.l.b16 %v9244
  %v9263 = vpack.c.b16 %v9262, %v9261
  %vm9264 = vcmask 130048
  %v9266 = vsel %vm9264, %v9263, 0
  %9268 = vmatprep.subr.bf16.mxu0 %v9246
  %9269 = vmatpush1.bf16.msra.mxu0 %v9245
  %9270 = vmatprep.subr.bf16.mxu0 0
  %9271 = vmatpush1.bf16.msra.mxu0 0
  %9272 = vmatprep.subr.bf16.mxu0 0
  %9273 = vmatpush1.bf16.msra.mxu0 0
  %9274 = vmatprep.subr.bf16.mxu0 0
  %9275 = vmatpush1.bf16.msra.mxu0 0
  %9276 = vmatprep.subr.bf16.mxu0 0
  %9277 = vmatpush1.bf16.msra.mxu0 0
  %9278 = vmatprep.subr.bf16.mxu0 0
  %9279 = vmatpush1.bf16.msra.mxu0 0
  %9280 = vmatprep.subr.bf16.mxu0 0
  %9281 = vmatpush1.bf16.msra.mxu0 0
  %9282 = vmatprep.subr.bf16.mxu0 0
  %9283 = vmatpush1.bf16.msra.mxu0 0
  %9284 = vmatprep.subr.bf16.mxu0 0
  %9285 = vmatpush1.bf16.msra.mxu0 0
  %9286 = vmatprep.subr.bf16.mxu0 0
  %9287 = vmatpush1.bf16.msra.mxu0 0
  %9288 = vmatprep.subr.bf16.mxu0 0
  %9289 = vmatpush1.bf16.msra.mxu0 0
  %9290 = vmatprep.subr.bf16.mxu0 0
  %9291 = vmatpush1.bf16.msra.mxu0 0
  %9292 = vmatprep.subr.bf16.mxu0 0
  %9293 = vmatpush1.bf16.msra.mxu0 0
  %9294 = vmatprep.subr.bf16.mxu0 0
  %9295 = vmatpush1.bf16.msra.mxu0 0
  %9296 = vmatprep.subr.bf16.mxu0 0
  %9297 = vmatpush1.bf16.msra.mxu0 0
  %9298 = vmatprep.subr.bf16.mxu0 0
  %9299 = vmatpush1.bf16.msra.mxu0 0
  %9300 = vmatprep.mubr.bf16.mxu0 0
  %9301 = vmatmul.mubr.bf16.gmra.mrb[0].mxu0 %v9266
  %v9302 = vpop.f32.mrb[0].mxu0
  %v9303 = vadd.f32 %v9252, %v9302
  %v9304 = vpop.f32.mrb[0].mxu0
  %v9305 = vadd.f32 %v9252, %v9304
  %v9306 = vpop.f32.mrb[0].mxu0
  %v9307 = vadd.f32 %v9257, %v9306
  %v9308 = vpop.f32.mrb[0].mxu0
  %v9309 = vadd.f32 %v9257, %v9308
  %9310 = vdwg.mxu0
  %9311 = vst [vmem:[%s7] sm:$0xff] %v9303
  %9312 = vst [vmem:[%s7 + $0x8] sm:$0xff] %v9305
  %9313 = vst [vmem:[%s7 + $0x10] sm:$0x3] %v9307
  %9314 = vst [vmem:[%s7 + $0x18] sm:$0x3] %v9309
  // Predicated region
  $region30: #{mnist_forward.1} parent=0 // pred_check
    _
  $region31: #{mnist_forward.1} parent=0 // pred_check_branch
    %9316 = sbr.rel (0) target = $region33
  $region32: #{mnist_forward.1} parent=0 // pred_region
    _
  $region33: #{mnist_forward.1} parent=0 // pred_fallthru
    _
  // Predicated region
  $region34: #{mnist_forward.1} parent=0 // pred_check
    _
  $region35: #{mnist_forward.1} parent=0 // pred_check_branch
    %9318 = sbr.rel (0) target = $region37
  $region36: #{mnist_forward.1} parent=0 // pred_region
    _
  $region37: #{mnist_forward.1} parent=0 // pred_fallthru
    _

</llo_original>
